<compile_context>
chip_gen: v7x
topology: tpu7x:2x2x1
jax: 0.10.0
libtpu: 0.0.40
codegen_flags: <defaults>
</compile_context>

<pallas_src>
import functools

import jax
import jax.numpy as jnp
from jax import lax
from jax.experimental import pallas as pl
from jax.experimental.pallas import tpu as pltpu

LEAKY_SLOPE = 1.0   # nn.LeakyReLU(True) -> negative_slope = True == 1.0
BN_EPS = 1e-5


def _round_up(x, m):
  return (x + m - 1) // m * m


def _pick_panel_rows(H, W, target_pixels=256):
  """Largest divisor of H whose panel (rows * W output pixels) <= target.

  ~256 pixels per matmul fills the MXU row dimension on v6e/v7x (2x the v5e
  one) while keeping the per-panel im2col staging buffer small.
  """
  best = 1
  for ph in range(1, H + 1):
    if H % ph == 0 and ph * W <= max(target_pixels, W):
      best = ph
  return best


# ---------------------------------------------------------------------------
# Fused ResidualGroup kernel (one image per grid step)
# ---------------------------------------------------------------------------
def _residual_group_kernel(
    x_ref,                                   # (H, W, C)  group input, f32
    w1_ref, s1_ref, t1_ref,                  # (B, 9C, C) cdt, (B,1,C) f32 x2
    w2_ref, s2_ref, t2_ref,                  # conv2 of each RCAB
    cw1_ref, cs1_ref, ct1_ref,               # CA squeeze 1x1: (B,C,Cr), (B,1,Cr)x2
    cw2_ref, cs2_ref, ct2_ref,               # CA excite 1x1: (B,Cr,C), (B,1,C)x2
    wt_ref, bt_ref,                          # tail conv: (9C, C) cdt, (1, C) f32
    o_ref,                                   # (H, W, C)
    xp_ref,                                  # VMEM (H+2, Wp, C) cdt   halo scratch
    h_ref,                                   # VMEM (H, W, C) f32      conv output
    cur_ref,                                 # VMEM (H, W, C) f32      running map
    *, H, W, n_blocks, panel_rows):
  C = x_ref.shape[-1]
  Wp = xp_ref.shape[1]
  PH = panel_rows
  n_panels = H // PH
  cdt = w1_ref.dtype                         # matmul-input dtype (bf16 or f32)

  # Zero ONLY the 1-pixel halo border (O(perimeter)).  Re-done every grid step
  # (not @pl.when(pid == 0)) so it is correct when the batch axis is split
  # across TensorCores.  Columns beyond W+1 in the padded scratch are never
  # read, so they need no initialisation.
  zrow = jnp.zeros((1, Wp, C), cdt)
  xp_ref[0:1, :, :] = zrow
  xp_ref[H + 1:H + 2, :, :] = zrow
  zcol = jnp.zeros((H + 2, 1, C), cdt)
  xp_ref[:, 0:1, :] = zcol
  xp_ref[:, W + 1:W + 2, :] = zcol

  def stage(src_f32):
    # Stage the current feature map into the halo scratch interior.
    xp_ref[1:H + 1, 1:W + 1, :] = src_f32.astype(cdt)

  def conv_pass(w, scale, shift, write_panel):
    """Panelised 3x3 'same' conv of the map staged in xp_ref's interior.

    One panel = PH output rows: (PH*W, 9C) im2col patch -> single MXU matmul
    (K = 9C, f32 accumulation) -> fused per-channel scale/shift epilogue ->
    write_panel(row0, (PH, W, C) f32 result).
    """
    def body(p, carry):
      r0 = pl.multiple_of(p * PH, PH)
      slab = xp_ref[pl.ds(r0, PH + 2), :, :]              # (PH+2, Wp, C)
      taps = [slab[dy:dy + PH, dx:dx + W, :]              # (PH, W, C) each
              for dy in range(3) for dx in range(3)]
      patch = jnp.concatenate(taps, axis=-1).reshape(PH * W, 9 * C)
      out = jnp.dot(patch, w, preferred_element_type=jnp.float32)
      if scale is not None:
        out = out * scale
      out = out + shift
      write_panel(r0, out.reshape(PH, W, C))
      return carry
    lax.fori_loop(0, n_panels, body, 0)

  def to_h(r0, v):
    h_ref[pl.ds(r0, PH), :, :] = v

  def to_out(r0, v):                                      # tail: add group skip
    xin = x_ref[pl.ds(r0, PH), :, :].astype(jnp.float32)
    o_ref[pl.ds(r0, PH), :, :] = (v + xin).astype(o_ref.dtype)

  # Running feature map lives in a VMEM scratch; the group input is re-read
  # per panel at the tail for the skip, so no whole-map x0 value stays live.
  cur_ref[...] = x_ref[...].astype(jnp.float32)

  def rcab(blk, carry):                                   # one fused RCAB
    # conv1 + folded BN.  LeakyReLU(negative_slope=True == 1.0) is identity.
    stage(cur_ref[...])
    conv_pass(w1_ref[blk], s1_ref[blk], t1_ref[blk], to_h)
    # conv2 + folded BN.
    stage(h_ref[...])
    conv_pass(w2_ref[blk], s2_ref[blk], t2_ref[blk], to_h)
    # CALayer: GAP -> 1x1 conv/BN/ReLU -> 1x1 conv/BN/sigmoid -> channel gate.
    y = jnp.mean(h_ref[...], axis=(0, 1)).reshape(1, C)
    z = jnp.dot(y.astype(cdt), cw1_ref[blk], preferred_element_type=jnp.float32)
    z = jnp.maximum(z * cs1_ref[blk] + ct1_ref[blk], 0.0)
    g = jnp.dot(z.astype(cdt), cw2_ref[blk], preferred_element_type=jnp.float32)
    g = jax.nn.sigmoid(g * cs2_ref[blk] + ct2_ref[blk])   # (1, C)
    cur_ref[...] = h_ref[...] * g.reshape(1, 1, C) + cur_ref[...]
    return carry

  # fori_loop (not a Python unroll) keeps code size and live ranges flat at
  # realistic n_resblocks (e.g. 20).
  lax.fori_loop(0, n_blocks, rcab, 0)

  # Tail conv (bias, no BN) + group skip, written straight to the output.
  stage(cur_ref[...])
  conv_pass(wt_ref[...], None, bt_ref[...], to_out)


# ---------------------------------------------------------------------------
# pallas_call wrapper (NCHW in / NCHW out, like the PyTorch module)
# ---------------------------------------------------------------------------
def _vmem_limit_bytes(packed, H, W, C, PH, Wp):
  f32 = 4
  cdt_b = packed["w1"].dtype.itemsize
  weights = sum(int(v.size) * v.dtype.itemsize for v in packed.values())
  io = 2 * 2 * H * W * C * f32                       # x + o blocks, double-buffered
  scratch = (H + 2) * Wp * C * cdt_b + 2 * H * W * C * f32
  patch = 2 * PH * W * 9 * C * cdt_b                 # transient im2col (with slack)
  need = int(1.5 * (io + weights + scratch + patch)) + (8 << 20)
  return max(32 << 20, min(need, 56 << 20))          # stay under v7x's 64 MiB


def residual_group_forward(x_nchw, packed, *, panel_target_pixels=256):
  x = jnp.transpose(x_nchw, (0, 2, 3, 1)).astype(jnp.float32)   # NHWC
  N, H, W, C = x.shape
  B = packed["w1"].shape[0]
  Cr = packed["cw1"].shape[-1]
  cdt = packed["w1"].dtype
  PH = _pick_panel_rows(H, W, panel_target_pixels)
  Wp = _round_up(W + 2, 8)            # sublane-pad the halo scratch width

  def rep(shape):
    # Grid-invariant operand: constant index_map + single buffering so the
    # weight stacks are not duplicated in VMEM.
    zeros = (0,) * len(shape)
    return pl.BlockSpec(shape, lambda n, _z=zeros: _z,
                        pipeline_mode=pl.Buffered(1))

  kernel = functools.partial(_residual_group_kernel, H=H, W=W,
                             n_blocks=B, panel_rows=PH)
  out = pl.pallas_call(
      kernel,
      out_shape=jax.ShapeDtypeStruct((N, H, W, C), x.dtype),
      grid=(N,),
      in_specs=[
          pl.BlockSpec((None, H, W, C), lambda n: (n, 0, 0, 0)),
          rep((B, 9 * C, C)), rep((B, 1, C)), rep((B, 1, C)),
          rep((B, 9 * C, C)), rep((B, 1, C)), rep((B, 1, C)),
          rep((B, C, Cr)), rep((B, 1, Cr)), rep((B, 1, Cr)),
          rep((B, Cr, C)), rep((B, 1, C)), rep((B, 1, C)),
          rep((9 * C, C)), rep((1, C)),
      ],
      out_specs=pl.BlockSpec((None, H, W, C), lambda n: (n, 0, 0, 0)),
      scratch_shapes=[
          pltpu.VMEM((H + 2, Wp, C), cdt),          # halo scratch
          pltpu.VMEM((H, W, C), jnp.float32),       # conv output
          pltpu.VMEM((H, W, C), jnp.float32),       # running feature map
      ],
      compiler_params=pltpu.CompilerParams(
          dimension_semantics=("parallel",),         # batch across TensorCores
          vmem_limit_bytes=_vmem_limit_bytes(packed, H, W, C, PH, Wp)),
  )(x,
    packed["w1"], packed["s1"], packed["t1"],
    packed["w2"], packed["s2"], packed["t2"],
    packed["cw1"], packed["cs1"], packed["ct1"],
    packed["cw2"], packed["cs2"], packed["ct2"],
    packed["wt"], packed["bt"])
  return jnp.transpose(out, (0, 3, 1, 2))                        # -> NCHW


# ---------------------------------------------------------------------------
# Parameters: raw (mirrors the PyTorch module) + packing for the kernel
# ---------------------------------------------------------------------------
def _bn_params(key, c):
  kg, kb, km, kv = jax.random.split(key, 4)
  return {
      "gamma": 1.0 + 0.1 * jax.random.normal(kg, (c,), jnp.float32),
      "beta": 0.1 * jax.random.normal(kb, (c,), jnp.float32),
      "mean": 0.1 * jax.random.normal(km, (c,), jnp.float32),
      "var": jax.random.uniform(kv, (c,), jnp.float32, 0.5, 1.5),
  }


def _bn_fold(bn):
  scale = bn["gamma"] / jnp.sqrt(bn["var"] + BN_EPS)
  shift = bn["beta"] - bn["mean"] * scale
  return scale, shift


def init_params(key, n_feat, reduction, n_resblocks):
  c = n_feat
  cr = max(n_feat // reduction, 1)
  conv_std = (9 * c) ** -0.5
  params = {"blocks": []}
  for _ in range(n_resblocks):
    key, k0, k1, k2, k3, k4, k5, k6, k7, k8, k9, k10, k11 = (
        jax.random.split(key, 13))
    blk = {
        "w1": conv_std * jax.random.normal(k0, (3, 3, c, c), jnp.float32),
        "b1": 0.05 * jax.random.normal(k1, (c,), jnp.float32),
        "bn1": _bn_params(k2, c),
        "w2": conv_std * jax.random.normal(k3, (3, 3, c, c), jnp.float32),
        "b2": 0.05 * jax.random.normal(k4, (c,), jnp.float32),
        "bn2": _bn_params(k5, c),
        "ca": {
            "w1": (c ** -0.5) * jax.random.normal(k6, (c, cr), jnp.float32),
            "b1": 0.05 * jax.random.normal(k7, (cr,), jnp.float32),
            "bn1": _bn_params(k8, cr),
            "w2": (cr ** -0.5) * jax.random.normal(k9, (cr, c), jnp.float32),
            "b2": 0.05 * jax.random.normal(k10, (c,), jnp.float32),
            "bn2": _bn_params(k11, c),
        },
    }
    params["blocks"].append(blk)
  key, kt0, kt1 = jax.random.split(key, 3)
  params["wt"] = conv_std * jax.random.normal(kt0, (3, 3, c, c), jnp.float32)
  params["bt"] = 0.05 * jax.random.normal(kt1, (c,), jnp.float32)
  return params


def pack_params(params, weight_dtype=jnp.bfloat16):
  """Fold conv bias into the BN shift, reshape conv weights to im2col (9C, C)
  layout, cast matmul weights to `weight_dtype` (bf16 halves HBM/VMEM; f32
  accumulation is kept in-kernel), and stack per-block tensors."""
  C = params["wt"].shape[-1]

  def fold(bias, bn):
    s, t = _bn_fold(bn)
    return s.reshape(1, -1), (bias * s + t).reshape(1, -1)

  acc = {k: [] for k in ("w1", "s1", "t1", "w2", "s2", "t2",
                         "cw1", "cs1", "ct1", "cw2", "cs2", "ct2")}
  for blk in params["blocks"]:
    acc["w1"].append(blk["w1"].reshape(9 * C, C).astype(weight_dtype))
    s, t = fold(blk["b1"], blk["bn1"]); acc["s1"].append(s); acc["t1"].append(t)
    acc["w2"].append(blk["w2"].reshape(9 * C, C).astype(weight_dtype))
    s, t = fold(blk["b2"], blk["bn2"]); acc["s2"].append(s); acc["t2"].append(t)
    ca = blk["ca"]
    acc["cw1"].append(ca["w1"].astype(weight_dtype))
    s, t = fold(ca["b1"], ca["bn1"]); acc["cs1"].append(s); acc["ct1"].append(t)
    acc["cw2"].append(ca["w2"].astype(weight_dtype))
    s, t = fold(ca["b2"], ca["bn2"]); acc["cs2"].append(s); acc["ct2"].append(t)

  packed = {k: jnp.stack(v) for k, v in acc.items()}
  packed["wt"] = params["wt"].reshape(9 * C, C).astype(weight_dtype)
  packed["bt"] = params["bt"].reshape(1, C)
  return packed


# ---------------------------------------------------------------------------
# Pure-JAX reference (same math, unfused) for correctness checking
# ---------------------------------------------------------------------------
def _conv_ref(x, w, b):
  y = jax.lax.conv_general_dilated(
      x, w, (1, 1), "SAME",
      dimension_numbers=("NHWC", "HWIO", "NHWC"),
      precision=jax.lax.Precision.HIGHEST)
  return y + b.reshape(1, 1, 1, -1)


def _bn_ref(x, bn):
  s, t = _bn_fold(bn)
  return x * s + t


def ref_forward(x_nchw, params):
  x = jnp.transpose(x_nchw, (0, 2, 3, 1)).astype(jnp.float32)
  out = x
  for blk in params["blocks"]:
    h = _bn_ref(_conv_ref(out, blk["w1"], blk["b1"]), blk["bn1"])
    h = jnp.where(h >= 0, h, LEAKY_SLOPE * h)      # LeakyReLU(True): slope 1.0
    h = _bn_ref(_conv_ref(h, blk["w2"], blk["b2"]), blk["bn2"])
    ca = blk["ca"]
    y = jnp.mean(h, axis=(1, 2), keepdims=True)
    z = jnp.einsum("nijc,co->nijo", y, ca["w1"],
                   precision=jax.lax.Precision.HIGHEST) + ca["b1"]
    z = jnp.maximum(_bn_ref(z, ca["bn1"]), 0.0)
    g = jnp.einsum("nijc,co->nijo", z, ca["w2"],
                   precision=jax.lax.Precision.HIGHEST) + ca["b2"]
    g = jax.nn.sigmoid(_bn_ref(g, ca["bn2"]))
    out = h * g + out
  res = _conv_ref(out, params["wt"], params["bt"]) + x
  return jnp.transpose(res, (0, 3, 1, 2))


if __name__ == "__main__":
  key = jax.random.PRNGKey(0)
  kx, kp = jax.random.split(key)

  # Small-but-representative RCAN config.  n_feat = 128 puts channels exactly
  # on the 128-lane axis; H=32, W=16 gives two 256-pixel conv panels so the
  # panelised-conv loop and the fori_loop over RCABs are both exercised.
  N, C, H, W = 2, 128, 32, 16
  reduction, n_resblocks = 16, 2

  x = jax.random.normal(kx, (N, C, H, W), jnp.float32)         # NCHW like torch
  raw = init_params(kp, C, reduction, n_resblocks)
  ref = ref_forward(x, raw)

  fwd = jax.jit(residual_group_forward)

  # f32 weights / f32 im2col patch: tight numerical check against the ref.
  out_f32 = jax.block_until_ready(fwd(x, pack_params(raw, jnp.float32)))
  assert out_f32.shape == x.shape and out_f32.dtype == x.dtype
  assert bool(jnp.all(jnp.isfinite(out_f32)))
  err = float(jnp.max(jnp.abs(out_f32 - ref)))
  assert err < 2e-3, f"f32 max abs error {err}"

  # bf16 matmul inputs (default perf mode), f32 accumulation: looser check
  # (tolerance reflects bf16 operand quantisation through 5 chained convs).
  out_bf = jax.block_until_ready(fwd(x, pack_params(raw)))
  assert out_bf.shape == x.shape and out_bf.dtype == x.dtype
  assert bool(jnp.all(jnp.isfinite(out_bf)))
  err_bf = float(jnp.max(jnp.abs(out_bf - ref)))
  assert err_bf < 1e-1, f"bf16 max abs error {err_bf}"

  print("KERNEL_OK")
</pallas_src>

<mosaic_0001>
module attributes {stable_mosaic.version = 11 : i64} {
  func.func @_residual_group_kernel(%arg0: i32, %arg1: memref<1x32x16x128xf32, #tpu.memory_space<vmem>>, %arg2: memref<2x1152x128xf32, #tpu.memory_space<vmem>>, %arg3: memref<2x1x128xf32, #tpu.memory_space<vmem>>, %arg4: memref<2x1x128xf32, #tpu.memory_space<vmem>>, %arg5: memref<2x1152x128xf32, #tpu.memory_space<vmem>>, %arg6: memref<2x1x128xf32, #tpu.memory_space<vmem>>, %arg7: memref<2x1x128xf32, #tpu.memory_space<vmem>>, %arg8: memref<2x128x8xf32, #tpu.memory_space<vmem>>, %arg9: memref<2x1x8xf32, #tpu.memory_space<vmem>>, %arg10: memref<2x1x8xf32, #tpu.memory_space<vmem>>, %arg11: memref<2x8x128xf32, #tpu.memory_space<vmem>>, %arg12: memref<2x1x128xf32, #tpu.memory_space<vmem>>, %arg13: memref<2x1x128xf32, #tpu.memory_space<vmem>>, %arg14: memref<1152x128xf32, #tpu.memory_space<vmem>>, %arg15: memref<1x128xf32, #tpu.memory_space<vmem>>, %arg16: memref<1x32x16x128xf32, #tpu.memory_space<vmem>>, %arg17: memref<34x24x128xf32, #tpu.memory_space<vmem>>, %arg18: memref<32x16x128xf32, #tpu.memory_space<vmem>>, %arg19: memref<32x16x128xf32, #tpu.memory_space<vmem>>) attributes {dimension_semantics = [#tpu.dimension_semantics<parallel>], iteration_bounds = array<i64: 2>, scalar_prefetch = 0 : i64, scratch_operands = 3 : i64, tpu.core_type = #tpu.core_type<tc>, window_params = [{transform_indices = @transform_0, window_bounds = array<i64: 1, 32, 16, 128>}, {pipeline_mode = #tpu.pipeline_mode<synchronous>, transform_indices = @transform_1, window_bounds = array<i64: 2, 1152, 128>}, {pipeline_mode = #tpu.pipeline_mode<synchronous>, transform_indices = @transform_2, window_bounds = array<i64: 2, 1, 128>}, {pipeline_mode = #tpu.pipeline_mode<synchronous>, transform_indices = @transform_3, window_bounds = array<i64: 2, 1, 128>}, {pipeline_mode = #tpu.pipeline_mode<synchronous>, transform_indices = @transform_4, window_bounds = array<i64: 2, 1152, 128>}, {pipeline_mode = #tpu.pipeline_mode<synchronous>, transform_indices = @transform_5, window_bounds = array<i64: 2, 1, 128>}, {pipeline_mode = #tpu.pipeline_mode<synchronous>, transform_indices = @transform_6, window_bounds = array<i64: 2, 1, 128>}, {pipeline_mode = #tpu.pipeline_mode<synchronous>, transform_indices = @transform_7, window_bounds = array<i64: 2, 128, 8>}, {pipeline_mode = #tpu.pipeline_mode<synchronous>, transform_indices = @transform_8, window_bounds = array<i64: 2, 1, 8>}, {pipeline_mode = #tpu.pipeline_mode<synchronous>, transform_indices = @transform_9, window_bounds = array<i64: 2, 1, 8>}, {pipeline_mode = #tpu.pipeline_mode<synchronous>, transform_indices = @transform_10, window_bounds = array<i64: 2, 8, 128>}, {pipeline_mode = #tpu.pipeline_mode<synchronous>, transform_indices = @transform_11, window_bounds = array<i64: 2, 1, 128>}, {pipeline_mode = #tpu.pipeline_mode<synchronous>, transform_indices = @transform_12, window_bounds = array<i64: 2, 1, 128>}, {pipeline_mode = #tpu.pipeline_mode<synchronous>, transform_indices = @transform_13, window_bounds = array<i64: 1152, 128>}, {pipeline_mode = #tpu.pipeline_mode<synchronous>, transform_indices = @transform_14, window_bounds = array<i64: 1, 128>}, {transform_indices = @transform_15, window_bounds = array<i64: 1, 32, 16, 128>}]} {
    %cst = arith.constant 0.000000e+00 : f32
    %0 = vector.broadcast %cst : f32 to vector<1x24x128xf32>
    %c0 = arith.constant 0 : index
    %c0_0 = arith.constant 0 : index
    %c0_1 = arith.constant 0 : index
    %1 = vector.load %arg17[%c0, %c0_0, %c0_1] : memref<34x24x128xf32, #tpu.memory_space<vmem>>, vector<1x24x128xf32>
    tpu.vector_store %arg17[%c0, %c0_0, %c0_1], %0 {strides = array<i32>} : memref<34x24x128xf32, #tpu.memory_space<vmem>>, vector<1x24x128xf32>,
    %c33 = arith.constant 33 : index
    %c0_2 = arith.constant 0 : index
    %c0_3 = arith.constant 0 : index
    %2 = vector.load %arg17[%c33, %c0_2, %c0_3] : memref<34x24x128xf32, #tpu.memory_space<vmem>>, vector<1x24x128xf32>
    tpu.vector_store %arg17[%c33, %c0_2, %c0_3], %0 {strides = array<i32>} : memref<34x24x128xf32, #tpu.memory_space<vmem>>, vector<1x24x128xf32>,
    %cst_4 = arith.constant 0.000000e+00 : f32
    %3 = vector.broadcast %cst_4 : f32 to vector<34x1x128xf32>
    %c0_5 = arith.constant 0 : index
    %c0_6 = arith.constant 0 : index
    %c0_7 = arith.constant 0 : index
    %4 = vector.load %arg17[%c0_5, %c0_6, %c0_7] : memref<34x24x128xf32, #tpu.memory_space<vmem>>, vector<34x1x128xf32>
    tpu.vector_store %arg17[%c0_5, %c0_6, %c0_7], %3 {strides = array<i32>} : memref<34x24x128xf32, #tpu.memory_space<vmem>>, vector<34x1x128xf32>,
    %c0_8 = arith.constant 0 : index
    %c17 = arith.constant 17 : index
    %c0_9 = arith.constant 0 : index
    %5 = vector.load %arg17[%c0_8, %c17, %c0_9] : memref<34x24x128xf32, #tpu.memory_space<vmem>>, vector<34x1x128xf32>
    tpu.vector_store %arg17[%c0_8, %c17, %c0_9], %3 {strides = array<i32>} : memref<34x24x128xf32, #tpu.memory_space<vmem>>, vector<34x1x128xf32>,
    %c0_10 = arith.constant 0 : index
    %c0_11 = arith.constant 0 : index
    %c0_12 = arith.constant 0 : index
    %c0_13 = arith.constant 0 : index
    %6 = vector.load %arg1[%c0_10, %c0_11, %c0_12, %c0_13] : memref<1x32x16x128xf32, #tpu.memory_space<vmem>>, vector<1x32x16x128xf32>
    %7 = vector.shape_cast %6 : vector<1x32x16x128xf32> to vector<32x16x128xf32>
    %c0_14 = arith.constant 0 : index
    %c0_15 = arith.constant 0 : index
    %c0_16 = arith.constant 0 : index
    %8 = vector.load %arg19[%c0_14, %c0_15, %c0_16] : memref<32x16x128xf32, #tpu.memory_space<vmem>>, vector<32x16x128xf32>
    tpu.vector_store %arg19[%c0_14, %c0_15, %c0_16], %7 {strides = array<i32>} : memref<32x16x128xf32, #tpu.memory_space<vmem>>, vector<32x16x128xf32>,
    %c0_i32 = arith.constant 0 : i32
    %c2_i32 = arith.constant 2 : i32
    %9 = arith.addi %c0_i32, %c2_i32 : i32
    %c1_i32 = arith.constant 1 : i32
    scf.for %arg20 = %c0_i32 to %9 step %c1_i32  : i32 {
      %c0_31 = arith.constant 0 : index
      %c0_32 = arith.constant 0 : index
      %c0_33 = arith.constant 0 : index
      %15 = vector.load %arg19[%c0_31, %c0_32, %c0_33] : memref<32x16x128xf32, #tpu.memory_space<vmem>>, vector<32x16x128xf32>
      %c1_34 = arith.constant 1 : index
      %c1_35 = arith.constant 1 : index
      %c0_36 = arith.constant 0 : index
      %16 = vector.load %arg17[%c1_34, %c1_35, %c0_36] : memref<34x24x128xf32, #tpu.memory_space<vmem>>, vector<32x16x128xf32>
      tpu.vector_store %arg17[%c1_34, %c1_35, %c0_36], %15 {strides = array<i32>} : memref<34x24x128xf32, #tpu.memory_space<vmem>>, vector<32x16x128xf32>,
      %17 = arith.index_cast %arg20 : i32 to index
      %c0_37 = arith.constant 0 : index
      %c0_38 = arith.constant 0 : index
      %18 = vector.load %arg2[%17, %c0_37, %c0_38] : memref<2x1152x128xf32, #tpu.memory_space<vmem>>, vector<1x1152x128xf32>
      %19 = vector.shape_cast %18 : vector<1x1152x128xf32> to vector<1152x128xf32>
      %20 = arith.index_cast %arg20 : i32 to index
      %c0_39 = arith.constant 0 : index
      %c0_40 = arith.constant 0 : index
      %21 = vector.load %arg3[%20, %c0_39, %c0_40] : memref<2x1x128xf32, #tpu.memory_space<vmem>>, vector<1x1x128xf32>
      %22 = vector.shape_cast %21 : vector<1x1x128xf32> to vector<1x128xf32>
      %23 = arith.index_cast %arg20 : i32 to index
      %c0_41 = arith.constant 0 : index
      %c0_42 = arith.constant 0 : index
      %24 = vector.load %arg4[%23, %c0_41, %c0_42] : memref<2x1x128xf32, #tpu.memory_space<vmem>>, vector<1x1x128xf32>
      %25 = vector.shape_cast %24 : vector<1x1x128xf32> to vector<1x128xf32>
      %c0_i32_43 = arith.constant 0 : i32
      %c2_i32_44 = arith.constant 2 : i32
      %26 = arith.addi %c0_i32_43, %c2_i32_44 : i32
      %c1_i32_45 = arith.constant 1 : i32
      scf.for %arg21 = %c0_i32_43 to %26 step %c1_i32_45  : i32 {
        %c16_i32 = arith.constant 16 : i32
        %82 = arith.muli %arg21, %c16_i32 : i32
        %83 = tpu.assume_multiple %82, 16 : i32
        %84 = arith.index_cast %83 : i32 to index
        %c0_93 = arith.constant 0 : index
        %c0_94 = arith.constant 0 : index
        %85 = vector.load %arg17[%84, %c0_93, %c0_94] : memref<34x24x128xf32, #tpu.memory_space<vmem>>, vector<18x24x128xf32>
        %86 = vector.extract_strided_slice %85 {offsets = [0, 0, 0], sizes = [16, 16, 128], strides = [1, 1, 1]} : vector<18x24x128xf32> to vector<16x16x128xf32>
        %87 = vector.extract_strided_slice %85 {offsets = [0, 1, 0], sizes = [16, 16, 128], strides = [1, 1, 1]} : vector<18x24x128xf32> to vector<16x16x128xf32>
        %88 = vector.extract_strided_slice %85 {offsets = [0, 2, 0], sizes = [16, 16, 128], strides = [1, 1, 1]} : vector<18x24x128xf32> to vector<16x16x128xf32>
        %89 = vector.extract_strided_slice %85 {offsets = [1, 0, 0], sizes = [16, 16, 128], strides = [1, 1, 1]} : vector<18x24x128xf32> to vector<16x16x128xf32>
        %90 = vector.extract_strided_slice %85 {offsets = [1, 1, 0], sizes = [16, 16, 128], strides = [1, 1, 1]} : vector<18x24x128xf32> to vector<16x16x128xf32>
        %91 = vector.extract_strided_slice %85 {offsets = [1, 2, 0], sizes = [16, 16, 128], strides = [1, 1, 1]} : vector<18x24x128xf32> to vector<16x16x128xf32>
        %92 = vector.extract_strided_slice %85 {offsets = [2, 0, 0], sizes = [16, 16, 128], strides = [1, 1, 1]} : vector<18x24x128xf32> to vector<16x16x128xf32>
        %93 = vector.extract_strided_slice %85 {offsets = [2, 1, 0], sizes = [16, 16, 128], strides = [1, 1, 1]} : vector<18x24x128xf32> to vector<16x16x128xf32>
        %94 = vector.extract_strided_slice %85 {offsets = [2, 2, 0], sizes = [16, 16, 128], strides = [1, 1, 1]} : vector<18x24x128xf32> to vector<16x16x128xf32>
        %95 = tpu.concatenate %86, %87, %88, %89, %90, %91, %92, %93, %94 in 2 : vector<16x16x128xf32>, vector<16x16x128xf32>, vector<16x16x128xf32>, vector<16x16x128xf32>, vector<16x16x128xf32>, vector<16x16x128xf32>, vector<16x16x128xf32>, vector<16x16x128xf32>, vector<16x16x128xf32> -> vector<16x16x1152xf32>
        %96 = vector.shape_cast %95 : vector<16x16x1152xf32> to vector<256x1152xf32>
        %cst_95 = arith.constant dense<0.000000e+00> : vector<256x128xf32>
        %97 = tpu.matmul %96, %19, %cst_95 {dimension_numbers = #tpu.dot_dimension_numbers<[1], [0], [0], [1], [0, 0, 1, 1], [], []>} : vector<256x1152xf32>, vector<1152x128xf32>, vector<256x128xf32> -> vector<256x128xf32>
        %98 = vector.broadcast %22 : vector<1x128xf32> to vector<256x128xf32>
        %99 = arith.mulf %97, %98 : vector<256x128xf32>
        %100 = vector.broadcast %25 : vector<1x128xf32> to vector<256x128xf32>
        %101 = arith.addf %99, %100 : vector<256x128xf32>
        %102 = vector.shape_cast %101 : vector<256x128xf32> to vector<16x16x128xf32>
        %103 = arith.index_cast %83 : i32 to index
        %c0_96 = arith.constant 0 : index
        %c0_97 = arith.constant 0 : index
        %104 = vector.load %arg18[%103, %c0_96, %c0_97] : memref<32x16x128xf32, #tpu.memory_space<vmem>>, vector<16x16x128xf32>
        tpu.vector_store %arg18[%103, %c0_96, %c0_97], %102 {strides = array<i32>} : memref<32x16x128xf32, #tpu.memory_space<vmem>>, vector<16x16x128xf32>,
      }
      %c2_i32_46 = arith.constant 2 : i32
      %c0_47 = arith.constant 0 : index
      %c0_48 = arith.constant 0 : index
      %c0_49 = arith.constant 0 : index
      %27 = vector.load %arg18[%c0_47, %c0_48, %c0_49] : memref<32x16x128xf32, #tpu.memory_space<vmem>>, vector<32x16x128xf32>
      %c1_50 = arith.constant 1 : index
      %c1_51 = arith.constant 1 : index
      %c0_52 = arith.constant 0 : index
      %28 = vector.load %arg17[%c1_50, %c1_51, %c0_52] : memref<34x24x128xf32, #tpu.memory_space<vmem>>, vector<32x16x128xf32>
      tpu.vector_store %arg17[%c1_50, %c1_51, %c0_52], %27 {strides = array<i32>} : memref<34x24x128xf32, #tpu.memory_space<vmem>>, vector<32x16x128xf32>,
      %29 = arith.index_cast %arg20 : i32 to index
      %c0_53 = arith.constant 0 : index
      %c0_54 = arith.constant 0 : index
      %30 = vector.load %arg5[%29, %c0_53, %c0_54] : memref<2x1152x128xf32, #tpu.memory_space<vmem>>, vector<1x1152x128xf32>
      %31 = vector.shape_cast %30 : vector<1x1152x128xf32> to vector<1152x128xf32>
      %32 = arith.index_cast %arg20 : i32 to index
      %c0_55 = arith.constant 0 : index
      %c0_56 = arith.constant 0 : index
      %33 = vector.load %arg6[%32, %c0_55, %c0_56] : memref<2x1x128xf32, #tpu.memory_space<vmem>>, vector<1x1x128xf32>
      %34 = vector.shape_cast %33 : vector<1x1x128xf32> to vector<1x128xf32>
      %35 = arith.index_cast %arg20 : i32 to index
      %c0_57 = arith.constant 0 : index
      %c0_58 = arith.constant 0 : index
      %36 = vector.load %arg7[%35, %c0_57, %c0_58] : memref<2x1x128xf32, #tpu.memory_space<vmem>>, vector<1x1x128xf32>
      %37 = vector.shape_cast %36 : vector<1x1x128xf32> to vector<1x128xf32>
      %c0_i32_59 = arith.constant 0 : i32
      %c2_i32_60 = arith.constant 2 : i32
      %38 = arith.addi %c0_i32_59, %c2_i32_60 : i32
      %c1_i32_61 = arith.constant 1 : i32
      scf.for %arg21 = %c0_i32_59 to %38 step %c1_i32_61  : i32 {
        %c16_i32 = arith.constant 16 : i32
        %82 = arith.muli %arg21, %c16_i32 : i32
        %83 = tpu.assume_multiple %82, 16 : i32
        %84 = arith.index_cast %83 : i32 to index
        %c0_93 = arith.constant 0 : index
        %c0_94 = arith.constant 0 : index
        %85 = vector.load %arg17[%84, %c0_93, %c0_94] : memref<34x24x128xf32, #tpu.memory_space<vmem>>, vector<18x24x128xf32>
        %86 = vector.extract_strided_slice %85 {offsets = [0, 0, 0], sizes = [16, 16, 128], strides = [1, 1, 1]} : vector<18x24x128xf32> to vector<16x16x128xf32>
        %87 = vector.extract_strided_slice %85 {offsets = [0, 1, 0], sizes = [16, 16, 128], strides = [1, 1, 1]} : vector<18x24x128xf32> to vector<16x16x128xf32>
        %88 = vector.extract_strided_slice %85 {offsets = [0, 2, 0], sizes = [16, 16, 128], strides = [1, 1, 1]} : vector<18x24x128xf32> to vector<16x16x128xf32>
        %89 = vector.extract_strided_slice %85 {offsets = [1, 0, 0], sizes = [16, 16, 128], strides = [1, 1, 1]} : vector<18x24x128xf32> to vector<16x16x128xf32>
        %90 = vector.extract_strided_slice %85 {offsets = [1, 1, 0], sizes = [16, 16, 128], strides = [1, 1, 1]} : vector<18x24x128xf32> to vector<16x16x128xf32>
        %91 = vector.extract_strided_slice %85 {offsets = [1, 2, 0], sizes = [16, 16, 128], strides = [1, 1, 1]} : vector<18x24x128xf32> to vector<16x16x128xf32>
        %92 = vector.extract_strided_slice %85 {offsets = [2, 0, 0], sizes = [16, 16, 128], strides = [1, 1, 1]} : vector<18x24x128xf32> to vector<16x16x128xf32>
        %93 = vector.extract_strided_slice %85 {offsets = [2, 1, 0], sizes = [16, 16, 128], strides = [1, 1, 1]} : vector<18x24x128xf32> to vector<16x16x128xf32>
        %94 = vector.extract_strided_slice %85 {offsets = [2, 2, 0], sizes = [16, 16, 128], strides = [1, 1, 1]} : vector<18x24x128xf32> to vector<16x16x128xf32>
        %95 = tpu.concatenate %86, %87, %88, %89, %90, %91, %92, %93, %94 in 2 : vector<16x16x128xf32>, vector<16x16x128xf32>, vector<16x16x128xf32>, vector<16x16x128xf32>, vector<16x16x128xf32>, vector<16x16x128xf32>, vector<16x16x128xf32>, vector<16x16x128xf32>, vector<16x16x128xf32> -> vector<16x16x1152xf32>
        %96 = vector.shape_cast %95 : vector<16x16x1152xf32> to vector<256x1152xf32>
        %cst_95 = arith.constant dense<0.000000e+00> : vector<256x128xf32>
        %97 = tpu.matmul %96, %31, %cst_95 {dimension_numbers = #tpu.dot_dimension_numbers<[1], [0], [0], [1], [0, 0, 1, 1], [], []>} : vector<256x1152xf32>, vector<1152x128xf32>, vector<256x128xf32> -> vector<256x128xf32>
        %98 = vector.broadcast %34 : vector<1x128xf32> to vector<256x128xf32>
        %99 = arith.mulf %97, %98 : vector<256x128xf32>
        %100 = vector.broadcast %37 : vector<1x128xf32> to vector<256x128xf32>
        %101 = arith.addf %99, %100 : vector<256x128xf32>
        %102 = vector.shape_cast %101 : vector<256x128xf32> to vector<16x16x128xf32>
        %103 = arith.index_cast %83 : i32 to index
        %c0_96 = arith.constant 0 : index
        %c0_97 = arith.constant 0 : index
        %104 = vector.load %arg18[%103, %c0_96, %c0_97] : memref<32x16x128xf32, #tpu.memory_space<vmem>>, vector<16x16x128xf32>
        tpu.vector_store %arg18[%103, %c0_96, %c0_97], %102 {strides = array<i32>} : memref<32x16x128xf32, #tpu.memory_space<vmem>>, vector<16x16x128xf32>,
      }
      %c2_i32_62 = arith.constant 2 : i32
      %c0_63 = arith.constant 0 : index
      %c0_64 = arith.constant 0 : index
      %c0_65 = arith.constant 0 : index
      %39 = vector.load %arg18[%c0_63, %c0_64, %c0_65] : memref<32x16x128xf32, #tpu.memory_space<vmem>>, vector<32x16x128xf32>
      %cst_66 = arith.constant dense<0.000000e+00> : vector<128xf32>
      %40 = vector.multi_reduction <add>, %39, %cst_66 [0, 1] : vector<32x16x128xf32> to vector<128xf32>
      %cst_67 = arith.constant 5.120000e+02 : f32
      %41 = vector.broadcast %cst_67 : f32 to vector<128xf32>
      %42 = arith.divf %40, %41 : vector<128xf32>
      %43 = vector.shape_cast %42 : vector<128xf32> to vector<1x128xf32>
      %44 = arith.index_cast %arg20 : i32 to index
      %c0_68 = arith.constant 0 : index
      %c0_69 = arith.constant 0 : index
      %45 = vector.load %arg8[%44, %c0_68, %c0_69] : memref<2x128x8xf32, #tpu.memory_space<vmem>>, vector<1x128x8xf32>
      %46 = vector.shape_cast %45 : vector<1x128x8xf32> to vector<128x8xf32>
      %cst_70 = arith.constant dense<0.000000e+00> : vector<1x8xf32>
      %47 = tpu.matmul %43, %46, %cst_70 {dimension_numbers = #tpu.dot_dimension_numbers<[1], [0], [0], [1], [0, 0, 1, 1], [], []>} : vector<1x128xf32>, vector<128x8xf32>, vector<1x8xf32> -> vector<1x8xf32>
      %48 = arith.index_cast %arg20 : i32 to index
      %c0_71 = arith.constant 0 : index
      %c0_72 = arith.constant 0 : index
      %49 = vector.load %arg9[%48, %c0_71, %c0_72] : memref<2x1x8xf32, #tpu.memory_space<vmem>>, vector<1x1x8xf32>
      %50 = vector.shape_cast %49 : vector<1x1x8xf32> to vector<1x8xf32>
      %51 = arith.mulf %47, %50 : vector<1x8xf32>
      %52 = arith.index_cast %arg20 : i32 to index
      %c0_73 = arith.constant 0 : index
      %c0_74 = arith.constant 0 : index
      %53 = vector.load %arg10[%52, %c0_73, %c0_74] : memref<2x1x8xf32, #tpu.memory_space<vmem>>, vector<1x1x8xf32>
      %54 = vector.shape_cast %53 : vector<1x1x8xf32> to vector<1x8xf32>
      %55 = arith.addf %51, %54 : vector<1x8xf32>
      %cst_75 = arith.constant 0.000000e+00 : f32
      %56 = vector.broadcast %cst_75 : f32 to vector<1x8xf32>
      %57 = arith.maximumf %55, %56 : vector<1x8xf32>
      %58 = arith.index_cast %arg20 : i32 to index
      %c0_76 = arith.constant 0 : index
      %c0_77 = arith.constant 0 : index
      %59 = vector.load %arg11[%58, %c0_76, %c0_77] : memref<2x8x128xf32, #tpu.memory_space<vmem>>, vector<1x8x128xf32>
      %60 = vector.shape_cast %59 : vector<1x8x128xf32> to vector<8x128xf32>
      %cst_78 = arith.constant dense<0.000000e+00> : vector<1x128xf32>
      %61 = tpu.matmul %57, %60, %cst_78 {dimension_numbers = #tpu.dot_dimension_numbers<[1], [0], [0], [1], [0, 0, 1, 1], [], []>} : vector<1x8xf32>, vector<8x128xf32>, vector<1x128xf32> -> vector<1x128xf32>
      %62 = arith.index_cast %arg20 : i32 to index
      %c0_79 = arith.constant 0 : index
      %c0_80 = arith.constant 0 : index
      %63 = vector.load %arg12[%62, %c0_79, %c0_80] : memref<2x1x128xf32, #tpu.memory_space<vmem>>, vector<1x1x128xf32>
      %64 = vector.shape_cast %63 : vector<1x1x128xf32> to vector<1x128xf32>
      %65 = arith.mulf %61, %64 : vector<1x128xf32>
      %66 = arith.index_cast %arg20 : i32 to index
      %c0_81 = arith.constant 0 : index
      %c0_82 = arith.constant 0 : index
      %67 = vector.load %arg13[%66, %c0_81, %c0_82] : memref<2x1x128xf32, #tpu.memory_space<vmem>>, vector<1x1x128xf32>
      %68 = vector.shape_cast %67 : vector<1x1x128xf32> to vector<1x128xf32>
      %69 = arith.addf %65, %68 : vector<1x128xf32>
      %70 = arith.negf %69 : vector<1x128xf32>
      %71 = math.exp %70 : vector<1x128xf32>
      %cst_83 = arith.constant 1.000000e+00 : f32
      %72 = vector.broadcast %cst_83 : f32 to vector<1x128xf32>
      %73 = arith.addf %72, %71 : vector<1x128xf32>
      %74 = arith.divf %72, %73 : vector<1x128xf32>
      %c0_84 = arith.constant 0 : index
      %c0_85 = arith.constant 0 : index
      %c0_86 = arith.constant 0 : index
      %75 = vector.load %arg18[%c0_84, %c0_85, %c0_86] : memref<32x16x128xf32, #tpu.memory_space<vmem>>, vector<32x16x128xf32>
      %76 = vector.shape_cast %74 : vector<1x128xf32> to vector<1x1x128xf32>
      %77 = vector.broadcast %76 : vector<1x1x128xf32> to vector<32x16x128xf32>
      %78 = arith.mulf %75, %77 : vector<32x16x128xf32>
      %c0_87 = arith.constant 0 : index
      %c0_88 = arith.constant 0 : index
      %c0_89 = arith.constant 0 : index
      %79 = vector.load %arg19[%c0_87, %c0_88, %c0_89] : memref<32x16x128xf32, #tpu.memory_space<vmem>>, vector<32x16x128xf32>
      %80 = arith.addf %78, %79 : vector<32x16x128xf32>
      %c0_90 = arith.constant 0 : index
      %c0_91 = arith.constant 0 : index
      %c0_92 = arith.constant 0 : index
      %81 = vector.load %arg19[%c0_90, %c0_91, %c0_92] : memref<32x16x128xf32, #tpu.memory_space<vmem>>, vector<32x16x128xf32>
      tpu.vector_store %arg19[%c0_90, %c0_91, %c0_92], %80 {strides = array<i32>} : memref<32x16x128xf32, #tpu.memory_space<vmem>>, vector<32x16x128xf32>,
    }
    %c2_i32_17 = arith.constant 2 : i32
    %c0_18 = arith.constant 0 : index
    %c0_19 = arith.constant 0 : index
    %c0_20 = arith.constant 0 : index
    %10 = vector.load %arg19[%c0_18, %c0_19, %c0_20] : memref<32x16x128xf32, #tpu.memory_space<vmem>>, vector<32x16x128xf32>
    %c1 = arith.constant 1 : index
    %c1_21 = arith.constant 1 : index
    %c0_22 = arith.constant 0 : index
    %11 = vector.load %arg17[%c1, %c1_21, %c0_22] : memref<34x24x128xf32, #tpu.memory_space<vmem>>, vector<32x16x128xf32>
    tpu.vector_store %arg17[%c1, %c1_21, %c0_22], %10 {strides = array<i32>} : memref<34x24x128xf32, #tpu.memory_space<vmem>>, vector<32x16x128xf32>,
    %c0_23 = arith.constant 0 : index
    %c0_24 = arith.constant 0 : index
    %12 = vector.load %arg14[%c0_23, %c0_24] : memref<1152x128xf32, #tpu.memory_space<vmem>>, vector<1152x128xf32>
    %c0_25 = arith.constant 0 : index
    %c0_26 = arith.constant 0 : index
    %13 = vector.load %arg15[%c0_25, %c0_26] : memref<1x128xf32, #tpu.memory_space<vmem>>, vector<1x128xf32>
    %c0_i32_27 = arith.constant 0 : i32
    %c2_i32_28 = arith.constant 2 : i32
    %14 = arith.addi %c0_i32_27, %c2_i32_28 : i32
    %c1_i32_29 = arith.constant 1 : i32
    scf.for %arg20 = %c0_i32_27 to %14 step %c1_i32_29  : i32 {
      %c16_i32 = arith.constant 16 : i32
      %15 = arith.muli %arg20, %c16_i32 : i32
      %16 = tpu.assume_multiple %15, 16 : i32
      %17 = arith.index_cast %16 : i32 to index
      %c0_31 = arith.constant 0 : index
      %c0_32 = arith.constant 0 : index
      %18 = vector.load %arg17[%17, %c0_31, %c0_32] : memref<34x24x128xf32, #tpu.memory_space<vmem>>, vector<18x24x128xf32>
      %19 = vector.extract_strided_slice %18 {offsets = [0, 0, 0], sizes = [16, 16, 128], strides = [1, 1, 1]} : vector<18x24x128xf32> to vector<16x16x128xf32>
      %20 = vector.extract_strided_slice %18 {offsets = [0, 1, 0], sizes = [16, 16, 128], strides = [1, 1, 1]} : vector<18x24x128xf32> to vector<16x16x128xf32>
      %21 = vector.extract_strided_slice %18 {offsets = [0, 2, 0], sizes = [16, 16, 128], strides = [1, 1, 1]} : vector<18x24x128xf32> to vector<16x16x128xf32>
      %22 = vector.extract_strided_slice %18 {offsets = [1, 0, 0], sizes = [16, 16, 128], strides = [1, 1, 1]} : vector<18x24x128xf32> to vector<16x16x128xf32>
      %23 = vector.extract_strided_slice %18 {offsets = [1, 1, 0], sizes = [16, 16, 128], strides = [1, 1, 1]} : vector<18x24x128xf32> to vector<16x16x128xf32>
      %24 = vector.extract_strided_slice %18 {offsets = [1, 2, 0], sizes = [16, 16, 128], strides = [1, 1, 1]} : vector<18x24x128xf32> to vector<16x16x128xf32>
      %25 = vector.extract_strided_slice %18 {offsets = [2, 0, 0], sizes = [16, 16, 128], strides = [1, 1, 1]} : vector<18x24x128xf32> to vector<16x16x128xf32>
      %26 = vector.extract_strided_slice %18 {offsets = [2, 1, 0], sizes = [16, 16, 128], strides = [1, 1, 1]} : vector<18x24x128xf32> to vector<16x16x128xf32>
      %27 = vector.extract_strided_slice %18 {offsets = [2, 2, 0], sizes = [16, 16, 128], strides = [1, 1, 1]} : vector<18x24x128xf32> to vector<16x16x128xf32>
      %28 = tpu.concatenate %19, %20, %21, %22, %23, %24, %25, %26, %27 in 2 : vector<16x16x128xf32>, vector<16x16x128xf32>, vector<16x16x128xf32>, vector<16x16x128xf32>, vector<16x16x128xf32>, vector<16x16x128xf32>, vector<16x16x128xf32>, vector<16x16x128xf32>, vector<16x16x128xf32> -> vector<16x16x1152xf32>
      %29 = vector.shape_cast %28 : vector<16x16x1152xf32> to vector<256x1152xf32>
      %cst_33 = arith.constant dense<0.000000e+00> : vector<256x128xf32>
      %30 = tpu.matmul %29, %12, %cst_33 {dimension_numbers = #tpu.dot_dimension_numbers<[1], [0], [0], [1], [0, 0, 1, 1], [], []>} : vector<256x1152xf32>, vector<1152x128xf32>, vector<256x128xf32> -> vector<256x128xf32>
      %31 = vector.broadcast %13 : vector<1x128xf32> to vector<256x128xf32>
      %32 = arith.addf %30, %31 : vector<256x128xf32>
      %33 = vector.shape_cast %32 : vector<256x128xf32> to vector<16x16x128xf32>
      %c0_34 = arith.constant 0 : index
      %34 = arith.index_cast %16 : i32 to index
      %c0_35 = arith.constant 0 : index
      %c0_36 = arith.constant 0 : index
      %35 = vector.load %arg1[%c0_34, %34, %c0_35, %c0_36] : memref<1x32x16x128xf32, #tpu.memory_space<vmem>>, vector<1x16x16x128xf32>
      %36 = vector.shape_cast %35 : vector<1x16x16x128xf32> to vector<16x16x128xf32>
      %37 = arith.addf %33, %36 : vector<16x16x128xf32>
      %c0_37 = arith.constant 0 : index
      %38 = arith.index_cast %16 : i32 to index
      %c0_38 = arith.constant 0 : index
      %c0_39 = arith.constant 0 : index
      %39 = vector.load %arg16[%c0_37, %38, %c0_38, %c0_39] : memref<1x32x16x128xf32, #tpu.memory_space<vmem>>, vector<1x16x16x128xf32>
      %40 = vector.shape_cast %39 : vector<1x16x16x128xf32> to vector<16x16x128xf32>
      %41 = vector.shape_cast %37 : vector<16x16x128xf32> to vector<1x16x16x128xf32>
      tpu.vector_store %arg16[%c0_37, %38, %c0_38, %c0_39], %41 {strides = array<i32>} : memref<1x32x16x128xf32, #tpu.memory_space<vmem>>, vector<1x16x16x128xf32>,
    }
    %c2_i32_30 = arith.constant 2 : i32
    return
  }
  func.func @transform_0(%arg0: i32) -> (i32, i32, i32, i32) {
    %c0_i32 = arith.constant 0 : i32
    %c0_i32_0 = arith.constant 0 : i32
    %c0_i32_1 = arith.constant 0 : i32
    %c0_i32_2 = arith.constant 0 : i32
    return %arg0, %c0_i32, %c0_i32_0, %c0_i32_1 : i32, i32, i32, i32
  }
  func.func @transform_1(%arg0: i32) -> (i32, i32, i32) {
    %c0_i32 = arith.constant 0 : i32
    %c0_i32_0 = arith.constant 0 : i32
    %c0_i32_1 = arith.constant 0 : i32
    %c0_i32_2 = arith.constant 0 : i32
    return %c0_i32, %c0_i32_0, %c0_i32_1 : i32, i32, i32
  }
  func.func @transform_2(%arg0: i32) -> (i32, i32, i32) {
    %c0_i32 = arith.constant 0 : i32
    %c0_i32_0 = arith.constant 0 : i32
    %c0_i32_1 = arith.constant 0 : i32
    %c0_i32_2 = arith.constant 0 : i32
    return %c0_i32, %c0_i32_0, %c0_i32_1 : i32, i32, i32
  }
  func.func @transform_3(%arg0: i32) -> (i32, i32, i32) {
    %c0_i32 = arith.constant 0 : i32
    %c0_i32_0 = arith.constant 0 : i32
    %c0_i32_1 = arith.constant 0 : i32
    %c0_i32_2 = arith.constant 0 : i32
    return %c0_i32, %c0_i32_0, %c0_i32_1 : i32, i32, i32
  }
  func.func @transform_4(%arg0: i32) -> (i32, i32, i32) {
    %c0_i32 = arith.constant 0 : i32
    %c0_i32_0 = arith.constant 0 : i32
    %c0_i32_1 = arith.constant 0 : i32
    %c0_i32_2 = arith.constant 0 : i32
    return %c0_i32, %c0_i32_0, %c0_i32_1 : i32, i32, i32
  }
  func.func @transform_5(%arg0: i32) -> (i32, i32, i32) {
    %c0_i32 = arith.constant 0 : i32
    %c0_i32_0 = arith.constant 0 : i32
    %c0_i32_1 = arith.constant 0 : i32
    %c0_i32_2 = arith.constant 0 : i32
    return %c0_i32, %c0_i32_0, %c0_i32_1 : i32, i32, i32
  }
  func.func @transform_6(%arg0: i32) -> (i32, i32, i32) {
    %c0_i32 = arith.constant 0 : i32
    %c0_i32_0 = arith.constant 0 : i32
    %c0_i32_1 = arith.constant 0 : i32
    %c0_i32_2 = arith.constant 0 : i32
    return %c0_i32, %c0_i32_0, %c0_i32_1 : i32, i32, i32
  }
  func.func @transform_7(%arg0: i32) -> (i32, i32, i32) {
    %c0_i32 = arith.constant 0 : i32
    %c0_i32_0 = arith.constant 0 : i32
    %c0_i32_1 = arith.constant 0 : i32
    %c0_i32_2 = arith.constant 0 : i32
    return %c0_i32, %c0_i32_0, %c0_i32_1 : i32, i32, i32
  }
  func.func @transform_8(%arg0: i32) -> (i32, i32, i32) {
    %c0_i32 = arith.constant 0 : i32
    %c0_i32_0 = arith.constant 0 : i32
    %c0_i32_1 = arith.constant 0 : i32
    %c0_i32_2 = arith.constant 0 : i32
    return %c0_i32, %c0_i32_0, %c0_i32_1 : i32, i32, i32
  }
  func.func @transform_9(%arg0: i32) -> (i32, i32, i32) {
    %c0_i32 = arith.constant 0 : i32
    %c0_i32_0 = arith.constant 0 : i32
    %c0_i32_1 = arith.constant 0 : i32
    %c0_i32_2 = arith.constant 0 : i32
    return %c0_i32, %c0_i32_0, %c0_i32_1 : i32, i32, i32
  }
  func.func @transform_10(%arg0: i32) -> (i32, i32, i32) {
    %c0_i32 = arith.constant 0 : i32
    %c0_i32_0 = arith.constant 0 : i32
    %c0_i32_1 = arith.constant 0 : i32
    %c0_i32_2 = arith.constant 0 : i32
    return %c0_i32, %c0_i32_0, %c0_i32_1 : i32, i32, i32
  }
  func.func @transform_11(%arg0: i32) -> (i32, i32, i32) {
    %c0_i32 = arith.constant 0 : i32
    %c0_i32_0 = arith.constant 0 : i32
    %c0_i32_1 = arith.constant 0 : i32
    %c0_i32_2 = arith.constant 0 : i32
    return %c0_i32, %c0_i32_0, %c0_i32_1 : i32, i32, i32
  }
  func.func @transform_12(%arg0: i32) -> (i32, i32, i32) {
    %c0_i32 = arith.constant 0 : i32
    %c0_i32_0 = arith.constant 0 : i32
    %c0_i32_1 = arith.constant 0 : i32
    %c0_i32_2 = arith.constant 0 : i32
    return %c0_i32, %c0_i32_0, %c0_i32_1 : i32, i32, i32
  }
  func.func @transform_13(%arg0: i32) -> (i32, i32) {
    %c0_i32 = arith.constant 0 : i32
    %c0_i32_0 = arith.constant 0 : i32
    %c0_i32_1 = arith.constant 0 : i32
    return %c0_i32, %c0_i32_0 : i32, i32
  }
  func.func @transform_14(%arg0: i32) -> (i32, i32) {
    %c0_i32 = arith.constant 0 : i32
    %c0_i32_0 = arith.constant 0 : i32
    %c0_i32_1 = arith.constant 0 : i32
    return %c0_i32, %c0_i32_0 : i32, i32
  }
  func.func @transform_15(%arg0: i32) -> (i32, i32, i32, i32) {
    %c0_i32 = arith.constant 0 : i32
    %c0_i32_0 = arith.constant 0 : i32
    %c0_i32_1 = arith.constant 0 : i32
    %c0_i32_2 = arith.constant 0 : i32
    return %arg0, %c0_i32, %c0_i32_0, %c0_i32_1 : i32, i32, i32, i32
  }
}

</mosaic_0001>

<llo_original>
// kernel: residual_group_forward.1
$region0: #{residual_group_forward.1}
  #allocation0 [shape = 'u32[]', space=smem, size = 0x4, offset = 0x4, fixed_abs, tag = 'smem constant byte address 0x4 - core index']
  #allocation1 [shape = 'u32[144,128]{1,0:T(1,128)}', space=vmem, size = 0x12000, scoped, tag = 'internal scratch']
  #allocation2 [shape = 'f32[34,24,128]{2,1,0:T(8,128)}', space=vmem, size = 0x66000, scoped, tag = 'scratch operand']
  #allocation3 [shape = 'f32[32,16,128]{2,1,0:T(8,128)}', space=vmem, size = 0x40000, scoped, tag = 'scratch operand']
  #allocation4 [shape = 'f32[32,16,128]{2,1,0:T(8,128)}', space=vmem, size = 0x40000, scoped, tag = 'scratch operand']
  %s0 = inlined_call_operand.hbm [shape: f32[2,32,16,128], index: 0, kind: input, shape index: {}]
  %s1 = inlined_call_operand.hbm [shape: f32[2,1152,128], index: 1, kind: input, shape index: {}]
  %s2 = inlined_call_operand.hbm [shape: f32[2,1,128], index: 2, kind: input, shape index: {}]
  %s3 = inlined_call_operand.hbm [shape: f32[2,1,128], index: 3, kind: input, shape index: {}]
  %s4 = inlined_call_operand.hbm [shape: f32[2,1152,128], index: 4, kind: input, shape index: {}]
  %s5 = inlined_call_operand.hbm [shape: f32[2,1,128], index: 5, kind: input, shape index: {}]
  %s6 = inlined_call_operand.hbm [shape: f32[2,1,128], index: 6, kind: input, shape index: {}]
  %s7 = inlined_call_operand.vmem [shape: f32[2,128,8], index: 7, kind: input, shape index: {}]
  %s8 = inlined_call_operand.hbm [shape: f32[2,1,8], index: 8, kind: input, shape index: {}]
  %s9 = inlined_call_operand.hbm [shape: f32[2,1,8], index: 9, kind: input, shape index: {}]
  %s10 = inlined_call_operand.hbm [shape: f32[2,8,128], index: 10, kind: input, shape index: {}]
  %s11 = inlined_call_operand.hbm [shape: f32[2,1,128], index: 11, kind: input, shape index: {}]
  %s12 = inlined_call_operand.hbm [shape: f32[2,1,128], index: 12, kind: input, shape index: {}]
  %s13 = inlined_call_operand.hbm [shape: f32[1152,128], index: 13, kind: input, shape index: {}]
  %s14 = inlined_call_operand.hbm [shape: f32[1,128], index: 14, kind: input, shape index: {}]
  %s15 = inlined_call_operand.hbm [shape: f32[2,32,16,128], index: 15, kind: output, shape index: {}]
  %s16 = sld [smem:[#allocation0]]
  $region177: #{residual_group_forward.1} parent=0
    _
  %s18 = ssub.s32 1, %s16
  %s19 = scalar_select 0, %s18, %s16
  $region1: #{residual_group_forward.1} parent=0
    #allocation5 [shape = 'u8[524288]{0}', space=vmem, size = 0x80000, scoped, tag = 'input window, operand 0']
    #allocation6 [shape = 's32[2]{0}', space=sflag, size = 0x8, scoped, tag = 'scoped memory for residual_group_forward.1']
    #allocation7 [shape = 's32[2]{0}', space=sflag, size = 0x8, scoped, tag = 'scoped memory for residual_group_forward.1']
    #allocation8 [shape = 'u8[1179648]{0}', space=vmem, size = 0x120000, scoped, tag = 'input window, operand 1, single buffered']
    #allocation9 [shape = 's32[1]{0}', space=sflag, size = 0x4, scoped, tag = 'scoped memory for residual_group_forward.1']
    #allocation10 [shape = 'u8[1024]{0}', space=vmem, size = 0x400, scoped, tag = 'input window, operand 2, single buffered']
    #allocation11 [shape = 'u8[1024]{0}', space=vmem, size = 0x400, scoped, tag = 'input window, operand 3, single buffered']
    #allocation12 [shape = 's32[1]{0}', space=sflag, size = 0x4, scoped, tag = 'scoped memory for residual_group_forward.1']
    #allocation13 [shape = 'u8[1179648]{0}', space=vmem, size = 0x120000, scoped, tag = 'input window, operand 4, single buffered']
    #allocation14 [shape = 'u8[1024]{0}', space=vmem, size = 0x400, scoped, tag = 'input window, operand 5, single buffered']
    #allocation15 [shape = 's32[1]{0}', space=sflag, size = 0x4, scoped, tag = 'scoped memory for residual_group_forward.1']
    #allocation16 [shape = 'u8[1024]{0}', space=vmem, size = 0x400, scoped, tag = 'input window, operand 6, single buffered']
    #allocation17 [shape = 'u8[1024]{0}', space=vmem, size = 0x400, scoped, tag = 'input window, operand 8, single buffered']
    #allocation18 [shape = 's32[1]{0}', space=sflag, size = 0x4, scoped, tag = 'scoped memory for residual_group_forward.1']
    #allocation19 [shape = 'u8[1024]{0}', space=vmem, size = 0x400, scoped, tag = 'input window, operand 9, single buffered']
    #allocation20 [shape = 'u8[8192]{0}', space=vmem, size = 0x2000, scoped, tag = 'input window, operand 10, single buffered']
    #allocation21 [shape = 's32[1]{0}', space=sflag, size = 0x4, scoped, tag = 'scoped memory for residual_group_forward.1']
    #allocation22 [shape = 'u8[1024]{0}', space=vmem, size = 0x400, scoped, tag = 'input window, operand 11, single buffered']
    #allocation23 [shape = 'u8[1024]{0}', space=vmem, size = 0x400, scoped, tag = 'input window, operand 12, single buffered']
    #allocation24 [shape = 's32[1]{0}', space=sflag, size = 0x4, scoped, tag = 'scoped memory for residual_group_forward.1']
    #allocation25 [shape = 'u8[589824]{0}', space=vmem, size = 0x90000, scoped, tag = 'input window, operand 13, single buffered']
    #allocation26 [shape = 'u8[512]{0}', space=vmem, size = 0x400, scoped, tag = 'input window, operand 14, single buffered']
    #allocation27 [shape = 's32[1]{0}', space=sflag, size = 0x4, scoped, tag = 'scoped memory for residual_group_forward.1']
    #allocation28 [shape = 'u8[524288]{0}', space=vmem, size = 0x80000, scoped, tag = 'output window, operand 0']
    %20 = vsyncpa [#allocation6], 0
    %s21 = scalar_lea.sflag [#allocation6], 1
    %22 = vsyncpa %s21, 0
    %23 = vsyncpa [#allocation9], 0
    %24 = vsyncpa [#allocation12], 0
    %25 = vsyncpa [#allocation15], 0
    %26 = vsyncpa [#allocation18], 0
    %27 = vsyncpa [#allocation21], 0
    %28 = vsyncpa [#allocation24], 0
    %29 = vsyncpa [#allocation27], 0
    %30 = vsyncpa [#allocation7], 0
    %s31 = scalar_lea.sflag [#allocation7], 1
    %32 = vsyncpa %s31, 0
    loop: start=0, step=1, limit=4
    $region2: #{residual_group_forward.1} parent=1 // loop_pre_header
      _
    $region3: #{residual_group_forward.1} parent=1 // loop_header
      %s34 = sphi 0, %s38
      %p35 = scmp.ge.s32.totalorder %s34, 4
      %s44 = sphi 0, %s46
      %s47 = sphi 0, %s44
      %s48 = sphi 0, %s47
      %s64 = sphi 0, %s48
      %s68 = sphi 0, %s68
      %s70 = sphi 0, %s68
      %s71 = sphi 0, %s70
      %s85 = sphi 0, %s71
      %s89 = sphi 0, %s89
      %s91 = sphi 0, %s89
      %s92 = sphi 0, %s91
      %s106 = sphi 0, %s92
      %s110 = sphi 0, %s110
      %s112 = sphi 0, %s110
      %s113 = sphi 0, %s112
      %s127 = sphi 0, %s113
      %s131 = sphi 0, %s131
      %s133 = sphi 0, %s131
      %s134 = sphi 0, %s133
      %s148 = sphi 0, %s134
      %s152 = sphi 0, %s152
      %s154 = sphi 0, %s152
      %s155 = sphi 0, %s154
      %s169 = sphi 0, %s155
      %s173 = sphi 0, %s173
      %s175 = sphi 0, %s173
      %s176 = sphi 0, %s175
      %s190 = sphi 0, %s176
      %s194 = sphi 0, %s194
      %s196 = sphi 0, %s194
      %s197 = sphi 0, %s196
      %s211 = sphi 0, %s197
      %s215 = sphi 0, %s215
      %s217 = sphi 0, %s215
      %s218 = sphi 0, %s217
      %s232 = sphi 0, %s218
      %s236 = sphi 0, %s236
      %s238 = sphi 0, %s236
      %s239 = sphi 0, %s238
      %s253 = sphi 0, %s239
      %s257 = sphi 0, %s257
      %s259 = sphi 0, %s257
      %s260 = sphi 0, %s259
      %s274 = sphi 0, %s260
      %s278 = sphi 0, %s278
      %s280 = sphi 0, %s278
      %s281 = sphi 0, %s280
      %s295 = sphi 0, %s281
      %s299 = sphi 0, %s299
      %s301 = sphi 0, %s299
      %s302 = sphi 0, %s301
      %s316 = sphi 0, %s302
      %s320 = sphi 0, %s320
      %s322 = sphi 0, %s320
      %s323 = sphi 0, %s322
      %s337 = sphi 0, %s323
      %s341 = sphi 0, %s341
      %s343 = sphi 0, %s341
      %s344 = sphi 0, %s343
      %s358 = sphi 0, %s344
      %s364 = sphi 0, %s366
      %s367 = sphi 0, %s364
      %s368 = sphi 0, %s367
      %s384 = sphi 0, %s368
    $region4: #{residual_group_forward.1} parent=1 // loop_header_branch
      %37 = sbr.rel (%p35) target = $region8
    $region5: #{residual_group_forward.1} parent=1 // loop_body
      %s39 = ssub.s32 %s34, 1
      %s40 = ssub.s32 %s34, 2
      %s41 = sadd.s32 %s34, 1
      %s42 = ssub.s32 %s34, %s41
      %p43 = scmp.eq.s32.totalorder %s42, 0
      %s45 = sadd.s32 %s44, 1
      %s46 = scalar_select %p43, %s44, %s45
      %p49 = pneg %p43
      %p50 = scmp.eq.s32.totalorder %s34, 1
      %p51 = por %p49, %p50
      %p52 = scmp.ne.s32.totalorder %s44, %s47
      %p53 = scmp.eq.s32.totalorder %s34, 0
      %p54 = por %p52, %p53
      %p55 = scmp.ne.s32.totalorder %s44, %s47
      %p56 = scmp.eq.s32.totalorder %s39, 1
      %p57 = por %p55, %p56
      %p58 = scmp.ne.s32.totalorder %s47, %s48
      %p59 = scmp.eq.s32.totalorder %s39, 0
      %p60 = por %p58, %p59
      %p61 = scmp.ne.s32.totalorder %s47, %s48
      %p62 = scmp.eq.s32.totalorder %s40, 1
      %p63 = por %p61, %p62
      %p65 = scmp.ne.s32.totalorder %s48, %s64
      %p66 = scmp.eq.s32.totalorder %s40, 0
      %p67 = por %p65, %p66
      %s69 = sadd.s32 %s68, 1
      %p72 = scmp.eq.s32.totalorder %s34, 1
      %p73 = scmp.ne.s32.totalorder %s68, %s70
      %p74 = scmp.eq.s32.totalorder %s34, 0
      %p75 = por %p73, %p74
      %p76 = scmp.ne.s32.totalorder %s68, %s70
      %p77 = scmp.eq.s32.totalorder %s39, 1
      %p78 = por %p76, %p77
      %p79 = scmp.ne.s32.totalorder %s70, %s71
      %p80 = scmp.eq.s32.totalorder %s39, 0
      %p81 = por %p79, %p80
      %p82 = scmp.ne.s32.totalorder %s70, %s71
      %p83 = scmp.eq.s32.totalorder %s40, 1
      %p84 = por %p82, %p83
      %p86 = scmp.ne.s32.totalorder %s71, %s85
      %p87 = scmp.eq.s32.totalorder %s40, 0
      %p88 = por %p86, %p87
      %s90 = sadd.s32 %s89, 1
      %p93 = scmp.eq.s32.totalorder %s34, 1
      %p94 = scmp.ne.s32.totalorder %s89, %s91
      %p95 = scmp.eq.s32.totalorder %s34, 0
      %p96 = por %p94, %p95
      %p97 = scmp.ne.s32.totalorder %s89, %s91
      %p98 = scmp.eq.s32.totalorder %s39, 1
      %p99 = por %p97, %p98
      %p100 = scmp.ne.s32.totalorder %s91, %s92
      %p101 = scmp.eq.s32.totalorder %s39, 0
      %p102 = por %p100, %p101
      %p103 = scmp.ne.s32.totalorder %s91, %s92
      %p104 = scmp.eq.s32.totalorder %s40, 1
      %p105 = por %p103, %p104
      %p107 = scmp.ne.s32.totalorder %s92, %s106
      %p108 = scmp.eq.s32.totalorder %s40, 0
      %p109 = por %p107, %p108
      %s111 = sadd.s32 %s110, 1
      %p114 = scmp.eq.s32.totalorder %s34, 1
      %p115 = scmp.ne.s32.totalorder %s110, %s112
      %p116 = scmp.eq.s32.totalorder %s34, 0
      %p117 = por %p115, %p116
      %p118 = scmp.ne.s32.totalorder %s110, %s112
      %p119 = scmp.eq.s32.totalorder %s39, 1
      %p120 = por %p118, %p119
      %p121 = scmp.ne.s32.totalorder %s112, %s113
      %p122 = scmp.eq.s32.totalorder %s39, 0
      %p123 = por %p121, %p122
      %p124 = scmp.ne.s32.totalorder %s112, %s113
      %p125 = scmp.eq.s32.totalorder %s40, 1
      %p126 = por %p124, %p125
      %p128 = scmp.ne.s32.totalorder %s113, %s127
      %p129 = scmp.eq.s32.totalorder %s40, 0
      %p130 = por %p128, %p129
      %s132 = sadd.s32 %s131, 1
      %p135 = scmp.eq.s32.totalorder %s34, 1
      %p136 = scmp.ne.s32.totalorder %s131, %s133
      %p137 = scmp.eq.s32.totalorder %s34, 0
      %p138 = por %p136, %p137
      %p139 = scmp.ne.s32.totalorder %s131, %s133
      %p140 = scmp.eq.s32.totalorder %s39, 1
      %p141 = por %p139, %p140
      %p142 = scmp.ne.s32.totalorder %s133, %s134
      %p143 = scmp.eq.s32.totalorder %s39, 0
      %p144 = por %p142, %p143
      %p145 = scmp.ne.s32.totalorder %s133, %s134
      %p146 = scmp.eq.s32.totalorder %s40, 1
      %p147 = por %p145, %p146
      %p149 = scmp.ne.s32.totalorder %s134, %s148
      %p150 = scmp.eq.s32.totalorder %s40, 0
      %p151 = por %p149, %p150
      %s153 = sadd.s32 %s152, 1
      %p156 = scmp.eq.s32.totalorder %s34, 1
      %p157 = scmp.ne.s32.totalorder %s152, %s154
      %p158 = scmp.eq.s32.totalorder %s34, 0
      %p159 = por %p157, %p158
      %p160 = scmp.ne.s32.totalorder %s152, %s154
      %p161 = scmp.eq.s32.totalorder %s39, 1
      %p162 = por %p160, %p161
      %p163 = scmp.ne.s32.totalorder %s154, %s155
      %p164 = scmp.eq.s32.totalorder %s39, 0
      %p165 = por %p163, %p164
      %p166 = scmp.ne.s32.totalorder %s154, %s155
      %p167 = scmp.eq.s32.totalorder %s40, 1
      %p168 = por %p166, %p167
      %p170 = scmp.ne.s32.totalorder %s155, %s169
      %p171 = scmp.eq.s32.totalorder %s40, 0
      %p172 = por %p170, %p171
      %s174 = sadd.s32 %s173, 1
      %p177 = scmp.eq.s32.totalorder %s34, 1
      %p178 = scmp.ne.s32.totalorder %s173, %s175
      %p179 = scmp.eq.s32.totalorder %s34, 0
      %p180 = por %p178, %p179
      %p181 = scmp.ne.s32.totalorder %s173, %s175
      %p182 = scmp.eq.s32.totalorder %s39, 1
      %p183 = por %p181, %p182
      %p184 = scmp.ne.s32.totalorder %s175, %s176
      %p185 = scmp.eq.s32.totalorder %s39, 0
      %p186 = por %p184, %p185
      %p187 = scmp.ne.s32.totalorder %s175, %s176
      %p188 = scmp.eq.s32.totalorder %s40, 1
      %p189 = por %p187, %p188
      %p191 = scmp.ne.s32.totalorder %s176, %s190
      %p192 = scmp.eq.s32.totalorder %s40, 0
      %p193 = por %p191, %p192
      %s195 = sadd.s32 %s194, 1
      %p198 = scmp.eq.s32.totalorder %s34, 1
      %p199 = scmp.ne.s32.totalorder %s194, %s196
      %p200 = scmp.eq.s32.totalorder %s34, 0
      %p201 = por %p199, %p200
      %p202 = scmp.ne.s32.totalorder %s194, %s196
      %p203 = scmp.eq.s32.totalorder %s39, 1
      %p204 = por %p202, %p203
      %p205 = scmp.ne.s32.totalorder %s196, %s197
      %p206 = scmp.eq.s32.totalorder %s39, 0
      %p207 = por %p205, %p206
      %p208 = scmp.ne.s32.totalorder %s196, %s197
      %p209 = scmp.eq.s32.totalorder %s40, 1
      %p210 = por %p208, %p209
      %p212 = scmp.ne.s32.totalorder %s197, %s211
      %p213 = scmp.eq.s32.totalorder %s40, 0
      %p214 = por %p212, %p213
      %s216 = sadd.s32 %s215, 1
      %p219 = scmp.eq.s32.totalorder %s34, 1
      %p220 = scmp.ne.s32.totalorder %s215, %s217
      %p221 = scmp.eq.s32.totalorder %s34, 0
      %p222 = por %p220, %p221
      %p223 = scmp.ne.s32.totalorder %s215, %s217
      %p224 = scmp.eq.s32.totalorder %s39, 1
      %p225 = por %p223, %p224
      %p226 = scmp.ne.s32.totalorder %s217, %s218
      %p227 = scmp.eq.s32.totalorder %s39, 0
      %p228 = por %p226, %p227
      %p229 = scmp.ne.s32.totalorder %s217, %s218
      %p230 = scmp.eq.s32.totalorder %s40, 1
      %p231 = por %p229, %p230
      %p233 = scmp.ne.s32.totalorder %s218, %s232
      %p234 = scmp.eq.s32.totalorder %s40, 0
      %p235 = por %p233, %p234
      %s237 = sadd.s32 %s236, 1
      %p240 = scmp.eq.s32.totalorder %s34, 1
      %p241 = scmp.ne.s32.totalorder %s236, %s238
      %p242 = scmp.eq.s32.totalorder %s34, 0
      %p243 = por %p241, %p242
      %p244 = scmp.ne.s32.totalorder %s236, %s238
      %p245 = scmp.eq.s32.totalorder %s39, 1
      %p246 = por %p244, %p245
      %p247 = scmp.ne.s32.totalorder %s238, %s239
      %p248 = scmp.eq.s32.totalorder %s39, 0
      %p249 = por %p247, %p248
      %p250 = scmp.ne.s32.totalorder %s238, %s239
      %p251 = scmp.eq.s32.totalorder %s40, 1
      %p252 = por %p250, %p251
      %p254 = scmp.ne.s32.totalorder %s239, %s253
      %p255 = scmp.eq.s32.totalorder %s40, 0
      %p256 = por %p254, %p255
      %s258 = sadd.s32 %s257, 1
      %p261 = scmp.eq.s32.totalorder %s34, 1
      %p262 = scmp.ne.s32.totalorder %s257, %s259
      %p263 = scmp.eq.s32.totalorder %s34, 0
      %p264 = por %p262, %p263
      %p265 = scmp.ne.s32.totalorder %s257, %s259
      %p266 = scmp.eq.s32.totalorder %s39, 1
      %p267 = por %p265, %p266
      %p268 = scmp.ne.s32.totalorder %s259, %s260
      %p269 = scmp.eq.s32.totalorder %s39, 0
      %p270 = por %p268, %p269
      %p271 = scmp.ne.s32.totalorder %s259, %s260
      %p272 = scmp.eq.s32.totalorder %s40, 1
      %p273 = por %p271, %p272
      %p275 = scmp.ne.s32.totalorder %s260, %s274
      %p276 = scmp.eq.s32.totalorder %s40, 0
      %p277 = por %p275, %p276
      %s279 = sadd.s32 %s278, 1
      %p282 = scmp.eq.s32.totalorder %s34, 1
      %p283 = scmp.ne.s32.totalorder %s278, %s280
      %p284 = scmp.eq.s32.totalorder %s34, 0
      %p285 = por %p283, %p284
      %p286 = scmp.ne.s32.totalorder %s278, %s280
      %p287 = scmp.eq.s32.totalorder %s39, 1
      %p288 = por %p286, %p287
      %p289 = scmp.ne.s32.totalorder %s280, %s281
      %p290 = scmp.eq.s32.totalorder %s39, 0
      %p291 = por %p289, %p290
      %p292 = scmp.ne.s32.totalorder %s280, %s281
      %p293 = scmp.eq.s32.totalorder %s40, 1
      %p294 = por %p292, %p293
      %p296 = scmp.ne.s32.totalorder %s281, %s295
      %p297 = scmp.eq.s32.totalorder %s40, 0
      %p298 = por %p296, %p297
      %s300 = sadd.s32 %s299, 1
      %p303 = scmp.eq.s32.totalorder %s34, 1
      %p304 = scmp.ne.s32.totalorder %s299, %s301
      %p305 = scmp.eq.s32.totalorder %s34, 0
      %p306 = por %p304, %p305
      %p307 = scmp.ne.s32.totalorder %s299, %s301
      %p308 = scmp.eq.s32.totalorder %s39, 1
      %p309 = por %p307, %p308
      %p310 = scmp.ne.s32.totalorder %s301, %s302
      %p311 = scmp.eq.s32.totalorder %s39, 0
      %p312 = por %p310, %p311
      %p313 = scmp.ne.s32.totalorder %s301, %s302
      %p314 = scmp.eq.s32.totalorder %s40, 1
      %p315 = por %p313, %p314
      %p317 = scmp.ne.s32.totalorder %s302, %s316
      %p318 = scmp.eq.s32.totalorder %s40, 0
      %p319 = por %p317, %p318
      %s321 = sadd.s32 %s320, 1
      %p324 = scmp.eq.s32.totalorder %s34, 1
      %p325 = scmp.ne.s32.totalorder %s320, %s322
      %p326 = scmp.eq.s32.totalorder %s34, 0
      %p327 = por %p325, %p326
      %p328 = scmp.ne.s32.totalorder %s320, %s322
      %p329 = scmp.eq.s32.totalorder %s39, 1
      %p330 = por %p328, %p329
      %p331 = scmp.ne.s32.totalorder %s322, %s323
      %p332 = scmp.eq.s32.totalorder %s39, 0
      %p333 = por %p331, %p332
      %p334 = scmp.ne.s32.totalorder %s322, %s323
      %p335 = scmp.eq.s32.totalorder %s40, 1
      %p336 = por %p334, %p335
      %p338 = scmp.ne.s32.totalorder %s323, %s337
      %p339 = scmp.eq.s32.totalorder %s40, 0
      %p340 = por %p338, %p339
      %s342 = sadd.s32 %s341, 1
      %p345 = scmp.eq.s32.totalorder %s34, 1
      %p346 = scmp.ne.s32.totalorder %s341, %s343
      %p347 = scmp.eq.s32.totalorder %s34, 0
      %p348 = por %p346, %p347
      %p349 = scmp.ne.s32.totalorder %s341, %s343
      %p350 = scmp.eq.s32.totalorder %s39, 1
      %p351 = por %p349, %p350
      %p352 = scmp.ne.s32.totalorder %s343, %s344
      %p353 = scmp.eq.s32.totalorder %s39, 0
      %p354 = por %p352, %p353
      %p355 = scmp.ne.s32.totalorder %s343, %s344
      %p356 = scmp.eq.s32.totalorder %s40, 1
      %p357 = por %p355, %p356
      %p359 = scmp.ne.s32.totalorder %s344, %s358
      %p360 = scmp.eq.s32.totalorder %s40, 0
      %p361 = por %p359, %p360
      %s362 = ssub.s32 %s34, %s41
      %p363 = scmp.eq.s32.totalorder %s362, 0
      %s365 = sadd.s32 %s364, 1
      %s366 = scalar_select %p363, %s364, %s365
      %p369 = pneg %p363
      %p370 = scmp.eq.s32.totalorder %s34, 1
      %p371 = por %p369, %p370
      %p372 = scmp.ne.s32.totalorder %s364, %s367
      %p373 = scmp.eq.s32.totalorder %s34, 0
      %p374 = por %p372, %p373
      %p375 = scmp.ne.s32.totalorder %s364, %s367
      %p376 = scmp.eq.s32.totalorder %s39, 1
      %p377 = por %p375, %p376
      %p378 = scmp.ne.s32.totalorder %s367, %s368
      %p379 = scmp.eq.s32.totalorder %s39, 0
      %p380 = por %p378, %p379
      %p381 = scmp.ne.s32.totalorder %s367, %s368
      %p382 = scmp.eq.s32.totalorder %s40, 1
      %p383 = por %p381, %p382
      %p385 = scmp.ne.s32.totalorder %s368, %s384
      %p386 = scmp.eq.s32.totalorder %s40, 0
      %p387 = por %p385, %p386
      %p388 = scmp.le.s32.totalorder 1, %s34
      %p389 = scmp.lt.s32.totalorder %s34, 3
      %p390 = pnand %p388, %p389
      %p391 = pneg %p390
      // Predicated region
      $region9: #{residual_group_forward.1} parent=5 // pred_check
        _
      $region10: #{residual_group_forward.1} parent=5 // pred_check_branch
        %393 = sbr.rel (%p390) target = $region12
      $region11: #{residual_group_forward.1} parent=5 // pred_region
        %s394 = ssub.s32 %s34, 1
        // Predicated region
        $region13: #{residual_group_forward.1} parent=11 // pred_check
          %p395 = pneg %p81
        $region14: #{residual_group_forward.1} parent=11 // pred_check_branch
          %397 = sbr.rel (%p395) target = $region16
        $region15: #{residual_group_forward.1} parent=11 // pred_region
          %s399 = ssub.s32 36864, 36864
          %400 = vsyncadd [#allocation9], %s399
          %s401 = sshll.u32 [#allocation8], 4
          %s402 = int_to_ptr.vmem [resolvable:$true] %s401
          %407 = dma.hbm_to_vmem [thread:$0]  %s1, 36864, %s402, [#allocation9], 128, 128, 8
        $region16: #{residual_group_forward.1} parent=11 // pred_fallthru
          _
        // Predicated region
        $region17: #{residual_group_forward.1} parent=11 // pred_check
          %p408 = pneg %p102
        $region18: #{residual_group_forward.1} parent=11 // pred_check_branch
          %410 = sbr.rel (%p408) target = $region20
        $region19: #{residual_group_forward.1} parent=11 // pred_region
          %s412 = ssub.s32 32, 32
          %413 = vsyncadd [#allocation9], %s412
          %s414 = sshll.u32 [#allocation10], 4
          %s415 = int_to_ptr.vmem [resolvable:$true] %s414
          %420 = dma.hbm_to_vmem [thread:$0]  %s2, 32, %s415, [#allocation9], 16, 16, 1
        $region20: #{residual_group_forward.1} parent=11 // pred_fallthru
          _
        // Predicated region
        $region21: #{residual_group_forward.1} parent=11 // pred_check
          %p421 = pneg %p123
        $region22: #{residual_group_forward.1} parent=11 // pred_check_branch
          %423 = sbr.rel (%p421) target = $region24
        $region23: #{residual_group_forward.1} parent=11 // pred_region
          %s425 = ssub.s32 32, 32
          %426 = vsyncadd [#allocation12], %s425
          %s427 = sshll.u32 [#allocation11], 4
          %s428 = int_to_ptr.vmem [resolvable:$true] %s427
          %433 = dma.hbm_to_vmem [thread:$0]  %s3, 32, %s428, [#allocation12], 16, 16, 1
        $region24: #{residual_group_forward.1} parent=11 // pred_fallthru
          _
        // Predicated region
        $region25: #{residual_group_forward.1} parent=11 // pred_check
          %p434 = pneg %p144
        $region26: #{residual_group_forward.1} parent=11 // pred_check_branch
          %436 = sbr.rel (%p434) target = $region28
        $region27: #{residual_group_forward.1} parent=11 // pred_region
          %s438 = ssub.s32 36864, 36864
          %439 = vsyncadd [#allocation12], %s438
          %s440 = sshll.u32 [#allocation13], 4
          %s441 = int_to_ptr.vmem [resolvable:$true] %s440
          %446 = dma.hbm_to_vmem [thread:$0]  %s4, 36864, %s441, [#allocation12], 128, 128, 8
        $region28: #{residual_group_forward.1} parent=11 // pred_fallthru
          _
        // Predicated region
        $region29: #{residual_group_forward.1} parent=11 // pred_check
          %p447 = pneg %p165
        $region30: #{residual_group_forward.1} parent=11 // pred_check_branch
          %449 = sbr.rel (%p447) target = $region32
        $region31: #{residual_group_forward.1} parent=11 // pred_region
          %s451 = ssub.s32 32, 32
          %452 = vsyncadd [#allocation15], %s451
          %s453 = sshll.u32 [#allocation14], 4
          %s454 = int_to_ptr.vmem [resolvable:$true] %s453
          %459 = dma.hbm_to_vmem [thread:$0]  %s5, 32, %s454, [#allocation15], 16, 16, 1
        $region32: #{residual_group_forward.1} parent=11 // pred_fallthru
          _
        // Predicated region
        $region33: #{residual_group_forward.1} parent=11 // pred_check
          %p460 = pneg %p186
        $region34: #{residual_group_forward.1} parent=11 // pred_check_branch
          %462 = sbr.rel (%p460) target = $region36
        $region35: #{residual_group_forward.1} parent=11 // pred_region
          %s464 = ssub.s32 32, 32
          %465 = vsyncadd [#allocation15], %s464
          %s466 = sshll.u32 [#allocation16], 4
          %s467 = int_to_ptr.vmem [resolvable:$true] %s466
          %472 = dma.hbm_to_vmem [thread:$0]  %s6, 32, %s467, [#allocation15], 16, 16, 1
        $region36: #{residual_group_forward.1} parent=11 // pred_fallthru
          _
        // Predicated region
        $region37: #{residual_group_forward.1} parent=11 // pred_check
          %p473 = pneg %p207
        $region38: #{residual_group_forward.1} parent=11 // pred_check_branch
          %475 = sbr.rel (%p473) target = $region40
        $region39: #{residual_group_forward.1} parent=11 // pred_region
          _
        $region40: #{residual_group_forward.1} parent=11 // pred_fallthru
          _
        // Predicated region
        $region41: #{residual_group_forward.1} parent=11 // pred_check
          %p476 = pneg %p228
        $region42: #{residual_group_forward.1} parent=11 // pred_check_branch
          %478 = sbr.rel (%p476) target = $region44
        $region43: #{residual_group_forward.1} parent=11 // pred_region
          %s480 = ssub.s32 32, 32
          %481 = vsyncadd [#allocation18], %s480
          %s482 = sshll.u32 [#allocation17], 4
          %s483 = int_to_ptr.vmem [resolvable:$true] %s482
          %488 = dma.hbm_to_vmem [thread:$0]  %s8, 32, %s483, [#allocation18], 16, 16, 1
        $region44: #{residual_group_forward.1} parent=11 // pred_fallthru
          _
        // Predicated region
        $region45: #{residual_group_forward.1} parent=11 // pred_check
          %p489 = pneg %p249
        $region46: #{residual_group_forward.1} parent=11 // pred_check_branch
          %491 = sbr.rel (%p489) target = $region48
        $region47: #{residual_group_forward.1} parent=11 // pred_region
          %s493 = ssub.s32 32, 32
          %494 = vsyncadd [#allocation18], %s493
          %s495 = sshll.u32 [#allocation19], 4
          %s496 = int_to_ptr.vmem [resolvable:$true] %s495
          %501 = dma.hbm_to_vmem [thread:$0]  %s9, 32, %s496, [#allocation18], 16, 16, 1
        $region48: #{residual_group_forward.1} parent=11 // pred_fallthru
          _
        // Predicated region
        $region49: #{residual_group_forward.1} parent=11 // pred_check
          %p502 = pneg %p270
        $region50: #{residual_group_forward.1} parent=11 // pred_check_branch
          %504 = sbr.rel (%p502) target = $region52
        $region51: #{residual_group_forward.1} parent=11 // pred_region
          %s506 = ssub.s32 256, 256
          %507 = vsyncadd [#allocation21], %s506
          %s508 = sshll.u32 [#allocation20], 4
          %s509 = int_to_ptr.vmem [resolvable:$true] %s508
          %514 = dma.hbm_to_vmem [thread:$0]  %s10, 256, %s509, [#allocation21], 128, 128, 8
        $region52: #{residual_group_forward.1} parent=11 // pred_fallthru
          _
        // Predicated region
        $region53: #{residual_group_forward.1} parent=11 // pred_check
          %p515 = pneg %p291
        $region54: #{residual_group_forward.1} parent=11 // pred_check_branch
          %517 = sbr.rel (%p515) target = $region56
        $region55: #{residual_group_forward.1} parent=11 // pred_region
          %s519 = ssub.s32 32, 32
          %520 = vsyncadd [#allocation21], %s519
          %s521 = sshll.u32 [#allocation22], 4
          %s522 = int_to_ptr.vmem [resolvable:$true] %s521
          %527 = dma.hbm_to_vmem [thread:$0]  %s11, 32, %s522, [#allocation21], 16, 16, 1
        $region56: #{residual_group_forward.1} parent=11 // pred_fallthru
          _
        // Predicated region
        $region57: #{residual_group_forward.1} parent=11 // pred_check
          %p528 = pneg %p312
        $region58: #{residual_group_forward.1} parent=11 // pred_check_branch
          %530 = sbr.rel (%p528) target = $region60
        $region59: #{residual_group_forward.1} parent=11 // pred_region
          %s532 = ssub.s32 32, 32
          %533 = vsyncadd [#allocation24], %s532
          %s534 = sshll.u32 [#allocation23], 4
          %s535 = int_to_ptr.vmem [resolvable:$true] %s534
          %540 = dma.hbm_to_vmem [thread:$0]  %s12, 32, %s535, [#allocation24], 16, 16, 1
        $region60: #{residual_group_forward.1} parent=11 // pred_fallthru
          _
        // Predicated region
        $region61: #{residual_group_forward.1} parent=11 // pred_check
          %p541 = pneg %p333
        $region62: #{residual_group_forward.1} parent=11 // pred_check_branch
          %543 = sbr.rel (%p541) target = $region64
        $region63: #{residual_group_forward.1} parent=11 // pred_region
          %s545 = ssub.s32 18432, 18432
          %546 = vsyncadd [#allocation24], %s545
          %s547 = sshll.u32 [#allocation25], 4
          %s548 = int_to_ptr.vmem [resolvable:$true] %s547
          %553 = dma.hbm_to_vmem [thread:$0]  %s13, 18432, %s548, [#allocation24], 128, 128, 8
        $region64: #{residual_group_forward.1} parent=11 // pred_fallthru
          _
        // Predicated region
        $region65: #{residual_group_forward.1} parent=11 // pred_check
          %p554 = pneg %p354
        $region66: #{residual_group_forward.1} parent=11 // pred_check_branch
          %556 = sbr.rel (%p554) target = $region68
        $region67: #{residual_group_forward.1} parent=11 // pred_region
          %s558 = ssub.s32 16, 16
          %559 = vsyncadd [#allocation27], %s558
          %s561 = sshll.u32 [#allocation26], 4
          %s562 = int_to_ptr.vmem [resolvable:$true] %s561
          %564 = dma.hbm_to_vmem [thread:$0]  %s14, 16, %s562, [#allocation27]
        $region68: #{residual_group_forward.1} parent=11 // pred_fallthru
          _
      $region12: #{residual_group_forward.1} parent=5 // pred_fallthru
        _
      %p565 = scmp.lt.s32.totalorder %s34, 2
      // Predicated region
      $region69: #{residual_group_forward.1} parent=5 // pred_check
        %p566 = pneg %p565
      $region70: #{residual_group_forward.1} parent=5 // pred_check_branch
        %568 = sbr.rel (%p566) target = $region72
      $region71: #{residual_group_forward.1} parent=5 // pred_region
        // Predicated region
        $region73: #{residual_group_forward.1} parent=71 // pred_check
          %p569 = pneg %p54
        $region74: #{residual_group_forward.1} parent=71 // pred_check_branch
          %571 = sbr.rel (%p569) target = $region76
        $region75: #{residual_group_forward.1} parent=71 // pred_region
          %s572 = sand.u32 %s44, 1
          %s573 = scalar_lea.sflag [#allocation6], %s572
          %s574 = sand.u32 %s44, 1
          %s575 = smul.addr %s574, 512
          %s576 = scalar_lea.vmem [#allocation5], %s575
          %s578 = ssub.s32 8192, 8192
          %579 = vsyncadd %s573, %s578
          %s580 = smul.addr %s34, 64
          %s581 = smul.addr %s580, 128
          %s582 = scalar_lea.hbm %s0, %s581
          %s583 = sshll.u32 %s576, 4
          %s584 = int_to_ptr.vmem [resolvable:$true] %s583
          %589 = dma.hbm_to_vmem [thread:$0]  %s582, 8192, %s584, %s573, 128, 128, 8
        $region76: #{residual_group_forward.1} parent=71 // pred_fallthru
          _
      $region72: #{residual_group_forward.1} parent=5 // pred_fallthru
        _
      %p590 = scmp.le.s32.totalorder 1, %s34
      %p591 = scmp.lt.s32.totalorder %s34, 3
      %p592 = pnand %p590, %p591
      %p593 = pneg %p592
      // Predicated region
      $region77: #{residual_group_forward.1} parent=5 // pred_check
        _
      $region78: #{residual_group_forward.1} parent=5 // pred_check_branch
        %595 = sbr.rel (%p592) target = $region80
      $region79: #{residual_group_forward.1} parent=5 // pred_region
        %s596 = ssub.s32 %s34, 1
        %s597 = sand.u32 %s47, 1
        %s598 = scalar_lea.sflag [#allocation6], %s597
        %s599 = sand.u32 %s47, 1
        %s600 = smul.addr %s599, 512
        %s601 = scalar_lea.vmem [#allocation5], %s600
        // Predicated region
        $region81: #{residual_group_forward.1} parent=79 // pred_check
          %p602 = pneg %p60
        $region82: #{residual_group_forward.1} parent=79 // pred_check_branch
          %604 = sbr.rel (%p602) target = $region84
        $region83: #{residual_group_forward.1} parent=79 // pred_region
          %605 = dma.done %s598, 8192
        $region84: #{residual_group_forward.1} parent=79 // pred_fallthru
          _
        // Predicated region
        $region85: #{residual_group_forward.1} parent=79 // pred_check
          %p606 = pneg %p81
        $region86: #{residual_group_forward.1} parent=79 // pred_check_branch
          %608 = sbr.rel (%p606) target = $region88
        $region87: #{residual_group_forward.1} parent=79 // pred_region
          %609 = dma.done [#allocation9], 36864
        $region88: #{residual_group_forward.1} parent=79 // pred_fallthru
          _
        // Predicated region
        $region89: #{residual_group_forward.1} parent=79 // pred_check
          %p610 = pneg %p102
        $region90: #{residual_group_forward.1} parent=79 // pred_check_branch
          %612 = sbr.rel (%p610) target = $region92
        $region91: #{residual_group_forward.1} parent=79 // pred_region
          %613 = dma.done [#allocation9], 32
        $region92: #{residual_group_forward.1} parent=79 // pred_fallthru
          _
        // Predicated region
        $region93: #{residual_group_forward.1} parent=79 // pred_check
          %p614 = pneg %p123
        $region94: #{residual_group_forward.1} parent=79 // pred_check_branch
          %616 = sbr.rel (%p614) target = $region96
        $region95: #{residual_group_forward.1} parent=79 // pred_region
          %617 = dma.done [#allocation12], 32
        $region96: #{residual_group_forward.1} parent=79 // pred_fallthru
          _
        // Predicated region
        $region97: #{residual_group_forward.1} parent=79 // pred_check
          %p618 = pneg %p144
        $region98: #{residual_group_forward.1} parent=79 // pred_check_branch
          %620 = sbr.rel (%p618) target = $region100
        $region99: #{residual_group_forward.1} parent=79 // pred_region
          %621 = dma.done [#allocation12], 36864
        $region100: #{residual_group_forward.1} parent=79 // pred_fallthru
          _
        // Predicated region
        $region101: #{residual_group_forward.1} parent=79 // pred_check
          %p622 = pneg %p165
        $region102: #{residual_group_forward.1} parent=79 // pred_check_branch
          %624 = sbr.rel (%p622) target = $region104
        $region103: #{residual_group_forward.1} parent=79 // pred_region
          %625 = dma.done [#allocation15], 32
        $region104: #{residual_group_forward.1} parent=79 // pred_fallthru
          _
        // Predicated region
        $region105: #{residual_group_forward.1} parent=79 // pred_check
          %p626 = pneg %p186
        $region106: #{residual_group_forward.1} parent=79 // pred_check_branch
          %628 = sbr.rel (%p626) target = $region108
        $region107: #{residual_group_forward.1} parent=79 // pred_region
          %629 = dma.done [#allocation15], 32
        $region108: #{residual_group_forward.1} parent=79 // pred_fallthru
          _
        // Predicated region
        $region109: #{residual_group_forward.1} parent=79 // pred_check
          %p630 = pneg %p228
        $region110: #{residual_group_forward.1} parent=79 // pred_check_branch
          %632 = sbr.rel (%p630) target = $region112
        $region111: #{residual_group_forward.1} parent=79 // pred_region
          %633 = dma.done [#allocation18], 32
        $region112: #{residual_group_forward.1} parent=79 // pred_fallthru
          _
        // Predicated region
        $region113: #{residual_group_forward.1} parent=79 // pred_check
          %p634 = pneg %p249
        $region114: #{residual_group_forward.1} parent=79 // pred_check_branch
          %636 = sbr.rel (%p634) target = $region116
        $region115: #{residual_group_forward.1} parent=79 // pred_region
          %637 = dma.done [#allocation18], 32
        $region116: #{residual_group_forward.1} parent=79 // pred_fallthru
          _
        // Predicated region
        $region117: #{residual_group_forward.1} parent=79 // pred_check
          %p638 = pneg %p270
        $region118: #{residual_group_forward.1} parent=79 // pred_check_branch
          %640 = sbr.rel (%p638) target = $region120
        $region119: #{residual_group_forward.1} parent=79 // pred_region
          %641 = dma.done [#allocation21], 256
        $region120: #{residual_group_forward.1} parent=79 // pred_fallthru
          _
        // Predicated region
        $region121: #{residual_group_forward.1} parent=79 // pred_check
          %p642 = pneg %p291
        $region122: #{residual_group_forward.1} parent=79 // pred_check_branch
          %644 = sbr.rel (%p642) target = $region124
        $region123: #{residual_group_forward.1} parent=79 // pred_region
          %645 = dma.done [#allocation21], 32
        $region124: #{residual_group_forward.1} parent=79 // pred_fallthru
          _
        // Predicated region
        $region125: #{residual_group_forward.1} parent=79 // pred_check
          %p646 = pneg %p312
        $region126: #{residual_group_forward.1} parent=79 // pred_check_branch
          %648 = sbr.rel (%p646) target = $region128
        $region127: #{residual_group_forward.1} parent=79 // pred_region
          %649 = dma.done [#allocation24], 32
        $region128: #{residual_group_forward.1} parent=79 // pred_fallthru
          _
        // Predicated region
        $region129: #{residual_group_forward.1} parent=79 // pred_check
          %p650 = pneg %p333
        $region130: #{residual_group_forward.1} parent=79 // pred_check_branch
          %652 = sbr.rel (%p650) target = $region132
        $region131: #{residual_group_forward.1} parent=79 // pred_region
          %653 = dma.done [#allocation24], 18432
        $region132: #{residual_group_forward.1} parent=79 // pred_fallthru
          _
        // Predicated region
        $region133: #{residual_group_forward.1} parent=79 // pred_check
          %p654 = pneg %p354
        $region134: #{residual_group_forward.1} parent=79 // pred_check_branch
          %656 = sbr.rel (%p654) target = $region136
        $region135: #{residual_group_forward.1} parent=79 // pred_region
          %657 = dma.done [#allocation27], 16
        $region136: #{residual_group_forward.1} parent=79 // pred_fallthru
          _
        %s658 = sand.u32 %s47, 1
        %s659 = scalar_lea.sflag [#allocation6], %s658
        %s660 = sand.u32 %s47, 1
        %s661 = smul.addr %s660, 512
        %s662 = scalar_lea.vmem [#allocation5], %s661
        %p663 = pneg %p60
        %p664 = pneg %p57
        %p665 = pneg %p81
        %p666 = pneg %p78
        %p667 = pneg %p102
        %p668 = pneg %p99
        %p669 = pneg %p123
        %p670 = pneg %p120
        %p671 = pneg %p144
        %p672 = pneg %p141
        %p673 = pneg %p165
        %p674 = pneg %p162
        %p675 = pneg %p186
        %p676 = pneg %p183
        %p677 = pneg %p207
        %p678 = pneg %p204
        %p679 = pneg %p228
        %p680 = pneg %p225
        %p681 = pneg %p249
        %p682 = pneg %p246
        %p683 = pneg %p270
        %p684 = pneg %p267
        %p685 = pneg %p291
        %p686 = pneg %p288
        %p687 = pneg %p312
        %p688 = pneg %p309
        %p689 = pneg %p333
        %p690 = pneg %p330
        %p691 = pneg %p354
        %p692 = pneg %p351
        %p693 = pneg %p380
        %p694 = pneg %p377
        %s695 = sand.u32 %s367, 1
        %s696 = scalar_lea.sflag [#allocation7], %s695
        %s697 = sand.u32 %s367, 1
        %s698 = smul.addr %s697, 512
        %s699 = scalar_lea.vmem [#allocation28], %s698
        %700 = vst [vmem:[#allocation2] sm:$0xff] 0.0
        %701 = vst [vmem:[#allocation2 + $0x8] sm:$0xff] 0.0
        %702 = vst [vmem:[#allocation2 + $0x10] sm:$0xff] 0.0
        %s703 = scalar_lea.vmem [#allocation2], 792
        %704 = vst [vmem:[%s703] sm:$0xff] 0.0
        %705 = vst [vmem:[%s703 + $0x8] sm:$0xff] 0.0
        %706 = vst [vmem:[%s703 + $0x10] sm:$0xff] 0.0
        %707 = vst [vmem:[#allocation2] sm:$0x1] 0.0
        %708 = vst [vmem:[#allocation2 + $0x18] sm:$0x1] 0.0
        %709 = vst [vmem:[#allocation2 + $0x30] sm:$0x1] 0.0
        %710 = vst [vmem:[#allocation2 + $0x48] sm:$0x1] 0.0
        %711 = vst [vmem:[#allocation2 + $0x60] sm:$0x1] 0.0
        %712 = vst [vmem:[#allocation2 + $0x78] sm:$0x1] 0.0
        %713 = vst [vmem:[#allocation2 + $0x90] sm:$0x1] 0.0
        %714 = vst [vmem:[#allocation2 + $0xa8] sm:$0x1] 0.0
        %715 = vst [vmem:[#allocation2 + $0xc0] sm:$0x1] 0.0
        %716 = vst [vmem:[#allocation2 + $0xd8] sm:$0x1] 0.0
        %717 = vst [vmem:[#allocation2 + $0xf0] sm:$0x1] 0.0
        %718 = vst [vmem:[#allocation2 + $0x108] sm:$0x1] 0.0
        %719 = vst [vmem:[#allocation2 + $0x120] sm:$0x1] 0.0
        %720 = vst [vmem:[#allocation2 + $0x138] sm:$0x1] 0.0
        %721 = vst [vmem:[#allocation2 + $0x150] sm:$0x1] 0.0
        %722 = vst [vmem:[#allocation2 + $0x168] sm:$0x1] 0.0
        %723 = vst [vmem:[#allocation2 + $0x180] sm:$0x1] 0.0
        %724 = vst [vmem:[#allocation2 + $0x198] sm:$0x1] 0.0
        %725 = vst [vmem:[#allocation2 + $0x1b0] sm:$0x1] 0.0
        %726 = vst [vmem:[#allocation2 + $0x1c8] sm:$0x1] 0.0
        %727 = vst [vmem:[#allocation2 + $0x1e0] sm:$0x1] 0.0
        %728 = vst [vmem:[#allocation2 + $0x1f8] sm:$0x1] 0.0
        %729 = vst [vmem:[#allocation2 + $0x210] sm:$0x1] 0.0
        %730 = vst [vmem:[#allocation2 + $0x228] sm:$0x1] 0.0
        %731 = vst [vmem:[#allocation2 + $0x240] sm:$0x1] 0.0
        %732 = vst [vmem:[#allocation2 + $0x258] sm:$0x1] 0.0
        %733 = vst [vmem:[#allocation2 + $0x270] sm:$0x1] 0.0
        %734 = vst [vmem:[#allocation2 + $0x288] sm:$0x1] 0.0
        %735 = vst [vmem:[#allocation2 + $0x2a0] sm:$0x1] 0.0
        %736 = vst [vmem:[#allocation2 + $0x2b8] sm:$0x1] 0.0
        %737 = vst [vmem:[#allocation2 + $0x2d0] sm:$0x1] 0.0
        %738 = vst [vmem:[#allocation2 + $0x2e8] sm:$0x1] 0.0
        %739 = vst [vmem:[#allocation2 + $0x300] sm:$0x1] 0.0
        %740 = vst [vmem:[#allocation2 + $0x318] sm:$0x1] 0.0
        %741 = vst [vmem:[#allocation2 + $0x11] sm:$0x1] 0.0
        %742 = vst [vmem:[#allocation2 + $0x29] sm:$0x1] 0.0
        %743 = vst [vmem:[#allocation2 + $0x41] sm:$0x1] 0.0
        %744 = vst [vmem:[#allocation2 + $0x59] sm:$0x1] 0.0
        %745 = vst [vmem:[#allocation2 + $0x71] sm:$0x1] 0.0
        %746 = vst [vmem:[#allocation2 + $0x89] sm:$0x1] 0.0
        %747 = vst [vmem:[#allocation2 + $0xa1] sm:$0x1] 0.0
        %748 = vst [vmem:[#allocation2 + $0xb9] sm:$0x1] 0.0
        %749 = vst [vmem:[#allocation2 + $0xd1] sm:$0x1] 0.0
        %750 = vst [vmem:[#allocation2 + $0xe9] sm:$0x1] 0.0
        %751 = vst [vmem:[#allocation2 + $0x101] sm:$0x1] 0.0
        %752 = vst [vmem:[#allocation2 + $0x119] sm:$0x1] 0.0
        %753 = vst [vmem:[#allocation2 + $0x131] sm:$0x1] 0.0
        %754 = vst [vmem:[#allocation2 + $0x149] sm:$0x1] 0.0
        %755 = vst [vmem:[#allocation2 + $0x161] sm:$0x1] 0.0
        %756 = vst [vmem:[#allocation2 + $0x179] sm:$0x1] 0.0
        %757 = vst [vmem:[#allocation2 + $0x191] sm:$0x1] 0.0
        %758 = vst [vmem:[#allocation2 + $0x1a9] sm:$0x1] 0.0
        %759 = vst [vmem:[#allocation2 + $0x1c1] sm:$0x1] 0.0
        %760 = vst [vmem:[#allocation2 + $0x1d9] sm:$0x1] 0.0
        %761 = vst [vmem:[#allocation2 + $0x1f1] sm:$0x1] 0.0
        %762 = vst [vmem:[#allocation2 + $0x209] sm:$0x1] 0.0
        %763 = vst [vmem:[#allocation2 + $0x221] sm:$0x1] 0.0
        %764 = vst [vmem:[#allocation2 + $0x239] sm:$0x1] 0.0
        %765 = vst [vmem:[#allocation2 + $0x251] sm:$0x1] 0.0
        %766 = vst [vmem:[#allocation2 + $0x269] sm:$0x1] 0.0
        %767 = vst [vmem:[#allocation2 + $0x281] sm:$0x1] 0.0
        %768 = vst [vmem:[#allocation2 + $0x299] sm:$0x1] 0.0
        %769 = vst [vmem:[#allocation2 + $0x2b1] sm:$0x1] 0.0
        %770 = vst [vmem:[#allocation2 + $0x2c9] sm:$0x1] 0.0
        %771 = vst [vmem:[#allocation2 + $0x2e1] sm:$0x1] 0.0
        %772 = vst [vmem:[#allocation2 + $0x2f9] sm:$0x1] 0.0
        %773 = vst [vmem:[#allocation2 + $0x311] sm:$0x1] 0.0
        %774 = vst [vmem:[#allocation2 + $0x329] sm:$0x1] 0.0
        %v775 = vld [vmem:[%s601] sm:$0xff]
        %v776 = vld [vmem:[%s601 + $0x8] sm:$0xff]
        %v777 = vld [vmem:[%s601 + $0x10] sm:$0xff]
        %v778 = vld [vmem:[%s601 + $0x18] sm:$0xff]
        %v779 = vld [vmem:[%s601 + $0x20] sm:$0xff]
        %v780 = vld [vmem:[%s601 + $0x28] sm:$0xff]
        %v781 = vld [vmem:[%s601 + $0x30] sm:$0xff]
        %v782 = vld [vmem:[%s601 + $0x38] sm:$0xff]
        %v783 = vld [vmem:[%s601 + $0x40] sm:$0xff]
        %v784 = vld [vmem:[%s601 + $0x48] sm:$0xff]
        %v785 = vld [vmem:[%s601 + $0x50] sm:$0xff]
        %v786 = vld [vmem:[%s601 + $0x58] sm:$0xff]
        %v787 = vld [vmem:[%s601 + $0x60] sm:$0xff]
        %v788 = vld [vmem:[%s601 + $0x68] sm:$0xff]
        %v789 = vld [vmem:[%s601 + $0x70] sm:$0xff]
        %v790 = vld [vmem:[%s601 + $0x78] sm:$0xff]
        %v791 = vld [vmem:[%s601 + $0x80] sm:$0xff]
        %v792 = vld [vmem:[%s601 + $0x88] sm:$0xff]
        %v793 = vld [vmem:[%s601 + $0x90] sm:$0xff]
        %v794 = vld [vmem:[%s601 + $0x98] sm:$0xff]
        %v795 = vld [vmem:[%s601 + $0xa0] sm:$0xff]
        %v796 = vld [vmem:[%s601 + $0xa8] sm:$0xff]
        %v797 = vld [vmem:[%s601 + $0xb0] sm:$0xff]
        %v798 = vld [vmem:[%s601 + $0xb8] sm:$0xff]
        %v799 = vld [vmem:[%s601 + $0xc0] sm:$0xff]
        %v800 = vld [vmem:[%s601 + $0xc8] sm:$0xff]
        %v801 = vld [vmem:[%s601 + $0xd0] sm:$0xff]
        %v802 = vld [vmem:[%s601 + $0xd8] sm:$0xff]
        %v803 = vld [vmem:[%s601 + $0xe0] sm:$0xff]
        %v804 = vld [vmem:[%s601 + $0xe8] sm:$0xff]
        %v805 = vld [vmem:[%s601 + $0xf0] sm:$0xff]
        %v806 = vld [vmem:[%s601 + $0xf8] sm:$0xff]
        %v807 = vld [vmem:[%s601 + $0x100] sm:$0xff]
        %v808 = vld [vmem:[%s601 + $0x108] sm:$0xff]
        %v809 = vld [vmem:[%s601 + $0x110] sm:$0xff]
        %v810 = vld [vmem:[%s601 + $0x118] sm:$0xff]
        %v811 = vld [vmem:[%s601 + $0x120] sm:$0xff]
        %v812 = vld [vmem:[%s601 + $0x128] sm:$0xff]
        %v813 = vld [vmem:[%s601 + $0x130] sm:$0xff]
        %v814 = vld [vmem:[%s601 + $0x138] sm:$0xff]
        %v815 = vld [vmem:[%s601 + $0x140] sm:$0xff]
        %v816 = vld [vmem:[%s601 + $0x148] sm:$0xff]
        %v817 = vld [vmem:[%s601 + $0x150] sm:$0xff]
        %v818 = vld [vmem:[%s601 + $0x158] sm:$0xff]
        %v819 = vld [vmem:[%s601 + $0x160] sm:$0xff]
        %v820 = vld [vmem:[%s601 + $0x168] sm:$0xff]
        %v821 = vld [vmem:[%s601 + $0x170] sm:$0xff]
        %v822 = vld [vmem:[%s601 + $0x178] sm:$0xff]
        %v823 = vld [vmem:[%s601 + $0x180] sm:$0xff]
        %v824 = vld [vmem:[%s601 + $0x188] sm:$0xff]
        %v825 = vld [vmem:[%s601 + $0x190] sm:$0xff]
        %v826 = vld [vmem:[%s601 + $0x198] sm:$0xff]
        %v827 = vld [vmem:[%s601 + $0x1a0] sm:$0xff]
        %v828 = vld [vmem:[%s601 + $0x1a8] sm:$0xff]
        %v829 = vld [vmem:[%s601 + $0x1b0] sm:$0xff]
        %v830 = vld [vmem:[%s601 + $0x1b8] sm:$0xff]
        %v831 = vld [vmem:[%s601 + $0x1c0] sm:$0xff]
        %v832 = vld [vmem:[%s601 + $0x1c8] sm:$0xff]
        %v833 = vld [vmem:[%s601 + $0x1d0] sm:$0xff]
        %v834 = vld [vmem:[%s601 + $0x1d8] sm:$0xff]
        %v835 = vld [vmem:[%s601 + $0x1e0] sm:$0xff]
        %v836 = vld [vmem:[%s601 + $0x1e8] sm:$0xff]
        %v837 = vld [vmem:[%s601 + $0x1f0] sm:$0xff]
        %v838 = vld [vmem:[%s601 + $0x1f8] sm:$0xff]
        %839 = vst [vmem:[#allocation4] sm:$0xff] %v775
        %840 = vst [vmem:[#allocation4 + $0x8] sm:$0xff] %v776
        %841 = vst [vmem:[#allocation4 + $0x10] sm:$0xff] %v777
        %842 = vst [vmem:[#allocation4 + $0x18] sm:$0xff] %v778
        %843 = vst [vmem:[#allocation4 + $0x20] sm:$0xff] %v779
        %844 = vst [vmem:[#allocation4 + $0x28] sm:$0xff] %v780
        %845 = vst [vmem:[#allocation4 + $0x30] sm:$0xff] %v781
        %846 = vst [vmem:[#allocation4 + $0x38] sm:$0xff] %v782
        %847 = vst [vmem:[#allocation4 + $0x40] sm:$0xff] %v783
        %848 = vst [vmem:[#allocation4 + $0x48] sm:$0xff] %v784
        %849 = vst [vmem:[#allocation4 + $0x50] sm:$0xff] %v785
        %850 = vst [vmem:[#allocation4 + $0x58] sm:$0xff] %v786
        %851 = vst [vmem:[#allocation4 + $0x60] sm:$0xff] %v787
        %852 = vst [vmem:[#allocation4 + $0x68] sm:$0xff] %v788
        %853 = vst [vmem:[#allocation4 + $0x70] sm:$0xff] %v789
        %854 = vst [vmem:[#allocation4 + $0x78] sm:$0xff] %v790
        %855 = vst [vmem:[#allocation4 + $0x80] sm:$0xff] %v791
        %856 = vst [vmem:[#allocation4 + $0x88] sm:$0xff] %v792
        %857 = vst [vmem:[#allocation4 + $0x90] sm:$0xff] %v793
        %858 = vst [vmem:[#allocation4 + $0x98] sm:$0xff] %v794
        %859 = vst [vmem:[#allocation4 + $0xa0] sm:$0xff] %v795
        %860 = vst [vmem:[#allocation4 + $0xa8] sm:$0xff] %v796
        %861 = vst [vmem:[#allocation4 + $0xb0] sm:$0xff] %v797
        %862 = vst [vmem:[#allocation4 + $0xb8] sm:$0xff] %v798
        %863 = vst [vmem:[#allocation4 + $0xc0] sm:$0xff] %v799
        %864 = vst [vmem:[#allocation4 + $0xc8] sm:$0xff] %v800
        %865 = vst [vmem:[#allocation4 + $0xd0] sm:$0xff] %v801
        %866 = vst [vmem:[#allocation4 + $0xd8] sm:$0xff] %v802
        %867 = vst [vmem:[#allocation4 + $0xe0] sm:$0xff] %v803
        %868 = vst [vmem:[#allocation4 + $0xe8] sm:$0xff] %v804
        %869 = vst [vmem:[#allocation4 + $0xf0] sm:$0xff] %v805
        %870 = vst [vmem:[#allocation4 + $0xf8] sm:$0xff] %v806
        %871 = vst [vmem:[#allocation4 + $0x100] sm:$0xff] %v807
        %872 = vst [vmem:[#allocation4 + $0x108] sm:$0xff] %v808
        %873 = vst [vmem:[#allocation4 + $0x110] sm:$0xff] %v809
        %874 = vst [vmem:[#allocation4 + $0x118] sm:$0xff] %v810
        %875 = vst [vmem:[#allocation4 + $0x120] sm:$0xff] %v811
        %876 = vst [vmem:[#allocation4 + $0x128] sm:$0xff] %v812
        %877 = vst [vmem:[#allocation4 + $0x130] sm:$0xff] %v813
        %878 = vst [vmem:[#allocation4 + $0x138] sm:$0xff] %v814
        %879 = vst [vmem:[#allocation4 + $0x140] sm:$0xff] %v815
        %880 = vst [vmem:[#allocation4 + $0x148] sm:$0xff] %v816
        %881 = vst [vmem:[#allocation4 + $0x150] sm:$0xff] %v817
        %882 = vst [vmem:[#allocation4 + $0x158] sm:$0xff] %v818
        %883 = vst [vmem:[#allocation4 + $0x160] sm:$0xff] %v819
        %884 = vst [vmem:[#allocation4 + $0x168] sm:$0xff] %v820
        %885 = vst [vmem:[#allocation4 + $0x170] sm:$0xff] %v821
        %886 = vst [vmem:[#allocation4 + $0x178] sm:$0xff] %v822
        %887 = vst [vmem:[#allocation4 + $0x180] sm:$0xff] %v823
        %888 = vst [vmem:[#allocation4 + $0x188] sm:$0xff] %v824
        %889 = vst [vmem:[#allocation4 + $0x190] sm:$0xff] %v825
        %890 = vst [vmem:[#allocation4 + $0x198] sm:$0xff] %v826
        %891 = vst [vmem:[#allocation4 + $0x1a0] sm:$0xff] %v827
        %892 = vst [vmem:[#allocation4 + $0x1a8] sm:$0xff] %v828
        %893 = vst [vmem:[#allocation4 + $0x1b0] sm:$0xff] %v829
        %894 = vst [vmem:[#allocation4 + $0x1b8] sm:$0xff] %v830
        %895 = vst [vmem:[#allocation4 + $0x1c0] sm:$0xff] %v831
        %896 = vst [vmem:[#allocation4 + $0x1c8] sm:$0xff] %v832
        %897 = vst [vmem:[#allocation4 + $0x1d0] sm:$0xff] %v833
        %898 = vst [vmem:[#allocation4 + $0x1d8] sm:$0xff] %v834
        %899 = vst [vmem:[#allocation4 + $0x1e0] sm:$0xff] %v835
        %900 = vst [vmem:[#allocation4 + $0x1e8] sm:$0xff] %v836
        %901 = vst [vmem:[#allocation4 + $0x1f0] sm:$0xff] %v837
        %902 = vst [vmem:[#allocation4 + $0x1f8] sm:$0xff] %v838
        loop: start=0, step=1, limit=2
        $region137: #{residual_group_forward.1} parent=79 // loop_pre_header
          _
        $region138: #{residual_group_forward.1} parent=79 // loop_header
          %s904 = sphi 0, %s908
          %p905 = scmp.ge.s32.totalorder %s904, 2
        $region139: #{residual_group_forward.1} parent=79 // loop_header_branch
          %907 = sbr.rel (%p905) target = $region143
        $region140: #{residual_group_forward.1} parent=79 // loop_body
          %v909 = vld [vmem:[#allocation4] sm:$0xff]
          %v910 = vld [vmem:[#allocation4 + $0x8] sm:$0xff]
          %v911 = vld [vmem:[#allocation4 + $0x10] sm:$0xff]
          %v912 = vld [vmem:[#allocation4 + $0x18] sm:$0xff]
          %v913 = vld [vmem:[#allocation4 + $0x20] sm:$0xff]
          %v914 = vld [vmem:[#allocation4 + $0x28] sm:$0xff]
          %v915 = vld [vmem:[#allocation4 + $0x30] sm:$0xff]
          %v916 = vld [vmem:[#allocation4 + $0x38] sm:$0xff]
          %v917 = vld [vmem:[#allocation4 + $0x40] sm:$0xff]
          %v918 = vld [vmem:[#allocation4 + $0x48] sm:$0xff]
          %v919 = vld [vmem:[#allocation4 + $0x50] sm:$0xff]
          %v920 = vld [vmem:[#allocation4 + $0x58] sm:$0xff]
          %v921 = vld [vmem:[#allocation4 + $0x60] sm:$0xff]
          %v922 = vld [vmem:[#allocation4 + $0x68] sm:$0xff]
          %v923 = vld [vmem:[#allocation4 + $0x70] sm:$0xff]
          %v924 = vld [vmem:[#allocation4 + $0x78] sm:$0xff]
          %v925 = vld [vmem:[#allocation4 + $0x80] sm:$0xff]
          %v926 = vld [vmem:[#allocation4 + $0x88] sm:$0xff]
          %v927 = vld [vmem:[#allocation4 + $0x90] sm:$0xff]
          %v928 = vld [vmem:[#allocation4 + $0x98] sm:$0xff]
          %v929 = vld [vmem:[#allocation4 + $0xa0] sm:$0xff]
          %v930 = vld [vmem:[#allocation4 + $0xa8] sm:$0xff]
          %v931 = vld [vmem:[#allocation4 + $0xb0] sm:$0xff]
          %v932 = vld [vmem:[#allocation4 + $0xb8] sm:$0xff]
          %v933 = vld [vmem:[#allocation4 + $0xc0] sm:$0xff]
          %v934 = vld [vmem:[#allocation4 + $0xc8] sm:$0xff]
          %v935 = vld [vmem:[#allocation4 + $0xd0] sm:$0xff]
          %v936 = vld [vmem:[#allocation4 + $0xd8] sm:$0xff]
          %v937 = vld [vmem:[#allocation4 + $0xe0] sm:$0xff]
          %v938 = vld [vmem:[#allocation4 + $0xe8] sm:$0xff]
          %v939 = vld [vmem:[#allocation4 + $0xf0] sm:$0xff]
          %v940 = vld [vmem:[#allocation4 + $0xf8] sm:$0xff]
          %v941 = vld [vmem:[#allocation4 + $0x100] sm:$0xff]
          %v942 = vld [vmem:[#allocation4 + $0x108] sm:$0xff]
          %v943 = vld [vmem:[#allocation4 + $0x110] sm:$0xff]
          %v944 = vld [vmem:[#allocation4 + $0x118] sm:$0xff]
          %v945 = vld [vmem:[#allocation4 + $0x120] sm:$0xff]
          %v946 = vld [vmem:[#allocation4 + $0x128] sm:$0xff]
          %v947 = vld [vmem:[#allocation4 + $0x130] sm:$0xff]
          %v948 = vld [vmem:[#allocation4 + $0x138] sm:$0xff]
          %v949 = vld [vmem:[#allocation4 + $0x140] sm:$0xff]
          %v950 = vld [vmem:[#allocation4 + $0x148] sm:$0xff]
          %v951 = vld [vmem:[#allocation4 + $0x150] sm:$0xff]
          %v952 = vld [vmem:[#allocation4 + $0x158] sm:$0xff]
          %v953 = vld [vmem:[#allocation4 + $0x160] sm:$0xff]
          %v954 = vld [vmem:[#allocation4 + $0x168] sm:$0xff]
          %v955 = vld [vmem:[#allocation4 + $0x170] sm:$0xff]
          %v956 = vld [vmem:[#allocation4 + $0x178] sm:$0xff]
          %v957 = vld [vmem:[#allocation4 + $0x180] sm:$0xff]
          %v958 = vld [vmem:[#allocation4 + $0x188] sm:$0xff]
          %v959 = vld [vmem:[#allocation4 + $0x190] sm:$0xff]
          %v960 = vld [vmem:[#allocation4 + $0x198] sm:$0xff]
          %v961 = vld [vmem:[#allocation4 + $0x1a0] sm:$0xff]
          %v962 = vld [vmem:[#allocation4 + $0x1a8] sm:$0xff]
          %v963 = vld [vmem:[#allocation4 + $0x1b0] sm:$0xff]
          %v964 = vld [vmem:[#allocation4 + $0x1b8] sm:$0xff]
          %v965 = vld [vmem:[#allocation4 + $0x1c0] sm:$0xff]
          %v966 = vld [vmem:[#allocation4 + $0x1c8] sm:$0xff]
          %v967 = vld [vmem:[#allocation4 + $0x1d0] sm:$0xff]
          %v968 = vld [vmem:[#allocation4 + $0x1d8] sm:$0xff]
          %v969 = vld [vmem:[#allocation4 + $0x1e0] sm:$0xff]
          %v970 = vld [vmem:[#allocation4 + $0x1e8] sm:$0xff]
          %v971 = vld [vmem:[#allocation4 + $0x1f0] sm:$0xff]
          %v972 = vld [vmem:[#allocation4 + $0x1f8] sm:$0xff]
          %s973 = scalar_lea.vmem [#allocation2], 24
          %974 = vst [vmem:[%s973 + $0x1] sm:$0xff] %v909
          %975 = vst [vmem:[%s973 + $0x9] sm:$0xff] %v910
          %976 = vst [vmem:[%s973 + $0x19] sm:$0xff] %v911
          %977 = vst [vmem:[%s973 + $0x21] sm:$0xff] %v912
          %978 = vst [vmem:[%s973 + $0x31] sm:$0xff] %v913
          %979 = vst [vmem:[%s973 + $0x39] sm:$0xff] %v914
          %980 = vst [vmem:[%s973 + $0x49] sm:$0xff] %v915
          %981 = vst [vmem:[%s973 + $0x51] sm:$0xff] %v916
          %982 = vst [vmem:[%s973 + $0x61] sm:$0xff] %v917
          %983 = vst [vmem:[%s973 + $0x69] sm:$0xff] %v918
          %984 = vst [vmem:[%s973 + $0x79] sm:$0xff] %v919
          %985 = vst [vmem:[%s973 + $0x81] sm:$0xff] %v920
          %986 = vst [vmem:[%s973 + $0x91] sm:$0xff] %v921
          %987 = vst [vmem:[%s973 + $0x99] sm:$0xff] %v922
          %988 = vst [vmem:[%s973 + $0xa9] sm:$0xff] %v923
          %989 = vst [vmem:[%s973 + $0xb1] sm:$0xff] %v924
          %990 = vst [vmem:[%s973 + $0xc1] sm:$0xff] %v925
          %991 = vst [vmem:[%s973 + $0xc9] sm:$0xff] %v926
          %992 = vst [vmem:[%s973 + $0xd9] sm:$0xff] %v927
          %993 = vst [vmem:[%s973 + $0xe1] sm:$0xff] %v928
          %994 = vst [vmem:[%s973 + $0xf1] sm:$0xff] %v929
          %995 = vst [vmem:[%s973 + $0xf9] sm:$0xff] %v930
          %996 = vst [vmem:[%s973 + $0x109] sm:$0xff] %v931
          %997 = vst [vmem:[%s973 + $0x111] sm:$0xff] %v932
          %998 = vst [vmem:[%s973 + $0x121] sm:$0xff] %v933
          %999 = vst [vmem:[%s973 + $0x129] sm:$0xff] %v934
          %1000 = vst [vmem:[%s973 + $0x139] sm:$0xff] %v935
          %1001 = vst [vmem:[%s973 + $0x141] sm:$0xff] %v936
          %1002 = vst [vmem:[%s973 + $0x151] sm:$0xff] %v937
          %1003 = vst [vmem:[%s973 + $0x159] sm:$0xff] %v938
          %1004 = vst [vmem:[%s973 + $0x169] sm:$0xff] %v939
          %1005 = vst [vmem:[%s973 + $0x171] sm:$0xff] %v940
          %1006 = vst [vmem:[%s973 + $0x181] sm:$0xff] %v941
          %1007 = vst [vmem:[%s973 + $0x189] sm:$0xff] %v942
          %1008 = vst [vmem:[%s973 + $0x199] sm:$0xff] %v943
          %1009 = vst [vmem:[%s973 + $0x1a1] sm:$0xff] %v944
          %1010 = vst [vmem:[%s973 + $0x1b1] sm:$0xff] %v945
          %1011 = vst [vmem:[%s973 + $0x1b9] sm:$0xff] %v946
          %1012 = vst [vmem:[%s973 + $0x1c9] sm:$0xff] %v947
          %1013 = vst [vmem:[%s973 + $0x1d1] sm:$0xff] %v948
          %1014 = vst [vmem:[%s973 + $0x1e1] sm:$0xff] %v949
          %1015 = vst [vmem:[%s973 + $0x1e9] sm:$0xff] %v950
          %1016 = vst [vmem:[%s973 + $0x1f9] sm:$0xff] %v951
          %1017 = vst [vmem:[%s973 + $0x201] sm:$0xff] %v952
          %1018 = vst [vmem:[%s973 + $0x211] sm:$0xff] %v953
          %1019 = vst [vmem:[%s973 + $0x219] sm:$0xff] %v954
          %1020 = vst [vmem:[%s973 + $0x229] sm:$0xff] %v955
          %1021 = vst [vmem:[%s973 + $0x231] sm:$0xff] %v956
          %1022 = vst [vmem:[%s973 + $0x241] sm:$0xff] %v957
          %1023 = vst [vmem:[%s973 + $0x249] sm:$0xff] %v958
          %1024 = vst [vmem:[%s973 + $0x259] sm:$0xff] %v959
          %1025 = vst [vmem:[%s973 + $0x261] sm:$0xff] %v960
          %1026 = vst [vmem:[%s973 + $0x271] sm:$0xff] %v961
          %1027 = vst [vmem:[%s973 + $0x279] sm:$0xff] %v962
          %1028 = vst [vmem:[%s973 + $0x289] sm:$0xff] %v963
          %1029 = vst [vmem:[%s973 + $0x291] sm:$0xff] %v964
          %1030 = vst [vmem:[%s973 + $0x2a1] sm:$0xff] %v965
          %1031 = vst [vmem:[%s973 + $0x2a9] sm:$0xff] %v966
          %1032 = vst [vmem:[%s973 + $0x2b9] sm:$0xff] %v967
          %1033 = vst [vmem:[%s973 + $0x2c1] sm:$0xff] %v968
          %1034 = vst [vmem:[%s973 + $0x2d1] sm:$0xff] %v969
          %1035 = vst [vmem:[%s973 + $0x2d9] sm:$0xff] %v970
          %1036 = vst [vmem:[%s973 + $0x2e9] sm:$0xff] %v971
          %1037 = vst [vmem:[%s973 + $0x2f1] sm:$0xff] %v972
          %s1038 = smul.u32 %s904, 1152
          %s1039 = scalar_lea.vmem [#allocation8], %s1038
          %v1040 = vld [vmem:[%s1039] sm:$0xff]
          %v1041 = vld [vmem:[%s1039 + $0x8] sm:$0xff]
          %v1042 = vld [vmem:[%s1039 + $0x10] sm:$0xff]
          %v1043 = vld [vmem:[%s1039 + $0x18] sm:$0xff]
          %v1044 = vld [vmem:[%s1039 + $0x20] sm:$0xff]
          %v1045 = vld [vmem:[%s1039 + $0x28] sm:$0xff]
          %v1046 = vld [vmem:[%s1039 + $0x30] sm:$0xff]
          %v1047 = vld [vmem:[%s1039 + $0x38] sm:$0xff]
          %v1048 = vld [vmem:[%s1039 + $0x40] sm:$0xff]
          %v1049 = vld [vmem:[%s1039 + $0x48] sm:$0xff]
          %v1050 = vld [vmem:[%s1039 + $0x50] sm:$0xff]
          %v1051 = vld [vmem:[%s1039 + $0x58] sm:$0xff]
          %v1052 = vld [vmem:[%s1039 + $0x60] sm:$0xff]
          %v1053 = vld [vmem:[%s1039 + $0x68] sm:$0xff]
          %v1054 = vld [vmem:[%s1039 + $0x70] sm:$0xff]
          %v1055 = vld [vmem:[%s1039 + $0x78] sm:$0xff]
          %v1056 = vld [vmem:[%s1039 + $0x80] sm:$0xff]
          %v1057 = vld [vmem:[%s1039 + $0x88] sm:$0xff]
          %v1058 = vld [vmem:[%s1039 + $0x90] sm:$0xff]
          %v1059 = vld [vmem:[%s1039 + $0x98] sm:$0xff]
          %v1060 = vld [vmem:[%s1039 + $0xa0] sm:$0xff]
          %v1061 = vld [vmem:[%s1039 + $0xa8] sm:$0xff]
          %v1062 = vld [vmem:[%s1039 + $0xb0] sm:$0xff]
          %v1063 = vld [vmem:[%s1039 + $0xb8] sm:$0xff]
          %v1064 = vld [vmem:[%s1039 + $0xc0] sm:$0xff]
          %v1065 = vld [vmem:[%s1039 + $0xc8] sm:$0xff]
          %v1066 = vld [vmem:[%s1039 + $0xd0] sm:$0xff]
          %v1067 = vld [vmem:[%s1039 + $0xd8] sm:$0xff]
          %v1068 = vld [vmem:[%s1039 + $0xe0] sm:$0xff]
          %v1069 = vld [vmem:[%s1039 + $0xe8] sm:$0xff]
          %v1070 = vld [vmem:[%s1039 + $0xf0] sm:$0xff]
          %v1071 = vld [vmem:[%s1039 + $0xf8] sm:$0xff]
          %v1072 = vld [vmem:[%s1039 + $0x100] sm:$0xff]
          %v1073 = vld [vmem:[%s1039 + $0x108] sm:$0xff]
          %v1074 = vld [vmem:[%s1039 + $0x110] sm:$0xff]
          %v1075 = vld [vmem:[%s1039 + $0x118] sm:$0xff]
          %v1076 = vld [vmem:[%s1039 + $0x120] sm:$0xff]
          %v1077 = vld [vmem:[%s1039 + $0x128] sm:$0xff]
          %v1078 = vld [vmem:[%s1039 + $0x130] sm:$0xff]
          %v1079 = vld [vmem:[%s1039 + $0x138] sm:$0xff]
          %v1080 = vld [vmem:[%s1039 + $0x140] sm:$0xff]
          %v1081 = vld [vmem:[%s1039 + $0x148] sm:$0xff]
          %v1082 = vld [vmem:[%s1039 + $0x150] sm:$0xff]
          %v1083 = vld [vmem:[%s1039 + $0x158] sm:$0xff]
          %v1084 = vld [vmem:[%s1039 + $0x160] sm:$0xff]
          %v1085 = vld [vmem:[%s1039 + $0x168] sm:$0xff]
          %v1086 = vld [vmem:[%s1039 + $0x170] sm:$0xff]
          %v1087 = vld [vmem:[%s1039 + $0x178] sm:$0xff]
          %v1088 = vld [vmem:[%s1039 + $0x180] sm:$0xff]
          %v1089 = vld [vmem:[%s1039 + $0x188] sm:$0xff]
          %v1090 = vld [vmem:[%s1039 + $0x190] sm:$0xff]
          %v1091 = vld [vmem:[%s1039 + $0x198] sm:$0xff]
          %v1092 = vld [vmem:[%s1039 + $0x1a0] sm:$0xff]
          %v1093 = vld [vmem:[%s1039 + $0x1a8] sm:$0xff]
          %v1094 = vld [vmem:[%s1039 + $0x1b0] sm:$0xff]
          %v1095 = vld [vmem:[%s1039 + $0x1b8] sm:$0xff]
          %v1096 = vld [vmem:[%s1039 + $0x1c0] sm:$0xff]
          %v1097 = vld [vmem:[%s1039 + $0x1c8] sm:$0xff]
          %v1098 = vld [vmem:[%s1039 + $0x1d0] sm:$0xff]
          %v1099 = vld [vmem:[%s1039 + $0x1d8] sm:$0xff]
          %v1100 = vld [vmem:[%s1039 + $0x1e0] sm:$0xff]
          %v1101 = vld [vmem:[%s1039 + $0x1e8] sm:$0xff]
          %v1102 = vld [vmem:[%s1039 + $0x1f0] sm:$0xff]
          %v1103 = vld [vmem:[%s1039 + $0x1f8] sm:$0xff]
          %v1104 = vld [vmem:[%s1039 + $0x200] sm:$0xff]
          %v1105 = vld [vmem:[%s1039 + $0x208] sm:$0xff]
          %v1106 = vld [vmem:[%s1039 + $0x210] sm:$0xff]
          %v1107 = vld [vmem:[%s1039 + $0x218] sm:$0xff]
          %v1108 = vld [vmem:[%s1039 + $0x220] sm:$0xff]
          %v1109 = vld [vmem:[%s1039 + $0x228] sm:$0xff]
          %v1110 = vld [vmem:[%s1039 + $0x230] sm:$0xff]
          %v1111 = vld [vmem:[%s1039 + $0x238] sm:$0xff]
          %v1112 = vld [vmem:[%s1039 + $0x240] sm:$0xff]
          %v1113 = vld [vmem:[%s1039 + $0x248] sm:$0xff]
          %v1114 = vld [vmem:[%s1039 + $0x250] sm:$0xff]
          %v1115 = vld [vmem:[%s1039 + $0x258] sm:$0xff]
          %v1116 = vld [vmem:[%s1039 + $0x260] sm:$0xff]
          %v1117 = vld [vmem:[%s1039 + $0x268] sm:$0xff]
          %v1118 = vld [vmem:[%s1039 + $0x270] sm:$0xff]
          %v1119 = vld [vmem:[%s1039 + $0x278] sm:$0xff]
          %v1120 = vld [vmem:[%s1039 + $0x280] sm:$0xff]
          %v1121 = vld [vmem:[%s1039 + $0x288] sm:$0xff]
          %v1122 = vld [vmem:[%s1039 + $0x290] sm:$0xff]
          %v1123 = vld [vmem:[%s1039 + $0x298] sm:$0xff]
          %v1124 = vld [vmem:[%s1039 + $0x2a0] sm:$0xff]
          %v1125 = vld [vmem:[%s1039 + $0x2a8] sm:$0xff]
          %v1126 = vld [vmem:[%s1039 + $0x2b0] sm:$0xff]
          %v1127 = vld [vmem:[%s1039 + $0x2b8] sm:$0xff]
          %v1128 = vld [vmem:[%s1039 + $0x2c0] sm:$0xff]
          %v1129 = vld [vmem:[%s1039 + $0x2c8] sm:$0xff]
          %v1130 = vld [vmem:[%s1039 + $0x2d0] sm:$0xff]
          %v1131 = vld [vmem:[%s1039 + $0x2d8] sm:$0xff]
          %v1132 = vld [vmem:[%s1039 + $0x2e0] sm:$0xff]
          %v1133 = vld [vmem:[%s1039 + $0x2e8] sm:$0xff]
          %v1134 = vld [vmem:[%s1039 + $0x2f0] sm:$0xff]
          %v1135 = vld [vmem:[%s1039 + $0x2f8] sm:$0xff]
          %v1136 = vld [vmem:[%s1039 + $0x300] sm:$0xff]
          %v1137 = vld [vmem:[%s1039 + $0x308] sm:$0xff]
          %v1138 = vld [vmem:[%s1039 + $0x310] sm:$0xff]
          %v1139 = vld [vmem:[%s1039 + $0x318] sm:$0xff]
          %v1140 = vld [vmem:[%s1039 + $0x320] sm:$0xff]
          %v1141 = vld [vmem:[%s1039 + $0x328] sm:$0xff]
          %v1142 = vld [vmem:[%s1039 + $0x330] sm:$0xff]
          %v1143 = vld [vmem:[%s1039 + $0x338] sm:$0xff]
          %v1144 = vld [vmem:[%s1039 + $0x340] sm:$0xff]
          %v1145 = vld [vmem:[%s1039 + $0x348] sm:$0xff]
          %v1146 = vld [vmem:[%s1039 + $0x350] sm:$0xff]
          %v1147 = vld [vmem:[%s1039 + $0x358] sm:$0xff]
          %v1148 = vld [vmem:[%s1039 + $0x360] sm:$0xff]
          %v1149 = vld [vmem:[%s1039 + $0x368] sm:$0xff]
          %v1150 = vld [vmem:[%s1039 + $0x370] sm:$0xff]
          %v1151 = vld [vmem:[%s1039 + $0x378] sm:$0xff]
          %v1152 = vld [vmem:[%s1039 + $0x380] sm:$0xff]
          %v1153 = vld [vmem:[%s1039 + $0x388] sm:$0xff]
          %v1154 = vld [vmem:[%s1039 + $0x390] sm:$0xff]
          %v1155 = vld [vmem:[%s1039 + $0x398] sm:$0xff]
          %v1156 = vld [vmem:[%s1039 + $0x3a0] sm:$0xff]
          %v1157 = vld [vmem:[%s1039 + $0x3a8] sm:$0xff]
          %v1158 = vld [vmem:[%s1039 + $0x3b0] sm:$0xff]
          %v1159 = vld [vmem:[%s1039 + $0x3b8] sm:$0xff]
          %v1160 = vld [vmem:[%s1039 + $0x3c0] sm:$0xff]
          %v1161 = vld [vmem:[%s1039 + $0x3c8] sm:$0xff]
          %v1162 = vld [vmem:[%s1039 + $0x3d0] sm:$0xff]
          %v1163 = vld [vmem:[%s1039 + $0x3d8] sm:$0xff]
          %v1164 = vld [vmem:[%s1039 + $0x3e0] sm:$0xff]
          %v1165 = vld [vmem:[%s1039 + $0x3e8] sm:$0xff]
          %v1166 = vld [vmem:[%s1039 + $0x3f0] sm:$0xff]
          %v1167 = vld [vmem:[%s1039 + $0x3f8] sm:$0xff]
          %v1168 = vld [vmem:[%s1039 + $0x400] sm:$0xff]
          %v1169 = vld [vmem:[%s1039 + $0x408] sm:$0xff]
          %v1170 = vld [vmem:[%s1039 + $0x410] sm:$0xff]
          %v1171 = vld [vmem:[%s1039 + $0x418] sm:$0xff]
          %v1172 = vld [vmem:[%s1039 + $0x420] sm:$0xff]
          %v1173 = vld [vmem:[%s1039 + $0x428] sm:$0xff]
          %v1174 = vld [vmem:[%s1039 + $0x430] sm:$0xff]
          %v1175 = vld [vmem:[%s1039 + $0x438] sm:$0xff]
          %v1176 = vld [vmem:[%s1039 + $0x440] sm:$0xff]
          %v1177 = vld [vmem:[%s1039 + $0x448] sm:$0xff]
          %v1178 = vld [vmem:[%s1039 + $0x450] sm:$0xff]
          %v1179 = vld [vmem:[%s1039 + $0x458] sm:$0xff]
          %v1180 = vld [vmem:[%s1039 + $0x460] sm:$0xff]
          %v1181 = vld [vmem:[%s1039 + $0x468] sm:$0xff]
          %v1182 = vld [vmem:[%s1039 + $0x470] sm:$0xff]
          %v1183 = vld [vmem:[%s1039 + $0x478] sm:$0xff]
          %s1184 = scalar_lea.vmem [#allocation10], %s904
          %v1185 = vld [vmem:[%s1184] sm:$0x1]
          %s1186 = scalar_lea.vmem [#allocation11], %s904
          %v1187 = vld [vmem:[%s1186] sm:$0x1]
          loop: start=0, step=1, limit=2
          $region144: #{residual_group_forward.1} parent=140 // loop_pre_header
            _
          $region145: #{residual_group_forward.1} parent=140 // loop_header
            %s1189 = sphi 0, %s1193
            %p1190 = scmp.ge.s32.totalorder %s1189, 2
          $region146: #{residual_group_forward.1} parent=140 // loop_header_branch
            %1192 = sbr.rel (%p1190) target = $region150
          $region147: #{residual_group_forward.1} parent=140 // loop_body
            %s1194 = smul.u32 %s1189, 16
            %s1195 = smul.u32 %s1194, 24
            %s1196 = scalar_lea.vmem [#allocation2], %s1195
            %v1197 = vld [vmem:[%s1196] sm:$0xff]
            %v1198 = vld [vmem:[%s1196 + $0x8] sm:$0xff]
            %v1199 = vld [vmem:[%s1196 + $0x10] sm:$0xff]
            %v1200 = vld [vmem:[%s1196 + $0x18] sm:$0xff]
            %v1201 = vld [vmem:[%s1196 + $0x20] sm:$0xff]
            %v1202 = vld [vmem:[%s1196 + $0x28] sm:$0xff]
            %v1203 = vld [vmem:[%s1196 + $0x30] sm:$0xff]
            %v1204 = vld [vmem:[%s1196 + $0x38] sm:$0xff]
            %v1205 = vld [vmem:[%s1196 + $0x40] sm:$0xff]
            %v1206 = vld [vmem:[%s1196 + $0x48] sm:$0xff]
            %v1207 = vld [vmem:[%s1196 + $0x50] sm:$0xff]
            %v1208 = vld [vmem:[%s1196 + $0x58] sm:$0xff]
            %v1209 = vld [vmem:[%s1196 + $0x60] sm:$0xff]
            %v1210 = vld [vmem:[%s1196 + $0x68] sm:$0xff]
            %v1211 = vld [vmem:[%s1196 + $0x70] sm:$0xff]
            %v1212 = vld [vmem:[%s1196 + $0x78] sm:$0xff]
            %v1213 = vld [vmem:[%s1196 + $0x80] sm:$0xff]
            %v1214 = vld [vmem:[%s1196 + $0x88] sm:$0xff]
            %v1215 = vld [vmem:[%s1196 + $0x90] sm:$0xff]
            %v1216 = vld [vmem:[%s1196 + $0x98] sm:$0xff]
            %v1217 = vld [vmem:[%s1196 + $0xa0] sm:$0xff]
            %v1218 = vld [vmem:[%s1196 + $0xa8] sm:$0xff]
            %v1219 = vld [vmem:[%s1196 + $0xb0] sm:$0xff]
            %v1220 = vld [vmem:[%s1196 + $0xb8] sm:$0xff]
            %v1221 = vld [vmem:[%s1196 + $0xc0] sm:$0xff]
            %v1222 = vld [vmem:[%s1196 + $0xc8] sm:$0xff]
            %v1223 = vld [vmem:[%s1196 + $0xd0] sm:$0xff]
            %v1224 = vld [vmem:[%s1196 + $0xd8] sm:$0xff]
            %v1225 = vld [vmem:[%s1196 + $0xe0] sm:$0xff]
            %v1226 = vld [vmem:[%s1196 + $0xe8] sm:$0xff]
            %v1227 = vld [vmem:[%s1196 + $0xf0] sm:$0xff]
            %v1228 = vld [vmem:[%s1196 + $0xf8] sm:$0xff]
            %v1229 = vld [vmem:[%s1196 + $0x100] sm:$0xff]
            %v1230 = vld [vmem:[%s1196 + $0x108] sm:$0xff]
            %v1231 = vld [vmem:[%s1196 + $0x110] sm:$0xff]
            %v1232 = vld [vmem:[%s1196 + $0x118] sm:$0xff]
            %v1233 = vld [vmem:[%s1196 + $0x120] sm:$0xff]
            %v1234 = vld [vmem:[%s1196 + $0x128] sm:$0xff]
            %v1235 = vld [vmem:[%s1196 + $0x130] sm:$0xff]
            %v1236 = vld [vmem:[%s1196 + $0x138] sm:$0xff]
            %v1237 = vld [vmem:[%s1196 + $0x140] sm:$0xff]
            %v1238 = vld [vmem:[%s1196 + $0x148] sm:$0xff]
            %v1239 = vld [vmem:[%s1196 + $0x150] sm:$0xff]
            %v1240 = vld [vmem:[%s1196 + $0x158] sm:$0xff]
            %v1241 = vld [vmem:[%s1196 + $0x160] sm:$0xff]
            %v1242 = vld [vmem:[%s1196 + $0x168] sm:$0xff]
            %v1243 = vld [vmem:[%s1196 + $0x170] sm:$0xff]
            %v1244 = vld [vmem:[%s1196 + $0x178] sm:$0xff]
            %v1245 = vld [vmem:[%s1196 + $0x180] sm:$0xff]
            %v1246 = vld [vmem:[%s1196 + $0x188] sm:$0xff]
            %v1247 = vld [vmem:[%s1196 + $0x190] sm:$0xff]
            %v1248 = vld [vmem:[%s1196 + $0x198] sm:$0xff]
            %v1249 = vld [vmem:[%s1196 + $0x1a0] sm:$0xff]
            %v1250 = vld [vmem:[%s1196 + $0x1a8] sm:$0xff]
            %vm1299 = vcmask 1046528
            %v1300 = vrot.slane %v1197, 1
            %v1301 = vrot.slane %v1198, 1
            %v1302 = vsel %vm1299, %v1300, %v1301
            %v1303 = vrot.slane %v1199, 1
            %v1304 = vsel %vm1299, %v1301, %v1303
            %v1305 = vrot.slane %v1200, 1
            %v1306 = vrot.slane %v1201, 1
            %v1307 = vsel %vm1299, %v1305, %v1306
            %v1308 = vrot.slane %v1202, 1
            %v1309 = vsel %vm1299, %v1306, %v1308
            %v1310 = vrot.slane %v1203, 1
            %v1311 = vrot.slane %v1204, 1
            %v1312 = vsel %vm1299, %v1310, %v1311
            %v1313 = vrot.slane %v1205, 1
            %v1314 = vsel %vm1299, %v1311, %v1313
            %v1315 = vrot.slane %v1206, 1
            %v1316 = vrot.slane %v1207, 1
            %v1317 = vsel %vm1299, %v1315, %v1316
            %v1318 = vrot.slane %v1208, 1
            %v1319 = vsel %vm1299, %v1316, %v1318
            %v1320 = vrot.slane %v1209, 1
            %v1321 = vrot.slane %v1210, 1
            %v1322 = vsel %vm1299, %v1320, %v1321
            %v1323 = vrot.slane %v1211, 1
            %v1324 = vsel %vm1299, %v1321, %v1323
            %v1325 = vrot.slane %v1212, 1
            %v1326 = vrot.slane %v1213, 1
            %v1327 = vsel %vm1299, %v1325, %v1326
            %v1328 = vrot.slane %v1214, 1
            %v1329 = vsel %vm1299, %v1326, %v1328
            %v1330 = vrot.slane %v1215, 1
            %v1331 = vrot.slane %v1216, 1
            %v1332 = vsel %vm1299, %v1330, %v1331
            %v1333 = vrot.slane %v1217, 1
            %v1334 = vsel %vm1299, %v1331, %v1333
            %v1335 = vrot.slane %v1218, 1
            %v1336 = vrot.slane %v1219, 1
            %v1337 = vsel %vm1299, %v1335, %v1336
            %v1338 = vrot.slane %v1220, 1
            %v1339 = vsel %vm1299, %v1336, %v1338
            %v1340 = vrot.slane %v1221, 1
            %v1341 = vrot.slane %v1222, 1
            %v1342 = vsel %vm1299, %v1340, %v1341
            %v1343 = vrot.slane %v1223, 1
            %v1344 = vsel %vm1299, %v1341, %v1343
            %v1345 = vrot.slane %v1224, 1
            %v1346 = vrot.slane %v1225, 1
            %v1347 = vsel %vm1299, %v1345, %v1346
            %v1348 = vrot.slane %v1226, 1
            %v1349 = vsel %vm1299, %v1346, %v1348
            %v1350 = vrot.slane %v1227, 1
            %v1351 = vrot.slane %v1228, 1
            %v1352 = vsel %vm1299, %v1350, %v1351
            %v1353 = vrot.slane %v1229, 1
            %v1354 = vsel %vm1299, %v1351, %v1353
            %v1355 = vrot.slane %v1230, 1
            %v1356 = vrot.slane %v1231, 1
            %v1357 = vsel %vm1299, %v1355, %v1356
            %v1358 = vrot.slane %v1232, 1
            %v1359 = vsel %vm1299, %v1356, %v1358
            %v1360 = vrot.slane %v1233, 1
            %v1361 = vrot.slane %v1234, 1
            %v1362 = vsel %vm1299, %v1360, %v1361
            %v1363 = vrot.slane %v1235, 1
            %v1364 = vsel %vm1299, %v1361, %v1363
            %v1365 = vrot.slane %v1236, 1
            %v1366 = vrot.slane %v1237, 1
            %v1367 = vsel %vm1299, %v1365, %v1366
            %v1368 = vrot.slane %v1238, 1
            %v1369 = vsel %vm1299, %v1366, %v1368
            %v1370 = vrot.slane %v1239, 1
            %v1371 = vrot.slane %v1240, 1
            %v1372 = vsel %vm1299, %v1370, %v1371
            %v1373 = vrot.slane %v1241, 1
            %v1374 = vsel %vm1299, %v1371, %v1373
            %v1375 = vrot.slane %v1242, 1
            %v1376 = vrot.slane %v1243, 1
            %v1377 = vsel %vm1299, %v1375, %v1376
            %v1378 = vrot.slane %v1244, 1
            %v1379 = vsel %vm1299, %v1376, %v1378
            %vm1412 = vcmask 1045504
            %v1413 = vrot.slane %v1197, 2
            %v1414 = vrot.slane %v1198, 2
            %v1415 = vsel %vm1412, %v1413, %v1414
            %v1416 = vrot.slane %v1199, 2
            %v1417 = vsel %vm1412, %v1414, %v1416
            %v1418 = vrot.slane %v1200, 2
            %v1419 = vrot.slane %v1201, 2
            %v1420 = vsel %vm1412, %v1418, %v1419
            %v1421 = vrot.slane %v1202, 2
            %v1422 = vsel %vm1412, %v1419, %v1421
            %v1423 = vrot.slane %v1203, 2
            %v1424 = vrot.slane %v1204, 2
            %v1425 = vsel %vm1412, %v1423, %v1424
            %v1426 = vrot.slane %v1205, 2
            %v1427 = vsel %vm1412, %v1424, %v1426
            %v1428 = vrot.slane %v1206, 2
            %v1429 = vrot.slane %v1207, 2
            %v1430 = vsel %vm1412, %v1428, %v1429
            %v1431 = vrot.slane %v1208, 2
            %v1432 = vsel %vm1412, %v1429, %v1431
            %v1433 = vrot.slane %v1209, 2
            %v1434 = vrot.slane %v1210, 2
            %v1435 = vsel %vm1412, %v1433, %v1434
            %v1436 = vrot.slane %v1211, 2
            %v1437 = vsel %vm1412, %v1434, %v1436
            %v1438 = vrot.slane %v1212, 2
            %v1439 = vrot.slane %v1213, 2
            %v1440 = vsel %vm1412, %v1438, %v1439
            %v1441 = vrot.slane %v1214, 2
            %v1442 = vsel %vm1412, %v1439, %v1441
            %v1443 = vrot.slane %v1215, 2
            %v1444 = vrot.slane %v1216, 2
            %v1445 = vsel %vm1412, %v1443, %v1444
            %v1446 = vrot.slane %v1217, 2
            %v1447 = vsel %vm1412, %v1444, %v1446
            %v1448 = vrot.slane %v1218, 2
            %v1449 = vrot.slane %v1219, 2
            %v1450 = vsel %vm1412, %v1448, %v1449
            %v1451 = vrot.slane %v1220, 2
            %v1452 = vsel %vm1412, %v1449, %v1451
            %v1453 = vrot.slane %v1221, 2
            %v1454 = vrot.slane %v1222, 2
            %v1455 = vsel %vm1412, %v1453, %v1454
            %v1456 = vrot.slane %v1223, 2
            %v1457 = vsel %vm1412, %v1454, %v1456
            %v1458 = vrot.slane %v1224, 2
            %v1459 = vrot.slane %v1225, 2
            %v1460 = vsel %vm1412, %v1458, %v1459
            %v1461 = vrot.slane %v1226, 2
            %v1462 = vsel %vm1412, %v1459, %v1461
            %v1463 = vrot.slane %v1227, 2
            %v1464 = vrot.slane %v1228, 2
            %v1465 = vsel %vm1412, %v1463, %v1464
            %v1466 = vrot.slane %v1229, 2
            %v1467 = vsel %vm1412, %v1464, %v1466
            %v1468 = vrot.slane %v1230, 2
            %v1469 = vrot.slane %v1231, 2
            %v1470 = vsel %vm1412, %v1468, %v1469
            %v1471 = vrot.slane %v1232, 2
            %v1472 = vsel %vm1412, %v1469, %v1471
            %v1473 = vrot.slane %v1233, 2
            %v1474 = vrot.slane %v1234, 2
            %v1475 = vsel %vm1412, %v1473, %v1474
            %v1476 = vrot.slane %v1235, 2
            %v1477 = vsel %vm1412, %v1474, %v1476
            %v1478 = vrot.slane %v1236, 2
            %v1479 = vrot.slane %v1237, 2
            %v1480 = vsel %vm1412, %v1478, %v1479
            %v1481 = vrot.slane %v1238, 2
            %v1482 = vsel %vm1412, %v1479, %v1481
            %v1483 = vrot.slane %v1239, 2
            %v1484 = vrot.slane %v1240, 2
            %v1485 = vsel %vm1412, %v1483, %v1484
            %v1486 = vrot.slane %v1241, 2
            %v1487 = vsel %vm1412, %v1484, %v1486
            %v1488 = vrot.slane %v1242, 2
            %v1489 = vrot.slane %v1243, 2
            %v1490 = vsel %vm1412, %v1488, %v1489
            %v1491 = vrot.slane %v1244, 2
            %v1492 = vsel %vm1412, %v1489, %v1491
            %v1528 = vrot.slane %v1245, 1
            %v1529 = vrot.slane %v1246, 1
            %v1530 = vsel %vm1299, %v1528, %v1529
            %v1531 = vrot.slane %v1247, 1
            %v1532 = vsel %vm1299, %v1529, %v1531
            %v1535 = vrot.slane %v1245, 2
            %v1536 = vrot.slane %v1246, 2
            %v1537 = vsel %vm1412, %v1535, %v1536
            %v1538 = vrot.slane %v1247, 2
            %v1539 = vsel %vm1412, %v1536, %v1538
            %v1545 = vrot.slane %v1248, 1
            %v1546 = vrot.slane %v1249, 1
            %v1547 = vsel %vm1299, %v1545, %v1546
            %v1548 = vrot.slane %v1250, 1
            %v1549 = vsel %vm1299, %v1546, %v1548
            %v1552 = vrot.slane %v1248, 2
            %v1553 = vrot.slane %v1249, 2
            %v1554 = vsel %vm1412, %v1552, %v1553
            %v1555 = vrot.slane %v1250, 2
            %v1556 = vsel %vm1412, %v1553, %v1555
            %1559 = vmatprep.subr.mxu0 0.0
            %1560 = vmatpush1.msra.mxu0 %v1040
            %1561 = vmatprep.subr.mxu0 0.0
            %1562 = vmatpush1.msra.mxu0 %v1041
            %1563 = vmatprep.subr.mxu0 0.0
            %1564 = vmatpush1.msra.mxu0 %v1042
            %1565 = vmatprep.subr.mxu0 0.0
            %1566 = vmatpush1.msra.mxu0 %v1043
            %1567 = vmatprep.subr.mxu0 0.0
            %1568 = vmatpush1.msra.mxu0 %v1044
            %1569 = vmatprep.subr.mxu0 0.0
            %1570 = vmatpush1.msra.mxu0 %v1045
            %1571 = vmatprep.subr.mxu0 0.0
            %1572 = vmatpush1.msra.mxu0 %v1046
            %1573 = vmatprep.subr.mxu0 0.0
            %1574 = vmatpush1.msra.mxu0 %v1047
            %1575 = vmatprep.subr.mxu0 0.0
            %1576 = vmatpush1.msra.mxu0 %v1048
            %1577 = vmatprep.subr.mxu0 0.0
            %1578 = vmatpush1.msra.mxu0 %v1049
            %1579 = vmatprep.subr.mxu0 0.0
            %1580 = vmatpush1.msra.mxu0 %v1050
            %1581 = vmatprep.subr.mxu0 0.0
            %1582 = vmatpush1.msra.mxu0 %v1051
            %1583 = vmatprep.subr.mxu0 0.0
            %1584 = vmatpush1.msra.mxu0 %v1052
            %1585 = vmatprep.subr.mxu0 0.0
            %1586 = vmatpush1.msra.mxu0 %v1053
            %1587 = vmatprep.subr.mxu0 0.0
            %1588 = vmatpush1.msra.mxu0 %v1054
            %1589 = vmatprep.subr.mxu0 0.0
            %1590 = vmatpush1.msra.mxu0 %v1055
            %1591 = vmatprep.subr.mxu0 0.0
            %1592 = vmatpush1.msra.mxu0 %v1056
            %1593 = vmatprep.subr.mxu0 0.0
            %1594 = vmatpush1.msra.mxu0 %v1057
            %1595 = vmatprep.subr.mxu0 0.0
            %1596 = vmatpush1.msra.mxu0 %v1058
            %1597 = vmatprep.subr.mxu0 0.0
            %1598 = vmatpush1.msra.mxu0 %v1059
            %1599 = vmatprep.subr.mxu0 0.0
            %1600 = vmatpush1.msra.mxu0 %v1060
            %1601 = vmatprep.subr.mxu0 0.0
            %1602 = vmatpush1.msra.mxu0 %v1061
            %1603 = vmatprep.subr.mxu0 0.0
            %1604 = vmatpush1.msra.mxu0 %v1062
            %1605 = vmatprep.subr.mxu0 0.0
            %1606 = vmatpush1.msra.mxu0 %v1063
            %1607 = vmatprep.subr.mxu0 0.0
            %1608 = vmatpush1.msra.mxu0 %v1064
            %1609 = vmatprep.subr.mxu0 0.0
            %1610 = vmatpush1.msra.mxu0 %v1065
            %1611 = vmatprep.subr.mxu0 0.0
            %1612 = vmatpush1.msra.mxu0 %v1066
            %1613 = vmatprep.subr.mxu0 0.0
            %1614 = vmatpush1.msra.mxu0 %v1067
            %1615 = vmatprep.subr.mxu0 0.0
            %1616 = vmatpush1.msra.mxu0 %v1068
            %1617 = vmatprep.subr.mxu0 0.0
            %1618 = vmatpush1.msra.mxu0 %v1069
            %1619 = vmatprep.subr.mxu0 0.0
            %1620 = vmatpush1.msra.mxu0 %v1070
            %1621 = vmatprep.subr.mxu0 0.0
            %1622 = vmatpush1.msra.mxu0 %v1071
            %1623 = vmatprep.mubr.f32.mxu0 %v1302
            %1624 = vmatmul.mubr.f32.gmra.mrb[0].mxu0 %v1197
            %v1625 = vpop.f32.mrb[0].mxu0
            %v1626 = vadd.f32 0.0, %v1625
            %v1627 = vpop.f32.mrb[0].mxu0
            %1628 = vmatprep.mubr.f32.mxu0 %v1304
            %1629 = vmatmul.mubr.f32.gmra.mrb[0].mxu0 %v1198
            %v1630 = vpop.f32.mrb[0].mxu0
            %v1631 = vadd.f32 0.0, %v1630
            %v1632 = vpop.f32.mrb[0].mxu0
            %1633 = vmatprep.mubr.f32.mxu0 %v1307
            %1634 = vmatmul.mubr.f32.gmra.mrb[0].mxu0 %v1200
            %v1635 = vpop.f32.mrb[0].mxu0
            %v1636 = vadd.f32 0.0, %v1635
            %v1637 = vpop.f32.mrb[0].mxu0
            %1638 = vmatprep.mubr.f32.mxu0 %v1309
            %1639 = vmatmul.mubr.f32.gmra.mrb[0].mxu0 %v1201
            %v1640 = vpop.f32.mrb[0].mxu0
            %v1641 = vadd.f32 0.0, %v1640
            %v1642 = vpop.f32.mrb[0].mxu0
            %1643 = vmatprep.mubr.f32.mxu0 %v1312
            %1644 = vmatmul.mubr.f32.gmra.mrb[0].mxu0 %v1203
            %v1645 = vpop.f32.mrb[0].mxu0
            %v1646 = vadd.f32 0.0, %v1645
            %v1647 = vpop.f32.mrb[0].mxu0
            %1648 = vmatprep.mubr.f32.mxu0 %v1314
            %1649 = vmatmul.mubr.f32.gmra.mrb[0].mxu0 %v1204
            %v1650 = vpop.f32.mrb[0].mxu0
            %v1651 = vadd.f32 0.0, %v1650
            %v1652 = vpop.f32.mrb[0].mxu0
            %1653 = vmatprep.mubr.f32.mxu0 %v1317
            %1654 = vmatmul.mubr.f32.gmra.mrb[0].mxu0 %v1206
            %v1655 = vpop.f32.mrb[0].mxu0
            %v1656 = vadd.f32 0.0, %v1655
            %v1657 = vpop.f32.mrb[0].mxu0
            %1658 = vmatprep.mubr.f32.mxu0 %v1319
            %1659 = vmatmul.mubr.f32.gmra.mrb[0].mxu0 %v1207
            %v1660 = vpop.f32.mrb[0].mxu0
            %v1661 = vadd.f32 0.0, %v1660
            %v1662 = vpop.f32.mrb[0].mxu0
            %1663 = vmatprep.mubr.f32.mxu0 %v1322
            %1664 = vmatmul.mubr.f32.gmra.mrb[0].mxu0 %v1209
            %v1665 = vpop.f32.mrb[0].mxu0
            %v1666 = vadd.f32 0.0, %v1665
            %v1667 = vpop.f32.mrb[0].mxu0
            %1668 = vmatprep.mubr.f32.mxu0 %v1324
            %1669 = vmatmul.mubr.f32.gmra.mrb[0].mxu0 %v1210
            %v1670 = vpop.f32.mrb[0].mxu0
            %v1671 = vadd.f32 0.0, %v1670
            %v1672 = vpop.f32.mrb[0].mxu0
            %1673 = vmatprep.mubr.f32.mxu0 %v1327
            %1674 = vmatmul.mubr.f32.gmra.mrb[0].mxu0 %v1212
            %v1675 = vpop.f32.mrb[0].mxu0
            %v1676 = vadd.f32 0.0, %v1675
            %v1677 = vpop.f32.mrb[0].mxu0
            %1678 = vmatprep.mubr.f32.mxu0 %v1329
            %1679 = vmatmul.mubr.f32.gmra.mrb[0].mxu0 %v1213
            %v1680 = vpop.f32.mrb[0].mxu0
            %v1681 = vadd.f32 0.0, %v1680
            %v1682 = vpop.f32.mrb[0].mxu0
            %1683 = vmatprep.mubr.f32.mxu0 %v1332
            %1684 = vmatmul.mubr.f32.gmra.mrb[0].mxu0 %v1215
            %v1685 = vpop.f32.mrb[0].mxu0
            %v1686 = vadd.f32 0.0, %v1685
            %v1687 = vpop.f32.mrb[0].mxu0
            %1688 = vmatprep.mubr.f32.mxu0 %v1334
            %1689 = vmatmul.mubr.f32.gmra.mrb[0].mxu0 %v1216
            %v1690 = vpop.f32.mrb[0].mxu0
            %v1691 = vadd.f32 0.0, %v1690
            %v1692 = vpop.f32.mrb[0].mxu0
            %1693 = vmatprep.mubr.f32.mxu0 %v1337
            %1694 = vmatmul.mubr.f32.gmra.mrb[0].mxu0 %v1218
            %v1695 = vpop.f32.mrb[0].mxu0
            %v1696 = vadd.f32 0.0, %v1695
            %v1697 = vpop.f32.mrb[0].mxu0
            %1698 = vmatprep.mubr.f32.mxu0 %v1339
            %1699 = vmatmul.mubr.f32.gmra.mrb[0].mxu0 %v1219
            %v1700 = vpop.f32.mrb[0].mxu0
            %v1701 = vadd.f32 0.0, %v1700
            %v1702 = vpop.f32.mrb[0].mxu0
            %1703 = vmatprep.mubr.f32.mxu0 %v1342
            %1704 = vmatmul.mubr.f32.gmra.mrb[0].mxu0 %v1221
            %v1705 = vpop.f32.mrb[0].mxu0
            %v1706 = vadd.f32 0.0, %v1705
            %v1707 = vpop.f32.mrb[0].mxu0
            %1708 = vmatprep.mubr.f32.mxu0 %v1344
            %1709 = vmatmul.mubr.f32.gmra.mrb[0].mxu0 %v1222
            %v1710 = vpop.f32.mrb[0].mxu0
            %v1711 = vadd.f32 0.0, %v1710
            %v1712 = vpop.f32.mrb[0].mxu0
            %1713 = vmatprep.mubr.f32.mxu0 %v1347
            %1714 = vmatmul.mubr.f32.gmra.mrb[0].mxu0 %v1224
            %v1715 = vpop.f32.mrb[0].mxu0
            %v1716 = vadd.f32 0.0, %v1715
            %v1717 = vpop.f32.mrb[0].mxu0
            %1718 = vmatprep.mubr.f32.mxu0 %v1349
            %1719 = vmatmul.mubr.f32.gmra.mrb[0].mxu0 %v1225
            %v1720 = vpop.f32.mrb[0].mxu0
            %v1721 = vadd.f32 0.0, %v1720
            %v1722 = vpop.f32.mrb[0].mxu0
            %1723 = vmatprep.mubr.f32.mxu0 %v1352
            %1724 = vmatmul.mubr.f32.gmra.mrb[0].mxu0 %v1227
            %v1725 = vpop.f32.mrb[0].mxu0
            %v1726 = vadd.f32 0.0, %v1725
            %v1727 = vpop.f32.mrb[0].mxu0
            %1728 = vmatprep.mubr.f32.mxu0 %v1354
            %1729 = vmatmul.mubr.f32.gmra.mrb[0].mxu0 %v1228
            %v1730 = vpop.f32.mrb[0].mxu0
            %v1731 = vadd.f32 0.0, %v1730
            %v1732 = vpop.f32.mrb[0].mxu0
            %1733 = vmatprep.mubr.f32.mxu0 %v1357
            %1734 = vmatmul.mubr.f32.gmra.mrb[0].mxu0 %v1230
            %v1735 = vpop.f32.mrb[0].mxu0
            %v1736 = vadd.f32 0.0, %v1735
            %v1737 = vpop.f32.mrb[0].mxu0
            %1738 = vmatprep.mubr.f32.mxu0 %v1359
            %1739 = vmatmul.mubr.f32.gmra.mrb[0].mxu0 %v1231
            %v1740 = vpop.f32.mrb[0].mxu0
            %v1741 = vadd.f32 0.0, %v1740
            %v1742 = vpop.f32.mrb[0].mxu0
            %1743 = vmatprep.mubr.f32.mxu0 %v1362
            %1744 = vmatmul.mubr.f32.gmra.mrb[0].mxu0 %v1233
            %v1745 = vpop.f32.mrb[0].mxu0
            %v1746 = vadd.f32 0.0, %v1745
            %v1747 = vpop.f32.mrb[0].mxu0
            %1748 = vmatprep.mubr.f32.mxu0 %v1364
            %1749 = vmatmul.mubr.f32.gmra.mrb[0].mxu0 %v1234
            %v1750 = vpop.f32.mrb[0].mxu0
            %v1751 = vadd.f32 0.0, %v1750
            %v1752 = vpop.f32.mrb[0].mxu0
            %1753 = vmatprep.mubr.f32.mxu0 %v1367
            %1754 = vmatmul.mubr.f32.gmra.mrb[0].mxu0 %v1236
            %v1755 = vpop.f32.mrb[0].mxu0
            %v1756 = vadd.f32 0.0, %v1755
            %v1757 = vpop.f32.mrb[0].mxu0
            %1758 = vmatprep.mubr.f32.mxu0 %v1369
            %1759 = vmatmul.mubr.f32.gmra.mrb[0].mxu0 %v1237
            %v1760 = vpop.f32.mrb[0].mxu0
            %v1761 = vadd.f32 0.0, %v1760
            %v1762 = vpop.f32.mrb[0].mxu0
            %1763 = vmatprep.mubr.f32.mxu0 %v1372
            %1764 = vmatmul.mubr.f32.gmra.mrb[0].mxu0 %v1239
            %v1765 = vpop.f32.mrb[0].mxu0
            %v1766 = vadd.f32 0.0, %v1765
            %v1767 = vpop.f32.mrb[0].mxu0
            %1768 = vmatprep.mubr.f32.mxu0 %v1374
            %1769 = vmatmul.mubr.f32.gmra.mrb[0].mxu0 %v1240
            %v1770 = vpop.f32.mrb[0].mxu0
            %v1771 = vadd.f32 0.0, %v1770
            %v1772 = vpop.f32.mrb[0].mxu0
            %1773 = vmatprep.mubr.f32.mxu0 %v1377
            %1774 = vmatmul.mubr.f32.gmra.mrb[0].mxu0 %v1242
            %v1775 = vpop.f32.mrb[0].mxu0
            %v1776 = vadd.f32 0.0, %v1775
            %v1777 = vpop.f32.mrb[0].mxu0
            %1778 = vmatprep.mubr.f32.mxu0 %v1379
            %1779 = vmatmul.mubr.f32.gmra.mrb[0].mxu0 %v1243
            %v1780 = vpop.f32.mrb[0].mxu0
            %v1781 = vadd.f32 0.0, %v1780
            %v1782 = vpop.f32.mrb[0].mxu0
            %1783 = vdwg.mxu0
            %1784 = vmatprep.subr.mxu0 0.0
            %1785 = vmatpush1.msra.mxu0 %v1072
            %1786 = vmatprep.subr.mxu0 0.0
            %1787 = vmatpush1.msra.mxu0 %v1073
            %1788 = vmatprep.subr.mxu0 0.0
            %1789 = vmatpush1.msra.mxu0 %v1074
            %1790 = vmatprep.subr.mxu0 0.0
            %1791 = vmatpush1.msra.mxu0 %v1075
            %1792 = vmatprep.subr.mxu0 0.0
            %1793 = vmatpush1.msra.mxu0 %v1076
            %1794 = vmatprep.subr.mxu0 0.0
            %1795 = vmatpush1.msra.mxu0 %v1077
            %1796 = vmatprep.subr.mxu0 0.0
            %1797 = vmatpush1.msra.mxu0 %v1078
            %1798 = vmatprep.subr.mxu0 0.0
            %1799 = vmatpush1.msra.mxu0 %v1079
            %1800 = vmatprep.subr.mxu0 0.0
            %1801 = vmatpush1.msra.mxu0 %v1080
            %1802 = vmatprep.subr.mxu0 0.0
            %1803 = vmatpush1.msra.mxu0 %v1081
            %1804 = vmatprep.subr.mxu0 0.0
            %1805 = vmatpush1.msra.mxu0 %v1082
            %1806 = vmatprep.subr.mxu0 0.0
            %1807 = vmatpush1.msra.mxu0 %v1083
            %1808 = vmatprep.subr.mxu0 0.0
            %1809 = vmatpush1.msra.mxu0 %v1084
            %1810 = vmatprep.subr.mxu0 0.0
            %1811 = vmatpush1.msra.mxu0 %v1085
            %1812 = vmatprep.subr.mxu0 0.0
            %1813 = vmatpush1.msra.mxu0 %v1086
            %1814 = vmatprep.subr.mxu0 0.0
            %1815 = vmatpush1.msra.mxu0 %v1087
            %1816 = vmatprep.subr.mxu0 0.0
            %1817 = vmatpush1.msra.mxu0 %v1088
            %1818 = vmatprep.subr.mxu0 0.0
            %1819 = vmatpush1.msra.mxu0 %v1089
            %1820 = vmatprep.subr.mxu0 0.0
            %1821 = vmatpush1.msra.mxu0 %v1090
            %1822 = vmatprep.subr.mxu0 0.0
            %1823 = vmatpush1.msra.mxu0 %v1091
            %1824 = vmatprep.subr.mxu0 0.0
            %1825 = vmatpush1.msra.mxu0 %v1092
            %1826 = vmatprep.subr.mxu0 0.0
            %1827 = vmatpush1.msra.mxu0 %v1093
            %1828 = vmatprep.subr.mxu0 0.0
            %1829 = vmatpush1.msra.mxu0 %v1094
            %1830 = vmatprep.subr.mxu0 0.0
            %1831 = vmatpush1.msra.mxu0 %v1095
            %1832 = vmatprep.subr.mxu0 0.0
            %1833 = vmatpush1.msra.mxu0 %v1096
            %1834 = vmatprep.subr.mxu0 0.0
            %1835 = vmatpush1.msra.mxu0 %v1097
            %1836 = vmatprep.subr.mxu0 0.0
            %1837 = vmatpush1.msra.mxu0 %v1098
            %1838 = vmatprep.subr.mxu0 0.0
            %1839 = vmatpush1.msra.mxu0 %v1099
            %1840 = vmatprep.subr.mxu0 0.0
            %1841 = vmatpush1.msra.mxu0 %v1100
            %1842 = vmatprep.subr.mxu0 0.0
            %1843 = vmatpush1.msra.mxu0 %v1101
            %1844 = vmatprep.subr.mxu0 0.0
            %1845 = vmatpush1.msra.mxu0 %v1102
            %1846 = vmatprep.subr.mxu0 0.0
            %1847 = vmatpush1.msra.mxu0 %v1103
            %1848 = vmatprep.mubr.f32.mxu0 %v1200
            %1849 = vmatmul.mubr.f32.gmra.mrb[0].mxu0 %v1415
            %v1850 = vpop.f32.mrb[0].mxu0
            %v1851 = vadd.f32 %v1626, %v1850
            %v1852 = vpop.f32.mrb[0].mxu0
            %1853 = vmatprep.mubr.f32.mxu0 %v1201
            %1854 = vmatmul.mubr.f32.gmra.mrb[0].mxu0 %v1417
            %v1855 = vpop.f32.mrb[0].mxu0
            %v1856 = vadd.f32 %v1631, %v1855
            %v1857 = vpop.f32.mrb[0].mxu0
            %1858 = vmatprep.mubr.f32.mxu0 %v1203
            %1859 = vmatmul.mubr.f32.gmra.mrb[0].mxu0 %v1420
            %v1860 = vpop.f32.mrb[0].mxu0
            %v1861 = vadd.f32 %v1636, %v1860
            %v1862 = vpop.f32.mrb[0].mxu0
            %1863 = vmatprep.mubr.f32.mxu0 %v1204
            %1864 = vmatmul.mubr.f32.gmra.mrb[0].mxu0 %v1422
            %v1865 = vpop.f32.mrb[0].mxu0
            %v1866 = vadd.f32 %v1641, %v1865
            %v1867 = vpop.f32.mrb[0].mxu0
            %1868 = vmatprep.mubr.f32.mxu0 %v1206
            %1869 = vmatmul.mubr.f32.gmra.mrb[0].mxu0 %v1425
            %v1870 = vpop.f32.mrb[0].mxu0
            %v1871 = vadd.f32 %v1646, %v1870
            %v1872 = vpop.f32.mrb[0].mxu0
            %1873 = vmatprep.mubr.f32.mxu0 %v1207
            %1874 = vmatmul.mubr.f32.gmra.mrb[0].mxu0 %v1427
            %v1875 = vpop.f32.mrb[0].mxu0
            %v1876 = vadd.f32 %v1651, %v1875
            %v1877 = vpop.f32.mrb[0].mxu0
            %1878 = vmatprep.mubr.f32.mxu0 %v1209
            %1879 = vmatmul.mubr.f32.gmra.mrb[0].mxu0 %v1430
            %v1880 = vpop.f32.mrb[0].mxu0
            %v1881 = vadd.f32 %v1656, %v1880
            %v1882 = vpop.f32.mrb[0].mxu0
            %1883 = vmatprep.mubr.f32.mxu0 %v1210
            %1884 = vmatmul.mubr.f32.gmra.mrb[0].mxu0 %v1432
            %v1885 = vpop.f32.mrb[0].mxu0
            %v1886 = vadd.f32 %v1661, %v1885
            %v1887 = vpop.f32.mrb[0].mxu0
            %1888 = vmatprep.mubr.f32.mxu0 %v1212
            %1889 = vmatmul.mubr.f32.gmra.mrb[0].mxu0 %v1435
            %v1890 = vpop.f32.mrb[0].mxu0
            %v1891 = vadd.f32 %v1666, %v1890
            %v1892 = vpop.f32.mrb[0].mxu0
            %1893 = vmatprep.mubr.f32.mxu0 %v1213
            %1894 = vmatmul.mubr.f32.gmra.mrb[0].mxu0 %v1437
            %v1895 = vpop.f32.mrb[0].mxu0
            %v1896 = vadd.f32 %v1671, %v1895
            %v1897 = vpop.f32.mrb[0].mxu0
            %1898 = vmatprep.mubr.f32.mxu0 %v1215
            %1899 = vmatmul.mubr.f32.gmra.mrb[0].mxu0 %v1440
            %v1900 = vpop.f32.mrb[0].mxu0
            %v1901 = vadd.f32 %v1676, %v1900
            %v1902 = vpop.f32.mrb[0].mxu0
            %1903 = vmatprep.mubr.f32.mxu0 %v1216
            %1904 = vmatmul.mubr.f32.gmra.mrb[0].mxu0 %v1442
            %v1905 = vpop.f32.mrb[0].mxu0
            %v1906 = vadd.f32 %v1681, %v1905
            %v1907 = vpop.f32.mrb[0].mxu0
            %1908 = vmatprep.mubr.f32.mxu0 %v1218
            %1909 = vmatmul.mubr.f32.gmra.mrb[0].mxu0 %v1445
            %v1910 = vpop.f32.mrb[0].mxu0
            %v1911 = vadd.f32 %v1686, %v1910
            %v1912 = vpop.f32.mrb[0].mxu0
            %1913 = vmatprep.mubr.f32.mxu0 %v1219
            %1914 = vmatmul.mubr.f32.gmra.mrb[0].mxu0 %v1447
            %v1915 = vpop.f32.mrb[0].mxu0
            %v1916 = vadd.f32 %v1691, %v1915
            %v1917 = vpop.f32.mrb[0].mxu0
            %1918 = vmatprep.mubr.f32.mxu0 %v1221
            %1919 = vmatmul.mubr.f32.gmra.mrb[0].mxu0 %v1450
            %v1920 = vpop.f32.mrb[0].mxu0
            %v1921 = vadd.f32 %v1696, %v1920
            %v1922 = vpop.f32.mrb[0].mxu0
            %1923 = vmatprep.mubr.f32.mxu0 %v1222
            %1924 = vmatmul.mubr.f32.gmra.mrb[0].mxu0 %v1452
            %v1925 = vpop.f32.mrb[0].mxu0
            %v1926 = vadd.f32 %v1701, %v1925
            %v1927 = vpop.f32.mrb[0].mxu0
            %1928 = vmatprep.mubr.f32.mxu0 %v1224
            %1929 = vmatmul.mubr.f32.gmra.mrb[0].mxu0 %v1455
            %v1930 = vpop.f32.mrb[0].mxu0
            %v1931 = vadd.f32 %v1706, %v1930
            %v1932 = vpop.f32.mrb[0].mxu0
            %1933 = vmatprep.mubr.f32.mxu0 %v1225
            %1934 = vmatmul.mubr.f32.gmra.mrb[0].mxu0 %v1457
            %v1935 = vpop.f32.mrb[0].mxu0
            %v1936 = vadd.f32 %v1711, %v1935
            %v1937 = vpop.f32.mrb[0].mxu0
            %1938 = vmatprep.mubr.f32.mxu0 %v1227
            %1939 = vmatmul.mubr.f32.gmra.mrb[0].mxu0 %v1460
            %v1940 = vpop.f32.mrb[0].mxu0
            %v1941 = vadd.f32 %v1716, %v1940
            %v1942 = vpop.f32.mrb[0].mxu0
            %1943 = vmatprep.mubr.f32.mxu0 %v1228
            %1944 = vmatmul.mubr.f32.gmra.mrb[0].mxu0 %v1462
            %v1945 = vpop.f32.mrb[0].mxu0
            %v1946 = vadd.f32 %v1721, %v1945
            %v1947 = vpop.f32.mrb[0].mxu0
            %1948 = vmatprep.mubr.f32.mxu0 %v1230
            %1949 = vmatmul.mubr.f32.gmra.mrb[0].mxu0 %v1465
            %v1950 = vpop.f32.mrb[0].mxu0
            %v1951 = vadd.f32 %v1726, %v1950
            %v1952 = vpop.f32.mrb[0].mxu0
            %1953 = vmatprep.mubr.f32.mxu0 %v1231
            %1954 = vmatmul.mubr.f32.gmra.mrb[0].mxu0 %v1467
            %v1955 = vpop.f32.mrb[0].mxu0
            %v1956 = vadd.f32 %v1731, %v1955
            %v1957 = vpop.f32.mrb[0].mxu0
            %1958 = vmatprep.mubr.f32.mxu0 %v1233
            %1959 = vmatmul.mubr.f32.gmra.mrb[0].mxu0 %v1470
            %v1960 = vpop.f32.mrb[0].mxu0
            %v1961 = vadd.f32 %v1736, %v1960
            %v1962 = vpop.f32.mrb[0].mxu0
            %1963 = vmatprep.mubr.f32.mxu0 %v1234
            %1964 = vmatmul.mubr.f32.gmra.mrb[0].mxu0 %v1472
            %v1965 = vpop.f32.mrb[0].mxu0
            %v1966 = vadd.f32 %v1741, %v1965
            %v1967 = vpop.f32.mrb[0].mxu0
            %1968 = vmatprep.mubr.f32.mxu0 %v1236
            %1969 = vmatmul.mubr.f32.gmra.mrb[0].mxu0 %v1475
            %v1970 = vpop.f32.mrb[0].mxu0
            %v1971 = vadd.f32 %v1746, %v1970
            %v1972 = vpop.f32.mrb[0].mxu0
            %1973 = vmatprep.mubr.f32.mxu0 %v1237
            %1974 = vmatmul.mubr.f32.gmra.mrb[0].mxu0 %v1477
            %v1975 = vpop.f32.mrb[0].mxu0
            %v1976 = vadd.f32 %v1751, %v1975
            %v1977 = vpop.f32.mrb[0].mxu0
            %1978 = vmatprep.mubr.f32.mxu0 %v1239
            %1979 = vmatmul.mubr.f32.gmra.mrb[0].mxu0 %v1480
            %v1980 = vpop.f32.mrb[0].mxu0
            %v1981 = vadd.f32 %v1756, %v1980
            %v1982 = vpop.f32.mrb[0].mxu0
            %1983 = vmatprep.mubr.f32.mxu0 %v1240
            %1984 = vmatmul.mubr.f32.gmra.mrb[0].mxu0 %v1482
            %v1985 = vpop.f32.mrb[0].mxu0
            %v1986 = vadd.f32 %v1761, %v1985
            %v1987 = vpop.f32.mrb[0].mxu0
            %1988 = vmatprep.mubr.f32.mxu0 %v1242
            %1989 = vmatmul.mubr.f32.gmra.mrb[0].mxu0 %v1485
            %v1990 = vpop.f32.mrb[0].mxu0
            %v1991 = vadd.f32 %v1766, %v1990
            %v1992 = vpop.f32.mrb[0].mxu0
            %1993 = vmatprep.mubr.f32.mxu0 %v1243
            %1994 = vmatmul.mubr.f32.gmra.mrb[0].mxu0 %v1487
            %v1995 = vpop.f32.mrb[0].mxu0
            %v1996 = vadd.f32 %v1771, %v1995
            %v1997 = vpop.f32.mrb[0].mxu0
            %1998 = vmatprep.mubr.f32.mxu0 %v1245
            %1999 = vmatmul.mubr.f32.gmra.mrb[0].mxu0 %v1490
            %v2000 = vpop.f32.mrb[0].mxu0
            %v2001 = vadd.f32 %v1776, %v2000
            %v2002 = vpop.f32.mrb[0].mxu0
            %2003 = vmatprep.mubr.f32.mxu0 %v1246
            %2004 = vmatmul.mubr.f32.gmra.mrb[0].mxu0 %v1492
            %v2005 = vpop.f32.mrb[0].mxu0
            %v2006 = vadd.f32 %v1781, %v2005
            %v2007 = vpop.f32.mrb[0].mxu0
            %2008 = vdwg.mxu0
            %2009 = vmatprep.subr.mxu0 0.0
            %2010 = vmatpush1.msra.mxu0 %v1104
            %2011 = vmatprep.subr.mxu0 0.0
            %2012 = vmatpush1.msra.mxu0 %v1105
            %2013 = vmatprep.subr.mxu0 0.0
            %2014 = vmatpush1.msra.mxu0 %v1106
            %2015 = vmatprep.subr.mxu0 0.0
            %2016 = vmatpush1.msra.mxu0 %v1107
            %2017 = vmatprep.subr.mxu0 0.0
            %2018 = vmatpush1.msra.mxu0 %v1108
            %2019 = vmatprep.subr.mxu0 0.0
            %2020 = vmatpush1.msra.mxu0 %v1109
            %2021 = vmatprep.subr.mxu0 0.0
            %2022 = vmatpush1.msra.mxu0 %v1110
            %2023 = vmatprep.subr.mxu0 0.0
            %2024 = vmatpush1.msra.mxu0 %v1111
            %2025 = vmatprep.subr.mxu0 0.0
            %2026 = vmatpush1.msra.mxu0 %v1112
            %2027 = vmatprep.subr.mxu0 0.0
            %2028 = vmatpush1.msra.mxu0 %v1113
            %2029 = vmatprep.subr.mxu0 0.0
            %2030 = vmatpush1.msra.mxu0 %v1114
            %2031 = vmatprep.subr.mxu0 0.0
            %2032 = vmatpush1.msra.mxu0 %v1115
            %2033 = vmatprep.subr.mxu0 0.0
            %2034 = vmatpush1.msra.mxu0 %v1116
            %2035 = vmatprep.subr.mxu0 0.0
            %2036 = vmatpush1.msra.mxu0 %v1117
            %2037 = vmatprep.subr.mxu0 0.0
            %2038 = vmatpush1.msra.mxu0 %v1118
            %2039 = vmatprep.subr.mxu0 0.0
            %2040 = vmatpush1.msra.mxu0 %v1119
            %2041 = vmatprep.subr.mxu0 0.0
            %2042 = vmatpush1.msra.mxu0 %v1120
            %2043 = vmatprep.subr.mxu0 0.0
            %2044 = vmatpush1.msra.mxu0 %v1121
            %2045 = vmatprep.subr.mxu0 0.0
            %2046 = vmatpush1.msra.mxu0 %v1122
            %2047 = vmatprep.subr.mxu0 0.0
            %2048 = vmatpush1.msra.mxu0 %v1123
            %2049 = vmatprep.subr.mxu0 0.0
            %2050 = vmatpush1.msra.mxu0 %v1124
            %2051 = vmatprep.subr.mxu0 0.0
            %2052 = vmatpush1.msra.mxu0 %v1125
            %2053 = vmatprep.subr.mxu0 0.0
            %2054 = vmatpush1.msra.mxu0 %v1126
            %2055 = vmatprep.subr.mxu0 0.0
            %2056 = vmatpush1.msra.mxu0 %v1127
            %2057 = vmatprep.subr.mxu0 0.0
            %2058 = vmatpush1.msra.mxu0 %v1128
            %2059 = vmatprep.subr.mxu0 0.0
            %2060 = vmatpush1.msra.mxu0 %v1129
            %2061 = vmatprep.subr.mxu0 0.0
            %2062 = vmatpush1.msra.mxu0 %v1130
            %2063 = vmatprep.subr.mxu0 0.0
            %2064 = vmatpush1.msra.mxu0 %v1131
            %2065 = vmatprep.subr.mxu0 0.0
            %2066 = vmatpush1.msra.mxu0 %v1132
            %2067 = vmatprep.subr.mxu0 0.0
            %2068 = vmatpush1.msra.mxu0 %v1133
            %2069 = vmatprep.subr.mxu0 0.0
            %2070 = vmatpush1.msra.mxu0 %v1134
            %2071 = vmatprep.subr.mxu0 0.0
            %2072 = vmatpush1.msra.mxu0 %v1135
            %2073 = vmatprep.mubr.f32.mxu0 %v1420
            %2074 = vmatmul.mubr.f32.gmra.mrb[0].mxu0 %v1307
            %v2075 = vpop.f32.mrb[0].mxu0
            %v2076 = vadd.f32 %v1851, %v2075
            %v2077 = vpop.f32.mrb[0].mxu0
            %2078 = vmatprep.mubr.f32.mxu0 %v1422
            %2079 = vmatmul.mubr.f32.gmra.mrb[0].mxu0 %v1309
            %v2080 = vpop.f32.mrb[0].mxu0
            %v2081 = vadd.f32 %v1856, %v2080
            %v2082 = vpop.f32.mrb[0].mxu0
            %2083 = vmatprep.mubr.f32.mxu0 %v1425
            %2084 = vmatmul.mubr.f32.gmra.mrb[0].mxu0 %v1312
            %v2085 = vpop.f32.mrb[0].mxu0
            %v2086 = vadd.f32 %v1861, %v2085
            %v2087 = vpop.f32.mrb[0].mxu0
            %2088 = vmatprep.mubr.f32.mxu0 %v1427
            %2089 = vmatmul.mubr.f32.gmra.mrb[0].mxu0 %v1314
            %v2090 = vpop.f32.mrb[0].mxu0
            %v2091 = vadd.f32 %v1866, %v2090
            %v2092 = vpop.f32.mrb[0].mxu0
            %2093 = vmatprep.mubr.f32.mxu0 %v1430
            %2094 = vmatmul.mubr.f32.gmra.mrb[0].mxu0 %v1317
            %v2095 = vpop.f32.mrb[0].mxu0
            %v2096 = vadd.f32 %v1871, %v2095
            %v2097 = vpop.f32.mrb[0].mxu0
            %2098 = vmatprep.mubr.f32.mxu0 %v1432
            %2099 = vmatmul.mubr.f32.gmra.mrb[0].mxu0 %v1319
            %v2100 = vpop.f32.mrb[0].mxu0
            %v2101 = vadd.f32 %v1876, %v2100
            %v2102 = vpop.f32.mrb[0].mxu0
            %2103 = vmatprep.mubr.f32.mxu0 %v1435
            %2104 = vmatmul.mubr.f32.gmra.mrb[0].mxu0 %v1322
            %v2105 = vpop.f32.mrb[0].mxu0
            %v2106 = vadd.f32 %v1881, %v2105
            %v2107 = vpop.f32.mrb[0].mxu0
            %2108 = vmatprep.mubr.f32.mxu0 %v1437
            %2109 = vmatmul.mubr.f32.gmra.mrb[0].mxu0 %v1324
            %v2110 = vpop.f32.mrb[0].mxu0
            %v2111 = vadd.f32 %v1886, %v2110
            %v2112 = vpop.f32.mrb[0].mxu0
            %2113 = vmatprep.mubr.f32.mxu0 %v1440
            %2114 = vmatmul.mubr.f32.gmra.mrb[0].mxu0 %v1327
            %v2115 = vpop.f32.mrb[0].mxu0
            %v2116 = vadd.f32 %v1891, %v2115
            %v2117 = vpop.f32.mrb[0].mxu0
            %2118 = vmatprep.mubr.f32.mxu0 %v1442
            %2119 = vmatmul.mubr.f32.gmra.mrb[0].mxu0 %v1329
            %v2120 = vpop.f32.mrb[0].mxu0
            %v2121 = vadd.f32 %v1896, %v2120
            %v2122 = vpop.f32.mrb[0].mxu0
            %2123 = vmatprep.mubr.f32.mxu0 %v1445
            %2124 = vmatmul.mubr.f32.gmra.mrb[0].mxu0 %v1332
            %v2125 = vpop.f32.mrb[0].mxu0
            %v2126 = vadd.f32 %v1901, %v2125
            %v2127 = vpop.f32.mrb[0].mxu0
            %2128 = vmatprep.mubr.f32.mxu0 %v1447
            %2129 = vmatmul.mubr.f32.gmra.mrb[0].mxu0 %v1334
            %v2130 = vpop.f32.mrb[0].mxu0
            %v2131 = vadd.f32 %v1906, %v2130
            %v2132 = vpop.f32.mrb[0].mxu0
            %2133 = vmatprep.mubr.f32.mxu0 %v1450
            %2134 = vmatmul.mubr.f32.gmra.mrb[0].mxu0 %v1337
            %v2135 = vpop.f32.mrb[0].mxu0
            %v2136 = vadd.f32 %v1911, %v2135
            %v2137 = vpop.f32.mrb[0].mxu0
            %2138 = vmatprep.mubr.f32.mxu0 %v1452
            %2139 = vmatmul.mubr.f32.gmra.mrb[0].mxu0 %v1339
            %v2140 = vpop.f32.mrb[0].mxu0
            %v2141 = vadd.f32 %v1916, %v2140
            %v2142 = vpop.f32.mrb[0].mxu0
            %2143 = vmatprep.mubr.f32.mxu0 %v1455
            %2144 = vmatmul.mubr.f32.gmra.mrb[0].mxu0 %v1342
            %v2145 = vpop.f32.mrb[0].mxu0
            %v2146 = vadd.f32 %v1921, %v2145
            %v2147 = vpop.f32.mrb[0].mxu0
            %2148 = vmatprep.mubr.f32.mxu0 %v1457
            %2149 = vmatmul.mubr.f32.gmra.mrb[0].mxu0 %v1344
            %v2150 = vpop.f32.mrb[0].mxu0
            %v2151 = vadd.f32 %v1926, %v2150
            %v2152 = vpop.f32.mrb[0].mxu0
            %2153 = vmatprep.mubr.f32.mxu0 %v1460
            %2154 = vmatmul.mubr.f32.gmra.mrb[0].mxu0 %v1347
            %v2155 = vpop.f32.mrb[0].mxu0
            %v2156 = vadd.f32 %v1931, %v2155
            %v2157 = vpop.f32.mrb[0].mxu0
            %2158 = vmatprep.mubr.f32.mxu0 %v1462
            %2159 = vmatmul.mubr.f32.gmra.mrb[0].mxu0 %v1349
            %v2160 = vpop.f32.mrb[0].mxu0
            %v2161 = vadd.f32 %v1936, %v2160
            %v2162 = vpop.f32.mrb[0].mxu0
            %2163 = vmatprep.mubr.f32.mxu0 %v1465
            %2164 = vmatmul.mubr.f32.gmra.mrb[0].mxu0 %v1352
            %v2165 = vpop.f32.mrb[0].mxu0
            %v2166 = vadd.f32 %v1941, %v2165
            %v2167 = vpop.f32.mrb[0].mxu0
            %2168 = vmatprep.mubr.f32.mxu0 %v1467
            %2169 = vmatmul.mubr.f32.gmra.mrb[0].mxu0 %v1354
            %v2170 = vpop.f32.mrb[0].mxu0
            %v2171 = vadd.f32 %v1946, %v2170
            %v2172 = vpop.f32.mrb[0].mxu0
            %2173 = vmatprep.mubr.f32.mxu0 %v1470
            %2174 = vmatmul.mubr.f32.gmra.mrb[0].mxu0 %v1357
            %v2175 = vpop.f32.mrb[0].mxu0
            %v2176 = vadd.f32 %v1951, %v2175
            %v2177 = vpop.f32.mrb[0].mxu0
            %2178 = vmatprep.mubr.f32.mxu0 %v1472
            %2179 = vmatmul.mubr.f32.gmra.mrb[0].mxu0 %v1359
            %v2180 = vpop.f32.mrb[0].mxu0
            %v2181 = vadd.f32 %v1956, %v2180
            %v2182 = vpop.f32.mrb[0].mxu0
            %2183 = vmatprep.mubr.f32.mxu0 %v1475
            %2184 = vmatmul.mubr.f32.gmra.mrb[0].mxu0 %v1362
            %v2185 = vpop.f32.mrb[0].mxu0
            %v2186 = vadd.f32 %v1961, %v2185
            %v2187 = vpop.f32.mrb[0].mxu0
            %2188 = vmatprep.mubr.f32.mxu0 %v1477
            %2189 = vmatmul.mubr.f32.gmra.mrb[0].mxu0 %v1364
            %v2190 = vpop.f32.mrb[0].mxu0
            %v2191 = vadd.f32 %v1966, %v2190
            %v2192 = vpop.f32.mrb[0].mxu0
            %2193 = vmatprep.mubr.f32.mxu0 %v1480
            %2194 = vmatmul.mubr.f32.gmra.mrb[0].mxu0 %v1367
            %v2195 = vpop.f32.mrb[0].mxu0
            %v2196 = vadd.f32 %v1971, %v2195
            %v2197 = vpop.f32.mrb[0].mxu0
            %2198 = vmatprep.mubr.f32.mxu0 %v1482
            %2199 = vmatmul.mubr.f32.gmra.mrb[0].mxu0 %v1369
            %v2200 = vpop.f32.mrb[0].mxu0
            %v2201 = vadd.f32 %v1976, %v2200
            %v2202 = vpop.f32.mrb[0].mxu0
            %2203 = vmatprep.mubr.f32.mxu0 %v1485
            %2204 = vmatmul.mubr.f32.gmra.mrb[0].mxu0 %v1372
            %v2205 = vpop.f32.mrb[0].mxu0
            %v2206 = vadd.f32 %v1981, %v2205
            %v2207 = vpop.f32.mrb[0].mxu0
            %2208 = vmatprep.mubr.f32.mxu0 %v1487
            %2209 = vmatmul.mubr.f32.gmra.mrb[0].mxu0 %v1374
            %v2210 = vpop.f32.mrb[0].mxu0
            %v2211 = vadd.f32 %v1986, %v2210
            %v2212 = vpop.f32.mrb[0].mxu0
            %2213 = vmatprep.mubr.f32.mxu0 %v1490
            %2214 = vmatmul.mubr.f32.gmra.mrb[0].mxu0 %v1377
            %v2215 = vpop.f32.mrb[0].mxu0
            %v2216 = vadd.f32 %v1991, %v2215
            %v2217 = vpop.f32.mrb[0].mxu0
            %2218 = vmatprep.mubr.f32.mxu0 %v1492
            %2219 = vmatmul.mubr.f32.gmra.mrb[0].mxu0 %v1379
            %v2220 = vpop.f32.mrb[0].mxu0
            %v2221 = vadd.f32 %v1996, %v2220
            %v2222 = vpop.f32.mrb[0].mxu0
            %2223 = vmatprep.mubr.f32.mxu0 %v1537
            %2224 = vmatmul.mubr.f32.gmra.mrb[0].mxu0 %v1530
            %v2225 = vpop.f32.mrb[0].mxu0
            %v2226 = vadd.f32 %v2001, %v2225
            %v2227 = vpop.f32.mrb[0].mxu0
            %2228 = vmatprep.mubr.f32.mxu0 %v1539
            %2229 = vmatmul.mubr.f32.gmra.mrb[0].mxu0 %v1532
            %v2230 = vpop.f32.mrb[0].mxu0
            %v2231 = vadd.f32 %v2006, %v2230
            %v2232 = vpop.f32.mrb[0].mxu0
            %2233 = vdwg.mxu0
            %2234 = vmatprep.subr.mxu0 0.0
            %2235 = vmatpush1.msra.mxu0 %v1136
            %2236 = vmatprep.subr.mxu0 0.0
            %2237 = vmatpush1.msra.mxu0 %v1137
            %2238 = vmatprep.subr.mxu0 0.0
            %2239 = vmatpush1.msra.mxu0 %v1138
            %2240 = vmatprep.subr.mxu0 0.0
            %2241 = vmatpush1.msra.mxu0 %v1139
            %2242 = vmatprep.subr.mxu0 0.0
            %2243 = vmatpush1.msra.mxu0 %v1140
            %2244 = vmatprep.subr.mxu0 0.0
            %2245 = vmatpush1.msra.mxu0 %v1141
            %2246 = vmatprep.subr.mxu0 0.0
            %2247 = vmatpush1.msra.mxu0 %v1142
            %2248 = vmatprep.subr.mxu0 0.0
            %2249 = vmatpush1.msra.mxu0 %v1143
            %2250 = vmatprep.subr.mxu0 0.0
            %2251 = vmatpush1.msra.mxu0 %v1144
            %2252 = vmatprep.subr.mxu0 0.0
            %2253 = vmatpush1.msra.mxu0 %v1145
            %2254 = vmatprep.subr.mxu0 0.0
            %2255 = vmatpush1.msra.mxu0 %v1146
            %2256 = vmatprep.subr.mxu0 0.0
            %2257 = vmatpush1.msra.mxu0 %v1147
            %2258 = vmatprep.subr.mxu0 0.0
            %2259 = vmatpush1.msra.mxu0 %v1148
            %2260 = vmatprep.subr.mxu0 0.0
            %2261 = vmatpush1.msra.mxu0 %v1149
            %2262 = vmatprep.subr.mxu0 0.0
            %2263 = vmatpush1.msra.mxu0 %v1150
            %2264 = vmatprep.subr.mxu0 0.0
            %2265 = vmatpush1.msra.mxu0 %v1151
            %2266 = vmatprep.subr.mxu0 0.0
            %2267 = vmatpush1.msra.mxu0 %v1152
            %2268 = vmatprep.subr.mxu0 0.0
            %2269 = vmatpush1.msra.mxu0 %v1153
            %2270 = vmatprep.subr.mxu0 0.0
            %2271 = vmatpush1.msra.mxu0 %v1154
            %2272 = vmatprep.subr.mxu0 0.0
            %2273 = vmatpush1.msra.mxu0 %v1155
            %2274 = vmatprep.subr.mxu0 0.0
            %2275 = vmatpush1.msra.mxu0 %v1156
            %2276 = vmatprep.subr.mxu0 0.0
            %2277 = vmatpush1.msra.mxu0 %v1157
            %2278 = vmatprep.subr.mxu0 0.0
            %2279 = vmatpush1.msra.mxu0 %v1158
            %2280 = vmatprep.subr.mxu0 0.0
            %2281 = vmatpush1.msra.mxu0 %v1159
            %2282 = vmatprep.subr.mxu0 0.0
            %2283 = vmatpush1.msra.mxu0 %v1160
            %2284 = vmatprep.subr.mxu0 0.0
            %2285 = vmatpush1.msra.mxu0 %v1161
            %2286 = vmatprep.subr.mxu0 0.0
            %2287 = vmatpush1.msra.mxu0 %v1162
            %2288 = vmatprep.subr.mxu0 0.0
            %2289 = vmatpush1.msra.mxu0 %v1163
            %2290 = vmatprep.subr.mxu0 0.0
            %2291 = vmatpush1.msra.mxu0 %v1164
            %2292 = vmatprep.subr.mxu0 0.0
            %2293 = vmatpush1.msra.mxu0 %v1165
            %2294 = vmatprep.subr.mxu0 0.0
            %2295 = vmatpush1.msra.mxu0 %v1166
            %2296 = vmatprep.subr.mxu0 0.0
            %2297 = vmatpush1.msra.mxu0 %v1167
            %2298 = vmatprep.mubr.f32.mxu0 %v1312
            %2299 = vmatmul.mubr.f32.gmra.mrb[0].mxu0 %v1203
            %v2300 = vpop.f32.mrb[0].mxu0
            %v2301 = vadd.f32 %v2076, %v2300
            %v2302 = vpop.f32.mrb[0].mxu0
            %2303 = vmatprep.mubr.f32.mxu0 %v1314
            %2304 = vmatmul.mubr.f32.gmra.mrb[0].mxu0 %v1204
            %v2305 = vpop.f32.mrb[0].mxu0
            %v2306 = vadd.f32 %v2081, %v2305
            %v2307 = vpop.f32.mrb[0].mxu0
            %2308 = vmatprep.mubr.f32.mxu0 %v1317
            %2309 = vmatmul.mubr.f32.gmra.mrb[0].mxu0 %v1206
            %v2310 = vpop.f32.mrb[0].mxu0
            %v2311 = vadd.f32 %v2086, %v2310
            %v2312 = vpop.f32.mrb[0].mxu0
            %2313 = vmatprep.mubr.f32.mxu0 %v1319
            %2314 = vmatmul.mubr.f32.gmra.mrb[0].mxu0 %v1207
            %v2315 = vpop.f32.mrb[0].mxu0
            %v2316 = vadd.f32 %v2091, %v2315
            %v2317 = vpop.f32.mrb[0].mxu0
            %2318 = vmatprep.mubr.f32.mxu0 %v1322
            %2319 = vmatmul.mubr.f32.gmra.mrb[0].mxu0 %v1209
            %v2320 = vpop.f32.mrb[0].mxu0
            %v2321 = vadd.f32 %v2096, %v2320
            %v2322 = vpop.f32.mrb[0].mxu0
            %2323 = vmatprep.mubr.f32.mxu0 %v1324
            %2324 = vmatmul.mubr.f32.gmra.mrb[0].mxu0 %v1210
            %v2325 = vpop.f32.mrb[0].mxu0
            %v2326 = vadd.f32 %v2101, %v2325
            %v2327 = vpop.f32.mrb[0].mxu0
            %2328 = vmatprep.mubr.f32.mxu0 %v1327
            %2329 = vmatmul.mubr.f32.gmra.mrb[0].mxu0 %v1212
            %v2330 = vpop.f32.mrb[0].mxu0
            %v2331 = vadd.f32 %v2106, %v2330
            %v2332 = vpop.f32.mrb[0].mxu0
            %2333 = vmatprep.mubr.f32.mxu0 %v1329
            %2334 = vmatmul.mubr.f32.gmra.mrb[0].mxu0 %v1213
            %v2335 = vpop.f32.mrb[0].mxu0
            %v2336 = vadd.f32 %v2111, %v2335
            %v2337 = vpop.f32.mrb[0].mxu0
            %2338 = vmatprep.mubr.f32.mxu0 %v1332
            %2339 = vmatmul.mubr.f32.gmra.mrb[0].mxu0 %v1215
            %v2340 = vpop.f32.mrb[0].mxu0
            %v2341 = vadd.f32 %v2116, %v2340
            %v2342 = vpop.f32.mrb[0].mxu0
            %2343 = vmatprep.mubr.f32.mxu0 %v1334
            %2344 = vmatmul.mubr.f32.gmra.mrb[0].mxu0 %v1216
            %v2345 = vpop.f32.mrb[0].mxu0
            %v2346 = vadd.f32 %v2121, %v2345
            %v2347 = vpop.f32.mrb[0].mxu0
            %2348 = vmatprep.mubr.f32.mxu0 %v1337
            %2349 = vmatmul.mubr.f32.gmra.mrb[0].mxu0 %v1218
            %v2350 = vpop.f32.mrb[0].mxu0
            %v2351 = vadd.f32 %v2126, %v2350
            %v2352 = vpop.f32.mrb[0].mxu0
            %2353 = vmatprep.mubr.f32.mxu0 %v1339
            %2354 = vmatmul.mubr.f32.gmra.mrb[0].mxu0 %v1219
            %v2355 = vpop.f32.mrb[0].mxu0
            %v2356 = vadd.f32 %v2131, %v2355
            %v2357 = vpop.f32.mrb[0].mxu0
            %2358 = vmatprep.mubr.f32.mxu0 %v1342
            %2359 = vmatmul.mubr.f32.gmra.mrb[0].mxu0 %v1221
            %v2360 = vpop.f32.mrb[0].mxu0
            %v2361 = vadd.f32 %v2136, %v2360
            %v2362 = vpop.f32.mrb[0].mxu0
            %2363 = vmatprep.mubr.f32.mxu0 %v1344
            %2364 = vmatmul.mubr.f32.gmra.mrb[0].mxu0 %v1222
            %v2365 = vpop.f32.mrb[0].mxu0
            %v2366 = vadd.f32 %v2141, %v2365
            %v2367 = vpop.f32.mrb[0].mxu0
            %2368 = vmatprep.mubr.f32.mxu0 %v1347
            %2369 = vmatmul.mubr.f32.gmra.mrb[0].mxu0 %v1224
            %v2370 = vpop.f32.mrb[0].mxu0
            %v2371 = vadd.f32 %v2146, %v2370
            %v2372 = vpop.f32.mrb[0].mxu0
            %2373 = vmatprep.mubr.f32.mxu0 %v1349
            %2374 = vmatmul.mubr.f32.gmra.mrb[0].mxu0 %v1225
            %v2375 = vpop.f32.mrb[0].mxu0
            %v2376 = vadd.f32 %v2151, %v2375
            %v2377 = vpop.f32.mrb[0].mxu0
            %2378 = vmatprep.mubr.f32.mxu0 %v1352
            %2379 = vmatmul.mubr.f32.gmra.mrb[0].mxu0 %v1227
            %v2380 = vpop.f32.mrb[0].mxu0
            %v2381 = vadd.f32 %v2156, %v2380
            %v2382 = vpop.f32.mrb[0].mxu0
            %2383 = vmatprep.mubr.f32.mxu0 %v1354
            %2384 = vmatmul.mubr.f32.gmra.mrb[0].mxu0 %v1228
            %v2385 = vpop.f32.mrb[0].mxu0
            %v2386 = vadd.f32 %v2161, %v2385
            %v2387 = vpop.f32.mrb[0].mxu0
            %2388 = vmatprep.mubr.f32.mxu0 %v1357
            %2389 = vmatmul.mubr.f32.gmra.mrb[0].mxu0 %v1230
            %v2390 = vpop.f32.mrb[0].mxu0
            %v2391 = vadd.f32 %v2166, %v2390
            %v2392 = vpop.f32.mrb[0].mxu0
            %2393 = vmatprep.mubr.f32.mxu0 %v1359
            %2394 = vmatmul.mubr.f32.gmra.mrb[0].mxu0 %v1231
            %v2395 = vpop.f32.mrb[0].mxu0
            %v2396 = vadd.f32 %v2171, %v2395
            %v2397 = vpop.f32.mrb[0].mxu0
            %2398 = vmatprep.mubr.f32.mxu0 %v1362
            %2399 = vmatmul.mubr.f32.gmra.mrb[0].mxu0 %v1233
            %v2400 = vpop.f32.mrb[0].mxu0
            %v2401 = vadd.f32 %v2176, %v2400
            %v2402 = vpop.f32.mrb[0].mxu0
            %2403 = vmatprep.mubr.f32.mxu0 %v1364
            %2404 = vmatmul.mubr.f32.gmra.mrb[0].mxu0 %v1234
            %v2405 = vpop.f32.mrb[0].mxu0
            %v2406 = vadd.f32 %v2181, %v2405
            %v2407 = vpop.f32.mrb[0].mxu0
            %2408 = vmatprep.mubr.f32.mxu0 %v1367
            %2409 = vmatmul.mubr.f32.gmra.mrb[0].mxu0 %v1236
            %v2410 = vpop.f32.mrb[0].mxu0
            %v2411 = vadd.f32 %v2186, %v2410
            %v2412 = vpop.f32.mrb[0].mxu0
            %2413 = vmatprep.mubr.f32.mxu0 %v1369
            %2414 = vmatmul.mubr.f32.gmra.mrb[0].mxu0 %v1237
            %v2415 = vpop.f32.mrb[0].mxu0
            %v2416 = vadd.f32 %v2191, %v2415
            %v2417 = vpop.f32.mrb[0].mxu0
            %2418 = vmatprep.mubr.f32.mxu0 %v1372
            %2419 = vmatmul.mubr.f32.gmra.mrb[0].mxu0 %v1239
            %v2420 = vpop.f32.mrb[0].mxu0
            %v2421 = vadd.f32 %v2196, %v2420
            %v2422 = vpop.f32.mrb[0].mxu0
            %2423 = vmatprep.mubr.f32.mxu0 %v1374
            %2424 = vmatmul.mubr.f32.gmra.mrb[0].mxu0 %v1240
            %v2425 = vpop.f32.mrb[0].mxu0
            %v2426 = vadd.f32 %v2201, %v2425
            %v2427 = vpop.f32.mrb[0].mxu0
            %2428 = vmatprep.mubr.f32.mxu0 %v1377
            %2429 = vmatmul.mubr.f32.gmra.mrb[0].mxu0 %v1242
            %v2430 = vpop.f32.mrb[0].mxu0
            %v2431 = vadd.f32 %v2206, %v2430
            %v2432 = vpop.f32.mrb[0].mxu0
            %2433 = vmatprep.mubr.f32.mxu0 %v1379
            %2434 = vmatmul.mubr.f32.gmra.mrb[0].mxu0 %v1243
            %v2435 = vpop.f32.mrb[0].mxu0
            %v2436 = vadd.f32 %v2211, %v2435
            %v2437 = vpop.f32.mrb[0].mxu0
            %2438 = vmatprep.mubr.f32.mxu0 %v1530
            %2439 = vmatmul.mubr.f32.gmra.mrb[0].mxu0 %v1245
            %v2440 = vpop.f32.mrb[0].mxu0
            %v2441 = vadd.f32 %v2216, %v2440
            %v2442 = vpop.f32.mrb[0].mxu0
            %2443 = vmatprep.mubr.f32.mxu0 %v1532
            %2444 = vmatmul.mubr.f32.gmra.mrb[0].mxu0 %v1246
            %v2445 = vpop.f32.mrb[0].mxu0
            %v2446 = vadd.f32 %v2221, %v2445
            %v2447 = vpop.f32.mrb[0].mxu0
            %2448 = vmatprep.mubr.f32.mxu0 %v1547
            %2449 = vmatmul.mubr.f32.gmra.mrb[0].mxu0 %v1248
            %v2450 = vpop.f32.mrb[0].mxu0
            %v2451 = vadd.f32 %v2226, %v2450
            %v2452 = vpop.f32.mrb[0].mxu0
            %2453 = vmatprep.mubr.f32.mxu0 %v1549
            %2454 = vmatmul.mubr.f32.gmra.mrb[0].mxu0 %v1249
            %v2455 = vpop.f32.mrb[0].mxu0
            %v2456 = vadd.f32 %v2231, %v2455
            %v2457 = vpop.f32.mrb[0].mxu0
            %2458 = vdwg.mxu0
            %2459 = vmatprep.subr.mxu0 0.0
            %2460 = vmatpush1.msra.mxu0 %v1168
            %2461 = vmatprep.subr.mxu0 0.0
            %2462 = vmatpush1.msra.mxu0 %v1169
            %2463 = vmatprep.subr.mxu0 0.0
            %2464 = vmatpush1.msra.mxu0 %v1170
            %2465 = vmatprep.subr.mxu0 0.0
            %2466 = vmatpush1.msra.mxu0 %v1171
            %2467 = vmatprep.subr.mxu0 0.0
            %2468 = vmatpush1.msra.mxu0 %v1172
            %2469 = vmatprep.subr.mxu0 0.0
            %2470 = vmatpush1.msra.mxu0 %v1173
            %2471 = vmatprep.subr.mxu0 0.0
            %2472 = vmatpush1.msra.mxu0 %v1174
            %2473 = vmatprep.subr.mxu0 0.0
            %2474 = vmatpush1.msra.mxu0 %v1175
            %2475 = vmatprep.subr.mxu0 0.0
            %2476 = vmatpush1.msra.mxu0 %v1176
            %2477 = vmatprep.subr.mxu0 0.0
            %2478 = vmatpush1.msra.mxu0 %v1177
            %2479 = vmatprep.subr.mxu0 0.0
            %2480 = vmatpush1.msra.mxu0 %v1178
            %2481 = vmatprep.subr.mxu0 0.0
            %2482 = vmatpush1.msra.mxu0 %v1179
            %2483 = vmatprep.subr.mxu0 0.0
            %2484 = vmatpush1.msra.mxu0 %v1180
            %2485 = vmatprep.subr.mxu0 0.0
            %2486 = vmatpush1.msra.mxu0 %v1181
            %2487 = vmatprep.subr.mxu0 0.0
            %2488 = vmatpush1.msra.mxu0 %v1182
            %2489 = vmatprep.subr.mxu0 0.0
            %2490 = vmatpush1.msra.mxu0 %v1183
            %2491 = vmatprep.subr.mxu0 0.0
            %2492 = vmatpush1.msra.mxu0 0.0
            %2493 = vmatprep.subr.mxu0 0.0
            %2494 = vmatpush1.msra.mxu0 0.0
            %2495 = vmatprep.subr.mxu0 0.0
            %2496 = vmatpush1.msra.mxu0 0.0
            %2497 = vmatprep.subr.mxu0 0.0
            %2498 = vmatpush1.msra.mxu0 0.0
            %2499 = vmatprep.subr.mxu0 0.0
            %2500 = vmatpush1.msra.mxu0 0.0
            %2501 = vmatprep.subr.mxu0 0.0
            %2502 = vmatpush1.msra.mxu0 0.0
            %2503 = vmatprep.subr.mxu0 0.0
            %2504 = vmatpush1.msra.mxu0 0.0
            %2505 = vmatprep.subr.mxu0 0.0
            %2506 = vmatpush1.msra.mxu0 0.0
            %2507 = vmatprep.subr.mxu0 0.0
            %2508 = vmatpush1.msra.mxu0 0.0
            %2509 = vmatprep.subr.mxu0 0.0
            %2510 = vmatpush1.msra.mxu0 0.0
            %2511 = vmatprep.subr.mxu0 0.0
            %2512 = vmatpush1.msra.mxu0 0.0
            %2513 = vmatprep.subr.mxu0 0.0
            %2514 = vmatpush1.msra.mxu0 0.0
            %2515 = vmatprep.subr.mxu0 0.0
            %2516 = vmatpush1.msra.mxu0 0.0
            %2517 = vmatprep.subr.mxu0 0.0
            %2518 = vmatpush1.msra.mxu0 0.0
            %2519 = vmatprep.subr.mxu0 0.0
            %2520 = vmatpush1.msra.mxu0 0.0
            %2521 = vmatprep.subr.mxu0 0.0
            %2522 = vmatpush1.msra.mxu0 0.0
            %2523 = vmatprep.mubr.f32.mxu0 0.0
            %2524 = vmatmul.mubr.f32.gmra.mrb[0].mxu0 %v1425
            %v2525 = vpop.f32.mrb[0].mxu0
            %v2526 = vadd.f32 %v2301, %v2525
            %v2527 = vpop.f32.mrb[0].mxu0
            %2528 = vmatprep.mubr.f32.mxu0 0.0
            %2529 = vmatmul.mubr.f32.gmra.mrb[0].mxu0 %v1427
            %v2530 = vpop.f32.mrb[0].mxu0
            %v2531 = vadd.f32 %v2306, %v2530
            %v2532 = vpop.f32.mrb[0].mxu0
            %2533 = vmatprep.mubr.f32.mxu0 0.0
            %2534 = vmatmul.mubr.f32.gmra.mrb[0].mxu0 %v1430
            %v2535 = vpop.f32.mrb[0].mxu0
            %v2536 = vadd.f32 %v2311, %v2535
            %v2537 = vpop.f32.mrb[0].mxu0
            %2538 = vmatprep.mubr.f32.mxu0 0.0
            %2539 = vmatmul.mubr.f32.gmra.mrb[0].mxu0 %v1432
            %v2540 = vpop.f32.mrb[0].mxu0
            %v2541 = vadd.f32 %v2316, %v2540
            %v2542 = vpop.f32.mrb[0].mxu0
            %2543 = vmatprep.mubr.f32.mxu0 0.0
            %2544 = vmatmul.mubr.f32.gmra.mrb[0].mxu0 %v1435
            %v2545 = vpop.f32.mrb[0].mxu0
            %v2546 = vadd.f32 %v2321, %v2545
            %v2547 = vpop.f32.mrb[0].mxu0
            %2548 = vmatprep.mubr.f32.mxu0 0.0
            %2549 = vmatmul.mubr.f32.gmra.mrb[0].mxu0 %v1437
            %v2550 = vpop.f32.mrb[0].mxu0
            %v2551 = vadd.f32 %v2326, %v2550
            %v2552 = vpop.f32.mrb[0].mxu0
            %2553 = vmatprep.mubr.f32.mxu0 0.0
            %2554 = vmatmul.mubr.f32.gmra.mrb[0].mxu0 %v1440
            %v2555 = vpop.f32.mrb[0].mxu0
            %v2556 = vadd.f32 %v2331, %v2555
            %v2557 = vpop.f32.mrb[0].mxu0
            %2558 = vmatprep.mubr.f32.mxu0 0.0
            %2559 = vmatmul.mubr.f32.gmra.mrb[0].mxu0 %v1442
            %v2560 = vpop.f32.mrb[0].mxu0
            %v2561 = vadd.f32 %v2336, %v2560
            %v2562 = vpop.f32.mrb[0].mxu0
            %2563 = vmatprep.mubr.f32.mxu0 0.0
            %2564 = vmatmul.mubr.f32.gmra.mrb[0].mxu0 %v1445
            %v2565 = vpop.f32.mrb[0].mxu0
            %v2566 = vadd.f32 %v2341, %v2565
            %v2567 = vpop.f32.mrb[0].mxu0
            %2568 = vmatprep.mubr.f32.mxu0 0.0
            %2569 = vmatmul.mubr.f32.gmra.mrb[0].mxu0 %v1447
            %v2570 = vpop.f32.mrb[0].mxu0
            %v2571 = vadd.f32 %v2346, %v2570
            %v2572 = vpop.f32.mrb[0].mxu0
            %2573 = vmatprep.mubr.f32.mxu0 0.0
            %2574 = vmatmul.mubr.f32.gmra.mrb[0].mxu0 %v1450
            %v2575 = vpop.f32.mrb[0].mxu0
            %v2576 = vadd.f32 %v2351, %v2575
            %v2577 = vpop.f32.mrb[0].mxu0
            %2578 = vmatprep.mubr.f32.mxu0 0.0
            %2579 = vmatmul.mubr.f32.gmra.mrb[0].mxu0 %v1452
            %v2580 = vpop.f32.mrb[0].mxu0
            %v2581 = vadd.f32 %v2356, %v2580
            %v2582 = vpop.f32.mrb[0].mxu0
            %2583 = vmatprep.mubr.f32.mxu0 0.0
            %2584 = vmatmul.mubr.f32.gmra.mrb[0].mxu0 %v1455
            %v2585 = vpop.f32.mrb[0].mxu0
            %v2586 = vadd.f32 %v2361, %v2585
            %v2587 = vpop.f32.mrb[0].mxu0
            %2588 = vmatprep.mubr.f32.mxu0 0.0
            %2589 = vmatmul.mubr.f32.gmra.mrb[0].mxu0 %v1457
            %v2590 = vpop.f32.mrb[0].mxu0
            %v2591 = vadd.f32 %v2366, %v2590
            %v2592 = vpop.f32.mrb[0].mxu0
            %2593 = vmatprep.mubr.f32.mxu0 0.0
            %2594 = vmatmul.mubr.f32.gmra.mrb[0].mxu0 %v1460
            %v2595 = vpop.f32.mrb[0].mxu0
            %v2596 = vadd.f32 %v2371, %v2595
            %v2597 = vpop.f32.mrb[0].mxu0
            %2598 = vmatprep.mubr.f32.mxu0 0.0
            %2599 = vmatmul.mubr.f32.gmra.mrb[0].mxu0 %v1462
            %v2600 = vpop.f32.mrb[0].mxu0
            %v2601 = vadd.f32 %v2376, %v2600
            %v2602 = vpop.f32.mrb[0].mxu0
            %2603 = vmatprep.mubr.f32.mxu0 0.0
            %2604 = vmatmul.mubr.f32.gmra.mrb[0].mxu0 %v1465
            %v2605 = vpop.f32.mrb[0].mxu0
            %v2606 = vadd.f32 %v2381, %v2605
            %v2607 = vpop.f32.mrb[0].mxu0
            %2608 = vmatprep.mubr.f32.mxu0 0.0
            %2609 = vmatmul.mubr.f32.gmra.mrb[0].mxu0 %v1467
            %v2610 = vpop.f32.mrb[0].mxu0
            %v2611 = vadd.f32 %v2386, %v2610
            %v2612 = vpop.f32.mrb[0].mxu0
            %2613 = vmatprep.mubr.f32.mxu0 0.0
            %2614 = vmatmul.mubr.f32.gmra.mrb[0].mxu0 %v1470
            %v2615 = vpop.f32.mrb[0].mxu0
            %v2616 = vadd.f32 %v2391, %v2615
            %v2617 = vpop.f32.mrb[0].mxu0
            %2618 = vmatprep.mubr.f32.mxu0 0.0
            %2619 = vmatmul.mubr.f32.gmra.mrb[0].mxu0 %v1472
            %v2620 = vpop.f32.mrb[0].mxu0
            %v2621 = vadd.f32 %v2396, %v2620
            %v2622 = vpop.f32.mrb[0].mxu0
            %2623 = vmatprep.mubr.f32.mxu0 0.0
            %2624 = vmatmul.mubr.f32.gmra.mrb[0].mxu0 %v1475
            %v2625 = vpop.f32.mrb[0].mxu0
            %v2626 = vadd.f32 %v2401, %v2625
            %v2627 = vpop.f32.mrb[0].mxu0
            %2628 = vmatprep.mubr.f32.mxu0 0.0
            %2629 = vmatmul.mubr.f32.gmra.mrb[0].mxu0 %v1477
            %v2630 = vpop.f32.mrb[0].mxu0
            %v2631 = vadd.f32 %v2406, %v2630
            %v2632 = vpop.f32.mrb[0].mxu0
            %2633 = vmatprep.mubr.f32.mxu0 0.0
            %2634 = vmatmul.mubr.f32.gmra.mrb[0].mxu0 %v1480
            %v2635 = vpop.f32.mrb[0].mxu0
            %v2636 = vadd.f32 %v2411, %v2635
            %v2637 = vpop.f32.mrb[0].mxu0
            %2638 = vmatprep.mubr.f32.mxu0 0.0
            %2639 = vmatmul.mubr.f32.gmra.mrb[0].mxu0 %v1482
            %v2640 = vpop.f32.mrb[0].mxu0
            %v2641 = vadd.f32 %v2416, %v2640
            %v2642 = vpop.f32.mrb[0].mxu0
            %2643 = vmatprep.mubr.f32.mxu0 0.0
            %2644 = vmatmul.mubr.f32.gmra.mrb[0].mxu0 %v1485
            %v2645 = vpop.f32.mrb[0].mxu0
            %v2646 = vadd.f32 %v2421, %v2645
            %v2647 = vpop.f32.mrb[0].mxu0
            %2648 = vmatprep.mubr.f32.mxu0 0.0
            %2649 = vmatmul.mubr.f32.gmra.mrb[0].mxu0 %v1487
            %v2650 = vpop.f32.mrb[0].mxu0
            %v2651 = vadd.f32 %v2426, %v2650
            %v2652 = vpop.f32.mrb[0].mxu0
            %2653 = vmatprep.mubr.f32.mxu0 0.0
            %2654 = vmatmul.mubr.f32.gmra.mrb[0].mxu0 %v1490
            %v2655 = vpop.f32.mrb[0].mxu0
            %v2656 = vadd.f32 %v2431, %v2655
            %v2657 = vpop.f32.mrb[0].mxu0
            %2658 = vmatprep.mubr.f32.mxu0 0.0
            %2659 = vmatmul.mubr.f32.gmra.mrb[0].mxu0 %v1492
            %v2660 = vpop.f32.mrb[0].mxu0
            %v2661 = vadd.f32 %v2436, %v2660
            %v2662 = vpop.f32.mrb[0].mxu0
            %2663 = vmatprep.mubr.f32.mxu0 0.0
            %2664 = vmatmul.mubr.f32.gmra.mrb[0].mxu0 %v1537
            %v2665 = vpop.f32.mrb[0].mxu0
            %v2666 = vadd.f32 %v2441, %v2665
            %v2667 = vpop.f32.mrb[0].mxu0
            %2668 = vmatprep.mubr.f32.mxu0 0.0
            %2669 = vmatmul.mubr.f32.gmra.mrb[0].mxu0 %v1539
            %v2670 = vpop.f32.mrb[0].mxu0
            %v2671 = vadd.f32 %v2446, %v2670
            %v2672 = vpop.f32.mrb[0].mxu0
            %2673 = vmatprep.mubr.f32.mxu0 0.0
            %2674 = vmatmul.mubr.f32.gmra.mrb[0].mxu0 %v1554
            %v2675 = vpop.f32.mrb[0].mxu0
            %v2676 = vadd.f32 %v2451, %v2675
            %v2677 = vpop.f32.mrb[0].mxu0
            %2678 = vmatprep.mubr.f32.mxu0 0.0
            %2679 = vmatmul.mubr.f32.gmra.mrb[0].mxu0 %v1556
            %v2680 = vpop.f32.mrb[0].mxu0
            %v2681 = vadd.f32 %v2456, %v2680
            %v2682 = vpop.f32.mrb[0].mxu0
            %2683 = vdwg.mxu0
            %v2685 = vlaneseq
            %v2686 = vshrl.u32 %v2685, 7
            %v2687 = vsub.s32 0, %v2686
            %v2688 = vrot.slane %v1185, %v2687
            %v2690 = vmul.f32 %v2526, %v2688
            %v2691 = vmul.f32 %v2531, %v2688
            %v2692 = vmul.f32 %v2536, %v2688
            %v2693 = vmul.f32 %v2541, %v2688
            %v2694 = vmul.f32 %v2546, %v2688
            %v2695 = vmul.f32 %v2551, %v2688
            %v2696 = vmul.f32 %v2556, %v2688
            %v2697 = vmul.f32 %v2561, %v2688
            %v2698 = vmul.f32 %v2566, %v2688
            %v2699 = vmul.f32 %v2571, %v2688
            %v2700 = vmul.f32 %v2576, %v2688
            %v2701 = vmul.f32 %v2581, %v2688
            %v2702 = vmul.f32 %v2586, %v2688
            %v2703 = vmul.f32 %v2591, %v2688
            %v2704 = vmul.f32 %v2596, %v2688
            %v2705 = vmul.f32 %v2601, %v2688
            %v2706 = vmul.f32 %v2606, %v2688
            %v2707 = vmul.f32 %v2611, %v2688
            %v2708 = vmul.f32 %v2616, %v2688
            %v2709 = vmul.f32 %v2621, %v2688
            %v2710 = vmul.f32 %v2626, %v2688
            %v2711 = vmul.f32 %v2631, %v2688
            %v2712 = vmul.f32 %v2636, %v2688
            %v2713 = vmul.f32 %v2641, %v2688
            %v2714 = vmul.f32 %v2646, %v2688
            %v2715 = vmul.f32 %v2651, %v2688
            %v2716 = vmul.f32 %v2656, %v2688
            %v2717 = vmul.f32 %v2661, %v2688
            %v2718 = vmul.f32 %v2666, %v2688
            %v2719 = vmul.f32 %v2671, %v2688
            %v2720 = vmul.f32 %v2676, %v2688
            %v2721 = vmul.f32 %v2681, %v2688
            %v2723 = vlaneseq
            %v2724 = vshrl.u32 %v2723, 7
            %v2725 = vsub.s32 0, %v2724
            %v2726 = vrot.slane %v1187, %v2725
            %v2728 = vadd.f32 %v2690, %v2726
            %v2729 = vadd.f32 %v2691, %v2726
            %v2730 = vadd.f32 %v2692, %v2726
            %v2731 = vadd.f32 %v2693, %v2726
            %v2732 = vadd.f32 %v2694, %v2726
            %v2733 = vadd.f32 %v2695, %v2726
            %v2734 = vadd.f32 %v2696, %v2726
            %v2735 = vadd.f32 %v2697, %v2726
            %v2736 = vadd.f32 %v2698, %v2726
            %v2737 = vadd.f32 %v2699, %v2726
            %v2738 = vadd.f32 %v2700, %v2726
            %v2739 = vadd.f32 %v2701, %v2726
            %v2740 = vadd.f32 %v2702, %v2726
            %v2741 = vadd.f32 %v2703, %v2726
            %v2742 = vadd.f32 %v2704, %v2726
            %v2743 = vadd.f32 %v2705, %v2726
            %v2744 = vadd.f32 %v2706, %v2726
            %v2745 = vadd.f32 %v2707, %v2726
            %v2746 = vadd.f32 %v2708, %v2726
            %v2747 = vadd.f32 %v2709, %v2726
            %v2748 = vadd.f32 %v2710, %v2726
            %v2749 = vadd.f32 %v2711, %v2726
            %v2750 = vadd.f32 %v2712, %v2726
            %v2751 = vadd.f32 %v2713, %v2726
            %v2752 = vadd.f32 %v2714, %v2726
            %v2753 = vadd.f32 %v2715, %v2726
            %v2754 = vadd.f32 %v2716, %v2726
            %v2755 = vadd.f32 %v2717, %v2726
            %v2756 = vadd.f32 %v2718, %v2726
            %v2757 = vadd.f32 %v2719, %v2726
            %v2758 = vadd.f32 %v2720, %v2726
            %v2759 = vadd.f32 %v2721, %v2726
            %s2760 = smul.u32 %s1194, 16
            %s2761 = scalar_lea.vmem [#allocation3], %s2760
            %2762 = vst [vmem:[%s2761] sm:$0xff] %v2728
            %2763 = vst [vmem:[%s2761 + $0x8] sm:$0xff] %v2729
            %2764 = vst [vmem:[%s2761 + $0x10] sm:$0xff] %v2730
            %2765 = vst [vmem:[%s2761 + $0x18] sm:$0xff] %v2731
            %2766 = vst [vmem:[%s2761 + $0x20] sm:$0xff] %v2732
            %2767 = vst [vmem:[%s2761 + $0x28] sm:$0xff] %v2733
            %2768 = vst [vmem:[%s2761 + $0x30] sm:$0xff] %v2734
            %2769 = vst [vmem:[%s2761 + $0x38] sm:$0xff] %v2735
            %2770 = vst [vmem:[%s2761 + $0x40] sm:$0xff] %v2736
            %2771 = vst [vmem:[%s2761 + $0x48] sm:$0xff] %v2737
            %2772 = vst [vmem:[%s2761 + $0x50] sm:$0xff] %v2738
            %2773 = vst [vmem:[%s2761 + $0x58] sm:$0xff] %v2739
            %2774 = vst [vmem:[%s2761 + $0x60] sm:$0xff] %v2740
            %2775 = vst [vmem:[%s2761 + $0x68] sm:$0xff] %v2741
            %2776 = vst [vmem:[%s2761 + $0x70] sm:$0xff] %v2742
            %2777 = vst [vmem:[%s2761 + $0x78] sm:$0xff] %v2743
            %2778 = vst [vmem:[%s2761 + $0x80] sm:$0xff] %v2744
            %2779 = vst [vmem:[%s2761 + $0x88] sm:$0xff] %v2745
            %2780 = vst [vmem:[%s2761 + $0x90] sm:$0xff] %v2746
            %2781 = vst [vmem:[%s2761 + $0x98] sm:$0xff] %v2747
            %2782 = vst [vmem:[%s2761 + $0xa0] sm:$0xff] %v2748
            %2783 = vst [vmem:[%s2761 + $0xa8] sm:$0xff] %v2749
            %2784 = vst [vmem:[%s2761 + $0xb0] sm:$0xff] %v2750
            %2785 = vst [vmem:[%s2761 + $0xb8] sm:$0xff] %v2751
            %2786 = vst [vmem:[%s2761 + $0xc0] sm:$0xff] %v2752
            %2787 = vst [vmem:[%s2761 + $0xc8] sm:$0xff] %v2753
            %2788 = vst [vmem:[%s2761 + $0xd0] sm:$0xff] %v2754
            %2789 = vst [vmem:[%s2761 + $0xd8] sm:$0xff] %v2755
            %2790 = vst [vmem:[%s2761 + $0xe0] sm:$0xff] %v2756
            %2791 = vst [vmem:[%s2761 + $0xe8] sm:$0xff] %v2757
            %2792 = vst [vmem:[%s2761 + $0xf0] sm:$0xff] %v2758
            %2793 = vst [vmem:[%s2761 + $0xf8] sm:$0xff] %v2759
          $region148: #{residual_group_forward.1} parent=140 // loop_footer
            %s1193 = sadd.s32 1, %s1189
          $region149: #{residual_group_forward.1} parent=140 // loop_footer_branch
            %1188 = sbr.rel target = $region145
          $region150: #{residual_group_forward.1} parent=140 // loop_exit
            _
          %v2794 = vld [vmem:[#allocation3] sm:$0xff]
          %v2795 = vld [vmem:[#allocation3 + $0x8] sm:$0xff]
          %v2796 = vld [vmem:[#allocation3 + $0x10] sm:$0xff]
          %v2797 = vld [vmem:[#allocation3 + $0x18] sm:$0xff]
          %v2798 = vld [vmem:[#allocation3 + $0x20] sm:$0xff]
          %v2799 = vld [vmem:[#allocation3 + $0x28] sm:$0xff]
          %v2800 = vld [vmem:[#allocation3 + $0x30] sm:$0xff]
          %v2801 = vld [vmem:[#allocation3 + $0x38] sm:$0xff]
          %v2802 = vld [vmem:[#allocation3 + $0x40] sm:$0xff]
          %v2803 = vld [vmem:[#allocation3 + $0x48] sm:$0xff]
          %v2804 = vld [vmem:[#allocation3 + $0x50] sm:$0xff]
          %v2805 = vld [vmem:[#allocation3 + $0x58] sm:$0xff]
          %v2806 = vld [vmem:[#allocation3 + $0x60] sm:$0xff]
          %v2807 = vld [vmem:[#allocation3 + $0x68] sm:$0xff]
          %v2808 = vld [vmem:[#allocation3 + $0x70] sm:$0xff]
          %v2809 = vld [vmem:[#allocation3 + $0x78] sm:$0xff]
          %v2810 = vld [vmem:[#allocation3 + $0x80] sm:$0xff]
          %v2811 = vld [vmem:[#allocation3 + $0x88] sm:$0xff]
          %v2812 = vld [vmem:[#allocation3 + $0x90] sm:$0xff]
          %v2813 = vld [vmem:[#allocation3 + $0x98] sm:$0xff]
          %v2814 = vld [vmem:[#allocation3 + $0xa0] sm:$0xff]
          %v2815 = vld [vmem:[#allocation3 + $0xa8] sm:$0xff]
          %v2816 = vld [vmem:[#allocation3 + $0xb0] sm:$0xff]
          %v2817 = vld [vmem:[#allocation3 + $0xb8] sm:$0xff]
          %v2818 = vld [vmem:[#allocation3 + $0xc0] sm:$0xff]
          %v2819 = vld [vmem:[#allocation3 + $0xc8] sm:$0xff]
          %v2820 = vld [vmem:[#allocation3 + $0xd0] sm:$0xff]
          %v2821 = vld [vmem:[#allocation3 + $0xd8] sm:$0xff]
          %v2822 = vld [vmem:[#allocation3 + $0xe0] sm:$0xff]
          %v2823 = vld [vmem:[#allocation3 + $0xe8] sm:$0xff]
          %v2824 = vld [vmem:[#allocation3 + $0xf0] sm:$0xff]
          %v2825 = vld [vmem:[#allocation3 + $0xf8] sm:$0xff]
          %v2826 = vld [vmem:[#allocation3 + $0x100] sm:$0xff]
          %v2827 = vld [vmem:[#allocation3 + $0x108] sm:$0xff]
          %v2828 = vld [vmem:[#allocation3 + $0x110] sm:$0xff]
          %v2829 = vld [vmem:[#allocation3 + $0x118] sm:$0xff]
          %v2830 = vld [vmem:[#allocation3 + $0x120] sm:$0xff]
          %v2831 = vld [vmem:[#allocation3 + $0x128] sm:$0xff]
          %v2832 = vld [vmem:[#allocation3 + $0x130] sm:$0xff]
          %v2833 = vld [vmem:[#allocation3 + $0x138] sm:$0xff]
          %v2834 = vld [vmem:[#allocation3 + $0x140] sm:$0xff]
          %v2835 = vld [vmem:[#allocation3 + $0x148] sm:$0xff]
          %v2836 = vld [vmem:[#allocation3 + $0x150] sm:$0xff]
          %v2837 = vld [vmem:[#allocation3 + $0x158] sm:$0xff]
          %v2838 = vld [vmem:[#allocation3 + $0x160] sm:$0xff]
          %v2839 = vld [vmem:[#allocation3 + $0x168] sm:$0xff]
          %v2840 = vld [vmem:[#allocation3 + $0x170] sm:$0xff]
          %v2841 = vld [vmem:[#allocation3 + $0x178] sm:$0xff]
          %v2842 = vld [vmem:[#allocation3 + $0x180] sm:$0xff]
          %v2843 = vld [vmem:[#allocation3 + $0x188] sm:$0xff]
          %v2844 = vld [vmem:[#allocation3 + $0x190] sm:$0xff]
          %v2845 = vld [vmem:[#allocation3 + $0x198] sm:$0xff]
          %v2846 = vld [vmem:[#allocation3 + $0x1a0] sm:$0xff]
          %v2847 = vld [vmem:[#allocation3 + $0x1a8] sm:$0xff]
          %v2848 = vld [vmem:[#allocation3 + $0x1b0] sm:$0xff]
          %v2849 = vld [vmem:[#allocation3 + $0x1b8] sm:$0xff]
          %v2850 = vld [vmem:[#allocation3 + $0x1c0] sm:$0xff]
          %v2851 = vld [vmem:[#allocation3 + $0x1c8] sm:$0xff]
          %v2852 = vld [vmem:[#allocation3 + $0x1d0] sm:$0xff]
          %v2853 = vld [vmem:[#allocation3 + $0x1d8] sm:$0xff]
          %v2854 = vld [vmem:[#allocation3 + $0x1e0] sm:$0xff]
          %v2855 = vld [vmem:[#allocation3 + $0x1e8] sm:$0xff]
          %v2856 = vld [vmem:[#allocation3 + $0x1f0] sm:$0xff]
          %v2857 = vld [vmem:[#allocation3 + $0x1f8] sm:$0xff]
          %2858 = vst [vmem:[%s973 + $0x1] sm:$0xff] %v2794
          %2859 = vst [vmem:[%s973 + $0x9] sm:$0xff] %v2795
          %2860 = vst [vmem:[%s973 + $0x19] sm:$0xff] %v2796
          %2861 = vst [vmem:[%s973 + $0x21] sm:$0xff] %v2797
          %2862 = vst [vmem:[%s973 + $0x31] sm:$0xff] %v2798
          %2863 = vst [vmem:[%s973 + $0x39] sm:$0xff] %v2799
          %2864 = vst [vmem:[%s973 + $0x49] sm:$0xff] %v2800
          %2865 = vst [vmem:[%s973 + $0x51] sm:$0xff] %v2801
          %2866 = vst [vmem:[%s973 + $0x61] sm:$0xff] %v2802
          %2867 = vst [vmem:[%s973 + $0x69] sm:$0xff] %v2803
          %2868 = vst [vmem:[%s973 + $0x79] sm:$0xff] %v2804
          %2869 = vst [vmem:[%s973 + $0x81] sm:$0xff] %v2805
          %2870 = vst [vmem:[%s973 + $0x91] sm:$0xff] %v2806
          %2871 = vst [vmem:[%s973 + $0x99] sm:$0xff] %v2807
          %2872 = vst [vmem:[%s973 + $0xa9] sm:$0xff] %v2808
          %2873 = vst [vmem:[%s973 + $0xb1] sm:$0xff] %v2809
          %2874 = vst [vmem:[%s973 + $0xc1] sm:$0xff] %v2810
          %2875 = vst [vmem:[%s973 + $0xc9] sm:$0xff] %v2811
          %2876 = vst [vmem:[%s973 + $0xd9] sm:$0xff] %v2812
          %2877 = vst [vmem:[%s973 + $0xe1] sm:$0xff] %v2813
          %2878 = vst [vmem:[%s973 + $0xf1] sm:$0xff] %v2814
          %2879 = vst [vmem:[%s973 + $0xf9] sm:$0xff] %v2815
          %2880 = vst [vmem:[%s973 + $0x109] sm:$0xff] %v2816
          %2881 = vst [vmem:[%s973 + $0x111] sm:$0xff] %v2817
          %2882 = vst [vmem:[%s973 + $0x121] sm:$0xff] %v2818
          %2883 = vst [vmem:[%s973 + $0x129] sm:$0xff] %v2819
          %2884 = vst [vmem:[%s973 + $0x139] sm:$0xff] %v2820
          %2885 = vst [vmem:[%s973 + $0x141] sm:$0xff] %v2821
          %2886 = vst [vmem:[%s973 + $0x151] sm:$0xff] %v2822
          %2887 = vst [vmem:[%s973 + $0x159] sm:$0xff] %v2823
          %2888 = vst [vmem:[%s973 + $0x169] sm:$0xff] %v2824
          %2889 = vst [vmem:[%s973 + $0x171] sm:$0xff] %v2825
          %2890 = vst [vmem:[%s973 + $0x181] sm:$0xff] %v2826
          %2891 = vst [vmem:[%s973 + $0x189] sm:$0xff] %v2827
          %2892 = vst [vmem:[%s973 + $0x199] sm:$0xff] %v2828
          %2893 = vst [vmem:[%s973 + $0x1a1] sm:$0xff] %v2829
          %2894 = vst [vmem:[%s973 + $0x1b1] sm:$0xff] %v2830
          %2895 = vst [vmem:[%s973 + $0x1b9] sm:$0xff] %v2831
          %2896 = vst [vmem:[%s973 + $0x1c9] sm:$0xff] %v2832
          %2897 = vst [vmem:[%s973 + $0x1d1] sm:$0xff] %v2833
          %2898 = vst [vmem:[%s973 + $0x1e1] sm:$0xff] %v2834
          %2899 = vst [vmem:[%s973 + $0x1e9] sm:$0xff] %v2835
          %2900 = vst [vmem:[%s973 + $0x1f9] sm:$0xff] %v2836
          %2901 = vst [vmem:[%s973 + $0x201] sm:$0xff] %v2837
          %2902 = vst [vmem:[%s973 + $0x211] sm:$0xff] %v2838
          %2903 = vst [vmem:[%s973 + $0x219] sm:$0xff] %v2839
          %2904 = vst [vmem:[%s973 + $0x229] sm:$0xff] %v2840
          %2905 = vst [vmem:[%s973 + $0x231] sm:$0xff] %v2841
          %2906 = vst [vmem:[%s973 + $0x241] sm:$0xff] %v2842
          %2907 = vst [vmem:[%s973 + $0x249] sm:$0xff] %v2843
          %2908 = vst [vmem:[%s973 + $0x259] sm:$0xff] %v2844
          %2909 = vst [vmem:[%s973 + $0x261] sm:$0xff] %v2845
          %2910 = vst [vmem:[%s973 + $0x271] sm:$0xff] %v2846
          %2911 = vst [vmem:[%s973 + $0x279] sm:$0xff] %v2847
          %2912 = vst [vmem:[%s973 + $0x289] sm:$0xff] %v2848
          %2913 = vst [vmem:[%s973 + $0x291] sm:$0xff] %v2849
          %2914 = vst [vmem:[%s973 + $0x2a1] sm:$0xff] %v2850
          %2915 = vst [vmem:[%s973 + $0x2a9] sm:$0xff] %v2851
          %2916 = vst [vmem:[%s973 + $0x2b9] sm:$0xff] %v2852
          %2917 = vst [vmem:[%s973 + $0x2c1] sm:$0xff] %v2853
          %2918 = vst [vmem:[%s973 + $0x2d1] sm:$0xff] %v2854
          %2919 = vst [vmem:[%s973 + $0x2d9] sm:$0xff] %v2855
          %2920 = vst [vmem:[%s973 + $0x2e9] sm:$0xff] %v2856
          %2921 = vst [vmem:[%s973 + $0x2f1] sm:$0xff] %v2857
          %s2922 = scalar_lea.vmem [#allocation13], %s1038
          %v2923 = vld [vmem:[%s2922] sm:$0xff]
          %v2924 = vld [vmem:[%s2922 + $0x8] sm:$0xff]
          %v2925 = vld [vmem:[%s2922 + $0x10] sm:$0xff]
          %v2926 = vld [vmem:[%s2922 + $0x18] sm:$0xff]
          %v2927 = vld [vmem:[%s2922 + $0x20] sm:$0xff]
          %v2928 = vld [vmem:[%s2922 + $0x28] sm:$0xff]
          %v2929 = vld [vmem:[%s2922 + $0x30] sm:$0xff]
          %v2930 = vld [vmem:[%s2922 + $0x38] sm:$0xff]
          %v2931 = vld [vmem:[%s2922 + $0x40] sm:$0xff]
          %v2932 = vld [vmem:[%s2922 + $0x48] sm:$0xff]
          %v2933 = vld [vmem:[%s2922 + $0x50] sm:$0xff]
          %v2934 = vld [vmem:[%s2922 + $0x58] sm:$0xff]
          %v2935 = vld [vmem:[%s2922 + $0x60] sm:$0xff]
          %v2936 = vld [vmem:[%s2922 + $0x68] sm:$0xff]
          %v2937 = vld [vmem:[%s2922 + $0x70] sm:$0xff]
          %v2938 = vld [vmem:[%s2922 + $0x78] sm:$0xff]
          %v2939 = vld [vmem:[%s2922 + $0x80] sm:$0xff]
          %v2940 = vld [vmem:[%s2922 + $0x88] sm:$0xff]
          %v2941 = vld [vmem:[%s2922 + $0x90] sm:$0xff]
          %v2942 = vld [vmem:[%s2922 + $0x98] sm:$0xff]
          %v2943 = vld [vmem:[%s2922 + $0xa0] sm:$0xff]
          %v2944 = vld [vmem:[%s2922 + $0xa8] sm:$0xff]
          %v2945 = vld [vmem:[%s2922 + $0xb0] sm:$0xff]
          %v2946 = vld [vmem:[%s2922 + $0xb8] sm:$0xff]
          %v2947 = vld [vmem:[%s2922 + $0xc0] sm:$0xff]
          %v2948 = vld [vmem:[%s2922 + $0xc8] sm:$0xff]
          %v2949 = vld [vmem:[%s2922 + $0xd0] sm:$0xff]
          %v2950 = vld [vmem:[%s2922 + $0xd8] sm:$0xff]
          %v2951 = vld [vmem:[%s2922 + $0xe0] sm:$0xff]
          %v2952 = vld [vmem:[%s2922 + $0xe8] sm:$0xff]
          %v2953 = vld [vmem:[%s2922 + $0xf0] sm:$0xff]
          %v2954 = vld [vmem:[%s2922 + $0xf8] sm:$0xff]
          %v2955 = vld [vmem:[%s2922 + $0x100] sm:$0xff]
          %v2956 = vld [vmem:[%s2922 + $0x108] sm:$0xff]
          %v2957 = vld [vmem:[%s2922 + $0x110] sm:$0xff]
          %v2958 = vld [vmem:[%s2922 + $0x118] sm:$0xff]
          %v2959 = vld [vmem:[%s2922 + $0x120] sm:$0xff]
          %v2960 = vld [vmem:[%s2922 + $0x128] sm:$0xff]
          %v2961 = vld [vmem:[%s2922 + $0x130] sm:$0xff]
          %v2962 = vld [vmem:[%s2922 + $0x138] sm:$0xff]
          %v2963 = vld [vmem:[%s2922 + $0x140] sm:$0xff]
          %v2964 = vld [vmem:[%s2922 + $0x148] sm:$0xff]
          %v2965 = vld [vmem:[%s2922 + $0x150] sm:$0xff]
          %v2966 = vld [vmem:[%s2922 + $0x158] sm:$0xff]
          %v2967 = vld [vmem:[%s2922 + $0x160] sm:$0xff]
          %v2968 = vld [vmem:[%s2922 + $0x168] sm:$0xff]
          %v2969 = vld [vmem:[%s2922 + $0x170] sm:$0xff]
          %v2970 = vld [vmem:[%s2922 + $0x178] sm:$0xff]
          %v2971 = vld [vmem:[%s2922 + $0x180] sm:$0xff]
          %v2972 = vld [vmem:[%s2922 + $0x188] sm:$0xff]
          %v2973 = vld [vmem:[%s2922 + $0x190] sm:$0xff]
          %v2974 = vld [vmem:[%s2922 + $0x198] sm:$0xff]
          %v2975 = vld [vmem:[%s2922 + $0x1a0] sm:$0xff]
          %v2976 = vld [vmem:[%s2922 + $0x1a8] sm:$0xff]
          %v2977 = vld [vmem:[%s2922 + $0x1b0] sm:$0xff]
          %v2978 = vld [vmem:[%s2922 + $0x1b8] sm:$0xff]
          %v2979 = vld [vmem:[%s2922 + $0x1c0] sm:$0xff]
          %v2980 = vld [vmem:[%s2922 + $0x1c8] sm:$0xff]
          %v2981 = vld [vmem:[%s2922 + $0x1d0] sm:$0xff]
          %v2982 = vld [vmem:[%s2922 + $0x1d8] sm:$0xff]
          %v2983 = vld [vmem:[%s2922 + $0x1e0] sm:$0xff]
          %v2984 = vld [vmem:[%s2922 + $0x1e8] sm:$0xff]
          %v2985 = vld [vmem:[%s2922 + $0x1f0] sm:$0xff]
          %v2986 = vld [vmem:[%s2922 + $0x1f8] sm:$0xff]
          %v2987 = vld [vmem:[%s2922 + $0x200] sm:$0xff]
          %v2988 = vld [vmem:[%s2922 + $0x208] sm:$0xff]
          %v2989 = vld [vmem:[%s2922 + $0x210] sm:$0xff]
          %v2990 = vld [vmem:[%s2922 + $0x218] sm:$0xff]
          %v2991 = vld [vmem:[%s2922 + $0x220] sm:$0xff]
          %v2992 = vld [vmem:[%s2922 + $0x228] sm:$0xff]
          %v2993 = vld [vmem:[%s2922 + $0x230] sm:$0xff]
          %v2994 = vld [vmem:[%s2922 + $0x238] sm:$0xff]
          %v2995 = vld [vmem:[%s2922 + $0x240] sm:$0xff]
          %v2996 = vld [vmem:[%s2922 + $0x248] sm:$0xff]
          %v2997 = vld [vmem:[%s2922 + $0x250] sm:$0xff]
          %v2998 = vld [vmem:[%s2922 + $0x258] sm:$0xff]
          %v2999 = vld [vmem:[%s2922 + $0x260] sm:$0xff]
          %v3000 = vld [vmem:[%s2922 + $0x268] sm:$0xff]
          %v3001 = vld [vmem:[%s2922 + $0x270] sm:$0xff]
          %v3002 = vld [vmem:[%s2922 + $0x278] sm:$0xff]
          %v3003 = vld [vmem:[%s2922 + $0x280] sm:$0xff]
          %v3004 = vld [vmem:[%s2922 + $0x288] sm:$0xff]
          %v3005 = vld [vmem:[%s2922 + $0x290] sm:$0xff]
          %v3006 = vld [vmem:[%s2922 + $0x298] sm:$0xff]
          %v3007 = vld [vmem:[%s2922 + $0x2a0] sm:$0xff]
          %v3008 = vld [vmem:[%s2922 + $0x2a8] sm:$0xff]
          %v3009 = vld [vmem:[%s2922 + $0x2b0] sm:$0xff]
          %v3010 = vld [vmem:[%s2922 + $0x2b8] sm:$0xff]
          %v3011 = vld [vmem:[%s2922 + $0x2c0] sm:$0xff]
          %v3012 = vld [vmem:[%s2922 + $0x2c8] sm:$0xff]
          %v3013 = vld [vmem:[%s2922 + $0x2d0] sm:$0xff]
          %v3014 = vld [vmem:[%s2922 + $0x2d8] sm:$0xff]
          %v3015 = vld [vmem:[%s2922 + $0x2e0] sm:$0xff]
          %v3016 = vld [vmem:[%s2922 + $0x2e8] sm:$0xff]
          %v3017 = vld [vmem:[%s2922 + $0x2f0] sm:$0xff]
          %v3018 = vld [vmem:[%s2922 + $0x2f8] sm:$0xff]
          %v3019 = vld [vmem:[%s2922 + $0x300] sm:$0xff]
          %v3020 = vld [vmem:[%s2922 + $0x308] sm:$0xff]
          %v3021 = vld [vmem:[%s2922 + $0x310] sm:$0xff]
          %v3022 = vld [vmem:[%s2922 + $0x318] sm:$0xff]
          %v3023 = vld [vmem:[%s2922 + $0x320] sm:$0xff]
          %v3024 = vld [vmem:[%s2922 + $0x328] sm:$0xff]
          %v3025 = vld [vmem:[%s2922 + $0x330] sm:$0xff]
          %v3026 = vld [vmem:[%s2922 + $0x338] sm:$0xff]
          %v3027 = vld [vmem:[%s2922 + $0x340] sm:$0xff]
          %v3028 = vld [vmem:[%s2922 + $0x348] sm:$0xff]
          %v3029 = vld [vmem:[%s2922 + $0x350] sm:$0xff]
          %v3030 = vld [vmem:[%s2922 + $0x358] sm:$0xff]
          %v3031 = vld [vmem:[%s2922 + $0x360] sm:$0xff]
          %v3032 = vld [vmem:[%s2922 + $0x368] sm:$0xff]
          %v3033 = vld [vmem:[%s2922 + $0x370] sm:$0xff]
          %v3034 = vld [vmem:[%s2922 + $0x378] sm:$0xff]
          %v3035 = vld [vmem:[%s2922 + $0x380] sm:$0xff]
          %v3036 = vld [vmem:[%s2922 + $0x388] sm:$0xff]
          %v3037 = vld [vmem:[%s2922 + $0x390] sm:$0xff]
          %v3038 = vld [vmem:[%s2922 + $0x398] sm:$0xff]
          %v3039 = vld [vmem:[%s2922 + $0x3a0] sm:$0xff]
          %v3040 = vld [vmem:[%s2922 + $0x3a8] sm:$0xff]
          %v3041 = vld [vmem:[%s2922 + $0x3b0] sm:$0xff]
          %v3042 = vld [vmem:[%s2922 + $0x3b8] sm:$0xff]
          %v3043 = vld [vmem:[%s2922 + $0x3c0] sm:$0xff]
          %v3044 = vld [vmem:[%s2922 + $0x3c8] sm:$0xff]
          %v3045 = vld [vmem:[%s2922 + $0x3d0] sm:$0xff]
          %v3046 = vld [vmem:[%s2922 + $0x3d8] sm:$0xff]
          %v3047 = vld [vmem:[%s2922 + $0x3e0] sm:$0xff]
          %v3048 = vld [vmem:[%s2922 + $0x3e8] sm:$0xff]
          %v3049 = vld [vmem:[%s2922 + $0x3f0] sm:$0xff]
          %v3050 = vld [vmem:[%s2922 + $0x3f8] sm:$0xff]
          %v3051 = vld [vmem:[%s2922 + $0x400] sm:$0xff]
          %v3052 = vld [vmem:[%s2922 + $0x408] sm:$0xff]
          %v3053 = vld [vmem:[%s2922 + $0x410] sm:$0xff]
          %v3054 = vld [vmem:[%s2922 + $0x418] sm:$0xff]
          %v3055 = vld [vmem:[%s2922 + $0x420] sm:$0xff]
          %v3056 = vld [vmem:[%s2922 + $0x428] sm:$0xff]
          %v3057 = vld [vmem:[%s2922 + $0x430] sm:$0xff]
          %v3058 = vld [vmem:[%s2922 + $0x438] sm:$0xff]
          %v3059 = vld [vmem:[%s2922 + $0x440] sm:$0xff]
          %v3060 = vld [vmem:[%s2922 + $0x448] sm:$0xff]
          %v3061 = vld [vmem:[%s2922 + $0x450] sm:$0xff]
          %v3062 = vld [vmem:[%s2922 + $0x458] sm:$0xff]
          %v3063 = vld [vmem:[%s2922 + $0x460] sm:$0xff]
          %v3064 = vld [vmem:[%s2922 + $0x468] sm:$0xff]
          %v3065 = vld [vmem:[%s2922 + $0x470] sm:$0xff]
          %v3066 = vld [vmem:[%s2922 + $0x478] sm:$0xff]
          %s3067 = scalar_lea.vmem [#allocation14], %s904
          %v3068 = vld [vmem:[%s3067] sm:$0x1]
          %s3069 = scalar_lea.vmem [#allocation16], %s904
          %v3070 = vld [vmem:[%s3069] sm:$0x1]
          loop: start=0, step=1, limit=2
          $region151: #{residual_group_forward.1} parent=140 // loop_pre_header
            _
          $region152: #{residual_group_forward.1} parent=140 // loop_header
            %s3072 = sphi 0, %s3076
            %p3073 = scmp.ge.s32.totalorder %s3072, 2
          $region153: #{residual_group_forward.1} parent=140 // loop_header_branch
            %3075 = sbr.rel (%p3073) target = $region157
          $region154: #{residual_group_forward.1} parent=140 // loop_body
            %s3077 = smul.u32 %s3072, 16
            %s3078 = smul.u32 %s3077, 24
            %s3079 = scalar_lea.vmem [#allocation2], %s3078
            %v3080 = vld [vmem:[%s3079] sm:$0xff]
            %v3081 = vld [vmem:[%s3079 + $0x8] sm:$0xff]
            %v3082 = vld [vmem:[%s3079 + $0x10] sm:$0xff]
            %v3083 = vld [vmem:[%s3079 + $0x18] sm:$0xff]
            %v3084 = vld [vmem:[%s3079 + $0x20] sm:$0xff]
            %v3085 = vld [vmem:[%s3079 + $0x28] sm:$0xff]
            %v3086 = vld [vmem:[%s3079 + $0x30] sm:$0xff]
            %v3087 = vld [vmem:[%s3079 + $0x38] sm:$0xff]
            %v3088 = vld [vmem:[%s3079 + $0x40] sm:$0xff]
            %v3089 = vld [vmem:[%s3079 + $0x48] sm:$0xff]
            %v3090 = vld [vmem:[%s3079 + $0x50] sm:$0xff]
            %v3091 = vld [vmem:[%s3079 + $0x58] sm:$0xff]
            %v3092 = vld [vmem:[%s3079 + $0x60] sm:$0xff]
            %v3093 = vld [vmem:[%s3079 + $0x68] sm:$0xff]
            %v3094 = vld [vmem:[%s3079 + $0x70] sm:$0xff]
            %v3095 = vld [vmem:[%s3079 + $0x78] sm:$0xff]
            %v3096 = vld [vmem:[%s3079 + $0x80] sm:$0xff]
            %v3097 = vld [vmem:[%s3079 + $0x88] sm:$0xff]
            %v3098 = vld [vmem:[%s3079 + $0x90] sm:$0xff]
            %v3099 = vld [vmem:[%s3079 + $0x98] sm:$0xff]
            %v3100 = vld [vmem:[%s3079 + $0xa0] sm:$0xff]
            %v3101 = vld [vmem:[%s3079 + $0xa8] sm:$0xff]
            %v3102 = vld [vmem:[%s3079 + $0xb0] sm:$0xff]
            %v3103 = vld [vmem:[%s3079 + $0xb8] sm:$0xff]
            %v3104 = vld [vmem:[%s3079 + $0xc0] sm:$0xff]
            %v3105 = vld [vmem:[%s3079 + $0xc8] sm:$0xff]
            %v3106 = vld [vmem:[%s3079 + $0xd0] sm:$0xff]
            %v3107 = vld [vmem:[%s3079 + $0xd8] sm:$0xff]
            %v3108 = vld [vmem:[%s3079 + $0xe0] sm:$0xff]
            %v3109 = vld [vmem:[%s3079 + $0xe8] sm:$0xff]
            %v3110 = vld [vmem:[%s3079 + $0xf0] sm:$0xff]
            %v3111 = vld [vmem:[%s3079 + $0xf8] sm:$0xff]
            %v3112 = vld [vmem:[%s3079 + $0x100] sm:$0xff]
            %v3113 = vld [vmem:[%s3079 + $0x108] sm:$0xff]
            %v3114 = vld [vmem:[%s3079 + $0x110] sm:$0xff]
            %v3115 = vld [vmem:[%s3079 + $0x118] sm:$0xff]
            %v3116 = vld [vmem:[%s3079 + $0x120] sm:$0xff]
            %v3117 = vld [vmem:[%s3079 + $0x128] sm:$0xff]
            %v3118 = vld [vmem:[%s3079 + $0x130] sm:$0xff]
            %v3119 = vld [vmem:[%s3079 + $0x138] sm:$0xff]
            %v3120 = vld [vmem:[%s3079 + $0x140] sm:$0xff]
            %v3121 = vld [vmem:[%s3079 + $0x148] sm:$0xff]
            %v3122 = vld [vmem:[%s3079 + $0x150] sm:$0xff]
            %v3123 = vld [vmem:[%s3079 + $0x158] sm:$0xff]
            %v3124 = vld [vmem:[%s3079 + $0x160] sm:$0xff]
            %v3125 = vld [vmem:[%s3079 + $0x168] sm:$0xff]
            %v3126 = vld [vmem:[%s3079 + $0x170] sm:$0xff]
            %v3127 = vld [vmem:[%s3079 + $0x178] sm:$0xff]
            %v3128 = vld [vmem:[%s3079 + $0x180] sm:$0xff]
            %v3129 = vld [vmem:[%s3079 + $0x188] sm:$0xff]
            %v3130 = vld [vmem:[%s3079 + $0x190] sm:$0xff]
            %v3131 = vld [vmem:[%s3079 + $0x198] sm:$0xff]
            %v3132 = vld [vmem:[%s3079 + $0x1a0] sm:$0xff]
            %v3133 = vld [vmem:[%s3079 + $0x1a8] sm:$0xff]
            %vm3182 = vcmask 1046528
            %v3183 = vrot.slane %v3080, 1
            %v3184 = vrot.slane %v3081, 1
            %v3185 = vsel %vm3182, %v3183, %v3184
            %v3186 = vrot.slane %v3082, 1
            %v3187 = vsel %vm3182, %v3184, %v3186
            %v3188 = vrot.slane %v3083, 1
            %v3189 = vrot.slane %v3084, 1
            %v3190 = vsel %vm3182, %v3188, %v3189
            %v3191 = vrot.slane %v3085, 1
            %v3192 = vsel %vm3182, %v3189, %v3191
            %v3193 = vrot.slane %v3086, 1
            %v3194 = vrot.slane %v3087, 1
            %v3195 = vsel %vm3182, %v3193, %v3194
            %v3196 = vrot.slane %v3088, 1
            %v3197 = vsel %vm3182, %v3194, %v3196
            %v3198 = vrot.slane %v3089, 1
            %v3199 = vrot.slane %v3090, 1
            %v3200 = vsel %vm3182, %v3198, %v3199
            %v3201 = vrot.slane %v3091, 1
            %v3202 = vsel %vm3182, %v3199, %v3201
            %v3203 = vrot.slane %v3092, 1
            %v3204 = vrot.slane %v3093, 1
            %v3205 = vsel %vm3182, %v3203, %v3204
            %v3206 = vrot.slane %v3094, 1
            %v3207 = vsel %vm3182, %v3204, %v3206
            %v3208 = vrot.slane %v3095, 1
            %v3209 = vrot.slane %v3096, 1
            %v3210 = vsel %vm3182, %v3208, %v3209
            %v3211 = vrot.slane %v3097, 1
            %v3212 = vsel %vm3182, %v3209, %v3211
            %v3213 = vrot.slane %v3098, 1
            %v3214 = vrot.slane %v3099, 1
            %v3215 = vsel %vm3182, %v3213, %v3214
            %v3216 = vrot.slane %v3100, 1
            %v3217 = vsel %vm3182, %v3214, %v3216
            %v3218 = vrot.slane %v3101, 1
            %v3219 = vrot.slane %v3102, 1
            %v3220 = vsel %vm3182, %v3218, %v3219
            %v3221 = vrot.slane %v3103, 1
            %v3222 = vsel %vm3182, %v3219, %v3221
            %v3223 = vrot.slane %v3104, 1
            %v3224 = vrot.slane %v3105, 1
            %v3225 = vsel %vm3182, %v3223, %v3224
            %v3226 = vrot.slane %v3106, 1
            %v3227 = vsel %vm3182, %v3224, %v3226
            %v3228 = vrot.slane %v3107, 1
            %v3229 = vrot.slane %v3108, 1
            %v3230 = vsel %vm3182, %v3228, %v3229
            %v3231 = vrot.slane %v3109, 1
            %v3232 = vsel %vm3182, %v3229, %v3231
            %v3233 = vrot.slane %v3110, 1
            %v3234 = vrot.slane %v3111, 1
            %v3235 = vsel %vm3182, %v3233, %v3234
            %v3236 = vrot.slane %v3112, 1
            %v3237 = vsel %vm3182, %v3234, %v3236
            %v3238 = vrot.slane %v3113, 1
            %v3239 = vrot.slane %v3114, 1
            %v3240 = vsel %vm3182, %v3238, %v3239
            %v3241 = vrot.slane %v3115, 1
            %v3242 = vsel %vm3182, %v3239, %v3241
            %v3243 = vrot.slane %v3116, 1
            %v3244 = vrot.slane %v3117, 1
            %v3245 = vsel %vm3182, %v3243, %v3244
            %v3246 = vrot.slane %v3118, 1
            %v3247 = vsel %vm3182, %v3244, %v3246
            %v3248 = vrot.slane %v3119, 1
            %v3249 = vrot.slane %v3120, 1
            %v3250 = vsel %vm3182, %v3248, %v3249
            %v3251 = vrot.slane %v3121, 1
            %v3252 = vsel %vm3182, %v3249, %v3251
            %v3253 = vrot.slane %v3122, 1
            %v3254 = vrot.slane %v3123, 1
            %v3255 = vsel %vm3182, %v3253, %v3254
            %v3256 = vrot.slane %v3124, 1
            %v3257 = vsel %vm3182, %v3254, %v3256
            %v3258 = vrot.slane %v3125, 1
            %v3259 = vrot.slane %v3126, 1
            %v3260 = vsel %vm3182, %v3258, %v3259
            %v3261 = vrot.slane %v3127, 1
            %v3262 = vsel %vm3182, %v3259, %v3261
            %vm3295 = vcmask 1045504
            %v3296 = vrot.slane %v3080, 2
            %v3297 = vrot.slane %v3081, 2
            %v3298 = vsel %vm3295, %v3296, %v3297
            %v3299 = vrot.slane %v3082, 2
            %v3300 = vsel %vm3295, %v3297, %v3299
            %v3301 = vrot.slane %v3083, 2
            %v3302 = vrot.slane %v3084, 2
            %v3303 = vsel %vm3295, %v3301, %v3302
            %v3304 = vrot.slane %v3085, 2
            %v3305 = vsel %vm3295, %v3302, %v3304
            %v3306 = vrot.slane %v3086, 2
            %v3307 = vrot.slane %v3087, 2
            %v3308 = vsel %vm3295, %v3306, %v3307
            %v3309 = vrot.slane %v3088, 2
            %v3310 = vsel %vm3295, %v3307, %v3309
            %v3311 = vrot.slane %v3089, 2
            %v3312 = vrot.slane %v3090, 2
            %v3313 = vsel %vm3295, %v3311, %v3312
            %v3314 = vrot.slane %v3091, 2
            %v3315 = vsel %vm3295, %v3312, %v3314
            %v3316 = vrot.slane %v3092, 2
            %v3317 = vrot.slane %v3093, 2
            %v3318 = vsel %vm3295, %v3316, %v3317
            %v3319 = vrot.slane %v3094, 2
            %v3320 = vsel %vm3295, %v3317, %v3319
            %v3321 = vrot.slane %v3095, 2
            %v3322 = vrot.slane %v3096, 2
            %v3323 = vsel %vm3295, %v3321, %v3322
            %v3324 = vrot.slane %v3097, 2
            %v3325 = vsel %vm3295, %v3322, %v3324
            %v3326 = vrot.slane %v3098, 2
            %v3327 = vrot.slane %v3099, 2
            %v3328 = vsel %vm3295, %v3326, %v3327
            %v3329 = vrot.slane %v3100, 2
            %v3330 = vsel %vm3295, %v3327, %v3329
            %v3331 = vrot.slane %v3101, 2
            %v3332 = vrot.slane %v3102, 2
            %v3333 = vsel %vm3295, %v3331, %v3332
            %v3334 = vrot.slane %v3103, 2
            %v3335 = vsel %vm3295, %v3332, %v3334
            %v3336 = vrot.slane %v3104, 2
            %v3337 = vrot.slane %v3105, 2
            %v3338 = vsel %vm3295, %v3336, %v3337
            %v3339 = vrot.slane %v3106, 2
            %v3340 = vsel %vm3295, %v3337, %v3339
            %v3341 = vrot.slane %v3107, 2
            %v3342 = vrot.slane %v3108, 2
            %v3343 = vsel %vm3295, %v3341, %v3342
            %v3344 = vrot.slane %v3109, 2
            %v3345 = vsel %vm3295, %v3342, %v3344
            %v3346 = vrot.slane %v3110, 2
            %v3347 = vrot.slane %v3111, 2
            %v3348 = vsel %vm3295, %v3346, %v3347
            %v3349 = vrot.slane %v3112, 2
            %v3350 = vsel %vm3295, %v3347, %v3349
            %v3351 = vrot.slane %v3113, 2
            %v3352 = vrot.slane %v3114, 2
            %v3353 = vsel %vm3295, %v3351, %v3352
            %v3354 = vrot.slane %v3115, 2
            %v3355 = vsel %vm3295, %v3352, %v3354
            %v3356 = vrot.slane %v3116, 2
            %v3357 = vrot.slane %v3117, 2
            %v3358 = vsel %vm3295, %v3356, %v3357
            %v3359 = vrot.slane %v3118, 2
            %v3360 = vsel %vm3295, %v3357, %v3359
            %v3361 = vrot.slane %v3119, 2
            %v3362 = vrot.slane %v3120, 2
            %v3363 = vsel %vm3295, %v3361, %v3362
            %v3364 = vrot.slane %v3121, 2
            %v3365 = vsel %vm3295, %v3362, %v3364
            %v3366 = vrot.slane %v3122, 2
            %v3367 = vrot.slane %v3123, 2
            %v3368 = vsel %vm3295, %v3366, %v3367
            %v3369 = vrot.slane %v3124, 2
            %v3370 = vsel %vm3295, %v3367, %v3369
            %v3371 = vrot.slane %v3125, 2
            %v3372 = vrot.slane %v3126, 2
            %v3373 = vsel %vm3295, %v3371, %v3372
            %v3374 = vrot.slane %v3127, 2
            %v3375 = vsel %vm3295, %v3372, %v3374
            %v3411 = vrot.slane %v3128, 1
            %v3412 = vrot.slane %v3129, 1
            %v3413 = vsel %vm3182, %v3411, %v3412
            %v3414 = vrot.slane %v3130, 1
            %v3415 = vsel %vm3182, %v3412, %v3414
            %v3418 = vrot.slane %v3128, 2
            %v3419 = vrot.slane %v3129, 2
            %v3420 = vsel %vm3295, %v3418, %v3419
            %v3421 = vrot.slane %v3130, 2
            %v3422 = vsel %vm3295, %v3419, %v3421
            %v3428 = vrot.slane %v3131, 1
            %v3429 = vrot.slane %v3132, 1
            %v3430 = vsel %vm3182, %v3428, %v3429
            %v3431 = vrot.slane %v3133, 1
            %v3432 = vsel %vm3182, %v3429, %v3431
            %v3435 = vrot.slane %v3131, 2
            %v3436 = vrot.slane %v3132, 2
            %v3437 = vsel %vm3295, %v3435, %v3436
            %v3438 = vrot.slane %v3133, 2
            %v3439 = vsel %vm3295, %v3436, %v3438
            %3442 = vmatprep.subr.mxu0 0.0
            %3443 = vmatpush1.msra.mxu0 %v2923
            %3444 = vmatprep.subr.mxu0 0.0
            %3445 = vmatpush1.msra.mxu0 %v2924
            %3446 = vmatprep.subr.mxu0 0.0
            %3447 = vmatpush1.msra.mxu0 %v2925
            %3448 = vmatprep.subr.mxu0 0.0
            %3449 = vmatpush1.msra.mxu0 %v2926
            %3450 = vmatprep.subr.mxu0 0.0
            %3451 = vmatpush1.msra.mxu0 %v2927
            %3452 = vmatprep.subr.mxu0 0.0
            %3453 = vmatpush1.msra.mxu0 %v2928
            %3454 = vmatprep.subr.mxu0 0.0
            %3455 = vmatpush1.msra.mxu0 %v2929
            %3456 = vmatprep.subr.mxu0 0.0
            %3457 = vmatpush1.msra.mxu0 %v2930
            %3458 = vmatprep.subr.mxu0 0.0
            %3459 = vmatpush1.msra.mxu0 %v2931
            %3460 = vmatprep.subr.mxu0 0.0
            %3461 = vmatpush1.msra.mxu0 %v2932
            %3462 = vmatprep.subr.mxu0 0.0
            %3463 = vmatpush1.msra.mxu0 %v2933
            %3464 = vmatprep.subr.mxu0 0.0
            %3465 = vmatpush1.msra.mxu0 %v2934
            %3466 = vmatprep.subr.mxu0 0.0
            %3467 = vmatpush1.msra.mxu0 %v2935
            %3468 = vmatprep.subr.mxu0 0.0
            %3469 = vmatpush1.msra.mxu0 %v2936
            %3470 = vmatprep.subr.mxu0 0.0
            %3471 = vmatpush1.msra.mxu0 %v2937
            %3472 = vmatprep.subr.mxu0 0.0
            %3473 = vmatpush1.msra.mxu0 %v2938
            %3474 = vmatprep.subr.mxu0 0.0
            %3475 = vmatpush1.msra.mxu0 %v2939
            %3476 = vmatprep.subr.mxu0 0.0
            %3477 = vmatpush1.msra.mxu0 %v2940
            %3478 = vmatprep.subr.mxu0 0.0
            %3479 = vmatpush1.msra.mxu0 %v2941
            %3480 = vmatprep.subr.mxu0 0.0
            %3481 = vmatpush1.msra.mxu0 %v2942
            %3482 = vmatprep.subr.mxu0 0.0
            %3483 = vmatpush1.msra.mxu0 %v2943
            %3484 = vmatprep.subr.mxu0 0.0
            %3485 = vmatpush1.msra.mxu0 %v2944
            %3486 = vmatprep.subr.mxu0 0.0
            %3487 = vmatpush1.msra.mxu0 %v2945
            %3488 = vmatprep.subr.mxu0 0.0
            %3489 = vmatpush1.msra.mxu0 %v2946
            %3490 = vmatprep.subr.mxu0 0.0
            %3491 = vmatpush1.msra.mxu0 %v2947
            %3492 = vmatprep.subr.mxu0 0.0
            %3493 = vmatpush1.msra.mxu0 %v2948
            %3494 = vmatprep.subr.mxu0 0.0
            %3495 = vmatpush1.msra.mxu0 %v2949
            %3496 = vmatprep.subr.mxu0 0.0
            %3497 = vmatpush1.msra.mxu0 %v2950
            %3498 = vmatprep.subr.mxu0 0.0
            %3499 = vmatpush1.msra.mxu0 %v2951
            %3500 = vmatprep.subr.mxu0 0.0
            %3501 = vmatpush1.msra.mxu0 %v2952
            %3502 = vmatprep.subr.mxu0 0.0
            %3503 = vmatpush1.msra.mxu0 %v2953
            %3504 = vmatprep.subr.mxu0 0.0
            %3505 = vmatpush1.msra.mxu0 %v2954
            %3506 = vmatprep.mubr.f32.mxu0 %v3185
            %3507 = vmatmul.mubr.f32.gmra.mrb[0].mxu0 %v3080
            %v3508 = vpop.f32.mrb[0].mxu0
            %v3509 = vadd.f32 0.0, %v3508
            %v3510 = vpop.f32.mrb[0].mxu0
            %3511 = vmatprep.mubr.f32.mxu0 %v3187
            %3512 = vmatmul.mubr.f32.gmra.mrb[0].mxu0 %v3081
            %v3513 = vpop.f32.mrb[0].mxu0
            %v3514 = vadd.f32 0.0, %v3513
            %v3515 = vpop.f32.mrb[0].mxu0
            %3516 = vmatprep.mubr.f32.mxu0 %v3190
            %3517 = vmatmul.mubr.f32.gmra.mrb[0].mxu0 %v3083
            %v3518 = vpop.f32.mrb[0].mxu0
            %v3519 = vadd.f32 0.0, %v3518
            %v3520 = vpop.f32.mrb[0].mxu0
            %3521 = vmatprep.mubr.f32.mxu0 %v3192
            %3522 = vmatmul.mubr.f32.gmra.mrb[0].mxu0 %v3084
            %v3523 = vpop.f32.mrb[0].mxu0
            %v3524 = vadd.f32 0.0, %v3523
            %v3525 = vpop.f32.mrb[0].mxu0
            %3526 = vmatprep.mubr.f32.mxu0 %v3195
            %3527 = vmatmul.mubr.f32.gmra.mrb[0].mxu0 %v3086
            %v3528 = vpop.f32.mrb[0].mxu0
            %v3529 = vadd.f32 0.0, %v3528
            %v3530 = vpop.f32.mrb[0].mxu0
            %3531 = vmatprep.mubr.f32.mxu0 %v3197
            %3532 = vmatmul.mubr.f32.gmra.mrb[0].mxu0 %v3087
            %v3533 = vpop.f32.mrb[0].mxu0
            %v3534 = vadd.f32 0.0, %v3533
            %v3535 = vpop.f32.mrb[0].mxu0
            %3536 = vmatprep.mubr.f32.mxu0 %v3200
            %3537 = vmatmul.mubr.f32.gmra.mrb[0].mxu0 %v3089
            %v3538 = vpop.f32.mrb[0].mxu0
            %v3539 = vadd.f32 0.0, %v3538
            %v3540 = vpop.f32.mrb[0].mxu0
            %3541 = vmatprep.mubr.f32.mxu0 %v3202
            %3542 = vmatmul.mubr.f32.gmra.mrb[0].mxu0 %v3090
            %v3543 = vpop.f32.mrb[0].mxu0
            %v3544 = vadd.f32 0.0, %v3543
            %v3545 = vpop.f32.mrb[0].mxu0
            %3546 = vmatprep.mubr.f32.mxu0 %v3205
            %3547 = vmatmul.mubr.f32.gmra.mrb[0].mxu0 %v3092
            %v3548 = vpop.f32.mrb[0].mxu0
            %v3549 = vadd.f32 0.0, %v3548
            %v3550 = vpop.f32.mrb[0].mxu0
            %3551 = vmatprep.mubr.f32.mxu0 %v3207
            %3552 = vmatmul.mubr.f32.gmra.mrb[0].mxu0 %v3093
            %v3553 = vpop.f32.mrb[0].mxu0
            %v3554 = vadd.f32 0.0, %v3553
            %v3555 = vpop.f32.mrb[0].mxu0
            %3556 = vmatprep.mubr.f32.mxu0 %v3210
            %3557 = vmatmul.mubr.f32.gmra.mrb[0].mxu0 %v3095
            %v3558 = vpop.f32.mrb[0].mxu0
            %v3559 = vadd.f32 0.0, %v3558
            %v3560 = vpop.f32.mrb[0].mxu0
            %3561 = vmatprep.mubr.f32.mxu0 %v3212
            %3562 = vmatmul.mubr.f32.gmra.mrb[0].mxu0 %v3096
            %v3563 = vpop.f32.mrb[0].mxu0
            %v3564 = vadd.f32 0.0, %v3563
            %v3565 = vpop.f32.mrb[0].mxu0
            %3566 = vmatprep.mubr.f32.mxu0 %v3215
            %3567 = vmatmul.mubr.f32.gmra.mrb[0].mxu0 %v3098
            %v3568 = vpop.f32.mrb[0].mxu0
            %v3569 = vadd.f32 0.0, %v3568
            %v3570 = vpop.f32.mrb[0].mxu0
            %3571 = vmatprep.mubr.f32.mxu0 %v3217
            %3572 = vmatmul.mubr.f32.gmra.mrb[0].mxu0 %v3099
            %v3573 = vpop.f32.mrb[0].mxu0
            %v3574 = vadd.f32 0.0, %v3573
            %v3575 = vpop.f32.mrb[0].mxu0
            %3576 = vmatprep.mubr.f32.mxu0 %v3220
            %3577 = vmatmul.mubr.f32.gmra.mrb[0].mxu0 %v3101
            %v3578 = vpop.f32.mrb[0].mxu0
            %v3579 = vadd.f32 0.0, %v3578
            %v3580 = vpop.f32.mrb[0].mxu0
            %3581 = vmatprep.mubr.f32.mxu0 %v3222
            %3582 = vmatmul.mubr.f32.gmra.mrb[0].mxu0 %v3102
            %v3583 = vpop.f32.mrb[0].mxu0
            %v3584 = vadd.f32 0.0, %v3583
            %v3585 = vpop.f32.mrb[0].mxu0
            %3586 = vmatprep.mubr.f32.mxu0 %v3225
            %3587 = vmatmul.mubr.f32.gmra.mrb[0].mxu0 %v3104
            %v3588 = vpop.f32.mrb[0].mxu0
            %v3589 = vadd.f32 0.0, %v3588
            %v3590 = vpop.f32.mrb[0].mxu0
            %3591 = vmatprep.mubr.f32.mxu0 %v3227
            %3592 = vmatmul.mubr.f32.gmra.mrb[0].mxu0 %v3105
            %v3593 = vpop.f32.mrb[0].mxu0
            %v3594 = vadd.f32 0.0, %v3593
            %v3595 = vpop.f32.mrb[0].mxu0
            %3596 = vmatprep.mubr.f32.mxu0 %v3230
            %3597 = vmatmul.mubr.f32.gmra.mrb[0].mxu0 %v3107
            %v3598 = vpop.f32.mrb[0].mxu0
            %v3599 = vadd.f32 0.0, %v3598
            %v3600 = vpop.f32.mrb[0].mxu0
            %3601 = vmatprep.mubr.f32.mxu0 %v3232
            %3602 = vmatmul.mubr.f32.gmra.mrb[0].mxu0 %v3108
            %v3603 = vpop.f32.mrb[0].mxu0
            %v3604 = vadd.f32 0.0, %v3603
            %v3605 = vpop.f32.mrb[0].mxu0
            %3606 = vmatprep.mubr.f32.mxu0 %v3235
            %3607 = vmatmul.mubr.f32.gmra.mrb[0].mxu0 %v3110
            %v3608 = vpop.f32.mrb[0].mxu0
            %v3609 = vadd.f32 0.0, %v3608
            %v3610 = vpop.f32.mrb[0].mxu0
            %3611 = vmatprep.mubr.f32.mxu0 %v3237
            %3612 = vmatmul.mubr.f32.gmra.mrb[0].mxu0 %v3111
            %v3613 = vpop.f32.mrb[0].mxu0
            %v3614 = vadd.f32 0.0, %v3613
            %v3615 = vpop.f32.mrb[0].mxu0
            %3616 = vmatprep.mubr.f32.mxu0 %v3240
            %3617 = vmatmul.mubr.f32.gmra.mrb[0].mxu0 %v3113
            %v3618 = vpop.f32.mrb[0].mxu0
            %v3619 = vadd.f32 0.0, %v3618
            %v3620 = vpop.f32.mrb[0].mxu0
            %3621 = vmatprep.mubr.f32.mxu0 %v3242
            %3622 = vmatmul.mubr.f32.gmra.mrb[0].mxu0 %v3114
            %v3623 = vpop.f32.mrb[0].mxu0
            %v3624 = vadd.f32 0.0, %v3623
            %v3625 = vpop.f32.mrb[0].mxu0
            %3626 = vmatprep.mubr.f32.mxu0 %v3245
            %3627 = vmatmul.mubr.f32.gmra.mrb[0].mxu0 %v3116
            %v3628 = vpop.f32.mrb[0].mxu0
            %v3629 = vadd.f32 0.0, %v3628
            %v3630 = vpop.f32.mrb[0].mxu0
            %3631 = vmatprep.mubr.f32.mxu0 %v3247
            %3632 = vmatmul.mubr.f32.gmra.mrb[0].mxu0 %v3117
            %v3633 = vpop.f32.mrb[0].mxu0
            %v3634 = vadd.f32 0.0, %v3633
            %v3635 = vpop.f32.mrb[0].mxu0
            %3636 = vmatprep.mubr.f32.mxu0 %v3250
            %3637 = vmatmul.mubr.f32.gmra.mrb[0].mxu0 %v3119
            %v3638 = vpop.f32.mrb[0].mxu0
            %v3639 = vadd.f32 0.0, %v3638
            %v3640 = vpop.f32.mrb[0].mxu0
            %3641 = vmatprep.mubr.f32.mxu0 %v3252
            %3642 = vmatmul.mubr.f32.gmra.mrb[0].mxu0 %v3120
            %v3643 = vpop.f32.mrb[0].mxu0
            %v3644 = vadd.f32 0.0, %v3643
            %v3645 = vpop.f32.mrb[0].mxu0
            %3646 = vmatprep.mubr.f32.mxu0 %v3255
            %3647 = vmatmul.mubr.f32.gmra.mrb[0].mxu0 %v3122
            %v3648 = vpop.f32.mrb[0].mxu0
            %v3649 = vadd.f32 0.0, %v3648
            %v3650 = vpop.f32.mrb[0].mxu0
            %3651 = vmatprep.mubr.f32.mxu0 %v3257
            %3652 = vmatmul.mubr.f32.gmra.mrb[0].mxu0 %v3123
            %v3653 = vpop.f32.mrb[0].mxu0
            %v3654 = vadd.f32 0.0, %v3653
            %v3655 = vpop.f32.mrb[0].mxu0
            %3656 = vmatprep.mubr.f32.mxu0 %v3260
            %3657 = vmatmul.mubr.f32.gmra.mrb[0].mxu0 %v3125
            %v3658 = vpop.f32.mrb[0].mxu0
            %v3659 = vadd.f32 0.0, %v3658
            %v3660 = vpop.f32.mrb[0].mxu0
            %3661 = vmatprep.mubr.f32.mxu0 %v3262
            %3662 = vmatmul.mubr.f32.gmra.mrb[0].mxu0 %v3126
            %v3663 = vpop.f32.mrb[0].mxu0
            %v3664 = vadd.f32 0.0, %v3663
            %v3665 = vpop.f32.mrb[0].mxu0
            %3666 = vdwg.mxu0
            %3667 = vmatprep.subr.mxu0 0.0
            %3668 = vmatpush1.msra.mxu0 %v2955
            %3669 = vmatprep.subr.mxu0 0.0
            %3670 = vmatpush1.msra.mxu0 %v2956
            %3671 = vmatprep.subr.mxu0 0.0
            %3672 = vmatpush1.msra.mxu0 %v2957
            %3673 = vmatprep.subr.mxu0 0.0
            %3674 = vmatpush1.msra.mxu0 %v2958
            %3675 = vmatprep.subr.mxu0 0.0
            %3676 = vmatpush1.msra.mxu0 %v2959
            %3677 = vmatprep.subr.mxu0 0.0
            %3678 = vmatpush1.msra.mxu0 %v2960
            %3679 = vmatprep.subr.mxu0 0.0
            %3680 = vmatpush1.msra.mxu0 %v2961
            %3681 = vmatprep.subr.mxu0 0.0
            %3682 = vmatpush1.msra.mxu0 %v2962
            %3683 = vmatprep.subr.mxu0 0.0
            %3684 = vmatpush1.msra.mxu0 %v2963
            %3685 = vmatprep.subr.mxu0 0.0
            %3686 = vmatpush1.msra.mxu0 %v2964
            %3687 = vmatprep.subr.mxu0 0.0
            %3688 = vmatpush1.msra.mxu0 %v2965
            %3689 = vmatprep.subr.mxu0 0.0
            %3690 = vmatpush1.msra.mxu0 %v2966
            %3691 = vmatprep.subr.mxu0 0.0
            %3692 = vmatpush1.msra.mxu0 %v2967
            %3693 = vmatprep.subr.mxu0 0.0
            %3694 = vmatpush1.msra.mxu0 %v2968
            %3695 = vmatprep.subr.mxu0 0.0
            %3696 = vmatpush1.msra.mxu0 %v2969
            %3697 = vmatprep.subr.mxu0 0.0
            %3698 = vmatpush1.msra.mxu0 %v2970
            %3699 = vmatprep.subr.mxu0 0.0
            %3700 = vmatpush1.msra.mxu0 %v2971
            %3701 = vmatprep.subr.mxu0 0.0
            %3702 = vmatpush1.msra.mxu0 %v2972
            %3703 = vmatprep.subr.mxu0 0.0
            %3704 = vmatpush1.msra.mxu0 %v2973
            %3705 = vmatprep.subr.mxu0 0.0
            %3706 = vmatpush1.msra.mxu0 %v2974
            %3707 = vmatprep.subr.mxu0 0.0
            %3708 = vmatpush1.msra.mxu0 %v2975
            %3709 = vmatprep.subr.mxu0 0.0
            %3710 = vmatpush1.msra.mxu0 %v2976
            %3711 = vmatprep.subr.mxu0 0.0
            %3712 = vmatpush1.msra.mxu0 %v2977
            %3713 = vmatprep.subr.mxu0 0.0
            %3714 = vmatpush1.msra.mxu0 %v2978
            %3715 = vmatprep.subr.mxu0 0.0
            %3716 = vmatpush1.msra.mxu0 %v2979
            %3717 = vmatprep.subr.mxu0 0.0
            %3718 = vmatpush1.msra.mxu0 %v2980
            %3719 = vmatprep.subr.mxu0 0.0
            %3720 = vmatpush1.msra.mxu0 %v2981
            %3721 = vmatprep.subr.mxu0 0.0
            %3722 = vmatpush1.msra.mxu0 %v2982
            %3723 = vmatprep.subr.mxu0 0.0
            %3724 = vmatpush1.msra.mxu0 %v2983
            %3725 = vmatprep.subr.mxu0 0.0
            %3726 = vmatpush1.msra.mxu0 %v2984
            %3727 = vmatprep.subr.mxu0 0.0
            %3728 = vmatpush1.msra.mxu0 %v2985
            %3729 = vmatprep.subr.mxu0 0.0
            %3730 = vmatpush1.msra.mxu0 %v2986
            %3731 = vmatprep.mubr.f32.mxu0 %v3083
            %3732 = vmatmul.mubr.f32.gmra.mrb[0].mxu0 %v3298
            %v3733 = vpop.f32.mrb[0].mxu0
            %v3734 = vadd.f32 %v3509, %v3733
            %v3735 = vpop.f32.mrb[0].mxu0
            %3736 = vmatprep.mubr.f32.mxu0 %v3084
            %3737 = vmatmul.mubr.f32.gmra.mrb[0].mxu0 %v3300
            %v3738 = vpop.f32.mrb[0].mxu0
            %v3739 = vadd.f32 %v3514, %v3738
            %v3740 = vpop.f32.mrb[0].mxu0
            %3741 = vmatprep.mubr.f32.mxu0 %v3086
            %3742 = vmatmul.mubr.f32.gmra.mrb[0].mxu0 %v3303
            %v3743 = vpop.f32.mrb[0].mxu0
            %v3744 = vadd.f32 %v3519, %v3743
            %v3745 = vpop.f32.mrb[0].mxu0
            %3746 = vmatprep.mubr.f32.mxu0 %v3087
            %3747 = vmatmul.mubr.f32.gmra.mrb[0].mxu0 %v3305
            %v3748 = vpop.f32.mrb[0].mxu0
            %v3749 = vadd.f32 %v3524, %v3748
            %v3750 = vpop.f32.mrb[0].mxu0
            %3751 = vmatprep.mubr.f32.mxu0 %v3089
            %3752 = vmatmul.mubr.f32.gmra.mrb[0].mxu0 %v3308
            %v3753 = vpop.f32.mrb[0].mxu0
            %v3754 = vadd.f32 %v3529, %v3753
            %v3755 = vpop.f32.mrb[0].mxu0
            %3756 = vmatprep.mubr.f32.mxu0 %v3090
            %3757 = vmatmul.mubr.f32.gmra.mrb[0].mxu0 %v3310
            %v3758 = vpop.f32.mrb[0].mxu0
            %v3759 = vadd.f32 %v3534, %v3758
            %v3760 = vpop.f32.mrb[0].mxu0
            %3761 = vmatprep.mubr.f32.mxu0 %v3092
            %3762 = vmatmul.mubr.f32.gmra.mrb[0].mxu0 %v3313
            %v3763 = vpop.f32.mrb[0].mxu0
            %v3764 = vadd.f32 %v3539, %v3763
            %v3765 = vpop.f32.mrb[0].mxu0
            %3766 = vmatprep.mubr.f32.mxu0 %v3093
            %3767 = vmatmul.mubr.f32.gmra.mrb[0].mxu0 %v3315
            %v3768 = vpop.f32.mrb[0].mxu0
            %v3769 = vadd.f32 %v3544, %v3768
            %v3770 = vpop.f32.mrb[0].mxu0
            %3771 = vmatprep.mubr.f32.mxu0 %v3095
            %3772 = vmatmul.mubr.f32.gmra.mrb[0].mxu0 %v3318
            %v3773 = vpop.f32.mrb[0].mxu0
            %v3774 = vadd.f32 %v3549, %v3773
            %v3775 = vpop.f32.mrb[0].mxu0
            %3776 = vmatprep.mubr.f32.mxu0 %v3096
            %3777 = vmatmul.mubr.f32.gmra.mrb[0].mxu0 %v3320
            %v3778 = vpop.f32.mrb[0].mxu0
            %v3779 = vadd.f32 %v3554, %v3778
            %v3780 = vpop.f32.mrb[0].mxu0
            %3781 = vmatprep.mubr.f32.mxu0 %v3098
            %3782 = vmatmul.mubr.f32.gmra.mrb[0].mxu0 %v3323
            %v3783 = vpop.f32.mrb[0].mxu0
            %v3784 = vadd.f32 %v3559, %v3783
            %v3785 = vpop.f32.mrb[0].mxu0
            %3786 = vmatprep.mubr.f32.mxu0 %v3099
            %3787 = vmatmul.mubr.f32.gmra.mrb[0].mxu0 %v3325
            %v3788 = vpop.f32.mrb[0].mxu0
            %v3789 = vadd.f32 %v3564, %v3788
            %v3790 = vpop.f32.mrb[0].mxu0
            %3791 = vmatprep.mubr.f32.mxu0 %v3101
            %3792 = vmatmul.mubr.f32.gmra.mrb[0].mxu0 %v3328
            %v3793 = vpop.f32.mrb[0].mxu0
            %v3794 = vadd.f32 %v3569, %v3793
            %v3795 = vpop.f32.mrb[0].mxu0
            %3796 = vmatprep.mubr.f32.mxu0 %v3102
            %3797 = vmatmul.mubr.f32.gmra.mrb[0].mxu0 %v3330
            %v3798 = vpop.f32.mrb[0].mxu0
            %v3799 = vadd.f32 %v3574, %v3798
            %v3800 = vpop.f32.mrb[0].mxu0
            %3801 = vmatprep.mubr.f32.mxu0 %v3104
            %3802 = vmatmul.mubr.f32.gmra.mrb[0].mxu0 %v3333
            %v3803 = vpop.f32.mrb[0].mxu0
            %v3804 = vadd.f32 %v3579, %v3803
            %v3805 = vpop.f32.mrb[0].mxu0
            %3806 = vmatprep.mubr.f32.mxu0 %v3105
            %3807 = vmatmul.mubr.f32.gmra.mrb[0].mxu0 %v3335
            %v3808 = vpop.f32.mrb[0].mxu0
            %v3809 = vadd.f32 %v3584, %v3808
            %v3810 = vpop.f32.mrb[0].mxu0
            %3811 = vmatprep.mubr.f32.mxu0 %v3107
            %3812 = vmatmul.mubr.f32.gmra.mrb[0].mxu0 %v3338
            %v3813 = vpop.f32.mrb[0].mxu0
            %v3814 = vadd.f32 %v3589, %v3813
            %v3815 = vpop.f32.mrb[0].mxu0
            %3816 = vmatprep.mubr.f32.mxu0 %v3108
            %3817 = vmatmul.mubr.f32.gmra.mrb[0].mxu0 %v3340
            %v3818 = vpop.f32.mrb[0].mxu0
            %v3819 = vadd.f32 %v3594, %v3818
            %v3820 = vpop.f32.mrb[0].mxu0
            %3821 = vmatprep.mubr.f32.mxu0 %v3110
            %3822 = vmatmul.mubr.f32.gmra.mrb[0].mxu0 %v3343
            %v3823 = vpop.f32.mrb[0].mxu0
            %v3824 = vadd.f32 %v3599, %v3823
            %v3825 = vpop.f32.mrb[0].mxu0
            %3826 = vmatprep.mubr.f32.mxu0 %v3111
            %3827 = vmatmul.mubr.f32.gmra.mrb[0].mxu0 %v3345
            %v3828 = vpop.f32.mrb[0].mxu0
            %v3829 = vadd.f32 %v3604, %v3828
            %v3830 = vpop.f32.mrb[0].mxu0
            %3831 = vmatprep.mubr.f32.mxu0 %v3113
            %3832 = vmatmul.mubr.f32.gmra.mrb[0].mxu0 %v3348
            %v3833 = vpop.f32.mrb[0].mxu0
            %v3834 = vadd.f32 %v3609, %v3833
            %v3835 = vpop.f32.mrb[0].mxu0
            %3836 = vmatprep.mubr.f32.mxu0 %v3114
            %3837 = vmatmul.mubr.f32.gmra.mrb[0].mxu0 %v3350
            %v3838 = vpop.f32.mrb[0].mxu0
            %v3839 = vadd.f32 %v3614, %v3838
            %v3840 = vpop.f32.mrb[0].mxu0
            %3841 = vmatprep.mubr.f32.mxu0 %v3116
            %3842 = vmatmul.mubr.f32.gmra.mrb[0].mxu0 %v3353
            %v3843 = vpop.f32.mrb[0].mxu0
            %v3844 = vadd.f32 %v3619, %v3843
            %v3845 = vpop.f32.mrb[0].mxu0
            %3846 = vmatprep.mubr.f32.mxu0 %v3117
            %3847 = vmatmul.mubr.f32.gmra.mrb[0].mxu0 %v3355
            %v3848 = vpop.f32.mrb[0].mxu0
            %v3849 = vadd.f32 %v3624, %v3848
            %v3850 = vpop.f32.mrb[0].mxu0
            %3851 = vmatprep.mubr.f32.mxu0 %v3119
            %3852 = vmatmul.mubr.f32.gmra.mrb[0].mxu0 %v3358
            %v3853 = vpop.f32.mrb[0].mxu0
            %v3854 = vadd.f32 %v3629, %v3853
            %v3855 = vpop.f32.mrb[0].mxu0
            %3856 = vmatprep.mubr.f32.mxu0 %v3120
            %3857 = vmatmul.mubr.f32.gmra.mrb[0].mxu0 %v3360
            %v3858 = vpop.f32.mrb[0].mxu0
            %v3859 = vadd.f32 %v3634, %v3858
            %v3860 = vpop.f32.mrb[0].mxu0
            %3861 = vmatprep.mubr.f32.mxu0 %v3122
            %3862 = vmatmul.mubr.f32.gmra.mrb[0].mxu0 %v3363
            %v3863 = vpop.f32.mrb[0].mxu0
            %v3864 = vadd.f32 %v3639, %v3863
            %v3865 = vpop.f32.mrb[0].mxu0
            %3866 = vmatprep.mubr.f32.mxu0 %v3123
            %3867 = vmatmul.mubr.f32.gmra.mrb[0].mxu0 %v3365
            %v3868 = vpop.f32.mrb[0].mxu0
            %v3869 = vadd.f32 %v3644, %v3868
            %v3870 = vpop.f32.mrb[0].mxu0
            %3871 = vmatprep.mubr.f32.mxu0 %v3125
            %3872 = vmatmul.mubr.f32.gmra.mrb[0].mxu0 %v3368
            %v3873 = vpop.f32.mrb[0].mxu0
            %v3874 = vadd.f32 %v3649, %v3873
            %v3875 = vpop.f32.mrb[0].mxu0
            %3876 = vmatprep.mubr.f32.mxu0 %v3126
            %3877 = vmatmul.mubr.f32.gmra.mrb[0].mxu0 %v3370
            %v3878 = vpop.f32.mrb[0].mxu0
            %v3879 = vadd.f32 %v3654, %v3878
            %v3880 = vpop.f32.mrb[0].mxu0
            %3881 = vmatprep.mubr.f32.mxu0 %v3128
            %3882 = vmatmul.mubr.f32.gmra.mrb[0].mxu0 %v3373
            %v3883 = vpop.f32.mrb[0].mxu0
            %v3884 = vadd.f32 %v3659, %v3883
            %v3885 = vpop.f32.mrb[0].mxu0
            %3886 = vmatprep.mubr.f32.mxu0 %v3129
            %3887 = vmatmul.mubr.f32.gmra.mrb[0].mxu0 %v3375
            %v3888 = vpop.f32.mrb[0].mxu0
            %v3889 = vadd.f32 %v3664, %v3888
            %v3890 = vpop.f32.mrb[0].mxu0
            %3891 = vdwg.mxu0
            %3892 = vmatprep.subr.mxu0 0.0
            %3893 = vmatpush1.msra.mxu0 %v2987
            %3894 = vmatprep.subr.mxu0 0.0
            %3895 = vmatpush1.msra.mxu0 %v2988
            %3896 = vmatprep.subr.mxu0 0.0
            %3897 = vmatpush1.msra.mxu0 %v2989
            %3898 = vmatprep.subr.mxu0 0.0
            %3899 = vmatpush1.msra.mxu0 %v2990
            %3900 = vmatprep.subr.mxu0 0.0
            %3901 = vmatpush1.msra.mxu0 %v2991
            %3902 = vmatprep.subr.mxu0 0.0
            %3903 = vmatpush1.msra.mxu0 %v2992
            %3904 = vmatprep.subr.mxu0 0.0
            %3905 = vmatpush1.msra.mxu0 %v2993
            %3906 = vmatprep.subr.mxu0 0.0
            %3907 = vmatpush1.msra.mxu0 %v2994
            %3908 = vmatprep.subr.mxu0 0.0
            %3909 = vmatpush1.msra.mxu0 %v2995
            %3910 = vmatprep.subr.mxu0 0.0
            %3911 = vmatpush1.msra.mxu0 %v2996
            %3912 = vmatprep.subr.mxu0 0.0
            %3913 = vmatpush1.msra.mxu0 %v2997
            %3914 = vmatprep.subr.mxu0 0.0
            %3915 = vmatpush1.msra.mxu0 %v2998
            %3916 = vmatprep.subr.mxu0 0.0
            %3917 = vmatpush1.msra.mxu0 %v2999
            %3918 = vmatprep.subr.mxu0 0.0
            %3919 = vmatpush1.msra.mxu0 %v3000
            %3920 = vmatprep.subr.mxu0 0.0
            %3921 = vmatpush1.msra.mxu0 %v3001
            %3922 = vmatprep.subr.mxu0 0.0
            %3923 = vmatpush1.msra.mxu0 %v3002
            %3924 = vmatprep.subr.mxu0 0.0
            %3925 = vmatpush1.msra.mxu0 %v3003
            %3926 = vmatprep.subr.mxu0 0.0
            %3927 = vmatpush1.msra.mxu0 %v3004
            %3928 = vmatprep.subr.mxu0 0.0
            %3929 = vmatpush1.msra.mxu0 %v3005
            %3930 = vmatprep.subr.mxu0 0.0
            %3931 = vmatpush1.msra.mxu0 %v3006
            %3932 = vmatprep.subr.mxu0 0.0
            %3933 = vmatpush1.msra.mxu0 %v3007
            %3934 = vmatprep.subr.mxu0 0.0
            %3935 = vmatpush1.msra.mxu0 %v3008
            %3936 = vmatprep.subr.mxu0 0.0
            %3937 = vmatpush1.msra.mxu0 %v3009
            %3938 = vmatprep.subr.mxu0 0.0
            %3939 = vmatpush1.msra.mxu0 %v3010
            %3940 = vmatprep.subr.mxu0 0.0
            %3941 = vmatpush1.msra.mxu0 %v3011
            %3942 = vmatprep.subr.mxu0 0.0
            %3943 = vmatpush1.msra.mxu0 %v3012
            %3944 = vmatprep.subr.mxu0 0.0
            %3945 = vmatpush1.msra.mxu0 %v3013
            %3946 = vmatprep.subr.mxu0 0.0
            %3947 = vmatpush1.msra.mxu0 %v3014
            %3948 = vmatprep.subr.mxu0 0.0
            %3949 = vmatpush1.msra.mxu0 %v3015
            %3950 = vmatprep.subr.mxu0 0.0
            %3951 = vmatpush1.msra.mxu0 %v3016
            %3952 = vmatprep.subr.mxu0 0.0
            %3953 = vmatpush1.msra.mxu0 %v3017
            %3954 = vmatprep.subr.mxu0 0.0
            %3955 = vmatpush1.msra.mxu0 %v3018
            %3956 = vmatprep.mubr.f32.mxu0 %v3303
            %3957 = vmatmul.mubr.f32.gmra.mrb[0].mxu0 %v3190
            %v3958 = vpop.f32.mrb[0].mxu0
            %v3959 = vadd.f32 %v3734, %v3958
            %v3960 = vpop.f32.mrb[0].mxu0
            %3961 = vmatprep.mubr.f32.mxu0 %v3305
            %3962 = vmatmul.mubr.f32.gmra.mrb[0].mxu0 %v3192
            %v3963 = vpop.f32.mrb[0].mxu0
            %v3964 = vadd.f32 %v3739, %v3963
            %v3965 = vpop.f32.mrb[0].mxu0
            %3966 = vmatprep.mubr.f32.mxu0 %v3308
            %3967 = vmatmul.mubr.f32.gmra.mrb[0].mxu0 %v3195
            %v3968 = vpop.f32.mrb[0].mxu0
            %v3969 = vadd.f32 %v3744, %v3968
            %v3970 = vpop.f32.mrb[0].mxu0
            %3971 = vmatprep.mubr.f32.mxu0 %v3310
            %3972 = vmatmul.mubr.f32.gmra.mrb[0].mxu0 %v3197
            %v3973 = vpop.f32.mrb[0].mxu0
            %v3974 = vadd.f32 %v3749, %v3973
            %v3975 = vpop.f32.mrb[0].mxu0
            %3976 = vmatprep.mubr.f32.mxu0 %v3313
            %3977 = vmatmul.mubr.f32.gmra.mrb[0].mxu0 %v3200
            %v3978 = vpop.f32.mrb[0].mxu0
            %v3979 = vadd.f32 %v3754, %v3978
            %v3980 = vpop.f32.mrb[0].mxu0
            %3981 = vmatprep.mubr.f32.mxu0 %v3315
            %3982 = vmatmul.mubr.f32.gmra.mrb[0].mxu0 %v3202
            %v3983 = vpop.f32.mrb[0].mxu0
            %v3984 = vadd.f32 %v3759, %v3983
            %v3985 = vpop.f32.mrb[0].mxu0
            %3986 = vmatprep.mubr.f32.mxu0 %v3318
            %3987 = vmatmul.mubr.f32.gmra.mrb[0].mxu0 %v3205
            %v3988 = vpop.f32.mrb[0].mxu0
            %v3989 = vadd.f32 %v3764, %v3988
            %v3990 = vpop.f32.mrb[0].mxu0
            %3991 = vmatprep.mubr.f32.mxu0 %v3320
            %3992 = vmatmul.mubr.f32.gmra.mrb[0].mxu0 %v3207
            %v3993 = vpop.f32.mrb[0].mxu0
            %v3994 = vadd.f32 %v3769, %v3993
            %v3995 = vpop.f32.mrb[0].mxu0
            %3996 = vmatprep.mubr.f32.mxu0 %v3323
            %3997 = vmatmul.mubr.f32.gmra.mrb[0].mxu0 %v3210
            %v3998 = vpop.f32.mrb[0].mxu0
            %v3999 = vadd.f32 %v3774, %v3998
            %v4000 = vpop.f32.mrb[0].mxu0
            %4001 = vmatprep.mubr.f32.mxu0 %v3325
            %4002 = vmatmul.mubr.f32.gmra.mrb[0].mxu0 %v3212
            %v4003 = vpop.f32.mrb[0].mxu0
            %v4004 = vadd.f32 %v3779, %v4003
            %v4005 = vpop.f32.mrb[0].mxu0
            %4006 = vmatprep.mubr.f32.mxu0 %v3328
            %4007 = vmatmul.mubr.f32.gmra.mrb[0].mxu0 %v3215
            %v4008 = vpop.f32.mrb[0].mxu0
            %v4009 = vadd.f32 %v3784, %v4008
            %v4010 = vpop.f32.mrb[0].mxu0
            %4011 = vmatprep.mubr.f32.mxu0 %v3330
            %4012 = vmatmul.mubr.f32.gmra.mrb[0].mxu0 %v3217
            %v4013 = vpop.f32.mrb[0].mxu0
            %v4014 = vadd.f32 %v3789, %v4013
            %v4015 = vpop.f32.mrb[0].mxu0
            %4016 = vmatprep.mubr.f32.mxu0 %v3333
            %4017 = vmatmul.mubr.f32.gmra.mrb[0].mxu0 %v3220
            %v4018 = vpop.f32.mrb[0].mxu0
            %v4019 = vadd.f32 %v3794, %v4018
            %v4020 = vpop.f32.mrb[0].mxu0
            %4021 = vmatprep.mubr.f32.mxu0 %v3335
            %4022 = vmatmul.mubr.f32.gmra.mrb[0].mxu0 %v3222
            %v4023 = vpop.f32.mrb[0].mxu0
            %v4024 = vadd.f32 %v3799, %v4023
            %v4025 = vpop.f32.mrb[0].mxu0
            %4026 = vmatprep.mubr.f32.mxu0 %v3338
            %4027 = vmatmul.mubr.f32.gmra.mrb[0].mxu0 %v3225
            %v4028 = vpop.f32.mrb[0].mxu0
            %v4029 = vadd.f32 %v3804, %v4028
            %v4030 = vpop.f32.mrb[0].mxu0
            %4031 = vmatprep.mubr.f32.mxu0 %v3340
            %4032 = vmatmul.mubr.f32.gmra.mrb[0].mxu0 %v3227
            %v4033 = vpop.f32.mrb[0].mxu0
            %v4034 = vadd.f32 %v3809, %v4033
            %v4035 = vpop.f32.mrb[0].mxu0
            %4036 = vmatprep.mubr.f32.mxu0 %v3343
            %4037 = vmatmul.mubr.f32.gmra.mrb[0].mxu0 %v3230
            %v4038 = vpop.f32.mrb[0].mxu0
            %v4039 = vadd.f32 %v3814, %v4038
            %v4040 = vpop.f32.mrb[0].mxu0
            %4041 = vmatprep.mubr.f32.mxu0 %v3345
            %4042 = vmatmul.mubr.f32.gmra.mrb[0].mxu0 %v3232
            %v4043 = vpop.f32.mrb[0].mxu0
            %v4044 = vadd.f32 %v3819, %v4043
            %v4045 = vpop.f32.mrb[0].mxu0
            %4046 = vmatprep.mubr.f32.mxu0 %v3348
            %4047 = vmatmul.mubr.f32.gmra.mrb[0].mxu0 %v3235
            %v4048 = vpop.f32.mrb[0].mxu0
            %v4049 = vadd.f32 %v3824, %v4048
            %v4050 = vpop.f32.mrb[0].mxu0
            %4051 = vmatprep.mubr.f32.mxu0 %v3350
            %4052 = vmatmul.mubr.f32.gmra.mrb[0].mxu0 %v3237
            %v4053 = vpop.f32.mrb[0].mxu0
            %v4054 = vadd.f32 %v3829, %v4053
            %v4055 = vpop.f32.mrb[0].mxu0
            %4056 = vmatprep.mubr.f32.mxu0 %v3353
            %4057 = vmatmul.mubr.f32.gmra.mrb[0].mxu0 %v3240
            %v4058 = vpop.f32.mrb[0].mxu0
            %v4059 = vadd.f32 %v3834, %v4058
            %v4060 = vpop.f32.mrb[0].mxu0
            %4061 = vmatprep.mubr.f32.mxu0 %v3355
            %4062 = vmatmul.mubr.f32.gmra.mrb[0].mxu0 %v3242
            %v4063 = vpop.f32.mrb[0].mxu0
            %v4064 = vadd.f32 %v3839, %v4063
            %v4065 = vpop.f32.mrb[0].mxu0
            %4066 = vmatprep.mubr.f32.mxu0 %v3358
            %4067 = vmatmul.mubr.f32.gmra.mrb[0].mxu0 %v3245
            %v4068 = vpop.f32.mrb[0].mxu0
            %v4069 = vadd.f32 %v3844, %v4068
            %v4070 = vpop.f32.mrb[0].mxu0
            %4071 = vmatprep.mubr.f32.mxu0 %v3360
            %4072 = vmatmul.mubr.f32.gmra.mrb[0].mxu0 %v3247
            %v4073 = vpop.f32.mrb[0].mxu0
            %v4074 = vadd.f32 %v3849, %v4073
            %v4075 = vpop.f32.mrb[0].mxu0
            %4076 = vmatprep.mubr.f32.mxu0 %v3363
            %4077 = vmatmul.mubr.f32.gmra.mrb[0].mxu0 %v3250
            %v4078 = vpop.f32.mrb[0].mxu0
            %v4079 = vadd.f32 %v3854, %v4078
            %v4080 = vpop.f32.mrb[0].mxu0
            %4081 = vmatprep.mubr.f32.mxu0 %v3365
            %4082 = vmatmul.mubr.f32.gmra.mrb[0].mxu0 %v3252
            %v4083 = vpop.f32.mrb[0].mxu0
            %v4084 = vadd.f32 %v3859, %v4083
            %v4085 = vpop.f32.mrb[0].mxu0
            %4086 = vmatprep.mubr.f32.mxu0 %v3368
            %4087 = vmatmul.mubr.f32.gmra.mrb[0].mxu0 %v3255
            %v4088 = vpop.f32.mrb[0].mxu0
            %v4089 = vadd.f32 %v3864, %v4088
            %v4090 = vpop.f32.mrb[0].mxu0
            %4091 = vmatprep.mubr.f32.mxu0 %v3370
            %4092 = vmatmul.mubr.f32.gmra.mrb[0].mxu0 %v3257
            %v4093 = vpop.f32.mrb[0].mxu0
            %v4094 = vadd.f32 %v3869, %v4093
            %v4095 = vpop.f32.mrb[0].mxu0
            %4096 = vmatprep.mubr.f32.mxu0 %v3373
            %4097 = vmatmul.mubr.f32.gmra.mrb[0].mxu0 %v3260
            %v4098 = vpop.f32.mrb[0].mxu0
            %v4099 = vadd.f32 %v3874, %v4098
            %v4100 = vpop.f32.mrb[0].mxu0
            %4101 = vmatprep.mubr.f32.mxu0 %v3375
            %4102 = vmatmul.mubr.f32.gmra.mrb[0].mxu0 %v3262
            %v4103 = vpop.f32.mrb[0].mxu0
            %v4104 = vadd.f32 %v3879, %v4103
            %v4105 = vpop.f32.mrb[0].mxu0
            %4106 = vmatprep.mubr.f32.mxu0 %v3420
            %4107 = vmatmul.mubr.f32.gmra.mrb[0].mxu0 %v3413
            %v4108 = vpop.f32.mrb[0].mxu0
            %v4109 = vadd.f32 %v3884, %v4108
            %v4110 = vpop.f32.mrb[0].mxu0
            %4111 = vmatprep.mubr.f32.mxu0 %v3422
            %4112 = vmatmul.mubr.f32.gmra.mrb[0].mxu0 %v3415
            %v4113 = vpop.f32.mrb[0].mxu0
            %v4114 = vadd.f32 %v3889, %v4113
            %v4115 = vpop.f32.mrb[0].mxu0
            %4116 = vdwg.mxu0
            %4117 = vmatprep.subr.mxu0 0.0
            %4118 = vmatpush1.msra.mxu0 %v3019
            %4119 = vmatprep.subr.mxu0 0.0
            %4120 = vmatpush1.msra.mxu0 %v3020
            %4121 = vmatprep.subr.mxu0 0.0
            %4122 = vmatpush1.msra.mxu0 %v3021
            %4123 = vmatprep.subr.mxu0 0.0
            %4124 = vmatpush1.msra.mxu0 %v3022
            %4125 = vmatprep.subr.mxu0 0.0
            %4126 = vmatpush1.msra.mxu0 %v3023
            %4127 = vmatprep.subr.mxu0 0.0
            %4128 = vmatpush1.msra.mxu0 %v3024
            %4129 = vmatprep.subr.mxu0 0.0
            %4130 = vmatpush1.msra.mxu0 %v3025
            %4131 = vmatprep.subr.mxu0 0.0
            %4132 = vmatpush1.msra.mxu0 %v3026
            %4133 = vmatprep.subr.mxu0 0.0
            %4134 = vmatpush1.msra.mxu0 %v3027
            %4135 = vmatprep.subr.mxu0 0.0
            %4136 = vmatpush1.msra.mxu0 %v3028
            %4137 = vmatprep.subr.mxu0 0.0
            %4138 = vmatpush1.msra.mxu0 %v3029
            %4139 = vmatprep.subr.mxu0 0.0
            %4140 = vmatpush1.msra.mxu0 %v3030
            %4141 = vmatprep.subr.mxu0 0.0
            %4142 = vmatpush1.msra.mxu0 %v3031
            %4143 = vmatprep.subr.mxu0 0.0
            %4144 = vmatpush1.msra.mxu0 %v3032
            %4145 = vmatprep.subr.mxu0 0.0
            %4146 = vmatpush1.msra.mxu0 %v3033
            %4147 = vmatprep.subr.mxu0 0.0
            %4148 = vmatpush1.msra.mxu0 %v3034
            %4149 = vmatprep.subr.mxu0 0.0
            %4150 = vmatpush1.msra.mxu0 %v3035
            %4151 = vmatprep.subr.mxu0 0.0
            %4152 = vmatpush1.msra.mxu0 %v3036
            %4153 = vmatprep.subr.mxu0 0.0
            %4154 = vmatpush1.msra.mxu0 %v3037
            %4155 = vmatprep.subr.mxu0 0.0
            %4156 = vmatpush1.msra.mxu0 %v3038
            %4157 = vmatprep.subr.mxu0 0.0
            %4158 = vmatpush1.msra.mxu0 %v3039
            %4159 = vmatprep.subr.mxu0 0.0
            %4160 = vmatpush1.msra.mxu0 %v3040
            %4161 = vmatprep.subr.mxu0 0.0
            %4162 = vmatpush1.msra.mxu0 %v3041
            %4163 = vmatprep.subr.mxu0 0.0
            %4164 = vmatpush1.msra.mxu0 %v3042
            %4165 = vmatprep.subr.mxu0 0.0
            %4166 = vmatpush1.msra.mxu0 %v3043
            %4167 = vmatprep.subr.mxu0 0.0
            %4168 = vmatpush1.msra.mxu0 %v3044
            %4169 = vmatprep.subr.mxu0 0.0
            %4170 = vmatpush1.msra.mxu0 %v3045
            %4171 = vmatprep.subr.mxu0 0.0
            %4172 = vmatpush1.msra.mxu0 %v3046
            %4173 = vmatprep.subr.mxu0 0.0
            %4174 = vmatpush1.msra.mxu0 %v3047
            %4175 = vmatprep.subr.mxu0 0.0
            %4176 = vmatpush1.msra.mxu0 %v3048
            %4177 = vmatprep.subr.mxu0 0.0
            %4178 = vmatpush1.msra.mxu0 %v3049
            %4179 = vmatprep.subr.mxu0 0.0
            %4180 = vmatpush1.msra.mxu0 %v3050
            %4181 = vmatprep.mubr.f32.mxu0 %v3195
            %4182 = vmatmul.mubr.f32.gmra.mrb[0].mxu0 %v3086
            %v4183 = vpop.f32.mrb[0].mxu0
            %v4184 = vadd.f32 %v3959, %v4183
            %v4185 = vpop.f32.mrb[0].mxu0
            %4186 = vmatprep.mubr.f32.mxu0 %v3197
            %4187 = vmatmul.mubr.f32.gmra.mrb[0].mxu0 %v3087
            %v4188 = vpop.f32.mrb[0].mxu0
            %v4189 = vadd.f32 %v3964, %v4188
            %v4190 = vpop.f32.mrb[0].mxu0
            %4191 = vmatprep.mubr.f32.mxu0 %v3200
            %4192 = vmatmul.mubr.f32.gmra.mrb[0].mxu0 %v3089
            %v4193 = vpop.f32.mrb[0].mxu0
            %v4194 = vadd.f32 %v3969, %v4193
            %v4195 = vpop.f32.mrb[0].mxu0
            %4196 = vmatprep.mubr.f32.mxu0 %v3202
            %4197 = vmatmul.mubr.f32.gmra.mrb[0].mxu0 %v3090
            %v4198 = vpop.f32.mrb[0].mxu0
            %v4199 = vadd.f32 %v3974, %v4198
            %v4200 = vpop.f32.mrb[0].mxu0
            %4201 = vmatprep.mubr.f32.mxu0 %v3205
            %4202 = vmatmul.mubr.f32.gmra.mrb[0].mxu0 %v3092
            %v4203 = vpop.f32.mrb[0].mxu0
            %v4204 = vadd.f32 %v3979, %v4203
            %v4205 = vpop.f32.mrb[0].mxu0
            %4206 = vmatprep.mubr.f32.mxu0 %v3207
            %4207 = vmatmul.mubr.f32.gmra.mrb[0].mxu0 %v3093
            %v4208 = vpop.f32.mrb[0].mxu0
            %v4209 = vadd.f32 %v3984, %v4208
            %v4210 = vpop.f32.mrb[0].mxu0
            %4211 = vmatprep.mubr.f32.mxu0 %v3210
            %4212 = vmatmul.mubr.f32.gmra.mrb[0].mxu0 %v3095
            %v4213 = vpop.f32.mrb[0].mxu0
            %v4214 = vadd.f32 %v3989, %v4213
            %v4215 = vpop.f32.mrb[0].mxu0
            %4216 = vmatprep.mubr.f32.mxu0 %v3212
            %4217 = vmatmul.mubr.f32.gmra.mrb[0].mxu0 %v3096
            %v4218 = vpop.f32.mrb[0].mxu0
            %v4219 = vadd.f32 %v3994, %v4218
            %v4220 = vpop.f32.mrb[0].mxu0
            %4221 = vmatprep.mubr.f32.mxu0 %v3215
            %4222 = vmatmul.mubr.f32.gmra.mrb[0].mxu0 %v3098
            %v4223 = vpop.f32.mrb[0].mxu0
            %v4224 = vadd.f32 %v3999, %v4223
            %v4225 = vpop.f32.mrb[0].mxu0
            %4226 = vmatprep.mubr.f32.mxu0 %v3217
            %4227 = vmatmul.mubr.f32.gmra.mrb[0].mxu0 %v3099
            %v4228 = vpop.f32.mrb[0].mxu0
            %v4229 = vadd.f32 %v4004, %v4228
            %v4230 = vpop.f32.mrb[0].mxu0
            %4231 = vmatprep.mubr.f32.mxu0 %v3220
            %4232 = vmatmul.mubr.f32.gmra.mrb[0].mxu0 %v3101
            %v4233 = vpop.f32.mrb[0].mxu0
            %v4234 = vadd.f32 %v4009, %v4233
            %v4235 = vpop.f32.mrb[0].mxu0
            %4236 = vmatprep.mubr.f32.mxu0 %v3222
            %4237 = vmatmul.mubr.f32.gmra.mrb[0].mxu0 %v3102
            %v4238 = vpop.f32.mrb[0].mxu0
            %v4239 = vadd.f32 %v4014, %v4238
            %v4240 = vpop.f32.mrb[0].mxu0
            %4241 = vmatprep.mubr.f32.mxu0 %v3225
            %4242 = vmatmul.mubr.f32.gmra.mrb[0].mxu0 %v3104
            %v4243 = vpop.f32.mrb[0].mxu0
            %v4244 = vadd.f32 %v4019, %v4243
            %v4245 = vpop.f32.mrb[0].mxu0
            %4246 = vmatprep.mubr.f32.mxu0 %v3227
            %4247 = vmatmul.mubr.f32.gmra.mrb[0].mxu0 %v3105
            %v4248 = vpop.f32.mrb[0].mxu0
            %v4249 = vadd.f32 %v4024, %v4248
            %v4250 = vpop.f32.mrb[0].mxu0
            %4251 = vmatprep.mubr.f32.mxu0 %v3230
            %4252 = vmatmul.mubr.f32.gmra.mrb[0].mxu0 %v3107
            %v4253 = vpop.f32.mrb[0].mxu0
            %v4254 = vadd.f32 %v4029, %v4253
            %v4255 = vpop.f32.mrb[0].mxu0
            %4256 = vmatprep.mubr.f32.mxu0 %v3232
            %4257 = vmatmul.mubr.f32.gmra.mrb[0].mxu0 %v3108
            %v4258 = vpop.f32.mrb[0].mxu0
            %v4259 = vadd.f32 %v4034, %v4258
            %v4260 = vpop.f32.mrb[0].mxu0
            %4261 = vmatprep.mubr.f32.mxu0 %v3235
            %4262 = vmatmul.mubr.f32.gmra.mrb[0].mxu0 %v3110
            %v4263 = vpop.f32.mrb[0].mxu0
            %v4264 = vadd.f32 %v4039, %v4263
            %v4265 = vpop.f32.mrb[0].mxu0
            %4266 = vmatprep.mubr.f32.mxu0 %v3237
            %4267 = vmatmul.mubr.f32.gmra.mrb[0].mxu0 %v3111
            %v4268 = vpop.f32.mrb[0].mxu0
            %v4269 = vadd.f32 %v4044, %v4268
            %v4270 = vpop.f32.mrb[0].mxu0
            %4271 = vmatprep.mubr.f32.mxu0 %v3240
            %4272 = vmatmul.mubr.f32.gmra.mrb[0].mxu0 %v3113
            %v4273 = vpop.f32.mrb[0].mxu0
            %v4274 = vadd.f32 %v4049, %v4273
            %v4275 = vpop.f32.mrb[0].mxu0
            %4276 = vmatprep.mubr.f32.mxu0 %v3242
            %4277 = vmatmul.mubr.f32.gmra.mrb[0].mxu0 %v3114
            %v4278 = vpop.f32.mrb[0].mxu0
            %v4279 = vadd.f32 %v4054, %v4278
            %v4280 = vpop.f32.mrb[0].mxu0
            %4281 = vmatprep.mubr.f32.mxu0 %v3245
            %4282 = vmatmul.mubr.f32.gmra.mrb[0].mxu0 %v3116
            %v4283 = vpop.f32.mrb[0].mxu0
            %v4284 = vadd.f32 %v4059, %v4283
            %v4285 = vpop.f32.mrb[0].mxu0
            %4286 = vmatprep.mubr.f32.mxu0 %v3247
            %4287 = vmatmul.mubr.f32.gmra.mrb[0].mxu0 %v3117
            %v4288 = vpop.f32.mrb[0].mxu0
            %v4289 = vadd.f32 %v4064, %v4288
            %v4290 = vpop.f32.mrb[0].mxu0
            %4291 = vmatprep.mubr.f32.mxu0 %v3250
            %4292 = vmatmul.mubr.f32.gmra.mrb[0].mxu0 %v3119
            %v4293 = vpop.f32.mrb[0].mxu0
            %v4294 = vadd.f32 %v4069, %v4293
            %v4295 = vpop.f32.mrb[0].mxu0
            %4296 = vmatprep.mubr.f32.mxu0 %v3252
            %4297 = vmatmul.mubr.f32.gmra.mrb[0].mxu0 %v3120
            %v4298 = vpop.f32.mrb[0].mxu0
            %v4299 = vadd.f32 %v4074, %v4298
            %v4300 = vpop.f32.mrb[0].mxu0
            %4301 = vmatprep.mubr.f32.mxu0 %v3255
            %4302 = vmatmul.mubr.f32.gmra.mrb[0].mxu0 %v3122
            %v4303 = vpop.f32.mrb[0].mxu0
            %v4304 = vadd.f32 %v4079, %v4303
            %v4305 = vpop.f32.mrb[0].mxu0
            %4306 = vmatprep.mubr.f32.mxu0 %v3257
            %4307 = vmatmul.mubr.f32.gmra.mrb[0].mxu0 %v3123
            %v4308 = vpop.f32.mrb[0].mxu0
            %v4309 = vadd.f32 %v4084, %v4308
            %v4310 = vpop.f32.mrb[0].mxu0
            %4311 = vmatprep.mubr.f32.mxu0 %v3260
            %4312 = vmatmul.mubr.f32.gmra.mrb[0].mxu0 %v3125
            %v4313 = vpop.f32.mrb[0].mxu0
            %v4314 = vadd.f32 %v4089, %v4313
            %v4315 = vpop.f32.mrb[0].mxu0
            %4316 = vmatprep.mubr.f32.mxu0 %v3262
            %4317 = vmatmul.mubr.f32.gmra.mrb[0].mxu0 %v3126
            %v4318 = vpop.f32.mrb[0].mxu0
            %v4319 = vadd.f32 %v4094, %v4318
            %v4320 = vpop.f32.mrb[0].mxu0
            %4321 = vmatprep.mubr.f32.mxu0 %v3413
            %4322 = vmatmul.mubr.f32.gmra.mrb[0].mxu0 %v3128
            %v4323 = vpop.f32.mrb[0].mxu0
            %v4324 = vadd.f32 %v4099, %v4323
            %v4325 = vpop.f32.mrb[0].mxu0
            %4326 = vmatprep.mubr.f32.mxu0 %v3415
            %4327 = vmatmul.mubr.f32.gmra.mrb[0].mxu0 %v3129
            %v4328 = vpop.f32.mrb[0].mxu0
            %v4329 = vadd.f32 %v4104, %v4328
            %v4330 = vpop.f32.mrb[0].mxu0
            %4331 = vmatprep.mubr.f32.mxu0 %v3430
            %4332 = vmatmul.mubr.f32.gmra.mrb[0].mxu0 %v3131
            %v4333 = vpop.f32.mrb[0].mxu0
            %v4334 = vadd.f32 %v4109, %v4333
            %v4335 = vpop.f32.mrb[0].mxu0
            %4336 = vmatprep.mubr.f32.mxu0 %v3432
            %4337 = vmatmul.mubr.f32.gmra.mrb[0].mxu0 %v3132
            %v4338 = vpop.f32.mrb[0].mxu0
            %v4339 = vadd.f32 %v4114, %v4338
            %v4340 = vpop.f32.mrb[0].mxu0
            %4341 = vdwg.mxu0
            %4342 = vmatprep.subr.mxu0 0.0
            %4343 = vmatpush1.msra.mxu0 %v3051
            %4344 = vmatprep.subr.mxu0 0.0
            %4345 = vmatpush1.msra.mxu0 %v3052
            %4346 = vmatprep.subr.mxu0 0.0
            %4347 = vmatpush1.msra.mxu0 %v3053
            %4348 = vmatprep.subr.mxu0 0.0
            %4349 = vmatpush1.msra.mxu0 %v3054
            %4350 = vmatprep.subr.mxu0 0.0
            %4351 = vmatpush1.msra.mxu0 %v3055
            %4352 = vmatprep.subr.mxu0 0.0
            %4353 = vmatpush1.msra.mxu0 %v3056
            %4354 = vmatprep.subr.mxu0 0.0
            %4355 = vmatpush1.msra.mxu0 %v3057
            %4356 = vmatprep.subr.mxu0 0.0
            %4357 = vmatpush1.msra.mxu0 %v3058
            %4358 = vmatprep.subr.mxu0 0.0
            %4359 = vmatpush1.msra.mxu0 %v3059
            %4360 = vmatprep.subr.mxu0 0.0
            %4361 = vmatpush1.msra.mxu0 %v3060
            %4362 = vmatprep.subr.mxu0 0.0
            %4363 = vmatpush1.msra.mxu0 %v3061
            %4364 = vmatprep.subr.mxu0 0.0
            %4365 = vmatpush1.msra.mxu0 %v3062
            %4366 = vmatprep.subr.mxu0 0.0
            %4367 = vmatpush1.msra.mxu0 %v3063
            %4368 = vmatprep.subr.mxu0 0.0
            %4369 = vmatpush1.msra.mxu0 %v3064
            %4370 = vmatprep.subr.mxu0 0.0
            %4371 = vmatpush1.msra.mxu0 %v3065
            %4372 = vmatprep.subr.mxu0 0.0
            %4373 = vmatpush1.msra.mxu0 %v3066
            %4374 = vmatprep.subr.mxu0 0.0
            %4375 = vmatpush1.msra.mxu0 0.0
            %4376 = vmatprep.subr.mxu0 0.0
            %4377 = vmatpush1.msra.mxu0 0.0
            %4378 = vmatprep.subr.mxu0 0.0
            %4379 = vmatpush1.msra.mxu0 0.0
            %4380 = vmatprep.subr.mxu0 0.0
            %4381 = vmatpush1.msra.mxu0 0.0
            %4382 = vmatprep.subr.mxu0 0.0
            %4383 = vmatpush1.msra.mxu0 0.0
            %4384 = vmatprep.subr.mxu0 0.0
            %4385 = vmatpush1.msra.mxu0 0.0
            %4386 = vmatprep.subr.mxu0 0.0
            %4387 = vmatpush1.msra.mxu0 0.0
            %4388 = vmatprep.subr.mxu0 0.0
            %4389 = vmatpush1.msra.mxu0 0.0
            %4390 = vmatprep.subr.mxu0 0.0
            %4391 = vmatpush1.msra.mxu0 0.0
            %4392 = vmatprep.subr.mxu0 0.0
            %4393 = vmatpush1.msra.mxu0 0.0
            %4394 = vmatprep.subr.mxu0 0.0
            %4395 = vmatpush1.msra.mxu0 0.0
            %4396 = vmatprep.subr.mxu0 0.0
            %4397 = vmatpush1.msra.mxu0 0.0
            %4398 = vmatprep.subr.mxu0 0.0
            %4399 = vmatpush1.msra.mxu0 0.0
            %4400 = vmatprep.subr.mxu0 0.0
            %4401 = vmatpush1.msra.mxu0 0.0
            %4402 = vmatprep.subr.mxu0 0.0
            %4403 = vmatpush1.msra.mxu0 0.0
            %4404 = vmatprep.subr.mxu0 0.0
            %4405 = vmatpush1.msra.mxu0 0.0
            %4406 = vmatprep.mubr.f32.mxu0 0.0
            %4407 = vmatmul.mubr.f32.gmra.mrb[0].mxu0 %v3308
            %v4408 = vpop.f32.mrb[0].mxu0
            %v4409 = vadd.f32 %v4184, %v4408
            %v4410 = vpop.f32.mrb[0].mxu0
            %4411 = vmatprep.mubr.f32.mxu0 0.0
            %4412 = vmatmul.mubr.f32.gmra.mrb[0].mxu0 %v3310
            %v4413 = vpop.f32.mrb[0].mxu0
            %v4414 = vadd.f32 %v4189, %v4413
            %v4415 = vpop.f32.mrb[0].mxu0
            %4416 = vmatprep.mubr.f32.mxu0 0.0
            %4417 = vmatmul.mubr.f32.gmra.mrb[0].mxu0 %v3313
            %v4418 = vpop.f32.mrb[0].mxu0
            %v4419 = vadd.f32 %v4194, %v4418
            %v4420 = vpop.f32.mrb[0].mxu0
            %4421 = vmatprep.mubr.f32.mxu0 0.0
            %4422 = vmatmul.mubr.f32.gmra.mrb[0].mxu0 %v3315
            %v4423 = vpop.f32.mrb[0].mxu0
            %v4424 = vadd.f32 %v4199, %v4423
            %v4425 = vpop.f32.mrb[0].mxu0
            %4426 = vmatprep.mubr.f32.mxu0 0.0
            %4427 = vmatmul.mubr.f32.gmra.mrb[0].mxu0 %v3318
            %v4428 = vpop.f32.mrb[0].mxu0
            %v4429 = vadd.f32 %v4204, %v4428
            %v4430 = vpop.f32.mrb[0].mxu0
            %4431 = vmatprep.mubr.f32.mxu0 0.0
            %4432 = vmatmul.mubr.f32.gmra.mrb[0].mxu0 %v3320
            %v4433 = vpop.f32.mrb[0].mxu0
            %v4434 = vadd.f32 %v4209, %v4433
            %v4435 = vpop.f32.mrb[0].mxu0
            %4436 = vmatprep.mubr.f32.mxu0 0.0
            %4437 = vmatmul.mubr.f32.gmra.mrb[0].mxu0 %v3323
            %v4438 = vpop.f32.mrb[0].mxu0
            %v4439 = vadd.f32 %v4214, %v4438
            %v4440 = vpop.f32.mrb[0].mxu0
            %4441 = vmatprep.mubr.f32.mxu0 0.0
            %4442 = vmatmul.mubr.f32.gmra.mrb[0].mxu0 %v3325
            %v4443 = vpop.f32.mrb[0].mxu0
            %v4444 = vadd.f32 %v4219, %v4443
            %v4445 = vpop.f32.mrb[0].mxu0
            %4446 = vmatprep.mubr.f32.mxu0 0.0
            %4447 = vmatmul.mubr.f32.gmra.mrb[0].mxu0 %v3328
            %v4448 = vpop.f32.mrb[0].mxu0
            %v4449 = vadd.f32 %v4224, %v4448
            %v4450 = vpop.f32.mrb[0].mxu0
            %4451 = vmatprep.mubr.f32.mxu0 0.0
            %4452 = vmatmul.mubr.f32.gmra.mrb[0].mxu0 %v3330
            %v4453 = vpop.f32.mrb[0].mxu0
            %v4454 = vadd.f32 %v4229, %v4453
            %v4455 = vpop.f32.mrb[0].mxu0
            %4456 = vmatprep.mubr.f32.mxu0 0.0
            %4457 = vmatmul.mubr.f32.gmra.mrb[0].mxu0 %v3333
            %v4458 = vpop.f32.mrb[0].mxu0
            %v4459 = vadd.f32 %v4234, %v4458
            %v4460 = vpop.f32.mrb[0].mxu0
            %4461 = vmatprep.mubr.f32.mxu0 0.0
            %4462 = vmatmul.mubr.f32.gmra.mrb[0].mxu0 %v3335
            %v4463 = vpop.f32.mrb[0].mxu0
            %v4464 = vadd.f32 %v4239, %v4463
            %v4465 = vpop.f32.mrb[0].mxu0
            %4466 = vmatprep.mubr.f32.mxu0 0.0
            %4467 = vmatmul.mubr.f32.gmra.mrb[0].mxu0 %v3338
            %v4468 = vpop.f32.mrb[0].mxu0
            %v4469 = vadd.f32 %v4244, %v4468
            %v4470 = vpop.f32.mrb[0].mxu0
            %4471 = vmatprep.mubr.f32.mxu0 0.0
            %4472 = vmatmul.mubr.f32.gmra.mrb[0].mxu0 %v3340
            %v4473 = vpop.f32.mrb[0].mxu0
            %v4474 = vadd.f32 %v4249, %v4473
            %v4475 = vpop.f32.mrb[0].mxu0
            %4476 = vmatprep.mubr.f32.mxu0 0.0
            %4477 = vmatmul.mubr.f32.gmra.mrb[0].mxu0 %v3343
            %v4478 = vpop.f32.mrb[0].mxu0
            %v4479 = vadd.f32 %v4254, %v4478
            %v4480 = vpop.f32.mrb[0].mxu0
            %4481 = vmatprep.mubr.f32.mxu0 0.0
            %4482 = vmatmul.mubr.f32.gmra.mrb[0].mxu0 %v3345
            %v4483 = vpop.f32.mrb[0].mxu0
            %v4484 = vadd.f32 %v4259, %v4483
            %v4485 = vpop.f32.mrb[0].mxu0
            %4486 = vmatprep.mubr.f32.mxu0 0.0
            %4487 = vmatmul.mubr.f32.gmra.mrb[0].mxu0 %v3348
            %v4488 = vpop.f32.mrb[0].mxu0
            %v4489 = vadd.f32 %v4264, %v4488
            %v4490 = vpop.f32.mrb[0].mxu0
            %4491 = vmatprep.mubr.f32.mxu0 0.0
            %4492 = vmatmul.mubr.f32.gmra.mrb[0].mxu0 %v3350
            %v4493 = vpop.f32.mrb[0].mxu0
            %v4494 = vadd.f32 %v4269, %v4493
            %v4495 = vpop.f32.mrb[0].mxu0
            %4496 = vmatprep.mubr.f32.mxu0 0.0
            %4497 = vmatmul.mubr.f32.gmra.mrb[0].mxu0 %v3353
            %v4498 = vpop.f32.mrb[0].mxu0
            %v4499 = vadd.f32 %v4274, %v4498
            %v4500 = vpop.f32.mrb[0].mxu0
            %4501 = vmatprep.mubr.f32.mxu0 0.0
            %4502 = vmatmul.mubr.f32.gmra.mrb[0].mxu0 %v3355
            %v4503 = vpop.f32.mrb[0].mxu0
            %v4504 = vadd.f32 %v4279, %v4503
            %v4505 = vpop.f32.mrb[0].mxu0
            %4506 = vmatprep.mubr.f32.mxu0 0.0
            %4507 = vmatmul.mubr.f32.gmra.mrb[0].mxu0 %v3358
            %v4508 = vpop.f32.mrb[0].mxu0
            %v4509 = vadd.f32 %v4284, %v4508
            %v4510 = vpop.f32.mrb[0].mxu0
            %4511 = vmatprep.mubr.f32.mxu0 0.0
            %4512 = vmatmul.mubr.f32.gmra.mrb[0].mxu0 %v3360
            %v4513 = vpop.f32.mrb[0].mxu0
            %v4514 = vadd.f32 %v4289, %v4513
            %v4515 = vpop.f32.mrb[0].mxu0
            %4516 = vmatprep.mubr.f32.mxu0 0.0
            %4517 = vmatmul.mubr.f32.gmra.mrb[0].mxu0 %v3363
            %v4518 = vpop.f32.mrb[0].mxu0
            %v4519 = vadd.f32 %v4294, %v4518
            %v4520 = vpop.f32.mrb[0].mxu0
            %4521 = vmatprep.mubr.f32.mxu0 0.0
            %4522 = vmatmul.mubr.f32.gmra.mrb[0].mxu0 %v3365
            %v4523 = vpop.f32.mrb[0].mxu0
            %v4524 = vadd.f32 %v4299, %v4523
            %v4525 = vpop.f32.mrb[0].mxu0
            %4526 = vmatprep.mubr.f32.mxu0 0.0
            %4527 = vmatmul.mubr.f32.gmra.mrb[0].mxu0 %v3368
            %v4528 = vpop.f32.mrb[0].mxu0
            %v4529 = vadd.f32 %v4304, %v4528
            %v4530 = vpop.f32.mrb[0].mxu0
            %4531 = vmatprep.mubr.f32.mxu0 0.0
            %4532 = vmatmul.mubr.f32.gmra.mrb[0].mxu0 %v3370
            %v4533 = vpop.f32.mrb[0].mxu0
            %v4534 = vadd.f32 %v4309, %v4533
            %v4535 = vpop.f32.mrb[0].mxu0
            %4536 = vmatprep.mubr.f32.mxu0 0.0
            %4537 = vmatmul.mubr.f32.gmra.mrb[0].mxu0 %v3373
            %v4538 = vpop.f32.mrb[0].mxu0
            %v4539 = vadd.f32 %v4314, %v4538
            %v4540 = vpop.f32.mrb[0].mxu0
            %4541 = vmatprep.mubr.f32.mxu0 0.0
            %4542 = vmatmul.mubr.f32.gmra.mrb[0].mxu0 %v3375
            %v4543 = vpop.f32.mrb[0].mxu0
            %v4544 = vadd.f32 %v4319, %v4543
            %v4545 = vpop.f32.mrb[0].mxu0
            %4546 = vmatprep.mubr.f32.mxu0 0.0
            %4547 = vmatmul.mubr.f32.gmra.mrb[0].mxu0 %v3420
            %v4548 = vpop.f32.mrb[0].mxu0
            %v4549 = vadd.f32 %v4324, %v4548
            %v4550 = vpop.f32.mrb[0].mxu0
            %4551 = vmatprep.mubr.f32.mxu0 0.0
            %4552 = vmatmul.mubr.f32.gmra.mrb[0].mxu0 %v3422
            %v4553 = vpop.f32.mrb[0].mxu0
            %v4554 = vadd.f32 %v4329, %v4553
            %v4555 = vpop.f32.mrb[0].mxu0
            %4556 = vmatprep.mubr.f32.mxu0 0.0
            %4557 = vmatmul.mubr.f32.gmra.mrb[0].mxu0 %v3437
            %v4558 = vpop.f32.mrb[0].mxu0
            %v4559 = vadd.f32 %v4334, %v4558
            %v4560 = vpop.f32.mrb[0].mxu0
            %4561 = vmatprep.mubr.f32.mxu0 0.0
            %4562 = vmatmul.mubr.f32.gmra.mrb[0].mxu0 %v3439
            %v4563 = vpop.f32.mrb[0].mxu0
            %v4564 = vadd.f32 %v4339, %v4563
            %v4565 = vpop.f32.mrb[0].mxu0
            %4566 = vdwg.mxu0
            %v4568 = vlaneseq
            %v4569 = vshrl.u32 %v4568, 7
            %v4570 = vsub.s32 0, %v4569
            %v4571 = vrot.slane %v3068, %v4570
            %v4573 = vmul.f32 %v4409, %v4571
            %v4574 = vmul.f32 %v4414, %v4571
            %v4575 = vmul.f32 %v4419, %v4571
            %v4576 = vmul.f32 %v4424, %v4571
            %v4577 = vmul.f32 %v4429, %v4571
            %v4578 = vmul.f32 %v4434, %v4571
            %v4579 = vmul.f32 %v4439, %v4571
            %v4580 = vmul.f32 %v4444, %v4571
            %v4581 = vmul.f32 %v4449, %v4571
            %v4582 = vmul.f32 %v4454, %v4571
            %v4583 = vmul.f32 %v4459, %v4571
            %v4584 = vmul.f32 %v4464, %v4571
            %v4585 = vmul.f32 %v4469, %v4571
            %v4586 = vmul.f32 %v4474, %v4571
            %v4587 = vmul.f32 %v4479, %v4571
            %v4588 = vmul.f32 %v4484, %v4571
            %v4589 = vmul.f32 %v4489, %v4571
            %v4590 = vmul.f32 %v4494, %v4571
            %v4591 = vmul.f32 %v4499, %v4571
            %v4592 = vmul.f32 %v4504, %v4571
            %v4593 = vmul.f32 %v4509, %v4571
            %v4594 = vmul.f32 %v4514, %v4571
            %v4595 = vmul.f32 %v4519, %v4571
            %v4596 = vmul.f32 %v4524, %v4571
            %v4597 = vmul.f32 %v4529, %v4571
            %v4598 = vmul.f32 %v4534, %v4571
            %v4599 = vmul.f32 %v4539, %v4571
            %v4600 = vmul.f32 %v4544, %v4571
            %v4601 = vmul.f32 %v4549, %v4571
            %v4602 = vmul.f32 %v4554, %v4571
            %v4603 = vmul.f32 %v4559, %v4571
            %v4604 = vmul.f32 %v4564, %v4571
            %v4606 = vlaneseq
            %v4607 = vshrl.u32 %v4606, 7
            %v4608 = vsub.s32 0, %v4607
            %v4609 = vrot.slane %v3070, %v4608
            %v4611 = vadd.f32 %v4573, %v4609
            %v4612 = vadd.f32 %v4574, %v4609
            %v4613 = vadd.f32 %v4575, %v4609
            %v4614 = vadd.f32 %v4576, %v4609
            %v4615 = vadd.f32 %v4577, %v4609
            %v4616 = vadd.f32 %v4578, %v4609
            %v4617 = vadd.f32 %v4579, %v4609
            %v4618 = vadd.f32 %v4580, %v4609
            %v4619 = vadd.f32 %v4581, %v4609
            %v4620 = vadd.f32 %v4582, %v4609
            %v4621 = vadd.f32 %v4583, %v4609
            %v4622 = vadd.f32 %v4584, %v4609
            %v4623 = vadd.f32 %v4585, %v4609
            %v4624 = vadd.f32 %v4586, %v4609
            %v4625 = vadd.f32 %v4587, %v4609
            %v4626 = vadd.f32 %v4588, %v4609
            %v4627 = vadd.f32 %v4589, %v4609
            %v4628 = vadd.f32 %v4590, %v4609
            %v4629 = vadd.f32 %v4591, %v4609
            %v4630 = vadd.f32 %v4592, %v4609
            %v4631 = vadd.f32 %v4593, %v4609
            %v4632 = vadd.f32 %v4594, %v4609
            %v4633 = vadd.f32 %v4595, %v4609
            %v4634 = vadd.f32 %v4596, %v4609
            %v4635 = vadd.f32 %v4597, %v4609
            %v4636 = vadd.f32 %v4598, %v4609
            %v4637 = vadd.f32 %v4599, %v4609
            %v4638 = vadd.f32 %v4600, %v4609
            %v4639 = vadd.f32 %v4601, %v4609
            %v4640 = vadd.f32 %v4602, %v4609
            %v4641 = vadd.f32 %v4603, %v4609
            %v4642 = vadd.f32 %v4604, %v4609
            %s4643 = smul.u32 %s3077, 16
            %s4644 = scalar_lea.vmem [#allocation3], %s4643
            %4645 = vst [vmem:[%s4644] sm:$0xff] %v4611
            %4646 = vst [vmem:[%s4644 + $0x8] sm:$0xff] %v4612
            %4647 = vst [vmem:[%s4644 + $0x10] sm:$0xff] %v4613
            %4648 = vst [vmem:[%s4644 + $0x18] sm:$0xff] %v4614
            %4649 = vst [vmem:[%s4644 + $0x20] sm:$0xff] %v4615
            %4650 = vst [vmem:[%s4644 + $0x28] sm:$0xff] %v4616
            %4651 = vst [vmem:[%s4644 + $0x30] sm:$0xff] %v4617
            %4652 = vst [vmem:[%s4644 + $0x38] sm:$0xff] %v4618
            %4653 = vst [vmem:[%s4644 + $0x40] sm:$0xff] %v4619
            %4654 = vst [vmem:[%s4644 + $0x48] sm:$0xff] %v4620
            %4655 = vst [vmem:[%s4644 + $0x50] sm:$0xff] %v4621
            %4656 = vst [vmem:[%s4644 + $0x58] sm:$0xff] %v4622
            %4657 = vst [vmem:[%s4644 + $0x60] sm:$0xff] %v4623
            %4658 = vst [vmem:[%s4644 + $0x68] sm:$0xff] %v4624
            %4659 = vst [vmem:[%s4644 + $0x70] sm:$0xff] %v4625
            %4660 = vst [vmem:[%s4644 + $0x78] sm:$0xff] %v4626
            %4661 = vst [vmem:[%s4644 + $0x80] sm:$0xff] %v4627
            %4662 = vst [vmem:[%s4644 + $0x88] sm:$0xff] %v4628
            %4663 = vst [vmem:[%s4644 + $0x90] sm:$0xff] %v4629
            %4664 = vst [vmem:[%s4644 + $0x98] sm:$0xff] %v4630
            %4665 = vst [vmem:[%s4644 + $0xa0] sm:$0xff] %v4631
            %4666 = vst [vmem:[%s4644 + $0xa8] sm:$0xff] %v4632
            %4667 = vst [vmem:[%s4644 + $0xb0] sm:$0xff] %v4633
            %4668 = vst [vmem:[%s4644 + $0xb8] sm:$0xff] %v4634
            %4669 = vst [vmem:[%s4644 + $0xc0] sm:$0xff] %v4635
            %4670 = vst [vmem:[%s4644 + $0xc8] sm:$0xff] %v4636
            %4671 = vst [vmem:[%s4644 + $0xd0] sm:$0xff] %v4637
            %4672 = vst [vmem:[%s4644 + $0xd8] sm:$0xff] %v4638
            %4673 = vst [vmem:[%s4644 + $0xe0] sm:$0xff] %v4639
            %4674 = vst [vmem:[%s4644 + $0xe8] sm:$0xff] %v4640
            %4675 = vst [vmem:[%s4644 + $0xf0] sm:$0xff] %v4641
            %4676 = vst [vmem:[%s4644 + $0xf8] sm:$0xff] %v4642
          $region155: #{residual_group_forward.1} parent=140 // loop_footer
            %s3076 = sadd.s32 1, %s3072
          $region156: #{residual_group_forward.1} parent=140 // loop_footer_branch
            %3071 = sbr.rel target = $region152
          $region157: #{residual_group_forward.1} parent=140 // loop_exit
            _
          %v4677 = vld [vmem:[#allocation3] sm:$0xff]
          %v4678 = vld [vmem:[#allocation3 + $0x8] sm:$0xff]
          %v4679 = vld [vmem:[#allocation3 + $0x10] sm:$0xff]
          %v4680 = vld [vmem:[#allocation3 + $0x18] sm:$0xff]
          %v4681 = vld [vmem:[#allocation3 + $0x20] sm:$0xff]
          %v4682 = vld [vmem:[#allocation3 + $0x28] sm:$0xff]
          %v4683 = vld [vmem:[#allocation3 + $0x30] sm:$0xff]
          %v4684 = vld [vmem:[#allocation3 + $0x38] sm:$0xff]
          %v4685 = vld [vmem:[#allocation3 + $0x40] sm:$0xff]
          %v4686 = vld [vmem:[#allocation3 + $0x48] sm:$0xff]
          %v4687 = vld [vmem:[#allocation3 + $0x50] sm:$0xff]
          %v4688 = vld [vmem:[#allocation3 + $0x58] sm:$0xff]
          %v4689 = vld [vmem:[#allocation3 + $0x60] sm:$0xff]
          %v4690 = vld [vmem:[#allocation3 + $0x68] sm:$0xff]
          %v4691 = vld [vmem:[#allocation3 + $0x70] sm:$0xff]
          %v4692 = vld [vmem:[#allocation3 + $0x78] sm:$0xff]
          %v4693 = vld [vmem:[#allocation3 + $0x80] sm:$0xff]
          %v4694 = vld [vmem:[#allocation3 + $0x88] sm:$0xff]
          %v4695 = vld [vmem:[#allocation3 + $0x90] sm:$0xff]
          %v4696 = vld [vmem:[#allocation3 + $0x98] sm:$0xff]
          %v4697 = vld [vmem:[#allocation3 + $0xa0] sm:$0xff]
          %v4698 = vld [vmem:[#allocation3 + $0xa8] sm:$0xff]
          %v4699 = vld [vmem:[#allocation3 + $0xb0] sm:$0xff]
          %v4700 = vld [vmem:[#allocation3 + $0xb8] sm:$0xff]
          %v4701 = vld [vmem:[#allocation3 + $0xc0] sm:$0xff]
          %v4702 = vld [vmem:[#allocation3 + $0xc8] sm:$0xff]
          %v4703 = vld [vmem:[#allocation3 + $0xd0] sm:$0xff]
          %v4704 = vld [vmem:[#allocation3 + $0xd8] sm:$0xff]
          %v4705 = vld [vmem:[#allocation3 + $0xe0] sm:$0xff]
          %v4706 = vld [vmem:[#allocation3 + $0xe8] sm:$0xff]
          %v4707 = vld [vmem:[#allocation3 + $0xf0] sm:$0xff]
          %v4708 = vld [vmem:[#allocation3 + $0xf8] sm:$0xff]
          %v4709 = vld [vmem:[#allocation3 + $0x100] sm:$0xff]
          %v4710 = vld [vmem:[#allocation3 + $0x108] sm:$0xff]
          %v4711 = vld [vmem:[#allocation3 + $0x110] sm:$0xff]
          %v4712 = vld [vmem:[#allocation3 + $0x118] sm:$0xff]
          %v4713 = vld [vmem:[#allocation3 + $0x120] sm:$0xff]
          %v4714 = vld [vmem:[#allocation3 + $0x128] sm:$0xff]
          %v4715 = vld [vmem:[#allocation3 + $0x130] sm:$0xff]
          %v4716 = vld [vmem:[#allocation3 + $0x138] sm:$0xff]
          %v4717 = vld [vmem:[#allocation3 + $0x140] sm:$0xff]
          %v4718 = vld [vmem:[#allocation3 + $0x148] sm:$0xff]
          %v4719 = vld [vmem:[#allocation3 + $0x150] sm:$0xff]
          %v4720 = vld [vmem:[#allocation3 + $0x158] sm:$0xff]
          %v4721 = vld [vmem:[#allocation3 + $0x160] sm:$0xff]
          %v4722 = vld [vmem:[#allocation3 + $0x168] sm:$0xff]
          %v4723 = vld [vmem:[#allocation3 + $0x170] sm:$0xff]
          %v4724 = vld [vmem:[#allocation3 + $0x178] sm:$0xff]
          %v4725 = vld [vmem:[#allocation3 + $0x180] sm:$0xff]
          %v4726 = vld [vmem:[#allocation3 + $0x188] sm:$0xff]
          %v4727 = vld [vmem:[#allocation3 + $0x190] sm:$0xff]
          %v4728 = vld [vmem:[#allocation3 + $0x198] sm:$0xff]
          %v4729 = vld [vmem:[#allocation3 + $0x1a0] sm:$0xff]
          %v4730 = vld [vmem:[#allocation3 + $0x1a8] sm:$0xff]
          %v4731 = vld [vmem:[#allocation3 + $0x1b0] sm:$0xff]
          %v4732 = vld [vmem:[#allocation3 + $0x1b8] sm:$0xff]
          %v4733 = vld [vmem:[#allocation3 + $0x1c0] sm:$0xff]
          %v4734 = vld [vmem:[#allocation3 + $0x1c8] sm:$0xff]
          %v4735 = vld [vmem:[#allocation3 + $0x1d0] sm:$0xff]
          %v4736 = vld [vmem:[#allocation3 + $0x1d8] sm:$0xff]
          %v4737 = vld [vmem:[#allocation3 + $0x1e0] sm:$0xff]
          %v4738 = vld [vmem:[#allocation3 + $0x1e8] sm:$0xff]
          %v4739 = vld [vmem:[#allocation3 + $0x1f0] sm:$0xff]
          %v4740 = vld [vmem:[#allocation3 + $0x1f8] sm:$0xff]
          %v4741 = vadd.f32 %v4677, %v4678
          %v4742 = vadd.f32 %v4741, %v4679
          %v4743 = vadd.f32 %v4742, %v4680
          %v4744 = vadd.f32 %v4743, %v4681
          %v4745 = vadd.f32 %v4744, %v4682
          %v4746 = vadd.f32 %v4745, %v4683
          %v4747 = vadd.f32 %v4746, %v4684
          %v4748 = vadd.f32 %v4747, %v4685
          %v4749 = vadd.f32 %v4748, %v4686
          %v4750 = vadd.f32 %v4749, %v4687
          %v4751 = vadd.f32 %v4750, %v4688
          %v4752 = vadd.f32 %v4751, %v4689
          %v4753 = vadd.f32 %v4752, %v4690
          %v4754 = vadd.f32 %v4753, %v4691
          %v4755 = vadd.f32 %v4754, %v4692
          %v4756 = vadd.f32 %v4755, %v4693
          %v4757 = vadd.f32 %v4756, %v4694
          %v4758 = vadd.f32 %v4757, %v4695
          %v4759 = vadd.f32 %v4758, %v4696
          %v4760 = vadd.f32 %v4759, %v4697
          %v4761 = vadd.f32 %v4760, %v4698
          %v4762 = vadd.f32 %v4761, %v4699
          %v4763 = vadd.f32 %v4762, %v4700
          %v4764 = vadd.f32 %v4763, %v4701
          %v4765 = vadd.f32 %v4764, %v4702
          %v4766 = vadd.f32 %v4765, %v4703
          %v4767 = vadd.f32 %v4766, %v4704
          %v4768 = vadd.f32 %v4767, %v4705
          %v4769 = vadd.f32 %v4768, %v4706
          %v4770 = vadd.f32 %v4769, %v4707
          %v4771 = vadd.f32 %v4770, %v4708
          %v4772 = vadd.f32 %v4771, %v4709
          %v4773 = vadd.f32 %v4772, %v4710
          %v4774 = vadd.f32 %v4773, %v4711
          %v4775 = vadd.f32 %v4774, %v4712
          %v4776 = vadd.f32 %v4775, %v4713
          %v4777 = vadd.f32 %v4776, %v4714
          %v4778 = vadd.f32 %v4777, %v4715
          %v4779 = vadd.f32 %v4778, %v4716
          %v4780 = vadd.f32 %v4779, %v4717
          %v4781 = vadd.f32 %v4780, %v4718
          %v4782 = vadd.f32 %v4781, %v4719
          %v4783 = vadd.f32 %v4782, %v4720
          %v4784 = vadd.f32 %v4783, %v4721
          %v4785 = vadd.f32 %v4784, %v4722
          %v4786 = vadd.f32 %v4785, %v4723
          %v4787 = vadd.f32 %v4786, %v4724
          %v4788 = vadd.f32 %v4787, %v4725
          %v4789 = vadd.f32 %v4788, %v4726
          %v4790 = vadd.f32 %v4789, %v4727
          %v4791 = vadd.f32 %v4790, %v4728
          %v4792 = vadd.f32 %v4791, %v4729
          %v4793 = vadd.f32 %v4792, %v4730
          %v4794 = vadd.f32 %v4793, %v4731
          %v4795 = vadd.f32 %v4794, %v4732
          %v4796 = vadd.f32 %v4795, %v4733
          %v4797 = vadd.f32 %v4796, %v4734
          %v4798 = vadd.f32 %v4797, %v4735
          %v4799 = vadd.f32 %v4798, %v4736
          %v4800 = vadd.f32 %v4799, %v4737
          %v4801 = vadd.f32 %v4800, %v4738
          %v4802 = vadd.f32 %v4801, %v4739
          %v4803 = vadd.f32 %v4802, %v4740
          %v4804 = vrot.slane %v4803, 4
          %v4805 = vadd.f32 %v4803, %v4804
          %v4806 = vrot.slane %v4805, 2
          %v4807 = vadd.f32 %v4805, %v4806
          %v4808 = vrot.slane %v4807, 1
          %v4809 = vadd.f32 %v4807, %v4808
          %v4810 = vrcp.pop 512.0
          %v4811 = vmul.f32 %v4809, %v4810
          %s4812 = smul.u32 %s904, 128
          %s4813 = scalar_lea.vmem %s7, %s4812
          %v4814 = vld [vmem:[%s4813] sm:$0xff]
          %v4815 = vld [vmem:[%s4813 + $0x8] sm:$0xff]
          %v4816 = vld [vmem:[%s4813 + $0x10] sm:$0xff]
          %v4817 = vld [vmem:[%s4813 + $0x18] sm:$0xff]
          %v4818 = vld [vmem:[%s4813 + $0x20] sm:$0xff]
          %v4819 = vld [vmem:[%s4813 + $0x28] sm:$0xff]
          %v4820 = vld [vmem:[%s4813 + $0x30] sm:$0xff]
          %v4821 = vld [vmem:[%s4813 + $0x38] sm:$0xff]
          %v4822 = vld [vmem:[%s4813 + $0x40] sm:$0xff]
          %v4823 = vld [vmem:[%s4813 + $0x48] sm:$0xff]
          %v4824 = vld [vmem:[%s4813 + $0x50] sm:$0xff]
          %v4825 = vld [vmem:[%s4813 + $0x58] sm:$0xff]
          %v4826 = vld [vmem:[%s4813 + $0x60] sm:$0xff]
          %v4827 = vld [vmem:[%s4813 + $0x68] sm:$0xff]
          %v4828 = vld [vmem:[%s4813 + $0x70] sm:$0xff]
          %v4829 = vld [vmem:[%s4813 + $0x78] sm:$0xff]
          %4830 = vmatprep.subr.mxu0 0.0
          %4831 = vmatpush1.msra.mxu0 %v4814
          %4832 = vmatprep.subr.mxu0 0.0
          %4833 = vmatpush1.msra.mxu0 %v4815
          %4834 = vmatprep.subr.mxu0 0.0
          %4835 = vmatpush1.msra.mxu0 %v4816
          %4836 = vmatprep.subr.mxu0 0.0
          %4837 = vmatpush1.msra.mxu0 %v4817
          %4838 = vmatprep.subr.mxu0 0.0
          %4839 = vmatpush1.msra.mxu0 %v4818
          %4840 = vmatprep.subr.mxu0 0.0
          %4841 = vmatpush1.msra.mxu0 %v4819
          %4842 = vmatprep.subr.mxu0 0.0
          %4843 = vmatpush1.msra.mxu0 %v4820
          %4844 = vmatprep.subr.mxu0 0.0
          %4845 = vmatpush1.msra.mxu0 %v4821
          %4846 = vmatprep.subr.mxu0 0.0
          %4847 = vmatpush1.msra.mxu0 %v4822
          %4848 = vmatprep.subr.mxu0 0.0
          %4849 = vmatpush1.msra.mxu0 %v4823
          %4850 = vmatprep.subr.mxu0 0.0
          %4851 = vmatpush1.msra.mxu0 %v4824
          %4852 = vmatprep.subr.mxu0 0.0
          %4853 = vmatpush1.msra.mxu0 %v4825
          %4854 = vmatprep.subr.mxu0 0.0
          %4855 = vmatpush1.msra.mxu0 %v4826
          %4856 = vmatprep.subr.mxu0 0.0
          %4857 = vmatpush1.msra.mxu0 %v4827
          %4858 = vmatprep.subr.mxu0 0.0
          %4859 = vmatpush1.msra.mxu0 %v4828
          %4860 = vmatprep.subr.mxu0 0.0
          %4861 = vmatpush1.msra.mxu0 %v4829
          %4862 = vmatprep.subr.mxu0 0.0
          %4863 = vmatpush1.msra.mxu0 0.0
          %4864 = vmatprep.subr.mxu0 0.0
          %4865 = vmatpush1.msra.mxu0 0.0
          %4866 = vmatprep.subr.mxu0 0.0
          %4867 = vmatpush1.msra.mxu0 0.0
          %4868 = vmatprep.subr.mxu0 0.0
          %4869 = vmatpush1.msra.mxu0 0.0
          %4870 = vmatprep.subr.mxu0 0.0
          %4871 = vmatpush1.msra.mxu0 0.0
          %4872 = vmatprep.subr.mxu0 0.0
          %4873 = vmatpush1.msra.mxu0 0.0
          %4874 = vmatprep.subr.mxu0 0.0
          %4875 = vmatpush1.msra.mxu0 0.0
          %4876 = vmatprep.subr.mxu0 0.0
          %4877 = vmatpush1.msra.mxu0 0.0
          %4878 = vmatprep.subr.mxu0 0.0
          %4879 = vmatpush1.msra.mxu0 0.0
          %4880 = vmatprep.subr.mxu0 0.0
          %4881 = vmatpush1.msra.mxu0 0.0
          %4882 = vmatprep.subr.mxu0 0.0
          %4883 = vmatpush1.msra.mxu0 0.0
          %4884 = vmatprep.subr.mxu0 0.0
          %4885 = vmatpush1.msra.mxu0 0.0
          %4886 = vmatprep.subr.mxu0 0.0
          %4887 = vmatpush1.msra.mxu0 0.0
          %4888 = vmatprep.subr.mxu0 0.0
          %4889 = vmatpush1.msra.mxu0 0.0
          %4890 = vmatprep.subr.mxu0 0.0
          %4891 = vmatpush1.msra.mxu0 0.0
          %4892 = vmatprep.subr.mxu0 0.0
          %4893 = vmatpush1.msra.mxu0 0.0
          %4894 = vmatprep.mubr.f32.mxu0 0.0
          %4895 = vmatmul.mubr.f32.gmra.mrb[0].mxu0 %v4811
          %v4896 = vpop.f32.mrb[0].mxu0
          %v4897 = vadd.f32 0.0, %v4896
          %v4898 = vpop.f32.mrb[0].mxu0
          %4899 = vdwg.mxu0
          %s4900 = scalar_lea.vmem [#allocation17], %s904
          %v4901 = vld [vmem:[%s4900] sm:$0x1]
          %v4902 = vmul.f32 %v4897, %v4901
          %s4903 = scalar_lea.vmem [#allocation19], %s904
          %v4904 = vld [vmem:[%s4903] sm:$0x1]
          %v4905 = vadd.f32 %v4902, %v4904
          %v4906 = vmax.f32 %v4905, 0.0
          %s4907 = smul.u32 %s904, 8
          %s4908 = scalar_lea.vmem [#allocation20], %s4907
          %v4909 = vld [vmem:[%s4908] sm:$0xff]
          %vm4910 = vcmask 64512
          %v4912 = vsel %vm4910, %v4906, 0
          %4914 = vmatprep.subr.mxu0 0.0
          %4915 = vmatpush1.msra.mxu0 %v4909
          %4916 = vmatprep.subr.mxu0 0.0
          %4917 = vmatpush1.msra.mxu0 0.0
          %4918 = vmatprep.subr.mxu0 0.0
          %4919 = vmatpush1.msra.mxu0 0.0
          %4920 = vmatprep.subr.mxu0 0.0
          %4921 = vmatpush1.msra.mxu0 0.0
          %4922 = vmatprep.subr.mxu0 0.0
          %4923 = vmatpush1.msra.mxu0 0.0
          %4924 = vmatprep.subr.mxu0 0.0
          %4925 = vmatpush1.msra.mxu0 0.0
          %4926 = vmatprep.subr.mxu0 0.0
          %4927 = vmatpush1.msra.mxu0 0.0
          %4928 = vmatprep.subr.mxu0 0.0
          %4929 = vmatpush1.msra.mxu0 0.0
          %4930 = vmatprep.subr.mxu0 0.0
          %4931 = vmatpush1.msra.mxu0 0.0
          %4932 = vmatprep.subr.mxu0 0.0
          %4933 = vmatpush1.msra.mxu0 0.0
          %4934 = vmatprep.subr.mxu0 0.0
          %4935 = vmatpush1.msra.mxu0 0.0
          %4936 = vmatprep.subr.mxu0 0.0
          %4937 = vmatpush1.msra.mxu0 0.0
          %4938 = vmatprep.subr.mxu0 0.0
          %4939 = vmatpush1.msra.mxu0 0.0
          %4940 = vmatprep.subr.mxu0 0.0
          %4941 = vmatpush1.msra.mxu0 0.0
          %4942 = vmatprep.subr.mxu0 0.0
          %4943 = vmatpush1.msra.mxu0 0.0
          %4944 = vmatprep.subr.mxu0 0.0
          %4945 = vmatpush1.msra.mxu0 0.0
          %4946 = vmatprep.subr.mxu0 0.0
          %4947 = vmatpush1.msra.mxu0 0.0
          %4948 = vmatprep.subr.mxu0 0.0
          %4949 = vmatpush1.msra.mxu0 0.0
          %4950 = vmatprep.subr.mxu0 0.0
          %4951 = vmatpush1.msra.mxu0 0.0
          %4952 = vmatprep.subr.mxu0 0.0
          %4953 = vmatpush1.msra.mxu0 0.0
          %4954 = vmatprep.subr.mxu0 0.0
          %4955 = vmatpush1.msra.mxu0 0.0
          %4956 = vmatprep.subr.mxu0 0.0
          %4957 = vmatpush1.msra.mxu0 0.0
          %4958 = vmatprep.subr.mxu0 0.0
          %4959 = vmatpush1.msra.mxu0 0.0
          %4960 = vmatprep.subr.mxu0 0.0
          %4961 = vmatpush1.msra.mxu0 0.0
          %4962 = vmatprep.subr.mxu0 0.0
          %4963 = vmatpush1.msra.mxu0 0.0
          %4964 = vmatprep.subr.mxu0 0.0
          %4965 = vmatpush1.msra.mxu0 0.0
          %4966 = vmatprep.subr.mxu0 0.0
          %4967 = vmatpush1.msra.mxu0 0.0
          %4968 = vmatprep.subr.mxu0 0.0
          %4969 = vmatpush1.msra.mxu0 0.0
          %4970 = vmatprep.subr.mxu0 0.0
          %4971 = vmatpush1.msra.mxu0 0.0
          %4972 = vmatprep.subr.mxu0 0.0
          %4973 = vmatpush1.msra.mxu0 0.0
          %4974 = vmatprep.subr.mxu0 0.0
          %4975 = vmatpush1.msra.mxu0 0.0
          %4976 = vmatprep.subr.mxu0 0.0
          %4977 = vmatpush1.msra.mxu0 0.0
          %4978 = vmatprep.mubr.f32.mxu0 0.0
          %4979 = vmatmul.mubr.f32.gmra.mrb[0].mxu0 %v4912
          %v4980 = vpop.f32.mrb[0].mxu0
          %v4981 = vadd.f32 0.0, %v4980
          %v4982 = vpop.f32.mrb[0].mxu0
          %4983 = vdwg.mxu0
          %s4984 = scalar_lea.vmem [#allocation22], %s904
          %v4985 = vld [vmem:[%s4984] sm:$0x1]
          %v4986 = vmul.f32 %v4981, %v4985
          %s4987 = scalar_lea.vmem [#allocation23], %s904
          %v4988 = vld [vmem:[%s4987] sm:$0x1]
          %v4989 = vadd.f32 %v4986, %v4988
          %v4990 = vxor.u32 %v4989, 2147483648
          %v4991 = vmul.f32 %v4990, 1.442695
          %v4992 = vpow.pop %v4991
          %v4993 = vadd.f32 %v4992, 1.0
          %v4994 = vrcp.pop %v4993
          %v4995 = vmul.f32 1.0, %v4994
          %v4996 = vlaneseq
          %v4997 = vshrl.u32 %v4996, 7
          %v4998 = vsub.s32 0, %v4997
          %v4999 = vrot.slane %v4995, %v4998
          %v5000 = vmul.f32 %v4677, %v4999
          %v5001 = vmul.f32 %v4678, %v4999
          %v5002 = vmul.f32 %v4679, %v4999
          %v5003 = vmul.f32 %v4680, %v4999
          %v5004 = vmul.f32 %v4681, %v4999
          %v5005 = vmul.f32 %v4682, %v4999
          %v5006 = vmul.f32 %v4683, %v4999
          %v5007 = vmul.f32 %v4684, %v4999
          %v5008 = vmul.f32 %v4685, %v4999
          %v5009 = vmul.f32 %v4686, %v4999
          %v5010 = vmul.f32 %v4687, %v4999
          %v5011 = vmul.f32 %v4688, %v4999
          %v5012 = vmul.f32 %v4689, %v4999
          %v5013 = vmul.f32 %v4690, %v4999
          %v5014 = vmul.f32 %v4691, %v4999
          %v5015 = vmul.f32 %v4692, %v4999
          %v5016 = vmul.f32 %v4693, %v4999
          %v5017 = vmul.f32 %v4694, %v4999
          %v5018 = vmul.f32 %v4695, %v4999
          %v5019 = vmul.f32 %v4696, %v4999
          %v5020 = vmul.f32 %v4697, %v4999
          %v5021 = vmul.f32 %v4698, %v4999
          %v5022 = vmul.f32 %v4699, %v4999
          %v5023 = vmul.f32 %v4700, %v4999
          %v5024 = vmul.f32 %v4701, %v4999
          %v5025 = vmul.f32 %v4702, %v4999
          %v5026 = vmul.f32 %v4703, %v4999
          %v5027 = vmul.f32 %v4704, %v4999
          %v5028 = vmul.f32 %v4705, %v4999
          %v5029 = vmul.f32 %v4706, %v4999
          %v5030 = vmul.f32 %v4707, %v4999
          %v5031 = vmul.f32 %v4708, %v4999
          %v5032 = vmul.f32 %v4709, %v4999
          %v5033 = vmul.f32 %v4710, %v4999
          %v5034 = vmul.f32 %v4711, %v4999
          %v5035 = vmul.f32 %v4712, %v4999
          %v5036 = vmul.f32 %v4713, %v4999
          %v5037 = vmul.f32 %v4714, %v4999
          %v5038 = vmul.f32 %v4715, %v4999
          %v5039 = vmul.f32 %v4716, %v4999
          %v5040 = vmul.f32 %v4717, %v4999
          %v5041 = vmul.f32 %v4718, %v4999
          %v5042 = vmul.f32 %v4719, %v4999
          %v5043 = vmul.f32 %v4720, %v4999
          %v5044 = vmul.f32 %v4721, %v4999
          %v5045 = vmul.f32 %v4722, %v4999
          %v5046 = vmul.f32 %v4723, %v4999
          %v5047 = vmul.f32 %v4724, %v4999
          %v5048 = vmul.f32 %v4725, %v4999
          %v5049 = vmul.f32 %v4726, %v4999
          %v5050 = vmul.f32 %v4727, %v4999
          %v5051 = vmul.f32 %v4728, %v4999
          %v5052 = vmul.f32 %v4729, %v4999
          %v5053 = vmul.f32 %v4730, %v4999
          %v5054 = vmul.f32 %v4731, %v4999
          %v5055 = vmul.f32 %v4732, %v4999
          %v5056 = vmul.f32 %v4733, %v4999
          %v5057 = vmul.f32 %v4734, %v4999
          %v5058 = vmul.f32 %v4735, %v4999
          %v5059 = vmul.f32 %v4736, %v4999
          %v5060 = vmul.f32 %v4737, %v4999
          %v5061 = vmul.f32 %v4738, %v4999
          %v5062 = vmul.f32 %v4739, %v4999
          %v5063 = vmul.f32 %v4740, %v4999
          %v5064 = vld [vmem:[#allocation4] sm:$0xff]
          %v5065 = vld [vmem:[#allocation4 + $0x8] sm:$0xff]
          %v5066 = vld [vmem:[#allocation4 + $0x10] sm:$0xff]
          %v5067 = vld [vmem:[#allocation4 + $0x18] sm:$0xff]
          %v5068 = vld [vmem:[#allocation4 + $0x20] sm:$0xff]
          %v5069 = vld [vmem:[#allocation4 + $0x28] sm:$0xff]
          %v5070 = vld [vmem:[#allocation4 + $0x30] sm:$0xff]
          %v5071 = vld [vmem:[#allocation4 + $0x38] sm:$0xff]
          %v5072 = vld [vmem:[#allocation4 + $0x40] sm:$0xff]
          %v5073 = vld [vmem:[#allocation4 + $0x48] sm:$0xff]
          %v5074 = vld [vmem:[#allocation4 + $0x50] sm:$0xff]
          %v5075 = vld [vmem:[#allocation4 + $0x58] sm:$0xff]
          %v5076 = vld [vmem:[#allocation4 + $0x60] sm:$0xff]
          %v5077 = vld [vmem:[#allocation4 + $0x68] sm:$0xff]
          %v5078 = vld [vmem:[#allocation4 + $0x70] sm:$0xff]
          %v5079 = vld [vmem:[#allocation4 + $0x78] sm:$0xff]
          %v5080 = vld [vmem:[#allocation4 + $0x80] sm:$0xff]
          %v5081 = vld [vmem:[#allocation4 + $0x88] sm:$0xff]
          %v5082 = vld [vmem:[#allocation4 + $0x90] sm:$0xff]
          %v5083 = vld [vmem:[#allocation4 + $0x98] sm:$0xff]
          %v5084 = vld [vmem:[#allocation4 + $0xa0] sm:$0xff]
          %v5085 = vld [vmem:[#allocation4 + $0xa8] sm:$0xff]
          %v5086 = vld [vmem:[#allocation4 + $0xb0] sm:$0xff]
          %v5087 = vld [vmem:[#allocation4 + $0xb8] sm:$0xff]
          %v5088 = vld [vmem:[#allocation4 + $0xc0] sm:$0xff]
          %v5089 = vld [vmem:[#allocation4 + $0xc8] sm:$0xff]
          %v5090 = vld [vmem:[#allocation4 + $0xd0] sm:$0xff]
          %v5091 = vld [vmem:[#allocation4 + $0xd8] sm:$0xff]
          %v5092 = vld [vmem:[#allocation4 + $0xe0] sm:$0xff]
          %v5093 = vld [vmem:[#allocation4 + $0xe8] sm:$0xff]
          %v5094 = vld [vmem:[#allocation4 + $0xf0] sm:$0xff]
          %v5095 = vld [vmem:[#allocation4 + $0xf8] sm:$0xff]
          %v5096 = vld [vmem:[#allocation4 + $0x100] sm:$0xff]
          %v5097 = vld [vmem:[#allocation4 + $0x108] sm:$0xff]
          %v5098 = vld [vmem:[#allocation4 + $0x110] sm:$0xff]
          %v5099 = vld [vmem:[#allocation4 + $0x118] sm:$0xff]
          %v5100 = vld [vmem:[#allocation4 + $0x120] sm:$0xff]
          %v5101 = vld [vmem:[#allocation4 + $0x128] sm:$0xff]
          %v5102 = vld [vmem:[#allocation4 + $0x130] sm:$0xff]
          %v5103 = vld [vmem:[#allocation4 + $0x138] sm:$0xff]
          %v5104 = vld [vmem:[#allocation4 + $0x140] sm:$0xff]
          %v5105 = vld [vmem:[#allocation4 + $0x148] sm:$0xff]
          %v5106 = vld [vmem:[#allocation4 + $0x150] sm:$0xff]
          %v5107 = vld [vmem:[#allocation4 + $0x158] sm:$0xff]
          %v5108 = vld [vmem:[#allocation4 + $0x160] sm:$0xff]
          %v5109 = vld [vmem:[#allocation4 + $0x168] sm:$0xff]
          %v5110 = vld [vmem:[#allocation4 + $0x170] sm:$0xff]
          %v5111 = vld [vmem:[#allocation4 + $0x178] sm:$0xff]
          %v5112 = vld [vmem:[#allocation4 + $0x180] sm:$0xff]
          %v5113 = vld [vmem:[#allocation4 + $0x188] sm:$0xff]
          %v5114 = vld [vmem:[#allocation4 + $0x190] sm:$0xff]
          %v5115 = vld [vmem:[#allocation4 + $0x198] sm:$0xff]
          %v5116 = vld [vmem:[#allocation4 + $0x1a0] sm:$0xff]
          %v5117 = vld [vmem:[#allocation4 + $0x1a8] sm:$0xff]
          %v5118 = vld [vmem:[#allocation4 + $0x1b0] sm:$0xff]
          %v5119 = vld [vmem:[#allocation4 + $0x1b8] sm:$0xff]
          %v5120 = vld [vmem:[#allocation4 + $0x1c0] sm:$0xff]
          %v5121 = vld [vmem:[#allocation4 + $0x1c8] sm:$0xff]
          %v5122 = vld [vmem:[#allocation4 + $0x1d0] sm:$0xff]
          %v5123 = vld [vmem:[#allocation4 + $0x1d8] sm:$0xff]
          %v5124 = vld [vmem:[#allocation4 + $0x1e0] sm:$0xff]
          %v5125 = vld [vmem:[#allocation4 + $0x1e8] sm:$0xff]
          %v5126 = vld [vmem:[#allocation4 + $0x1f0] sm:$0xff]
          %v5127 = vld [vmem:[#allocation4 + $0x1f8] sm:$0xff]
          %v5128 = vadd.f32 %v5000, %v5064
          %v5129 = vadd.f32 %v5001, %v5065
          %v5130 = vadd.f32 %v5002, %v5066
          %v5131 = vadd.f32 %v5003, %v5067
          %v5132 = vadd.f32 %v5004, %v5068
          %v5133 = vadd.f32 %v5005, %v5069
          %v5134 = vadd.f32 %v5006, %v5070
          %v5135 = vadd.f32 %v5007, %v5071
          %v5136 = vadd.f32 %v5008, %v5072
          %v5137 = vadd.f32 %v5009, %v5073
          %v5138 = vadd.f32 %v5010, %v5074
          %v5139 = vadd.f32 %v5011, %v5075
          %v5140 = vadd.f32 %v5012, %v5076
          %v5141 = vadd.f32 %v5013, %v5077
          %v5142 = vadd.f32 %v5014, %v5078
          %v5143 = vadd.f32 %v5015, %v5079
          %v5144 = vadd.f32 %v5016, %v5080
          %v5145 = vadd.f32 %v5017, %v5081
          %v5146 = vadd.f32 %v5018, %v5082
          %v5147 = vadd.f32 %v5019, %v5083
          %v5148 = vadd.f32 %v5020, %v5084
          %v5149 = vadd.f32 %v5021, %v5085
          %v5150 = vadd.f32 %v5022, %v5086
          %v5151 = vadd.f32 %v5023, %v5087
          %v5152 = vadd.f32 %v5024, %v5088
          %v5153 = vadd.f32 %v5025, %v5089
          %v5154 = vadd.f32 %v5026, %v5090
          %v5155 = vadd.f32 %v5027, %v5091
          %v5156 = vadd.f32 %v5028, %v5092
          %v5157 = vadd.f32 %v5029, %v5093
          %v5158 = vadd.f32 %v5030, %v5094
          %v5159 = vadd.f32 %v5031, %v5095
          %v5160 = vadd.f32 %v5032, %v5096
          %v5161 = vadd.f32 %v5033, %v5097
          %v5162 = vadd.f32 %v5034, %v5098
          %v5163 = vadd.f32 %v5035, %v5099
          %v5164 = vadd.f32 %v5036, %v5100
          %v5165 = vadd.f32 %v5037, %v5101
          %v5166 = vadd.f32 %v5038, %v5102
          %v5167 = vadd.f32 %v5039, %v5103
          %v5168 = vadd.f32 %v5040, %v5104
          %v5169 = vadd.f32 %v5041, %v5105
          %v5170 = vadd.f32 %v5042, %v5106
          %v5171 = vadd.f32 %v5043, %v5107
          %v5172 = vadd.f32 %v5044, %v5108
          %v5173 = vadd.f32 %v5045, %v5109
          %v5174 = vadd.f32 %v5046, %v5110
          %v5175 = vadd.f32 %v5047, %v5111
          %v5176 = vadd.f32 %v5048, %v5112
          %v5177 = vadd.f32 %v5049, %v5113
          %v5178 = vadd.f32 %v5050, %v5114
          %v5179 = vadd.f32 %v5051, %v5115
          %v5180 = vadd.f32 %v5052, %v5116
          %v5181 = vadd.f32 %v5053, %v5117
          %v5182 = vadd.f32 %v5054, %v5118
          %v5183 = vadd.f32 %v5055, %v5119
          %v5184 = vadd.f32 %v5056, %v5120
          %v5185 = vadd.f32 %v5057, %v5121
          %v5186 = vadd.f32 %v5058, %v5122
          %v5187 = vadd.f32 %v5059, %v5123
          %v5188 = vadd.f32 %v5060, %v5124
          %v5189 = vadd.f32 %v5061, %v5125
          %v5190 = vadd.f32 %v5062, %v5126
          %v5191 = vadd.f32 %v5063, %v5127
          %5192 = vst [vmem:[#allocation4] sm:$0xff] %v5128
          %5193 = vst [vmem:[#allocation4 + $0x8] sm:$0xff] %v5129
          %5194 = vst [vmem:[#allocation4 + $0x10] sm:$0xff] %v5130
          %5195 = vst [vmem:[#allocation4 + $0x18] sm:$0xff] %v5131
          %5196 = vst [vmem:[#allocation4 + $0x20] sm:$0xff] %v5132
          %5197 = vst [vmem:[#allocation4 + $0x28] sm:$0xff] %v5133
          %5198 = vst [vmem:[#allocation4 + $0x30] sm:$0xff] %v5134
          %5199 = vst [vmem:[#allocation4 + $0x38] sm:$0xff] %v5135
          %5200 = vst [vmem:[#allocation4 + $0x40] sm:$0xff] %v5136
          %5201 = vst [vmem:[#allocation4 + $0x48] sm:$0xff] %v5137
          %5202 = vst [vmem:[#allocation4 + $0x50] sm:$0xff] %v5138
          %5203 = vst [vmem:[#allocation4 + $0x58] sm:$0xff] %v5139
          %5204 = vst [vmem:[#allocation4 + $0x60] sm:$0xff] %v5140
          %5205 = vst [vmem:[#allocation4 + $0x68] sm:$0xff] %v5141
          %5206 = vst [vmem:[#allocation4 + $0x70] sm:$0xff] %v5142
          %5207 = vst [vmem:[#allocation4 + $0x78] sm:$0xff] %v5143
          %5208 = vst [vmem:[#allocation4 + $0x80] sm:$0xff] %v5144
          %5209 = vst [vmem:[#allocation4 + $0x88] sm:$0xff] %v5145
          %5210 = vst [vmem:[#allocation4 + $0x90] sm:$0xff] %v5146
          %5211 = vst [vmem:[#allocation4 + $0x98] sm:$0xff] %v5147
          %5212 = vst [vmem:[#allocation4 + $0xa0] sm:$0xff] %v5148
          %5213 = vst [vmem:[#allocation4 + $0xa8] sm:$0xff] %v5149
          %5214 = vst [vmem:[#allocation4 + $0xb0] sm:$0xff] %v5150
          %5215 = vst [vmem:[#allocation4 + $0xb8] sm:$0xff] %v5151
          %5216 = vst [vmem:[#allocation4 + $0xc0] sm:$0xff] %v5152
          %5217 = vst [vmem:[#allocation4 + $0xc8] sm:$0xff] %v5153
          %5218 = vst [vmem:[#allocation4 + $0xd0] sm:$0xff] %v5154
          %5219 = vst [vmem:[#allocation4 + $0xd8] sm:$0xff] %v5155
          %5220 = vst [vmem:[#allocation4 + $0xe0] sm:$0xff] %v5156
          %5221 = vst [vmem:[#allocation4 + $0xe8] sm:$0xff] %v5157
          %5222 = vst [vmem:[#allocation4 + $0xf0] sm:$0xff] %v5158
          %5223 = vst [vmem:[#allocation4 + $0xf8] sm:$0xff] %v5159
          %5224 = vst [vmem:[#allocation4 + $0x100] sm:$0xff] %v5160
          %5225 = vst [vmem:[#allocation4 + $0x108] sm:$0xff] %v5161
          %5226 = vst [vmem:[#allocation4 + $0x110] sm:$0xff] %v5162
          %5227 = vst [vmem:[#allocation4 + $0x118] sm:$0xff] %v5163
          %5228 = vst [vmem:[#allocation4 + $0x120] sm:$0xff] %v5164
          %5229 = vst [vmem:[#allocation4 + $0x128] sm:$0xff] %v5165
          %5230 = vst [vmem:[#allocation4 + $0x130] sm:$0xff] %v5166
          %5231 = vst [vmem:[#allocation4 + $0x138] sm:$0xff] %v5167
          %5232 = vst [vmem:[#allocation4 + $0x140] sm:$0xff] %v5168
          %5233 = vst [vmem:[#allocation4 + $0x148] sm:$0xff] %v5169
          %5234 = vst [vmem:[#allocation4 + $0x150] sm:$0xff] %v5170
          %5235 = vst [vmem:[#allocation4 + $0x158] sm:$0xff] %v5171
          %5236 = vst [vmem:[#allocation4 + $0x160] sm:$0xff] %v5172
          %5237 = vst [vmem:[#allocation4 + $0x168] sm:$0xff] %v5173
          %5238 = vst [vmem:[#allocation4 + $0x170] sm:$0xff] %v5174
          %5239 = vst [vmem:[#allocation4 + $0x178] sm:$0xff] %v5175
          %5240 = vst [vmem:[#allocation4 + $0x180] sm:$0xff] %v5176
          %5241 = vst [vmem:[#allocation4 + $0x188] sm:$0xff] %v5177
          %5242 = vst [vmem:[#allocation4 + $0x190] sm:$0xff] %v5178
          %5243 = vst [vmem:[#allocation4 + $0x198] sm:$0xff] %v5179
          %5244 = vst [vmem:[#allocation4 + $0x1a0] sm:$0xff] %v5180
          %5245 = vst [vmem:[#allocation4 + $0x1a8] sm:$0xff] %v5181
          %5246 = vst [vmem:[#allocation4 + $0x1b0] sm:$0xff] %v5182
          %5247 = vst [vmem:[#allocation4 + $0x1b8] sm:$0xff] %v5183
          %5248 = vst [vmem:[#allocation4 + $0x1c0] sm:$0xff] %v5184
          %5249 = vst [vmem:[#allocation4 + $0x1c8] sm:$0xff] %v5185
          %5250 = vst [vmem:[#allocation4 + $0x1d0] sm:$0xff] %v5186
          %5251 = vst [vmem:[#allocation4 + $0x1d8] sm:$0xff] %v5187
          %5252 = vst [vmem:[#allocation4 + $0x1e0] sm:$0xff] %v5188
          %5253 = vst [vmem:[#allocation4 + $0x1e8] sm:$0xff] %v5189
          %5254 = vst [vmem:[#allocation4 + $0x1f0] sm:$0xff] %v5190
          %5255 = vst [vmem:[#allocation4 + $0x1f8] sm:$0xff] %v5191
        $region141: #{residual_group_forward.1} parent=79 // loop_footer
          %s908 = sadd.s32 1, %s904
        $region142: #{residual_group_forward.1} parent=79 // loop_footer_branch
          %903 = sbr.rel target = $region138
        $region143: #{residual_group_forward.1} parent=79 // loop_exit
          _
        %v5256 = vld [vmem:[#allocation4] sm:$0xff]
        %v5257 = vld [vmem:[#allocation4 + $0x8] sm:$0xff]
        %v5258 = vld [vmem:[#allocation4 + $0x10] sm:$0xff]
        %v5259 = vld [vmem:[#allocation4 + $0x18] sm:$0xff]
        %v5260 = vld [vmem:[#allocation4 + $0x20] sm:$0xff]
        %v5261 = vld [vmem:[#allocation4 + $0x28] sm:$0xff]
        %v5262 = vld [vmem:[#allocation4 + $0x30] sm:$0xff]
        %v5263 = vld [vmem:[#allocation4 + $0x38] sm:$0xff]
        %v5264 = vld [vmem:[#allocation4 + $0x40] sm:$0xff]
        %v5265 = vld [vmem:[#allocation4 + $0x48] sm:$0xff]
        %v5266 = vld [vmem:[#allocation4 + $0x50] sm:$0xff]
        %v5267 = vld [vmem:[#allocation4 + $0x58] sm:$0xff]
        %v5268 = vld [vmem:[#allocation4 + $0x60] sm:$0xff]
        %v5269 = vld [vmem:[#allocation4 + $0x68] sm:$0xff]
        %v5270 = vld [vmem:[#allocation4 + $0x70] sm:$0xff]
        %v5271 = vld [vmem:[#allocation4 + $0x78] sm:$0xff]
        %v5272 = vld [vmem:[#allocation4 + $0x80] sm:$0xff]
        %v5273 = vld [vmem:[#allocation4 + $0x88] sm:$0xff]
        %v5274 = vld [vmem:[#allocation4 + $0x90] sm:$0xff]
        %v5275 = vld [vmem:[#allocation4 + $0x98] sm:$0xff]
        %v5276 = vld [vmem:[#allocation4 + $0xa0] sm:$0xff]
        %v5277 = vld [vmem:[#allocation4 + $0xa8] sm:$0xff]
        %v5278 = vld [vmem:[#allocation4 + $0xb0] sm:$0xff]
        %v5279 = vld [vmem:[#allocation4 + $0xb8] sm:$0xff]
        %v5280 = vld [vmem:[#allocation4 + $0xc0] sm:$0xff]
        %v5281 = vld [vmem:[#allocation4 + $0xc8] sm:$0xff]
        %v5282 = vld [vmem:[#allocation4 + $0xd0] sm:$0xff]
        %v5283 = vld [vmem:[#allocation4 + $0xd8] sm:$0xff]
        %v5284 = vld [vmem:[#allocation4 + $0xe0] sm:$0xff]
        %v5285 = vld [vmem:[#allocation4 + $0xe8] sm:$0xff]
        %v5286 = vld [vmem:[#allocation4 + $0xf0] sm:$0xff]
        %v5287 = vld [vmem:[#allocation4 + $0xf8] sm:$0xff]
        %v5288 = vld [vmem:[#allocation4 + $0x100] sm:$0xff]
        %v5289 = vld [vmem:[#allocation4 + $0x108] sm:$0xff]
        %v5290 = vld [vmem:[#allocation4 + $0x110] sm:$0xff]
        %v5291 = vld [vmem:[#allocation4 + $0x118] sm:$0xff]
        %v5292 = vld [vmem:[#allocation4 + $0x120] sm:$0xff]
        %v5293 = vld [vmem:[#allocation4 + $0x128] sm:$0xff]
        %v5294 = vld [vmem:[#allocation4 + $0x130] sm:$0xff]
        %v5295 = vld [vmem:[#allocation4 + $0x138] sm:$0xff]
        %v5296 = vld [vmem:[#allocation4 + $0x140] sm:$0xff]
        %v5297 = vld [vmem:[#allocation4 + $0x148] sm:$0xff]
        %v5298 = vld [vmem:[#allocation4 + $0x150] sm:$0xff]
        %v5299 = vld [vmem:[#allocation4 + $0x158] sm:$0xff]
        %v5300 = vld [vmem:[#allocation4 + $0x160] sm:$0xff]
        %v5301 = vld [vmem:[#allocation4 + $0x168] sm:$0xff]
        %v5302 = vld [vmem:[#allocation4 + $0x170] sm:$0xff]
        %v5303 = vld [vmem:[#allocation4 + $0x178] sm:$0xff]
        %v5304 = vld [vmem:[#allocation4 + $0x180] sm:$0xff]
        %v5305 = vld [vmem:[#allocation4 + $0x188] sm:$0xff]
        %v5306 = vld [vmem:[#allocation4 + $0x190] sm:$0xff]
        %v5307 = vld [vmem:[#allocation4 + $0x198] sm:$0xff]
        %v5308 = vld [vmem:[#allocation4 + $0x1a0] sm:$0xff]
        %v5309 = vld [vmem:[#allocation4 + $0x1a8] sm:$0xff]
        %v5310 = vld [vmem:[#allocation4 + $0x1b0] sm:$0xff]
        %v5311 = vld [vmem:[#allocation4 + $0x1b8] sm:$0xff]
        %v5312 = vld [vmem:[#allocation4 + $0x1c0] sm:$0xff]
        %v5313 = vld [vmem:[#allocation4 + $0x1c8] sm:$0xff]
        %v5314 = vld [vmem:[#allocation4 + $0x1d0] sm:$0xff]
        %v5315 = vld [vmem:[#allocation4 + $0x1d8] sm:$0xff]
        %v5316 = vld [vmem:[#allocation4 + $0x1e0] sm:$0xff]
        %v5317 = vld [vmem:[#allocation4 + $0x1e8] sm:$0xff]
        %v5318 = vld [vmem:[#allocation4 + $0x1f0] sm:$0xff]
        %v5319 = vld [vmem:[#allocation4 + $0x1f8] sm:$0xff]
        %s5320 = scalar_lea.vmem [#allocation2], 24
        %5321 = vst [vmem:[%s5320 + $0x1] sm:$0xff] %v5256
        %5322 = vst [vmem:[%s5320 + $0x9] sm:$0xff] %v5257
        %5323 = vst [vmem:[%s5320 + $0x19] sm:$0xff] %v5258
        %5324 = vst [vmem:[%s5320 + $0x21] sm:$0xff] %v5259
        %5325 = vst [vmem:[%s5320 + $0x31] sm:$0xff] %v5260
        %5326 = vst [vmem:[%s5320 + $0x39] sm:$0xff] %v5261
        %5327 = vst [vmem:[%s5320 + $0x49] sm:$0xff] %v5262
        %5328 = vst [vmem:[%s5320 + $0x51] sm:$0xff] %v5263
        %5329 = vst [vmem:[%s5320 + $0x61] sm:$0xff] %v5264
        %5330 = vst [vmem:[%s5320 + $0x69] sm:$0xff] %v5265
        %5331 = vst [vmem:[%s5320 + $0x79] sm:$0xff] %v5266
        %5332 = vst [vmem:[%s5320 + $0x81] sm:$0xff] %v5267
        %5333 = vst [vmem:[%s5320 + $0x91] sm:$0xff] %v5268
        %5334 = vst [vmem:[%s5320 + $0x99] sm:$0xff] %v5269
        %5335 = vst [vmem:[%s5320 + $0xa9] sm:$0xff] %v5270
        %5336 = vst [vmem:[%s5320 + $0xb1] sm:$0xff] %v5271
        %5337 = vst [vmem:[%s5320 + $0xc1] sm:$0xff] %v5272
        %5338 = vst [vmem:[%s5320 + $0xc9] sm:$0xff] %v5273
        %5339 = vst [vmem:[%s5320 + $0xd9] sm:$0xff] %v5274
        %5340 = vst [vmem:[%s5320 + $0xe1] sm:$0xff] %v5275
        %5341 = vst [vmem:[%s5320 + $0xf1] sm:$0xff] %v5276
        %5342 = vst [vmem:[%s5320 + $0xf9] sm:$0xff] %v5277
        %5343 = vst [vmem:[%s5320 + $0x109] sm:$0xff] %v5278
        %5344 = vst [vmem:[%s5320 + $0x111] sm:$0xff] %v5279
        %5345 = vst [vmem:[%s5320 + $0x121] sm:$0xff] %v5280
        %5346 = vst [vmem:[%s5320 + $0x129] sm:$0xff] %v5281
        %5347 = vst [vmem:[%s5320 + $0x139] sm:$0xff] %v5282
        %5348 = vst [vmem:[%s5320 + $0x141] sm:$0xff] %v5283
        %5349 = vst [vmem:[%s5320 + $0x151] sm:$0xff] %v5284
        %5350 = vst [vmem:[%s5320 + $0x159] sm:$0xff] %v5285
        %5351 = vst [vmem:[%s5320 + $0x169] sm:$0xff] %v5286
        %5352 = vst [vmem:[%s5320 + $0x171] sm:$0xff] %v5287
        %5353 = vst [vmem:[%s5320 + $0x181] sm:$0xff] %v5288
        %5354 = vst [vmem:[%s5320 + $0x189] sm:$0xff] %v5289
        %5355 = vst [vmem:[%s5320 + $0x199] sm:$0xff] %v5290
        %5356 = vst [vmem:[%s5320 + $0x1a1] sm:$0xff] %v5291
        %5357 = vst [vmem:[%s5320 + $0x1b1] sm:$0xff] %v5292
        %5358 = vst [vmem:[%s5320 + $0x1b9] sm:$0xff] %v5293
        %5359 = vst [vmem:[%s5320 + $0x1c9] sm:$0xff] %v5294
        %5360 = vst [vmem:[%s5320 + $0x1d1] sm:$0xff] %v5295
        %5361 = vst [vmem:[%s5320 + $0x1e1] sm:$0xff] %v5296
        %5362 = vst [vmem:[%s5320 + $0x1e9] sm:$0xff] %v5297
        %5363 = vst [vmem:[%s5320 + $0x1f9] sm:$0xff] %v5298
        %5364 = vst [vmem:[%s5320 + $0x201] sm:$0xff] %v5299
        %5365 = vst [vmem:[%s5320 + $0x211] sm:$0xff] %v5300
        %5366 = vst [vmem:[%s5320 + $0x219] sm:$0xff] %v5301
        %5367 = vst [vmem:[%s5320 + $0x229] sm:$0xff] %v5302
        %5368 = vst [vmem:[%s5320 + $0x231] sm:$0xff] %v5303
        %5369 = vst [vmem:[%s5320 + $0x241] sm:$0xff] %v5304
        %5370 = vst [vmem:[%s5320 + $0x249] sm:$0xff] %v5305
        %5371 = vst [vmem:[%s5320 + $0x259] sm:$0xff] %v5306
        %5372 = vst [vmem:[%s5320 + $0x261] sm:$0xff] %v5307
        %5373 = vst [vmem:[%s5320 + $0x271] sm:$0xff] %v5308
        %5374 = vst [vmem:[%s5320 + $0x279] sm:$0xff] %v5309
        %5375 = vst [vmem:[%s5320 + $0x289] sm:$0xff] %v5310
        %5376 = vst [vmem:[%s5320 + $0x291] sm:$0xff] %v5311
        %5377 = vst [vmem:[%s5320 + $0x2a1] sm:$0xff] %v5312
        %5378 = vst [vmem:[%s5320 + $0x2a9] sm:$0xff] %v5313
        %5379 = vst [vmem:[%s5320 + $0x2b9] sm:$0xff] %v5314
        %5380 = vst [vmem:[%s5320 + $0x2c1] sm:$0xff] %v5315
        %5381 = vst [vmem:[%s5320 + $0x2d1] sm:$0xff] %v5316
        %5382 = vst [vmem:[%s5320 + $0x2d9] sm:$0xff] %v5317
        %5383 = vst [vmem:[%s5320 + $0x2e9] sm:$0xff] %v5318
        %5384 = vst [vmem:[%s5320 + $0x2f1] sm:$0xff] %v5319
        %v5385 = vld [vmem:[#allocation25] sm:$0xff]
        %v5386 = vld [vmem:[#allocation25 + $0x8] sm:$0xff]
        %v5387 = vld [vmem:[#allocation25 + $0x10] sm:$0xff]
        %v5388 = vld [vmem:[#allocation25 + $0x18] sm:$0xff]
        %v5389 = vld [vmem:[#allocation25 + $0x20] sm:$0xff]
        %v5390 = vld [vmem:[#allocation25 + $0x28] sm:$0xff]
        %v5391 = vld [vmem:[#allocation25 + $0x30] sm:$0xff]
        %v5392 = vld [vmem:[#allocation25 + $0x38] sm:$0xff]
        %v5393 = vld [vmem:[#allocation25 + $0x40] sm:$0xff]
        %v5394 = vld [vmem:[#allocation25 + $0x48] sm:$0xff]
        %v5395 = vld [vmem:[#allocation25 + $0x50] sm:$0xff]
        %v5396 = vld [vmem:[#allocation25 + $0x58] sm:$0xff]
        %v5397 = vld [vmem:[#allocation25 + $0x60] sm:$0xff]
        %v5398 = vld [vmem:[#allocation25 + $0x68] sm:$0xff]
        %v5399 = vld [vmem:[#allocation25 + $0x70] sm:$0xff]
        %v5400 = vld [vmem:[#allocation25 + $0x78] sm:$0xff]
        %v5401 = vld [vmem:[#allocation25 + $0x80] sm:$0xff]
        %v5402 = vld [vmem:[#allocation25 + $0x88] sm:$0xff]
        %v5403 = vld [vmem:[#allocation25 + $0x90] sm:$0xff]
        %v5404 = vld [vmem:[#allocation25 + $0x98] sm:$0xff]
        %v5405 = vld [vmem:[#allocation25 + $0xa0] sm:$0xff]
        %v5406 = vld [vmem:[#allocation25 + $0xa8] sm:$0xff]
        %v5407 = vld [vmem:[#allocation25 + $0xb0] sm:$0xff]
        %v5408 = vld [vmem:[#allocation25 + $0xb8] sm:$0xff]
        %v5409 = vld [vmem:[#allocation25 + $0xc0] sm:$0xff]
        %v5410 = vld [vmem:[#allocation25 + $0xc8] sm:$0xff]
        %v5411 = vld [vmem:[#allocation25 + $0xd0] sm:$0xff]
        %v5412 = vld [vmem:[#allocation25 + $0xd8] sm:$0xff]
        %v5413 = vld [vmem:[#allocation25 + $0xe0] sm:$0xff]
        %v5414 = vld [vmem:[#allocation25 + $0xe8] sm:$0xff]
        %v5415 = vld [vmem:[#allocation25 + $0xf0] sm:$0xff]
        %v5416 = vld [vmem:[#allocation25 + $0xf8] sm:$0xff]
        %v5417 = vld [vmem:[#allocation25 + $0x100] sm:$0xff]
        %v5418 = vld [vmem:[#allocation25 + $0x108] sm:$0xff]
        %v5419 = vld [vmem:[#allocation25 + $0x110] sm:$0xff]
        %v5420 = vld [vmem:[#allocation25 + $0x118] sm:$0xff]
        %v5421 = vld [vmem:[#allocation25 + $0x120] sm:$0xff]
        %v5422 = vld [vmem:[#allocation25 + $0x128] sm:$0xff]
        %v5423 = vld [vmem:[#allocation25 + $0x130] sm:$0xff]
        %v5424 = vld [vmem:[#allocation25 + $0x138] sm:$0xff]
        %v5425 = vld [vmem:[#allocation25 + $0x140] sm:$0xff]
        %v5426 = vld [vmem:[#allocation25 + $0x148] sm:$0xff]
        %v5427 = vld [vmem:[#allocation25 + $0x150] sm:$0xff]
        %v5428 = vld [vmem:[#allocation25 + $0x158] sm:$0xff]
        %v5429 = vld [vmem:[#allocation25 + $0x160] sm:$0xff]
        %v5430 = vld [vmem:[#allocation25 + $0x168] sm:$0xff]
        %v5431 = vld [vmem:[#allocation25 + $0x170] sm:$0xff]
        %v5432 = vld [vmem:[#allocation25 + $0x178] sm:$0xff]
        %v5433 = vld [vmem:[#allocation25 + $0x180] sm:$0xff]
        %v5434 = vld [vmem:[#allocation25 + $0x188] sm:$0xff]
        %v5435 = vld [vmem:[#allocation25 + $0x190] sm:$0xff]
        %v5436 = vld [vmem:[#allocation25 + $0x198] sm:$0xff]
        %v5437 = vld [vmem:[#allocation25 + $0x1a0] sm:$0xff]
        %v5438 = vld [vmem:[#allocation25 + $0x1a8] sm:$0xff]
        %v5439 = vld [vmem:[#allocation25 + $0x1b0] sm:$0xff]
        %v5440 = vld [vmem:[#allocation25 + $0x1b8] sm:$0xff]
        %v5441 = vld [vmem:[#allocation25 + $0x1c0] sm:$0xff]
        %v5442 = vld [vmem:[#allocation25 + $0x1c8] sm:$0xff]
        %v5443 = vld [vmem:[#allocation25 + $0x1d0] sm:$0xff]
        %v5444 = vld [vmem:[#allocation25 + $0x1d8] sm:$0xff]
        %v5445 = vld [vmem:[#allocation25 + $0x1e0] sm:$0xff]
        %v5446 = vld [vmem:[#allocation25 + $0x1e8] sm:$0xff]
        %v5447 = vld [vmem:[#allocation25 + $0x1f0] sm:$0xff]
        %v5448 = vld [vmem:[#allocation25 + $0x1f8] sm:$0xff]
        %v5449 = vld [vmem:[#allocation25 + $0x200] sm:$0xff]
        %v5450 = vld [vmem:[#allocation25 + $0x208] sm:$0xff]
        %v5451 = vld [vmem:[#allocation25 + $0x210] sm:$0xff]
        %v5452 = vld [vmem:[#allocation25 + $0x218] sm:$0xff]
        %v5453 = vld [vmem:[#allocation25 + $0x220] sm:$0xff]
        %v5454 = vld [vmem:[#allocation25 + $0x228] sm:$0xff]
        %v5455 = vld [vmem:[#allocation25 + $0x230] sm:$0xff]
        %v5456 = vld [vmem:[#allocation25 + $0x238] sm:$0xff]
        %v5457 = vld [vmem:[#allocation25 + $0x240] sm:$0xff]
        %v5458 = vld [vmem:[#allocation25 + $0x248] sm:$0xff]
        %v5459 = vld [vmem:[#allocation25 + $0x250] sm:$0xff]
        %v5460 = vld [vmem:[#allocation25 + $0x258] sm:$0xff]
        %v5461 = vld [vmem:[#allocation25 + $0x260] sm:$0xff]
        %v5462 = vld [vmem:[#allocation25 + $0x268] sm:$0xff]
        %v5463 = vld [vmem:[#allocation25 + $0x270] sm:$0xff]
        %v5464 = vld [vmem:[#allocation25 + $0x278] sm:$0xff]
        %v5465 = vld [vmem:[#allocation25 + $0x280] sm:$0xff]
        %v5466 = vld [vmem:[#allocation25 + $0x288] sm:$0xff]
        %v5467 = vld [vmem:[#allocation25 + $0x290] sm:$0xff]
        %v5468 = vld [vmem:[#allocation25 + $0x298] sm:$0xff]
        %v5469 = vld [vmem:[#allocation25 + $0x2a0] sm:$0xff]
        %v5470 = vld [vmem:[#allocation25 + $0x2a8] sm:$0xff]
        %v5471 = vld [vmem:[#allocation25 + $0x2b0] sm:$0xff]
        %v5472 = vld [vmem:[#allocation25 + $0x2b8] sm:$0xff]
        %v5473 = vld [vmem:[#allocation25 + $0x2c0] sm:$0xff]
        %v5474 = vld [vmem:[#allocation25 + $0x2c8] sm:$0xff]
        %v5475 = vld [vmem:[#allocation25 + $0x2d0] sm:$0xff]
        %v5476 = vld [vmem:[#allocation25 + $0x2d8] sm:$0xff]
        %v5477 = vld [vmem:[#allocation25 + $0x2e0] sm:$0xff]
        %v5478 = vld [vmem:[#allocation25 + $0x2e8] sm:$0xff]
        %v5479 = vld [vmem:[#allocation25 + $0x2f0] sm:$0xff]
        %v5480 = vld [vmem:[#allocation25 + $0x2f8] sm:$0xff]
        %v5481 = vld [vmem:[#allocation25 + $0x300] sm:$0xff]
        %v5482 = vld [vmem:[#allocation25 + $0x308] sm:$0xff]
        %v5483 = vld [vmem:[#allocation25 + $0x310] sm:$0xff]
        %v5484 = vld [vmem:[#allocation25 + $0x318] sm:$0xff]
        %v5485 = vld [vmem:[#allocation25 + $0x320] sm:$0xff]
        %v5486 = vld [vmem:[#allocation25 + $0x328] sm:$0xff]
        %v5487 = vld [vmem:[#allocation25 + $0x330] sm:$0xff]
        %v5488 = vld [vmem:[#allocation25 + $0x338] sm:$0xff]
        %v5489 = vld [vmem:[#allocation25 + $0x340] sm:$0xff]
        %v5490 = vld [vmem:[#allocation25 + $0x348] sm:$0xff]
        %v5491 = vld [vmem:[#allocation25 + $0x350] sm:$0xff]
        %v5492 = vld [vmem:[#allocation25 + $0x358] sm:$0xff]
        %v5493 = vld [vmem:[#allocation25 + $0x360] sm:$0xff]
        %v5494 = vld [vmem:[#allocation25 + $0x368] sm:$0xff]
        %v5495 = vld [vmem:[#allocation25 + $0x370] sm:$0xff]
        %v5496 = vld [vmem:[#allocation25 + $0x378] sm:$0xff]
        %v5497 = vld [vmem:[#allocation25 + $0x380] sm:$0xff]
        %v5498 = vld [vmem:[#allocation25 + $0x388] sm:$0xff]
        %v5499 = vld [vmem:[#allocation25 + $0x390] sm:$0xff]
        %v5500 = vld [vmem:[#allocation25 + $0x398] sm:$0xff]
        %v5501 = vld [vmem:[#allocation25 + $0x3a0] sm:$0xff]
        %v5502 = vld [vmem:[#allocation25 + $0x3a8] sm:$0xff]
        %v5503 = vld [vmem:[#allocation25 + $0x3b0] sm:$0xff]
        %v5504 = vld [vmem:[#allocation25 + $0x3b8] sm:$0xff]
        %v5505 = vld [vmem:[#allocation25 + $0x3c0] sm:$0xff]
        %v5506 = vld [vmem:[#allocation25 + $0x3c8] sm:$0xff]
        %v5507 = vld [vmem:[#allocation25 + $0x3d0] sm:$0xff]
        %v5508 = vld [vmem:[#allocation25 + $0x3d8] sm:$0xff]
        %v5509 = vld [vmem:[#allocation25 + $0x3e0] sm:$0xff]
        %v5510 = vld [vmem:[#allocation25 + $0x3e8] sm:$0xff]
        %v5511 = vld [vmem:[#allocation25 + $0x3f0] sm:$0xff]
        %v5512 = vld [vmem:[#allocation25 + $0x3f8] sm:$0xff]
        %v5513 = vld [vmem:[#allocation25 + $0x400] sm:$0xff]
        %v5514 = vld [vmem:[#allocation25 + $0x408] sm:$0xff]
        %v5515 = vld [vmem:[#allocation25 + $0x410] sm:$0xff]
        %v5516 = vld [vmem:[#allocation25 + $0x418] sm:$0xff]
        %v5517 = vld [vmem:[#allocation25 + $0x420] sm:$0xff]
        %v5518 = vld [vmem:[#allocation25 + $0x428] sm:$0xff]
        %v5519 = vld [vmem:[#allocation25 + $0x430] sm:$0xff]
        %v5520 = vld [vmem:[#allocation25 + $0x438] sm:$0xff]
        %v5521 = vld [vmem:[#allocation25 + $0x440] sm:$0xff]
        %v5522 = vld [vmem:[#allocation25 + $0x448] sm:$0xff]
        %v5523 = vld [vmem:[#allocation25 + $0x450] sm:$0xff]
        %v5524 = vld [vmem:[#allocation25 + $0x458] sm:$0xff]
        %v5525 = vld [vmem:[#allocation25 + $0x460] sm:$0xff]
        %v5526 = vld [vmem:[#allocation25 + $0x468] sm:$0xff]
        %v5527 = vld [vmem:[#allocation25 + $0x470] sm:$0xff]
        %v5528 = vld [vmem:[#allocation25 + $0x478] sm:$0xff]
        %v5529 = vld [vmem:[#allocation26] sm:$0x1]
        loop: start=0, step=1, limit=2
        $region158: #{residual_group_forward.1} parent=79 // loop_pre_header
          _
        $region159: #{residual_group_forward.1} parent=79 // loop_header
          %s5531 = sphi 0, %s5535
          %p5532 = scmp.ge.s32.totalorder %s5531, 2
        $region160: #{residual_group_forward.1} parent=79 // loop_header_branch
          %5534 = sbr.rel (%p5532) target = $region164
        $region161: #{residual_group_forward.1} parent=79 // loop_body
          %s5536 = smul.u32 %s5531, 16
          %s5537 = smul.u32 %s5536, 24
          %s5538 = scalar_lea.vmem [#allocation2], %s5537
          %v5539 = vld [vmem:[%s5538] sm:$0xff]
          %v5540 = vld [vmem:[%s5538 + $0x8] sm:$0xff]
          %v5541 = vld [vmem:[%s5538 + $0x10] sm:$0xff]
          %v5542 = vld [vmem:[%s5538 + $0x18] sm:$0xff]
          %v5543 = vld [vmem:[%s5538 + $0x20] sm:$0xff]
          %v5544 = vld [vmem:[%s5538 + $0x28] sm:$0xff]
          %v5545 = vld [vmem:[%s5538 + $0x30] sm:$0xff]
          %v5546 = vld [vmem:[%s5538 + $0x38] sm:$0xff]
          %v5547 = vld [vmem:[%s5538 + $0x40] sm:$0xff]
          %v5548 = vld [vmem:[%s5538 + $0x48] sm:$0xff]
          %v5549 = vld [vmem:[%s5538 + $0x50] sm:$0xff]
          %v5550 = vld [vmem:[%s5538 + $0x58] sm:$0xff]
          %v5551 = vld [vmem:[%s5538 + $0x60] sm:$0xff]
          %v5552 = vld [vmem:[%s5538 + $0x68] sm:$0xff]
          %v5553 = vld [vmem:[%s5538 + $0x70] sm:$0xff]
          %v5554 = vld [vmem:[%s5538 + $0x78] sm:$0xff]
          %v5555 = vld [vmem:[%s5538 + $0x80] sm:$0xff]
          %v5556 = vld [vmem:[%s5538 + $0x88] sm:$0xff]
          %v5557 = vld [vmem:[%s5538 + $0x90] sm:$0xff]
          %v5558 = vld [vmem:[%s5538 + $0x98] sm:$0xff]
          %v5559 = vld [vmem:[%s5538 + $0xa0] sm:$0xff]
          %v5560 = vld [vmem:[%s5538 + $0xa8] sm:$0xff]
          %v5561 = vld [vmem:[%s5538 + $0xb0] sm:$0xff]
          %v5562 = vld [vmem:[%s5538 + $0xb8] sm:$0xff]
          %v5563 = vld [vmem:[%s5538 + $0xc0] sm:$0xff]
          %v5564 = vld [vmem:[%s5538 + $0xc8] sm:$0xff]
          %v5565 = vld [vmem:[%s5538 + $0xd0] sm:$0xff]
          %v5566 = vld [vmem:[%s5538 + $0xd8] sm:$0xff]
          %v5567 = vld [vmem:[%s5538 + $0xe0] sm:$0xff]
          %v5568 = vld [vmem:[%s5538 + $0xe8] sm:$0xff]
          %v5569 = vld [vmem:[%s5538 + $0xf0] sm:$0xff]
          %v5570 = vld [vmem:[%s5538 + $0xf8] sm:$0xff]
          %v5571 = vld [vmem:[%s5538 + $0x100] sm:$0xff]
          %v5572 = vld [vmem:[%s5538 + $0x108] sm:$0xff]
          %v5573 = vld [vmem:[%s5538 + $0x110] sm:$0xff]
          %v5574 = vld [vmem:[%s5538 + $0x118] sm:$0xff]
          %v5575 = vld [vmem:[%s5538 + $0x120] sm:$0xff]
          %v5576 = vld [vmem:[%s5538 + $0x128] sm:$0xff]
          %v5577 = vld [vmem:[%s5538 + $0x130] sm:$0xff]
          %v5578 = vld [vmem:[%s5538 + $0x138] sm:$0xff]
          %v5579 = vld [vmem:[%s5538 + $0x140] sm:$0xff]
          %v5580 = vld [vmem:[%s5538 + $0x148] sm:$0xff]
          %v5581 = vld [vmem:[%s5538 + $0x150] sm:$0xff]
          %v5582 = vld [vmem:[%s5538 + $0x158] sm:$0xff]
          %v5583 = vld [vmem:[%s5538 + $0x160] sm:$0xff]
          %v5584 = vld [vmem:[%s5538 + $0x168] sm:$0xff]
          %v5585 = vld [vmem:[%s5538 + $0x170] sm:$0xff]
          %v5586 = vld [vmem:[%s5538 + $0x178] sm:$0xff]
          %v5587 = vld [vmem:[%s5538 + $0x180] sm:$0xff]
          %v5588 = vld [vmem:[%s5538 + $0x188] sm:$0xff]
          %v5589 = vld [vmem:[%s5538 + $0x190] sm:$0xff]
          %v5590 = vld [vmem:[%s5538 + $0x198] sm:$0xff]
          %v5591 = vld [vmem:[%s5538 + $0x1a0] sm:$0xff]
          %v5592 = vld [vmem:[%s5538 + $0x1a8] sm:$0xff]
          %vm5641 = vcmask 1046528
          %v5642 = vrot.slane %v5539, 1
          %v5643 = vrot.slane %v5540, 1
          %v5644 = vsel %vm5641, %v5642, %v5643
          %v5645 = vrot.slane %v5541, 1
          %v5646 = vsel %vm5641, %v5643, %v5645
          %v5647 = vrot.slane %v5542, 1
          %v5648 = vrot.slane %v5543, 1
          %v5649 = vsel %vm5641, %v5647, %v5648
          %v5650 = vrot.slane %v5544, 1
          %v5651 = vsel %vm5641, %v5648, %v5650
          %v5652 = vrot.slane %v5545, 1
          %v5653 = vrot.slane %v5546, 1
          %v5654 = vsel %vm5641, %v5652, %v5653
          %v5655 = vrot.slane %v5547, 1
          %v5656 = vsel %vm5641, %v5653, %v5655
          %v5657 = vrot.slane %v5548, 1
          %v5658 = vrot.slane %v5549, 1
          %v5659 = vsel %vm5641, %v5657, %v5658
          %v5660 = vrot.slane %v5550, 1
          %v5661 = vsel %vm5641, %v5658, %v5660
          %v5662 = vrot.slane %v5551, 1
          %v5663 = vrot.slane %v5552, 1
          %v5664 = vsel %vm5641, %v5662, %v5663
          %v5665 = vrot.slane %v5553, 1
          %v5666 = vsel %vm5641, %v5663, %v5665
          %v5667 = vrot.slane %v5554, 1
          %v5668 = vrot.slane %v5555, 1
          %v5669 = vsel %vm5641, %v5667, %v5668
          %v5670 = vrot.slane %v5556, 1
          %v5671 = vsel %vm5641, %v5668, %v5670
          %v5672 = vrot.slane %v5557, 1
          %v5673 = vrot.slane %v5558, 1
          %v5674 = vsel %vm5641, %v5672, %v5673
          %v5675 = vrot.slane %v5559, 1
          %v5676 = vsel %vm5641, %v5673, %v5675
          %v5677 = vrot.slane %v5560, 1
          %v5678 = vrot.slane %v5561, 1
          %v5679 = vsel %vm5641, %v5677, %v5678
          %v5680 = vrot.slane %v5562, 1
          %v5681 = vsel %vm5641, %v5678, %v5680
          %v5682 = vrot.slane %v5563, 1
          %v5683 = vrot.slane %v5564, 1
          %v5684 = vsel %vm5641, %v5682, %v5683
          %v5685 = vrot.slane %v5565, 1
          %v5686 = vsel %vm5641, %v5683, %v5685
          %v5687 = vrot.slane %v5566, 1
          %v5688 = vrot.slane %v5567, 1
          %v5689 = vsel %vm5641, %v5687, %v5688
          %v5690 = vrot.slane %v5568, 1
          %v5691 = vsel %vm5641, %v5688, %v5690
          %v5692 = vrot.slane %v5569, 1
          %v5693 = vrot.slane %v5570, 1
          %v5694 = vsel %vm5641, %v5692, %v5693
          %v5695 = vrot.slane %v5571, 1
          %v5696 = vsel %vm5641, %v5693, %v5695
          %v5697 = vrot.slane %v5572, 1
          %v5698 = vrot.slane %v5573, 1
          %v5699 = vsel %vm5641, %v5697, %v5698
          %v5700 = vrot.slane %v5574, 1
          %v5701 = vsel %vm5641, %v5698, %v5700
          %v5702 = vrot.slane %v5575, 1
          %v5703 = vrot.slane %v5576, 1
          %v5704 = vsel %vm5641, %v5702, %v5703
          %v5705 = vrot.slane %v5577, 1
          %v5706 = vsel %vm5641, %v5703, %v5705
          %v5707 = vrot.slane %v5578, 1
          %v5708 = vrot.slane %v5579, 1
          %v5709 = vsel %vm5641, %v5707, %v5708
          %v5710 = vrot.slane %v5580, 1
          %v5711 = vsel %vm5641, %v5708, %v5710
          %v5712 = vrot.slane %v5581, 1
          %v5713 = vrot.slane %v5582, 1
          %v5714 = vsel %vm5641, %v5712, %v5713
          %v5715 = vrot.slane %v5583, 1
          %v5716 = vsel %vm5641, %v5713, %v5715
          %v5717 = vrot.slane %v5584, 1
          %v5718 = vrot.slane %v5585, 1
          %v5719 = vsel %vm5641, %v5717, %v5718
          %v5720 = vrot.slane %v5586, 1
          %v5721 = vsel %vm5641, %v5718, %v5720
          %vm5754 = vcmask 1045504
          %v5755 = vrot.slane %v5539, 2
          %v5756 = vrot.slane %v5540, 2
          %v5757 = vsel %vm5754, %v5755, %v5756
          %v5758 = vrot.slane %v5541, 2
          %v5759 = vsel %vm5754, %v5756, %v5758
          %v5760 = vrot.slane %v5542, 2
          %v5761 = vrot.slane %v5543, 2
          %v5762 = vsel %vm5754, %v5760, %v5761
          %v5763 = vrot.slane %v5544, 2
          %v5764 = vsel %vm5754, %v5761, %v5763
          %v5765 = vrot.slane %v5545, 2
          %v5766 = vrot.slane %v5546, 2
          %v5767 = vsel %vm5754, %v5765, %v5766
          %v5768 = vrot.slane %v5547, 2
          %v5769 = vsel %vm5754, %v5766, %v5768
          %v5770 = vrot.slane %v5548, 2
          %v5771 = vrot.slane %v5549, 2
          %v5772 = vsel %vm5754, %v5770, %v5771
          %v5773 = vrot.slane %v5550, 2
          %v5774 = vsel %vm5754, %v5771, %v5773
          %v5775 = vrot.slane %v5551, 2
          %v5776 = vrot.slane %v5552, 2
          %v5777 = vsel %vm5754, %v5775, %v5776
          %v5778 = vrot.slane %v5553, 2
          %v5779 = vsel %vm5754, %v5776, %v5778
          %v5780 = vrot.slane %v5554, 2
          %v5781 = vrot.slane %v5555, 2
          %v5782 = vsel %vm5754, %v5780, %v5781
          %v5783 = vrot.slane %v5556, 2
          %v5784 = vsel %vm5754, %v5781, %v5783
          %v5785 = vrot.slane %v5557, 2
          %v5786 = vrot.slane %v5558, 2
          %v5787 = vsel %vm5754, %v5785, %v5786
          %v5788 = vrot.slane %v5559, 2
          %v5789 = vsel %vm5754, %v5786, %v5788
          %v5790 = vrot.slane %v5560, 2
          %v5791 = vrot.slane %v5561, 2
          %v5792 = vsel %vm5754, %v5790, %v5791
          %v5793 = vrot.slane %v5562, 2
          %v5794 = vsel %vm5754, %v5791, %v5793
          %v5795 = vrot.slane %v5563, 2
          %v5796 = vrot.slane %v5564, 2
          %v5797 = vsel %vm5754, %v5795, %v5796
          %v5798 = vrot.slane %v5565, 2
          %v5799 = vsel %vm5754, %v5796, %v5798
          %v5800 = vrot.slane %v5566, 2
          %v5801 = vrot.slane %v5567, 2
          %v5802 = vsel %vm5754, %v5800, %v5801
          %v5803 = vrot.slane %v5568, 2
          %v5804 = vsel %vm5754, %v5801, %v5803
          %v5805 = vrot.slane %v5569, 2
          %v5806 = vrot.slane %v5570, 2
          %v5807 = vsel %vm5754, %v5805, %v5806
          %v5808 = vrot.slane %v5571, 2
          %v5809 = vsel %vm5754, %v5806, %v5808
          %v5810 = vrot.slane %v5572, 2
          %v5811 = vrot.slane %v5573, 2
          %v5812 = vsel %vm5754, %v5810, %v5811
          %v5813 = vrot.slane %v5574, 2
          %v5814 = vsel %vm5754, %v5811, %v5813
          %v5815 = vrot.slane %v5575, 2
          %v5816 = vrot.slane %v5576, 2
          %v5817 = vsel %vm5754, %v5815, %v5816
          %v5818 = vrot.slane %v5577, 2
          %v5819 = vsel %vm5754, %v5816, %v5818
          %v5820 = vrot.slane %v5578, 2
          %v5821 = vrot.slane %v5579, 2
          %v5822 = vsel %vm5754, %v5820, %v5821
          %v5823 = vrot.slane %v5580, 2
          %v5824 = vsel %vm5754, %v5821, %v5823
          %v5825 = vrot.slane %v5581, 2
          %v5826 = vrot.slane %v5582, 2
          %v5827 = vsel %vm5754, %v5825, %v5826
          %v5828 = vrot.slane %v5583, 2
          %v5829 = vsel %vm5754, %v5826, %v5828
          %v5830 = vrot.slane %v5584, 2
          %v5831 = vrot.slane %v5585, 2
          %v5832 = vsel %vm5754, %v5830, %v5831
          %v5833 = vrot.slane %v5586, 2
          %v5834 = vsel %vm5754, %v5831, %v5833
          %v5870 = vrot.slane %v5587, 1
          %v5871 = vrot.slane %v5588, 1
          %v5872 = vsel %vm5641, %v5870, %v5871
          %v5873 = vrot.slane %v5589, 1
          %v5874 = vsel %vm5641, %v5871, %v5873
          %v5877 = vrot.slane %v5587, 2
          %v5878 = vrot.slane %v5588, 2
          %v5879 = vsel %vm5754, %v5877, %v5878
          %v5880 = vrot.slane %v5589, 2
          %v5881 = vsel %vm5754, %v5878, %v5880
          %v5887 = vrot.slane %v5590, 1
          %v5888 = vrot.slane %v5591, 1
          %v5889 = vsel %vm5641, %v5887, %v5888
          %v5890 = vrot.slane %v5592, 1
          %v5891 = vsel %vm5641, %v5888, %v5890
          %v5894 = vrot.slane %v5590, 2
          %v5895 = vrot.slane %v5591, 2
          %v5896 = vsel %vm5754, %v5894, %v5895
          %v5897 = vrot.slane %v5592, 2
          %v5898 = vsel %vm5754, %v5895, %v5897
          %v5902 = vlaneseq
          %v5903 = vshrl.u32 %v5902, 7
          %v5904 = vsub.s32 0, %v5903
          %v5905 = vrot.slane %v5529, %v5904
          %5907 = vmatprep.subr.mxu0 0.0
          %5908 = vmatpush1.msra.mxu0 %v5385
          %5909 = vmatprep.subr.mxu0 0.0
          %5910 = vmatpush1.msra.mxu0 %v5386
          %5911 = vmatprep.subr.mxu0 0.0
          %5912 = vmatpush1.msra.mxu0 %v5387
          %5913 = vmatprep.subr.mxu0 0.0
          %5914 = vmatpush1.msra.mxu0 %v5388
          %5915 = vmatprep.subr.mxu0 0.0
          %5916 = vmatpush1.msra.mxu0 %v5389
          %5917 = vmatprep.subr.mxu0 0.0
          %5918 = vmatpush1.msra.mxu0 %v5390
          %5919 = vmatprep.subr.mxu0 0.0
          %5920 = vmatpush1.msra.mxu0 %v5391
          %5921 = vmatprep.subr.mxu0 0.0
          %5922 = vmatpush1.msra.mxu0 %v5392
          %5923 = vmatprep.subr.mxu0 0.0
          %5924 = vmatpush1.msra.mxu0 %v5393
          %5925 = vmatprep.subr.mxu0 0.0
          %5926 = vmatpush1.msra.mxu0 %v5394
          %5927 = vmatprep.subr.mxu0 0.0
          %5928 = vmatpush1.msra.mxu0 %v5395
          %5929 = vmatprep.subr.mxu0 0.0
          %5930 = vmatpush1.msra.mxu0 %v5396
          %5931 = vmatprep.subr.mxu0 0.0
          %5932 = vmatpush1.msra.mxu0 %v5397
          %5933 = vmatprep.subr.mxu0 0.0
          %5934 = vmatpush1.msra.mxu0 %v5398
          %5935 = vmatprep.subr.mxu0 0.0
          %5936 = vmatpush1.msra.mxu0 %v5399
          %5937 = vmatprep.subr.mxu0 0.0
          %5938 = vmatpush1.msra.mxu0 %v5400
          %5939 = vmatprep.subr.mxu0 0.0
          %5940 = vmatpush1.msra.mxu0 %v5401
          %5941 = vmatprep.subr.mxu0 0.0
          %5942 = vmatpush1.msra.mxu0 %v5402
          %5943 = vmatprep.subr.mxu0 0.0
          %5944 = vmatpush1.msra.mxu0 %v5403
          %5945 = vmatprep.subr.mxu0 0.0
          %5946 = vmatpush1.msra.mxu0 %v5404
          %5947 = vmatprep.subr.mxu0 0.0
          %5948 = vmatpush1.msra.mxu0 %v5405
          %5949 = vmatprep.subr.mxu0 0.0
          %5950 = vmatpush1.msra.mxu0 %v5406
          %5951 = vmatprep.subr.mxu0 0.0
          %5952 = vmatpush1.msra.mxu0 %v5407
          %5953 = vmatprep.subr.mxu0 0.0
          %5954 = vmatpush1.msra.mxu0 %v5408
          %5955 = vmatprep.subr.mxu0 0.0
          %5956 = vmatpush1.msra.mxu0 %v5409
          %5957 = vmatprep.subr.mxu0 0.0
          %5958 = vmatpush1.msra.mxu0 %v5410
          %5959 = vmatprep.subr.mxu0 0.0
          %5960 = vmatpush1.msra.mxu0 %v5411
          %5961 = vmatprep.subr.mxu0 0.0
          %5962 = vmatpush1.msra.mxu0 %v5412
          %5963 = vmatprep.subr.mxu0 0.0
          %5964 = vmatpush1.msra.mxu0 %v5413
          %5965 = vmatprep.subr.mxu0 0.0
          %5966 = vmatpush1.msra.mxu0 %v5414
          %5967 = vmatprep.subr.mxu0 0.0
          %5968 = vmatpush1.msra.mxu0 %v5415
          %5969 = vmatprep.subr.mxu0 0.0
          %5970 = vmatpush1.msra.mxu0 %v5416
          %5971 = vmatprep.mubr.f32.mxu0 %v5644
          %5972 = vmatmul.mubr.f32.gmra.mrb[0].mxu0 %v5539
          %v5973 = vpop.f32.mrb[0].mxu0
          %v5974 = vadd.f32 %v5905, %v5973
          %v5975 = vpop.f32.mrb[0].mxu0
          %5976 = vmatprep.mubr.f32.mxu0 %v5646
          %5977 = vmatmul.mubr.f32.gmra.mrb[0].mxu0 %v5540
          %v5978 = vpop.f32.mrb[0].mxu0
          %v5979 = vadd.f32 %v5905, %v5978
          %v5980 = vpop.f32.mrb[0].mxu0
          %5981 = vmatprep.mubr.f32.mxu0 %v5649
          %5982 = vmatmul.mubr.f32.gmra.mrb[0].mxu0 %v5542
          %v5983 = vpop.f32.mrb[0].mxu0
          %v5984 = vadd.f32 %v5905, %v5983
          %v5985 = vpop.f32.mrb[0].mxu0
          %5986 = vmatprep.mubr.f32.mxu0 %v5651
          %5987 = vmatmul.mubr.f32.gmra.mrb[0].mxu0 %v5543
          %v5988 = vpop.f32.mrb[0].mxu0
          %v5989 = vadd.f32 %v5905, %v5988
          %v5990 = vpop.f32.mrb[0].mxu0
          %5991 = vmatprep.mubr.f32.mxu0 %v5654
          %5992 = vmatmul.mubr.f32.gmra.mrb[0].mxu0 %v5545
          %v5993 = vpop.f32.mrb[0].mxu0
          %v5994 = vadd.f32 %v5905, %v5993
          %v5995 = vpop.f32.mrb[0].mxu0
          %5996 = vmatprep.mubr.f32.mxu0 %v5656
          %5997 = vmatmul.mubr.f32.gmra.mrb[0].mxu0 %v5546
          %v5998 = vpop.f32.mrb[0].mxu0
          %v5999 = vadd.f32 %v5905, %v5998
          %v6000 = vpop.f32.mrb[0].mxu0
          %6001 = vmatprep.mubr.f32.mxu0 %v5659
          %6002 = vmatmul.mubr.f32.gmra.mrb[0].mxu0 %v5548
          %v6003 = vpop.f32.mrb[0].mxu0
          %v6004 = vadd.f32 %v5905, %v6003
          %v6005 = vpop.f32.mrb[0].mxu0
          %6006 = vmatprep.mubr.f32.mxu0 %v5661
          %6007 = vmatmul.mubr.f32.gmra.mrb[0].mxu0 %v5549
          %v6008 = vpop.f32.mrb[0].mxu0
          %v6009 = vadd.f32 %v5905, %v6008
          %v6010 = vpop.f32.mrb[0].mxu0
          %6011 = vmatprep.mubr.f32.mxu0 %v5664
          %6012 = vmatmul.mubr.f32.gmra.mrb[0].mxu0 %v5551
          %v6013 = vpop.f32.mrb[0].mxu0
          %v6014 = vadd.f32 %v5905, %v6013
          %v6015 = vpop.f32.mrb[0].mxu0
          %6016 = vmatprep.mubr.f32.mxu0 %v5666
          %6017 = vmatmul.mubr.f32.gmra.mrb[0].mxu0 %v5552
          %v6018 = vpop.f32.mrb[0].mxu0
          %v6019 = vadd.f32 %v5905, %v6018
          %v6020 = vpop.f32.mrb[0].mxu0
          %6021 = vmatprep.mubr.f32.mxu0 %v5669
          %6022 = vmatmul.mubr.f32.gmra.mrb[0].mxu0 %v5554
          %v6023 = vpop.f32.mrb[0].mxu0
          %v6024 = vadd.f32 %v5905, %v6023
          %v6025 = vpop.f32.mrb[0].mxu0
          %6026 = vmatprep.mubr.f32.mxu0 %v5671
          %6027 = vmatmul.mubr.f32.gmra.mrb[0].mxu0 %v5555
          %v6028 = vpop.f32.mrb[0].mxu0
          %v6029 = vadd.f32 %v5905, %v6028
          %v6030 = vpop.f32.mrb[0].mxu0
          %6031 = vmatprep.mubr.f32.mxu0 %v5674
          %6032 = vmatmul.mubr.f32.gmra.mrb[0].mxu0 %v5557
          %v6033 = vpop.f32.mrb[0].mxu0
          %v6034 = vadd.f32 %v5905, %v6033
          %v6035 = vpop.f32.mrb[0].mxu0
          %6036 = vmatprep.mubr.f32.mxu0 %v5676
          %6037 = vmatmul.mubr.f32.gmra.mrb[0].mxu0 %v5558
          %v6038 = vpop.f32.mrb[0].mxu0
          %v6039 = vadd.f32 %v5905, %v6038
          %v6040 = vpop.f32.mrb[0].mxu0
          %6041 = vmatprep.mubr.f32.mxu0 %v5679
          %6042 = vmatmul.mubr.f32.gmra.mrb[0].mxu0 %v5560
          %v6043 = vpop.f32.mrb[0].mxu0
          %v6044 = vadd.f32 %v5905, %v6043
          %v6045 = vpop.f32.mrb[0].mxu0
          %6046 = vmatprep.mubr.f32.mxu0 %v5681
          %6047 = vmatmul.mubr.f32.gmra.mrb[0].mxu0 %v5561
          %v6048 = vpop.f32.mrb[0].mxu0
          %v6049 = vadd.f32 %v5905, %v6048
          %v6050 = vpop.f32.mrb[0].mxu0
          %6051 = vmatprep.mubr.f32.mxu0 %v5684
          %6052 = vmatmul.mubr.f32.gmra.mrb[0].mxu0 %v5563
          %v6053 = vpop.f32.mrb[0].mxu0
          %v6054 = vadd.f32 %v5905, %v6053
          %v6055 = vpop.f32.mrb[0].mxu0
          %6056 = vmatprep.mubr.f32.mxu0 %v5686
          %6057 = vmatmul.mubr.f32.gmra.mrb[0].mxu0 %v5564
          %v6058 = vpop.f32.mrb[0].mxu0
          %v6059 = vadd.f32 %v5905, %v6058
          %v6060 = vpop.f32.mrb[0].mxu0
          %6061 = vmatprep.mubr.f32.mxu0 %v5689
          %6062 = vmatmul.mubr.f32.gmra.mrb[0].mxu0 %v5566
          %v6063 = vpop.f32.mrb[0].mxu0
          %v6064 = vadd.f32 %v5905, %v6063
          %v6065 = vpop.f32.mrb[0].mxu0
          %6066 = vmatprep.mubr.f32.mxu0 %v5691
          %6067 = vmatmul.mubr.f32.gmra.mrb[0].mxu0 %v5567
          %v6068 = vpop.f32.mrb[0].mxu0
          %v6069 = vadd.f32 %v5905, %v6068
          %v6070 = vpop.f32.mrb[0].mxu0
          %6071 = vmatprep.mubr.f32.mxu0 %v5694
          %6072 = vmatmul.mubr.f32.gmra.mrb[0].mxu0 %v5569
          %v6073 = vpop.f32.mrb[0].mxu0
          %v6074 = vadd.f32 %v5905, %v6073
          %v6075 = vpop.f32.mrb[0].mxu0
          %6076 = vmatprep.mubr.f32.mxu0 %v5696
          %6077 = vmatmul.mubr.f32.gmra.mrb[0].mxu0 %v5570
          %v6078 = vpop.f32.mrb[0].mxu0
          %v6079 = vadd.f32 %v5905, %v6078
          %v6080 = vpop.f32.mrb[0].mxu0
          %6081 = vmatprep.mubr.f32.mxu0 %v5699
          %6082 = vmatmul.mubr.f32.gmra.mrb[0].mxu0 %v5572
          %v6083 = vpop.f32.mrb[0].mxu0
          %v6084 = vadd.f32 %v5905, %v6083
          %v6085 = vpop.f32.mrb[0].mxu0
          %6086 = vmatprep.mubr.f32.mxu0 %v5701
          %6087 = vmatmul.mubr.f32.gmra.mrb[0].mxu0 %v5573
          %v6088 = vpop.f32.mrb[0].mxu0
          %v6089 = vadd.f32 %v5905, %v6088
          %v6090 = vpop.f32.mrb[0].mxu0
          %6091 = vmatprep.mubr.f32.mxu0 %v5704
          %6092 = vmatmul.mubr.f32.gmra.mrb[0].mxu0 %v5575
          %v6093 = vpop.f32.mrb[0].mxu0
          %v6094 = vadd.f32 %v5905, %v6093
          %v6095 = vpop.f32.mrb[0].mxu0
          %6096 = vmatprep.mubr.f32.mxu0 %v5706
          %6097 = vmatmul.mubr.f32.gmra.mrb[0].mxu0 %v5576
          %v6098 = vpop.f32.mrb[0].mxu0
          %v6099 = vadd.f32 %v5905, %v6098
          %v6100 = vpop.f32.mrb[0].mxu0
          %6101 = vmatprep.mubr.f32.mxu0 %v5709
          %6102 = vmatmul.mubr.f32.gmra.mrb[0].mxu0 %v5578
          %v6103 = vpop.f32.mrb[0].mxu0
          %v6104 = vadd.f32 %v5905, %v6103
          %v6105 = vpop.f32.mrb[0].mxu0
          %6106 = vmatprep.mubr.f32.mxu0 %v5711
          %6107 = vmatmul.mubr.f32.gmra.mrb[0].mxu0 %v5579
          %v6108 = vpop.f32.mrb[0].mxu0
          %v6109 = vadd.f32 %v5905, %v6108
          %v6110 = vpop.f32.mrb[0].mxu0
          %6111 = vmatprep.mubr.f32.mxu0 %v5714
          %6112 = vmatmul.mubr.f32.gmra.mrb[0].mxu0 %v5581
          %v6113 = vpop.f32.mrb[0].mxu0
          %v6114 = vadd.f32 %v5905, %v6113
          %v6115 = vpop.f32.mrb[0].mxu0
          %6116 = vmatprep.mubr.f32.mxu0 %v5716
          %6117 = vmatmul.mubr.f32.gmra.mrb[0].mxu0 %v5582
          %v6118 = vpop.f32.mrb[0].mxu0
          %v6119 = vadd.f32 %v5905, %v6118
          %v6120 = vpop.f32.mrb[0].mxu0
          %6121 = vmatprep.mubr.f32.mxu0 %v5719
          %6122 = vmatmul.mubr.f32.gmra.mrb[0].mxu0 %v5584
          %v6123 = vpop.f32.mrb[0].mxu0
          %v6124 = vadd.f32 %v5905, %v6123
          %v6125 = vpop.f32.mrb[0].mxu0
          %6126 = vmatprep.mubr.f32.mxu0 %v5721
          %6127 = vmatmul.mubr.f32.gmra.mrb[0].mxu0 %v5585
          %v6128 = vpop.f32.mrb[0].mxu0
          %v6129 = vadd.f32 %v5905, %v6128
          %v6130 = vpop.f32.mrb[0].mxu0
          %6131 = vdwg.mxu0
          %6132 = vmatprep.subr.mxu0 0.0
          %6133 = vmatpush1.msra.mxu0 %v5417
          %6134 = vmatprep.subr.mxu0 0.0
          %6135 = vmatpush1.msra.mxu0 %v5418
          %6136 = vmatprep.subr.mxu0 0.0
          %6137 = vmatpush1.msra.mxu0 %v5419
          %6138 = vmatprep.subr.mxu0 0.0
          %6139 = vmatpush1.msra.mxu0 %v5420
          %6140 = vmatprep.subr.mxu0 0.0
          %6141 = vmatpush1.msra.mxu0 %v5421
          %6142 = vmatprep.subr.mxu0 0.0
          %6143 = vmatpush1.msra.mxu0 %v5422
          %6144 = vmatprep.subr.mxu0 0.0
          %6145 = vmatpush1.msra.mxu0 %v5423
          %6146 = vmatprep.subr.mxu0 0.0
          %6147 = vmatpush1.msra.mxu0 %v5424
          %6148 = vmatprep.subr.mxu0 0.0
          %6149 = vmatpush1.msra.mxu0 %v5425
          %6150 = vmatprep.subr.mxu0 0.0
          %6151 = vmatpush1.msra.mxu0 %v5426
          %6152 = vmatprep.subr.mxu0 0.0
          %6153 = vmatpush1.msra.mxu0 %v5427
          %6154 = vmatprep.subr.mxu0 0.0
          %6155 = vmatpush1.msra.mxu0 %v5428
          %6156 = vmatprep.subr.mxu0 0.0
          %6157 = vmatpush1.msra.mxu0 %v5429
          %6158 = vmatprep.subr.mxu0 0.0
          %6159 = vmatpush1.msra.mxu0 %v5430
          %6160 = vmatprep.subr.mxu0 0.0
          %6161 = vmatpush1.msra.mxu0 %v5431
          %6162 = vmatprep.subr.mxu0 0.0
          %6163 = vmatpush1.msra.mxu0 %v5432
          %6164 = vmatprep.subr.mxu0 0.0
          %6165 = vmatpush1.msra.mxu0 %v5433
          %6166 = vmatprep.subr.mxu0 0.0
          %6167 = vmatpush1.msra.mxu0 %v5434
          %6168 = vmatprep.subr.mxu0 0.0
          %6169 = vmatpush1.msra.mxu0 %v5435
          %6170 = vmatprep.subr.mxu0 0.0
          %6171 = vmatpush1.msra.mxu0 %v5436
          %6172 = vmatprep.subr.mxu0 0.0
          %6173 = vmatpush1.msra.mxu0 %v5437
          %6174 = vmatprep.subr.mxu0 0.0
          %6175 = vmatpush1.msra.mxu0 %v5438
          %6176 = vmatprep.subr.mxu0 0.0
          %6177 = vmatpush1.msra.mxu0 %v5439
          %6178 = vmatprep.subr.mxu0 0.0
          %6179 = vmatpush1.msra.mxu0 %v5440
          %6180 = vmatprep.subr.mxu0 0.0
          %6181 = vmatpush1.msra.mxu0 %v5441
          %6182 = vmatprep.subr.mxu0 0.0
          %6183 = vmatpush1.msra.mxu0 %v5442
          %6184 = vmatprep.subr.mxu0 0.0
          %6185 = vmatpush1.msra.mxu0 %v5443
          %6186 = vmatprep.subr.mxu0 0.0
          %6187 = vmatpush1.msra.mxu0 %v5444
          %6188 = vmatprep.subr.mxu0 0.0
          %6189 = vmatpush1.msra.mxu0 %v5445
          %6190 = vmatprep.subr.mxu0 0.0
          %6191 = vmatpush1.msra.mxu0 %v5446
          %6192 = vmatprep.subr.mxu0 0.0
          %6193 = vmatpush1.msra.mxu0 %v5447
          %6194 = vmatprep.subr.mxu0 0.0
          %6195 = vmatpush1.msra.mxu0 %v5448
          %6196 = vmatprep.mubr.f32.mxu0 %v5542
          %6197 = vmatmul.mubr.f32.gmra.mrb[0].mxu0 %v5757
          %v6198 = vpop.f32.mrb[0].mxu0
          %v6199 = vadd.f32 %v5974, %v6198
          %v6200 = vpop.f32.mrb[0].mxu0
          %6201 = vmatprep.mubr.f32.mxu0 %v5543
          %6202 = vmatmul.mubr.f32.gmra.mrb[0].mxu0 %v5759
          %v6203 = vpop.f32.mrb[0].mxu0
          %v6204 = vadd.f32 %v5979, %v6203
          %v6205 = vpop.f32.mrb[0].mxu0
          %6206 = vmatprep.mubr.f32.mxu0 %v5545
          %6207 = vmatmul.mubr.f32.gmra.mrb[0].mxu0 %v5762
          %v6208 = vpop.f32.mrb[0].mxu0
          %v6209 = vadd.f32 %v5984, %v6208
          %v6210 = vpop.f32.mrb[0].mxu0
          %6211 = vmatprep.mubr.f32.mxu0 %v5546
          %6212 = vmatmul.mubr.f32.gmra.mrb[0].mxu0 %v5764
          %v6213 = vpop.f32.mrb[0].mxu0
          %v6214 = vadd.f32 %v5989, %v6213
          %v6215 = vpop.f32.mrb[0].mxu0
          %6216 = vmatprep.mubr.f32.mxu0 %v5548
          %6217 = vmatmul.mubr.f32.gmra.mrb[0].mxu0 %v5767
          %v6218 = vpop.f32.mrb[0].mxu0
          %v6219 = vadd.f32 %v5994, %v6218
          %v6220 = vpop.f32.mrb[0].mxu0
          %6221 = vmatprep.mubr.f32.mxu0 %v5549
          %6222 = vmatmul.mubr.f32.gmra.mrb[0].mxu0 %v5769
          %v6223 = vpop.f32.mrb[0].mxu0
          %v6224 = vadd.f32 %v5999, %v6223
          %v6225 = vpop.f32.mrb[0].mxu0
          %6226 = vmatprep.mubr.f32.mxu0 %v5551
          %6227 = vmatmul.mubr.f32.gmra.mrb[0].mxu0 %v5772
          %v6228 = vpop.f32.mrb[0].mxu0
          %v6229 = vadd.f32 %v6004, %v6228
          %v6230 = vpop.f32.mrb[0].mxu0
          %6231 = vmatprep.mubr.f32.mxu0 %v5552
          %6232 = vmatmul.mubr.f32.gmra.mrb[0].mxu0 %v5774
          %v6233 = vpop.f32.mrb[0].mxu0
          %v6234 = vadd.f32 %v6009, %v6233
          %v6235 = vpop.f32.mrb[0].mxu0
          %6236 = vmatprep.mubr.f32.mxu0 %v5554
          %6237 = vmatmul.mubr.f32.gmra.mrb[0].mxu0 %v5777
          %v6238 = vpop.f32.mrb[0].mxu0
          %v6239 = vadd.f32 %v6014, %v6238
          %v6240 = vpop.f32.mrb[0].mxu0
          %6241 = vmatprep.mubr.f32.mxu0 %v5555
          %6242 = vmatmul.mubr.f32.gmra.mrb[0].mxu0 %v5779
          %v6243 = vpop.f32.mrb[0].mxu0
          %v6244 = vadd.f32 %v6019, %v6243
          %v6245 = vpop.f32.mrb[0].mxu0
          %6246 = vmatprep.mubr.f32.mxu0 %v5557
          %6247 = vmatmul.mubr.f32.gmra.mrb[0].mxu0 %v5782
          %v6248 = vpop.f32.mrb[0].mxu0
          %v6249 = vadd.f32 %v6024, %v6248
          %v6250 = vpop.f32.mrb[0].mxu0
          %6251 = vmatprep.mubr.f32.mxu0 %v5558
          %6252 = vmatmul.mubr.f32.gmra.mrb[0].mxu0 %v5784
          %v6253 = vpop.f32.mrb[0].mxu0
          %v6254 = vadd.f32 %v6029, %v6253
          %v6255 = vpop.f32.mrb[0].mxu0
          %6256 = vmatprep.mubr.f32.mxu0 %v5560
          %6257 = vmatmul.mubr.f32.gmra.mrb[0].mxu0 %v5787
          %v6258 = vpop.f32.mrb[0].mxu0
          %v6259 = vadd.f32 %v6034, %v6258
          %v6260 = vpop.f32.mrb[0].mxu0
          %6261 = vmatprep.mubr.f32.mxu0 %v5561
          %6262 = vmatmul.mubr.f32.gmra.mrb[0].mxu0 %v5789
          %v6263 = vpop.f32.mrb[0].mxu0
          %v6264 = vadd.f32 %v6039, %v6263
          %v6265 = vpop.f32.mrb[0].mxu0
          %6266 = vmatprep.mubr.f32.mxu0 %v5563
          %6267 = vmatmul.mubr.f32.gmra.mrb[0].mxu0 %v5792
          %v6268 = vpop.f32.mrb[0].mxu0
          %v6269 = vadd.f32 %v6044, %v6268
          %v6270 = vpop.f32.mrb[0].mxu0
          %6271 = vmatprep.mubr.f32.mxu0 %v5564
          %6272 = vmatmul.mubr.f32.gmra.mrb[0].mxu0 %v5794
          %v6273 = vpop.f32.mrb[0].mxu0
          %v6274 = vadd.f32 %v6049, %v6273
          %v6275 = vpop.f32.mrb[0].mxu0
          %6276 = vmatprep.mubr.f32.mxu0 %v5566
          %6277 = vmatmul.mubr.f32.gmra.mrb[0].mxu0 %v5797
          %v6278 = vpop.f32.mrb[0].mxu0
          %v6279 = vadd.f32 %v6054, %v6278
          %v6280 = vpop.f32.mrb[0].mxu0
          %6281 = vmatprep.mubr.f32.mxu0 %v5567
          %6282 = vmatmul.mubr.f32.gmra.mrb[0].mxu0 %v5799
          %v6283 = vpop.f32.mrb[0].mxu0
          %v6284 = vadd.f32 %v6059, %v6283
          %v6285 = vpop.f32.mrb[0].mxu0
          %6286 = vmatprep.mubr.f32.mxu0 %v5569
          %6287 = vmatmul.mubr.f32.gmra.mrb[0].mxu0 %v5802
          %v6288 = vpop.f32.mrb[0].mxu0
          %v6289 = vadd.f32 %v6064, %v6288
          %v6290 = vpop.f32.mrb[0].mxu0
          %6291 = vmatprep.mubr.f32.mxu0 %v5570
          %6292 = vmatmul.mubr.f32.gmra.mrb[0].mxu0 %v5804
          %v6293 = vpop.f32.mrb[0].mxu0
          %v6294 = vadd.f32 %v6069, %v6293
          %v6295 = vpop.f32.mrb[0].mxu0
          %6296 = vmatprep.mubr.f32.mxu0 %v5572
          %6297 = vmatmul.mubr.f32.gmra.mrb[0].mxu0 %v5807
          %v6298 = vpop.f32.mrb[0].mxu0
          %v6299 = vadd.f32 %v6074, %v6298
          %v6300 = vpop.f32.mrb[0].mxu0
          %6301 = vmatprep.mubr.f32.mxu0 %v5573
          %6302 = vmatmul.mubr.f32.gmra.mrb[0].mxu0 %v5809
          %v6303 = vpop.f32.mrb[0].mxu0
          %v6304 = vadd.f32 %v6079, %v6303
          %v6305 = vpop.f32.mrb[0].mxu0
          %6306 = vmatprep.mubr.f32.mxu0 %v5575
          %6307 = vmatmul.mubr.f32.gmra.mrb[0].mxu0 %v5812
          %v6308 = vpop.f32.mrb[0].mxu0
          %v6309 = vadd.f32 %v6084, %v6308
          %v6310 = vpop.f32.mrb[0].mxu0
          %6311 = vmatprep.mubr.f32.mxu0 %v5576
          %6312 = vmatmul.mubr.f32.gmra.mrb[0].mxu0 %v5814
          %v6313 = vpop.f32.mrb[0].mxu0
          %v6314 = vadd.f32 %v6089, %v6313
          %v6315 = vpop.f32.mrb[0].mxu0
          %6316 = vmatprep.mubr.f32.mxu0 %v5578
          %6317 = vmatmul.mubr.f32.gmra.mrb[0].mxu0 %v5817
          %v6318 = vpop.f32.mrb[0].mxu0
          %v6319 = vadd.f32 %v6094, %v6318
          %v6320 = vpop.f32.mrb[0].mxu0
          %6321 = vmatprep.mubr.f32.mxu0 %v5579
          %6322 = vmatmul.mubr.f32.gmra.mrb[0].mxu0 %v5819
          %v6323 = vpop.f32.mrb[0].mxu0
          %v6324 = vadd.f32 %v6099, %v6323
          %v6325 = vpop.f32.mrb[0].mxu0
          %6326 = vmatprep.mubr.f32.mxu0 %v5581
          %6327 = vmatmul.mubr.f32.gmra.mrb[0].mxu0 %v5822
          %v6328 = vpop.f32.mrb[0].mxu0
          %v6329 = vadd.f32 %v6104, %v6328
          %v6330 = vpop.f32.mrb[0].mxu0
          %6331 = vmatprep.mubr.f32.mxu0 %v5582
          %6332 = vmatmul.mubr.f32.gmra.mrb[0].mxu0 %v5824
          %v6333 = vpop.f32.mrb[0].mxu0
          %v6334 = vadd.f32 %v6109, %v6333
          %v6335 = vpop.f32.mrb[0].mxu0
          %6336 = vmatprep.mubr.f32.mxu0 %v5584
          %6337 = vmatmul.mubr.f32.gmra.mrb[0].mxu0 %v5827
          %v6338 = vpop.f32.mrb[0].mxu0
          %v6339 = vadd.f32 %v6114, %v6338
          %v6340 = vpop.f32.mrb[0].mxu0
          %6341 = vmatprep.mubr.f32.mxu0 %v5585
          %6342 = vmatmul.mubr.f32.gmra.mrb[0].mxu0 %v5829
          %v6343 = vpop.f32.mrb[0].mxu0
          %v6344 = vadd.f32 %v6119, %v6343
          %v6345 = vpop.f32.mrb[0].mxu0
          %6346 = vmatprep.mubr.f32.mxu0 %v5587
          %6347 = vmatmul.mubr.f32.gmra.mrb[0].mxu0 %v5832
          %v6348 = vpop.f32.mrb[0].mxu0
          %v6349 = vadd.f32 %v6124, %v6348
          %v6350 = vpop.f32.mrb[0].mxu0
          %6351 = vmatprep.mubr.f32.mxu0 %v5588
          %6352 = vmatmul.mubr.f32.gmra.mrb[0].mxu0 %v5834
          %v6353 = vpop.f32.mrb[0].mxu0
          %v6354 = vadd.f32 %v6129, %v6353
          %v6355 = vpop.f32.mrb[0].mxu0
          %6356 = vdwg.mxu0
          %6357 = vmatprep.subr.mxu0 0.0
          %6358 = vmatpush1.msra.mxu0 %v5449
          %6359 = vmatprep.subr.mxu0 0.0
          %6360 = vmatpush1.msra.mxu0 %v5450
          %6361 = vmatprep.subr.mxu0 0.0
          %6362 = vmatpush1.msra.mxu0 %v5451
          %6363 = vmatprep.subr.mxu0 0.0
          %6364 = vmatpush1.msra.mxu0 %v5452
          %6365 = vmatprep.subr.mxu0 0.0
          %6366 = vmatpush1.msra.mxu0 %v5453
          %6367 = vmatprep.subr.mxu0 0.0
          %6368 = vmatpush1.msra.mxu0 %v5454
          %6369 = vmatprep.subr.mxu0 0.0
          %6370 = vmatpush1.msra.mxu0 %v5455
          %6371 = vmatprep.subr.mxu0 0.0
          %6372 = vmatpush1.msra.mxu0 %v5456
          %6373 = vmatprep.subr.mxu0 0.0
          %6374 = vmatpush1.msra.mxu0 %v5457
          %6375 = vmatprep.subr.mxu0 0.0
          %6376 = vmatpush1.msra.mxu0 %v5458
          %6377 = vmatprep.subr.mxu0 0.0
          %6378 = vmatpush1.msra.mxu0 %v5459
          %6379 = vmatprep.subr.mxu0 0.0
          %6380 = vmatpush1.msra.mxu0 %v5460
          %6381 = vmatprep.subr.mxu0 0.0
          %6382 = vmatpush1.msra.mxu0 %v5461
          %6383 = vmatprep.subr.mxu0 0.0
          %6384 = vmatpush1.msra.mxu0 %v5462
          %6385 = vmatprep.subr.mxu0 0.0
          %6386 = vmatpush1.msra.mxu0 %v5463
          %6387 = vmatprep.subr.mxu0 0.0
          %6388 = vmatpush1.msra.mxu0 %v5464
          %6389 = vmatprep.subr.mxu0 0.0
          %6390 = vmatpush1.msra.mxu0 %v5465
          %6391 = vmatprep.subr.mxu0 0.0
          %6392 = vmatpush1.msra.mxu0 %v5466
          %6393 = vmatprep.subr.mxu0 0.0
          %6394 = vmatpush1.msra.mxu0 %v5467
          %6395 = vmatprep.subr.mxu0 0.0
          %6396 = vmatpush1.msra.mxu0 %v5468
          %6397 = vmatprep.subr.mxu0 0.0
          %6398 = vmatpush1.msra.mxu0 %v5469
          %6399 = vmatprep.subr.mxu0 0.0
          %6400 = vmatpush1.msra.mxu0 %v5470
          %6401 = vmatprep.subr.mxu0 0.0
          %6402 = vmatpush1.msra.mxu0 %v5471
          %6403 = vmatprep.subr.mxu0 0.0
          %6404 = vmatpush1.msra.mxu0 %v5472
          %6405 = vmatprep.subr.mxu0 0.0
          %6406 = vmatpush1.msra.mxu0 %v5473
          %6407 = vmatprep.subr.mxu0 0.0
          %6408 = vmatpush1.msra.mxu0 %v5474
          %6409 = vmatprep.subr.mxu0 0.0
          %6410 = vmatpush1.msra.mxu0 %v5475
          %6411 = vmatprep.subr.mxu0 0.0
          %6412 = vmatpush1.msra.mxu0 %v5476
          %6413 = vmatprep.subr.mxu0 0.0
          %6414 = vmatpush1.msra.mxu0 %v5477
          %6415 = vmatprep.subr.mxu0 0.0
          %6416 = vmatpush1.msra.mxu0 %v5478
          %6417 = vmatprep.subr.mxu0 0.0
          %6418 = vmatpush1.msra.mxu0 %v5479
          %6419 = vmatprep.subr.mxu0 0.0
          %6420 = vmatpush1.msra.mxu0 %v5480
          %6421 = vmatprep.mubr.f32.mxu0 %v5762
          %6422 = vmatmul.mubr.f32.gmra.mrb[0].mxu0 %v5649
          %v6423 = vpop.f32.mrb[0].mxu0
          %v6424 = vadd.f32 %v6199, %v6423
          %v6425 = vpop.f32.mrb[0].mxu0
          %6426 = vmatprep.mubr.f32.mxu0 %v5764
          %6427 = vmatmul.mubr.f32.gmra.mrb[0].mxu0 %v5651
          %v6428 = vpop.f32.mrb[0].mxu0
          %v6429 = vadd.f32 %v6204, %v6428
          %v6430 = vpop.f32.mrb[0].mxu0
          %6431 = vmatprep.mubr.f32.mxu0 %v5767
          %6432 = vmatmul.mubr.f32.gmra.mrb[0].mxu0 %v5654
          %v6433 = vpop.f32.mrb[0].mxu0
          %v6434 = vadd.f32 %v6209, %v6433
          %v6435 = vpop.f32.mrb[0].mxu0
          %6436 = vmatprep.mubr.f32.mxu0 %v5769
          %6437 = vmatmul.mubr.f32.gmra.mrb[0].mxu0 %v5656
          %v6438 = vpop.f32.mrb[0].mxu0
          %v6439 = vadd.f32 %v6214, %v6438
          %v6440 = vpop.f32.mrb[0].mxu0
          %6441 = vmatprep.mubr.f32.mxu0 %v5772
          %6442 = vmatmul.mubr.f32.gmra.mrb[0].mxu0 %v5659
          %v6443 = vpop.f32.mrb[0].mxu0
          %v6444 = vadd.f32 %v6219, %v6443
          %v6445 = vpop.f32.mrb[0].mxu0
          %6446 = vmatprep.mubr.f32.mxu0 %v5774
          %6447 = vmatmul.mubr.f32.gmra.mrb[0].mxu0 %v5661
          %v6448 = vpop.f32.mrb[0].mxu0
          %v6449 = vadd.f32 %v6224, %v6448
          %v6450 = vpop.f32.mrb[0].mxu0
          %6451 = vmatprep.mubr.f32.mxu0 %v5777
          %6452 = vmatmul.mubr.f32.gmra.mrb[0].mxu0 %v5664
          %v6453 = vpop.f32.mrb[0].mxu0
          %v6454 = vadd.f32 %v6229, %v6453
          %v6455 = vpop.f32.mrb[0].mxu0
          %6456 = vmatprep.mubr.f32.mxu0 %v5779
          %6457 = vmatmul.mubr.f32.gmra.mrb[0].mxu0 %v5666
          %v6458 = vpop.f32.mrb[0].mxu0
          %v6459 = vadd.f32 %v6234, %v6458
          %v6460 = vpop.f32.mrb[0].mxu0
          %6461 = vmatprep.mubr.f32.mxu0 %v5782
          %6462 = vmatmul.mubr.f32.gmra.mrb[0].mxu0 %v5669
          %v6463 = vpop.f32.mrb[0].mxu0
          %v6464 = vadd.f32 %v6239, %v6463
          %v6465 = vpop.f32.mrb[0].mxu0
          %6466 = vmatprep.mubr.f32.mxu0 %v5784
          %6467 = vmatmul.mubr.f32.gmra.mrb[0].mxu0 %v5671
          %v6468 = vpop.f32.mrb[0].mxu0
          %v6469 = vadd.f32 %v6244, %v6468
          %v6470 = vpop.f32.mrb[0].mxu0
          %6471 = vmatprep.mubr.f32.mxu0 %v5787
          %6472 = vmatmul.mubr.f32.gmra.mrb[0].mxu0 %v5674
          %v6473 = vpop.f32.mrb[0].mxu0
          %v6474 = vadd.f32 %v6249, %v6473
          %v6475 = vpop.f32.mrb[0].mxu0
          %6476 = vmatprep.mubr.f32.mxu0 %v5789
          %6477 = vmatmul.mubr.f32.gmra.mrb[0].mxu0 %v5676
          %v6478 = vpop.f32.mrb[0].mxu0
          %v6479 = vadd.f32 %v6254, %v6478
          %v6480 = vpop.f32.mrb[0].mxu0
          %6481 = vmatprep.mubr.f32.mxu0 %v5792
          %6482 = vmatmul.mubr.f32.gmra.mrb[0].mxu0 %v5679
          %v6483 = vpop.f32.mrb[0].mxu0
          %v6484 = vadd.f32 %v6259, %v6483
          %v6485 = vpop.f32.mrb[0].mxu0
          %6486 = vmatprep.mubr.f32.mxu0 %v5794
          %6487 = vmatmul.mubr.f32.gmra.mrb[0].mxu0 %v5681
          %v6488 = vpop.f32.mrb[0].mxu0
          %v6489 = vadd.f32 %v6264, %v6488
          %v6490 = vpop.f32.mrb[0].mxu0
          %6491 = vmatprep.mubr.f32.mxu0 %v5797
          %6492 = vmatmul.mubr.f32.gmra.mrb[0].mxu0 %v5684
          %v6493 = vpop.f32.mrb[0].mxu0
          %v6494 = vadd.f32 %v6269, %v6493
          %v6495 = vpop.f32.mrb[0].mxu0
          %6496 = vmatprep.mubr.f32.mxu0 %v5799
          %6497 = vmatmul.mubr.f32.gmra.mrb[0].mxu0 %v5686
          %v6498 = vpop.f32.mrb[0].mxu0
          %v6499 = vadd.f32 %v6274, %v6498
          %v6500 = vpop.f32.mrb[0].mxu0
          %6501 = vmatprep.mubr.f32.mxu0 %v5802
          %6502 = vmatmul.mubr.f32.gmra.mrb[0].mxu0 %v5689
          %v6503 = vpop.f32.mrb[0].mxu0
          %v6504 = vadd.f32 %v6279, %v6503
          %v6505 = vpop.f32.mrb[0].mxu0
          %6506 = vmatprep.mubr.f32.mxu0 %v5804
          %6507 = vmatmul.mubr.f32.gmra.mrb[0].mxu0 %v5691
          %v6508 = vpop.f32.mrb[0].mxu0
          %v6509 = vadd.f32 %v6284, %v6508
          %v6510 = vpop.f32.mrb[0].mxu0
          %6511 = vmatprep.mubr.f32.mxu0 %v5807
          %6512 = vmatmul.mubr.f32.gmra.mrb[0].mxu0 %v5694
          %v6513 = vpop.f32.mrb[0].mxu0
          %v6514 = vadd.f32 %v6289, %v6513
          %v6515 = vpop.f32.mrb[0].mxu0
          %6516 = vmatprep.mubr.f32.mxu0 %v5809
          %6517 = vmatmul.mubr.f32.gmra.mrb[0].mxu0 %v5696
          %v6518 = vpop.f32.mrb[0].mxu0
          %v6519 = vadd.f32 %v6294, %v6518
          %v6520 = vpop.f32.mrb[0].mxu0
          %6521 = vmatprep.mubr.f32.mxu0 %v5812
          %6522 = vmatmul.mubr.f32.gmra.mrb[0].mxu0 %v5699
          %v6523 = vpop.f32.mrb[0].mxu0
          %v6524 = vadd.f32 %v6299, %v6523
          %v6525 = vpop.f32.mrb[0].mxu0
          %6526 = vmatprep.mubr.f32.mxu0 %v5814
          %6527 = vmatmul.mubr.f32.gmra.mrb[0].mxu0 %v5701
          %v6528 = vpop.f32.mrb[0].mxu0
          %v6529 = vadd.f32 %v6304, %v6528
          %v6530 = vpop.f32.mrb[0].mxu0
          %6531 = vmatprep.mubr.f32.mxu0 %v5817
          %6532 = vmatmul.mubr.f32.gmra.mrb[0].mxu0 %v5704
          %v6533 = vpop.f32.mrb[0].mxu0
          %v6534 = vadd.f32 %v6309, %v6533
          %v6535 = vpop.f32.mrb[0].mxu0
          %6536 = vmatprep.mubr.f32.mxu0 %v5819
          %6537 = vmatmul.mubr.f32.gmra.mrb[0].mxu0 %v5706
          %v6538 = vpop.f32.mrb[0].mxu0
          %v6539 = vadd.f32 %v6314, %v6538
          %v6540 = vpop.f32.mrb[0].mxu0
          %6541 = vmatprep.mubr.f32.mxu0 %v5822
          %6542 = vmatmul.mubr.f32.gmra.mrb[0].mxu0 %v5709
          %v6543 = vpop.f32.mrb[0].mxu0
          %v6544 = vadd.f32 %v6319, %v6543
          %v6545 = vpop.f32.mrb[0].mxu0
          %6546 = vmatprep.mubr.f32.mxu0 %v5824
          %6547 = vmatmul.mubr.f32.gmra.mrb[0].mxu0 %v5711
          %v6548 = vpop.f32.mrb[0].mxu0
          %v6549 = vadd.f32 %v6324, %v6548
          %v6550 = vpop.f32.mrb[0].mxu0
          %6551 = vmatprep.mubr.f32.mxu0 %v5827
          %6552 = vmatmul.mubr.f32.gmra.mrb[0].mxu0 %v5714
          %v6553 = vpop.f32.mrb[0].mxu0
          %v6554 = vadd.f32 %v6329, %v6553
          %v6555 = vpop.f32.mrb[0].mxu0
          %6556 = vmatprep.mubr.f32.mxu0 %v5829
          %6557 = vmatmul.mubr.f32.gmra.mrb[0].mxu0 %v5716
          %v6558 = vpop.f32.mrb[0].mxu0
          %v6559 = vadd.f32 %v6334, %v6558
          %v6560 = vpop.f32.mrb[0].mxu0
          %6561 = vmatprep.mubr.f32.mxu0 %v5832
          %6562 = vmatmul.mubr.f32.gmra.mrb[0].mxu0 %v5719
          %v6563 = vpop.f32.mrb[0].mxu0
          %v6564 = vadd.f32 %v6339, %v6563
          %v6565 = vpop.f32.mrb[0].mxu0
          %6566 = vmatprep.mubr.f32.mxu0 %v5834
          %6567 = vmatmul.mubr.f32.gmra.mrb[0].mxu0 %v5721
          %v6568 = vpop.f32.mrb[0].mxu0
          %v6569 = vadd.f32 %v6344, %v6568
          %v6570 = vpop.f32.mrb[0].mxu0
          %6571 = vmatprep.mubr.f32.mxu0 %v5879
          %6572 = vmatmul.mubr.f32.gmra.mrb[0].mxu0 %v5872
          %v6573 = vpop.f32.mrb[0].mxu0
          %v6574 = vadd.f32 %v6349, %v6573
          %v6575 = vpop.f32.mrb[0].mxu0
          %6576 = vmatprep.mubr.f32.mxu0 %v5881
          %6577 = vmatmul.mubr.f32.gmra.mrb[0].mxu0 %v5874
          %v6578 = vpop.f32.mrb[0].mxu0
          %v6579 = vadd.f32 %v6354, %v6578
          %v6580 = vpop.f32.mrb[0].mxu0
          %6581 = vdwg.mxu0
          %6582 = vmatprep.subr.mxu0 0.0
          %6583 = vmatpush1.msra.mxu0 %v5481
          %6584 = vmatprep.subr.mxu0 0.0
          %6585 = vmatpush1.msra.mxu0 %v5482
          %6586 = vmatprep.subr.mxu0 0.0
          %6587 = vmatpush1.msra.mxu0 %v5483
          %6588 = vmatprep.subr.mxu0 0.0
          %6589 = vmatpush1.msra.mxu0 %v5484
          %6590 = vmatprep.subr.mxu0 0.0
          %6591 = vmatpush1.msra.mxu0 %v5485
          %6592 = vmatprep.subr.mxu0 0.0
          %6593 = vmatpush1.msra.mxu0 %v5486
          %6594 = vmatprep.subr.mxu0 0.0
          %6595 = vmatpush1.msra.mxu0 %v5487
          %6596 = vmatprep.subr.mxu0 0.0
          %6597 = vmatpush1.msra.mxu0 %v5488
          %6598 = vmatprep.subr.mxu0 0.0
          %6599 = vmatpush1.msra.mxu0 %v5489
          %6600 = vmatprep.subr.mxu0 0.0
          %6601 = vmatpush1.msra.mxu0 %v5490
          %6602 = vmatprep.subr.mxu0 0.0
          %6603 = vmatpush1.msra.mxu0 %v5491
          %6604 = vmatprep.subr.mxu0 0.0
          %6605 = vmatpush1.msra.mxu0 %v5492
          %6606 = vmatprep.subr.mxu0 0.0
          %6607 = vmatpush1.msra.mxu0 %v5493
          %6608 = vmatprep.subr.mxu0 0.0
          %6609 = vmatpush1.msra.mxu0 %v5494
          %6610 = vmatprep.subr.mxu0 0.0
          %6611 = vmatpush1.msra.mxu0 %v5495
          %6612 = vmatprep.subr.mxu0 0.0
          %6613 = vmatpush1.msra.mxu0 %v5496
          %6614 = vmatprep.subr.mxu0 0.0
          %6615 = vmatpush1.msra.mxu0 %v5497
          %6616 = vmatprep.subr.mxu0 0.0
          %6617 = vmatpush1.msra.mxu0 %v5498
          %6618 = vmatprep.subr.mxu0 0.0
          %6619 = vmatpush1.msra.mxu0 %v5499
          %6620 = vmatprep.subr.mxu0 0.0
          %6621 = vmatpush1.msra.mxu0 %v5500
          %6622 = vmatprep.subr.mxu0 0.0
          %6623 = vmatpush1.msra.mxu0 %v5501
          %6624 = vmatprep.subr.mxu0 0.0
          %6625 = vmatpush1.msra.mxu0 %v5502
          %6626 = vmatprep.subr.mxu0 0.0
          %6627 = vmatpush1.msra.mxu0 %v5503
          %6628 = vmatprep.subr.mxu0 0.0
          %6629 = vmatpush1.msra.mxu0 %v5504
          %6630 = vmatprep.subr.mxu0 0.0
          %6631 = vmatpush1.msra.mxu0 %v5505
          %6632 = vmatprep.subr.mxu0 0.0
          %6633 = vmatpush1.msra.mxu0 %v5506
          %6634 = vmatprep.subr.mxu0 0.0
          %6635 = vmatpush1.msra.mxu0 %v5507
          %6636 = vmatprep.subr.mxu0 0.0
          %6637 = vmatpush1.msra.mxu0 %v5508
          %6638 = vmatprep.subr.mxu0 0.0
          %6639 = vmatpush1.msra.mxu0 %v5509
          %6640 = vmatprep.subr.mxu0 0.0
          %6641 = vmatpush1.msra.mxu0 %v5510
          %6642 = vmatprep.subr.mxu0 0.0
          %6643 = vmatpush1.msra.mxu0 %v5511
          %6644 = vmatprep.subr.mxu0 0.0
          %6645 = vmatpush1.msra.mxu0 %v5512
          %6646 = vmatprep.mubr.f32.mxu0 %v5654
          %6647 = vmatmul.mubr.f32.gmra.mrb[0].mxu0 %v5545
          %v6648 = vpop.f32.mrb[0].mxu0
          %v6649 = vadd.f32 %v6424, %v6648
          %v6650 = vpop.f32.mrb[0].mxu0
          %6651 = vmatprep.mubr.f32.mxu0 %v5656
          %6652 = vmatmul.mubr.f32.gmra.mrb[0].mxu0 %v5546
          %v6653 = vpop.f32.mrb[0].mxu0
          %v6654 = vadd.f32 %v6429, %v6653
          %v6655 = vpop.f32.mrb[0].mxu0
          %6656 = vmatprep.mubr.f32.mxu0 %v5659
          %6657 = vmatmul.mubr.f32.gmra.mrb[0].mxu0 %v5548
          %v6658 = vpop.f32.mrb[0].mxu0
          %v6659 = vadd.f32 %v6434, %v6658
          %v6660 = vpop.f32.mrb[0].mxu0
          %6661 = vmatprep.mubr.f32.mxu0 %v5661
          %6662 = vmatmul.mubr.f32.gmra.mrb[0].mxu0 %v5549
          %v6663 = vpop.f32.mrb[0].mxu0
          %v6664 = vadd.f32 %v6439, %v6663
          %v6665 = vpop.f32.mrb[0].mxu0
          %6666 = vmatprep.mubr.f32.mxu0 %v5664
          %6667 = vmatmul.mubr.f32.gmra.mrb[0].mxu0 %v5551
          %v6668 = vpop.f32.mrb[0].mxu0
          %v6669 = vadd.f32 %v6444, %v6668
          %v6670 = vpop.f32.mrb[0].mxu0
          %6671 = vmatprep.mubr.f32.mxu0 %v5666
          %6672 = vmatmul.mubr.f32.gmra.mrb[0].mxu0 %v5552
          %v6673 = vpop.f32.mrb[0].mxu0
          %v6674 = vadd.f32 %v6449, %v6673
          %v6675 = vpop.f32.mrb[0].mxu0
          %6676 = vmatprep.mubr.f32.mxu0 %v5669
          %6677 = vmatmul.mubr.f32.gmra.mrb[0].mxu0 %v5554
          %v6678 = vpop.f32.mrb[0].mxu0
          %v6679 = vadd.f32 %v6454, %v6678
          %v6680 = vpop.f32.mrb[0].mxu0
          %6681 = vmatprep.mubr.f32.mxu0 %v5671
          %6682 = vmatmul.mubr.f32.gmra.mrb[0].mxu0 %v5555
          %v6683 = vpop.f32.mrb[0].mxu0
          %v6684 = vadd.f32 %v6459, %v6683
          %v6685 = vpop.f32.mrb[0].mxu0
          %6686 = vmatprep.mubr.f32.mxu0 %v5674
          %6687 = vmatmul.mubr.f32.gmra.mrb[0].mxu0 %v5557
          %v6688 = vpop.f32.mrb[0].mxu0
          %v6689 = vadd.f32 %v6464, %v6688
          %v6690 = vpop.f32.mrb[0].mxu0
          %6691 = vmatprep.mubr.f32.mxu0 %v5676
          %6692 = vmatmul.mubr.f32.gmra.mrb[0].mxu0 %v5558
          %v6693 = vpop.f32.mrb[0].mxu0
          %v6694 = vadd.f32 %v6469, %v6693
          %v6695 = vpop.f32.mrb[0].mxu0
          %6696 = vmatprep.mubr.f32.mxu0 %v5679
          %6697 = vmatmul.mubr.f32.gmra.mrb[0].mxu0 %v5560
          %v6698 = vpop.f32.mrb[0].mxu0
          %v6699 = vadd.f32 %v6474, %v6698
          %v6700 = vpop.f32.mrb[0].mxu0
          %6701 = vmatprep.mubr.f32.mxu0 %v5681
          %6702 = vmatmul.mubr.f32.gmra.mrb[0].mxu0 %v5561
          %v6703 = vpop.f32.mrb[0].mxu0
          %v6704 = vadd.f32 %v6479, %v6703
          %v6705 = vpop.f32.mrb[0].mxu0
          %6706 = vmatprep.mubr.f32.mxu0 %v5684
          %6707 = vmatmul.mubr.f32.gmra.mrb[0].mxu0 %v5563
          %v6708 = vpop.f32.mrb[0].mxu0
          %v6709 = vadd.f32 %v6484, %v6708
          %v6710 = vpop.f32.mrb[0].mxu0
          %6711 = vmatprep.mubr.f32.mxu0 %v5686
          %6712 = vmatmul.mubr.f32.gmra.mrb[0].mxu0 %v5564
          %v6713 = vpop.f32.mrb[0].mxu0
          %v6714 = vadd.f32 %v6489, %v6713
          %v6715 = vpop.f32.mrb[0].mxu0
          %6716 = vmatprep.mubr.f32.mxu0 %v5689
          %6717 = vmatmul.mubr.f32.gmra.mrb[0].mxu0 %v5566
          %v6718 = vpop.f32.mrb[0].mxu0
          %v6719 = vadd.f32 %v6494, %v6718
          %v6720 = vpop.f32.mrb[0].mxu0
          %6721 = vmatprep.mubr.f32.mxu0 %v5691
          %6722 = vmatmul.mubr.f32.gmra.mrb[0].mxu0 %v5567
          %v6723 = vpop.f32.mrb[0].mxu0
          %v6724 = vadd.f32 %v6499, %v6723
          %v6725 = vpop.f32.mrb[0].mxu0
          %6726 = vmatprep.mubr.f32.mxu0 %v5694
          %6727 = vmatmul.mubr.f32.gmra.mrb[0].mxu0 %v5569
          %v6728 = vpop.f32.mrb[0].mxu0
          %v6729 = vadd.f32 %v6504, %v6728
          %v6730 = vpop.f32.mrb[0].mxu0
          %6731 = vmatprep.mubr.f32.mxu0 %v5696
          %6732 = vmatmul.mubr.f32.gmra.mrb[0].mxu0 %v5570
          %v6733 = vpop.f32.mrb[0].mxu0
          %v6734 = vadd.f32 %v6509, %v6733
          %v6735 = vpop.f32.mrb[0].mxu0
          %6736 = vmatprep.mubr.f32.mxu0 %v5699
          %6737 = vmatmul.mubr.f32.gmra.mrb[0].mxu0 %v5572
          %v6738 = vpop.f32.mrb[0].mxu0
          %v6739 = vadd.f32 %v6514, %v6738
          %v6740 = vpop.f32.mrb[0].mxu0
          %6741 = vmatprep.mubr.f32.mxu0 %v5701
          %6742 = vmatmul.mubr.f32.gmra.mrb[0].mxu0 %v5573
          %v6743 = vpop.f32.mrb[0].mxu0
          %v6744 = vadd.f32 %v6519, %v6743
          %v6745 = vpop.f32.mrb[0].mxu0
          %6746 = vmatprep.mubr.f32.mxu0 %v5704
          %6747 = vmatmul.mubr.f32.gmra.mrb[0].mxu0 %v5575
          %v6748 = vpop.f32.mrb[0].mxu0
          %v6749 = vadd.f32 %v6524, %v6748
          %v6750 = vpop.f32.mrb[0].mxu0
          %6751 = vmatprep.mubr.f32.mxu0 %v5706
          %6752 = vmatmul.mubr.f32.gmra.mrb[0].mxu0 %v5576
          %v6753 = vpop.f32.mrb[0].mxu0
          %v6754 = vadd.f32 %v6529, %v6753
          %v6755 = vpop.f32.mrb[0].mxu0
          %6756 = vmatprep.mubr.f32.mxu0 %v5709
          %6757 = vmatmul.mubr.f32.gmra.mrb[0].mxu0 %v5578
          %v6758 = vpop.f32.mrb[0].mxu0
          %v6759 = vadd.f32 %v6534, %v6758
          %v6760 = vpop.f32.mrb[0].mxu0
          %6761 = vmatprep.mubr.f32.mxu0 %v5711
          %6762 = vmatmul.mubr.f32.gmra.mrb[0].mxu0 %v5579
          %v6763 = vpop.f32.mrb[0].mxu0
          %v6764 = vadd.f32 %v6539, %v6763
          %v6765 = vpop.f32.mrb[0].mxu0
          %6766 = vmatprep.mubr.f32.mxu0 %v5714
          %6767 = vmatmul.mubr.f32.gmra.mrb[0].mxu0 %v5581
          %v6768 = vpop.f32.mrb[0].mxu0
          %v6769 = vadd.f32 %v6544, %v6768
          %v6770 = vpop.f32.mrb[0].mxu0
          %6771 = vmatprep.mubr.f32.mxu0 %v5716
          %6772 = vmatmul.mubr.f32.gmra.mrb[0].mxu0 %v5582
          %v6773 = vpop.f32.mrb[0].mxu0
          %v6774 = vadd.f32 %v6549, %v6773
          %v6775 = vpop.f32.mrb[0].mxu0
          %6776 = vmatprep.mubr.f32.mxu0 %v5719
          %6777 = vmatmul.mubr.f32.gmra.mrb[0].mxu0 %v5584
          %v6778 = vpop.f32.mrb[0].mxu0
          %v6779 = vadd.f32 %v6554, %v6778
          %v6780 = vpop.f32.mrb[0].mxu0
          %6781 = vmatprep.mubr.f32.mxu0 %v5721
          %6782 = vmatmul.mubr.f32.gmra.mrb[0].mxu0 %v5585
          %v6783 = vpop.f32.mrb[0].mxu0
          %v6784 = vadd.f32 %v6559, %v6783
          %v6785 = vpop.f32.mrb[0].mxu0
          %6786 = vmatprep.mubr.f32.mxu0 %v5872
          %6787 = vmatmul.mubr.f32.gmra.mrb[0].mxu0 %v5587
          %v6788 = vpop.f32.mrb[0].mxu0
          %v6789 = vadd.f32 %v6564, %v6788
          %v6790 = vpop.f32.mrb[0].mxu0
          %6791 = vmatprep.mubr.f32.mxu0 %v5874
          %6792 = vmatmul.mubr.f32.gmra.mrb[0].mxu0 %v5588
          %v6793 = vpop.f32.mrb[0].mxu0
          %v6794 = vadd.f32 %v6569, %v6793
          %v6795 = vpop.f32.mrb[0].mxu0
          %6796 = vmatprep.mubr.f32.mxu0 %v5889
          %6797 = vmatmul.mubr.f32.gmra.mrb[0].mxu0 %v5590
          %v6798 = vpop.f32.mrb[0].mxu0
          %v6799 = vadd.f32 %v6574, %v6798
          %v6800 = vpop.f32.mrb[0].mxu0
          %6801 = vmatprep.mubr.f32.mxu0 %v5891
          %6802 = vmatmul.mubr.f32.gmra.mrb[0].mxu0 %v5591
          %v6803 = vpop.f32.mrb[0].mxu0
          %v6804 = vadd.f32 %v6579, %v6803
          %v6805 = vpop.f32.mrb[0].mxu0
          %6806 = vdwg.mxu0
          %6807 = vmatprep.subr.mxu0 0.0
          %6808 = vmatpush1.msra.mxu0 %v5513
          %6809 = vmatprep.subr.mxu0 0.0
          %6810 = vmatpush1.msra.mxu0 %v5514
          %6811 = vmatprep.subr.mxu0 0.0
          %6812 = vmatpush1.msra.mxu0 %v5515
          %6813 = vmatprep.subr.mxu0 0.0
          %6814 = vmatpush1.msra.mxu0 %v5516
          %6815 = vmatprep.subr.mxu0 0.0
          %6816 = vmatpush1.msra.mxu0 %v5517
          %6817 = vmatprep.subr.mxu0 0.0
          %6818 = vmatpush1.msra.mxu0 %v5518
          %6819 = vmatprep.subr.mxu0 0.0
          %6820 = vmatpush1.msra.mxu0 %v5519
          %6821 = vmatprep.subr.mxu0 0.0
          %6822 = vmatpush1.msra.mxu0 %v5520
          %6823 = vmatprep.subr.mxu0 0.0
          %6824 = vmatpush1.msra.mxu0 %v5521
          %6825 = vmatprep.subr.mxu0 0.0
          %6826 = vmatpush1.msra.mxu0 %v5522
          %6827 = vmatprep.subr.mxu0 0.0
          %6828 = vmatpush1.msra.mxu0 %v5523
          %6829 = vmatprep.subr.mxu0 0.0
          %6830 = vmatpush1.msra.mxu0 %v5524
          %6831 = vmatprep.subr.mxu0 0.0
          %6832 = vmatpush1.msra.mxu0 %v5525
          %6833 = vmatprep.subr.mxu0 0.0
          %6834 = vmatpush1.msra.mxu0 %v5526
          %6835 = vmatprep.subr.mxu0 0.0
          %6836 = vmatpush1.msra.mxu0 %v5527
          %6837 = vmatprep.subr.mxu0 0.0
          %6838 = vmatpush1.msra.mxu0 %v5528
          %6839 = vmatprep.subr.mxu0 0.0
          %6840 = vmatpush1.msra.mxu0 0.0
          %6841 = vmatprep.subr.mxu0 0.0
          %6842 = vmatpush1.msra.mxu0 0.0
          %6843 = vmatprep.subr.mxu0 0.0
          %6844 = vmatpush1.msra.mxu0 0.0
          %6845 = vmatprep.subr.mxu0 0.0
          %6846 = vmatpush1.msra.mxu0 0.0
          %6847 = vmatprep.subr.mxu0 0.0
          %6848 = vmatpush1.msra.mxu0 0.0
          %6849 = vmatprep.subr.mxu0 0.0
          %6850 = vmatpush1.msra.mxu0 0.0
          %6851 = vmatprep.subr.mxu0 0.0
          %6852 = vmatpush1.msra.mxu0 0.0
          %6853 = vmatprep.subr.mxu0 0.0
          %6854 = vmatpush1.msra.mxu0 0.0
          %6855 = vmatprep.subr.mxu0 0.0
          %6856 = vmatpush1.msra.mxu0 0.0
          %6857 = vmatprep.subr.mxu0 0.0
          %6858 = vmatpush1.msra.mxu0 0.0
          %6859 = vmatprep.subr.mxu0 0.0
          %6860 = vmatpush1.msra.mxu0 0.0
          %6861 = vmatprep.subr.mxu0 0.0
          %6862 = vmatpush1.msra.mxu0 0.0
          %6863 = vmatprep.subr.mxu0 0.0
          %6864 = vmatpush1.msra.mxu0 0.0
          %6865 = vmatprep.subr.mxu0 0.0
          %6866 = vmatpush1.msra.mxu0 0.0
          %6867 = vmatprep.subr.mxu0 0.0
          %6868 = vmatpush1.msra.mxu0 0.0
          %6869 = vmatprep.subr.mxu0 0.0
          %6870 = vmatpush1.msra.mxu0 0.0
          %6871 = vmatprep.mubr.f32.mxu0 0.0
          %6872 = vmatmul.mubr.f32.gmra.mrb[0].mxu0 %v5767
          %v6873 = vpop.f32.mrb[0].mxu0
          %v6874 = vadd.f32 %v6649, %v6873
          %v6875 = vpop.f32.mrb[0].mxu0
          %6876 = vmatprep.mubr.f32.mxu0 0.0
          %6877 = vmatmul.mubr.f32.gmra.mrb[0].mxu0 %v5769
          %v6878 = vpop.f32.mrb[0].mxu0
          %v6879 = vadd.f32 %v6654, %v6878
          %v6880 = vpop.f32.mrb[0].mxu0
          %6881 = vmatprep.mubr.f32.mxu0 0.0
          %6882 = vmatmul.mubr.f32.gmra.mrb[0].mxu0 %v5772
          %v6883 = vpop.f32.mrb[0].mxu0
          %v6884 = vadd.f32 %v6659, %v6883
          %v6885 = vpop.f32.mrb[0].mxu0
          %6886 = vmatprep.mubr.f32.mxu0 0.0
          %6887 = vmatmul.mubr.f32.gmra.mrb[0].mxu0 %v5774
          %v6888 = vpop.f32.mrb[0].mxu0
          %v6889 = vadd.f32 %v6664, %v6888
          %v6890 = vpop.f32.mrb[0].mxu0
          %6891 = vmatprep.mubr.f32.mxu0 0.0
          %6892 = vmatmul.mubr.f32.gmra.mrb[0].mxu0 %v5777
          %v6893 = vpop.f32.mrb[0].mxu0
          %v6894 = vadd.f32 %v6669, %v6893
          %v6895 = vpop.f32.mrb[0].mxu0
          %6896 = vmatprep.mubr.f32.mxu0 0.0
          %6897 = vmatmul.mubr.f32.gmra.mrb[0].mxu0 %v5779
          %v6898 = vpop.f32.mrb[0].mxu0
          %v6899 = vadd.f32 %v6674, %v6898
          %v6900 = vpop.f32.mrb[0].mxu0
          %6901 = vmatprep.mubr.f32.mxu0 0.0
          %6902 = vmatmul.mubr.f32.gmra.mrb[0].mxu0 %v5782
          %v6903 = vpop.f32.mrb[0].mxu0
          %v6904 = vadd.f32 %v6679, %v6903
          %v6905 = vpop.f32.mrb[0].mxu0
          %6906 = vmatprep.mubr.f32.mxu0 0.0
          %6907 = vmatmul.mubr.f32.gmra.mrb[0].mxu0 %v5784
          %v6908 = vpop.f32.mrb[0].mxu0
          %v6909 = vadd.f32 %v6684, %v6908
          %v6910 = vpop.f32.mrb[0].mxu0
          %6911 = vmatprep.mubr.f32.mxu0 0.0
          %6912 = vmatmul.mubr.f32.gmra.mrb[0].mxu0 %v5787
          %v6913 = vpop.f32.mrb[0].mxu0
          %v6914 = vadd.f32 %v6689, %v6913
          %v6915 = vpop.f32.mrb[0].mxu0
          %6916 = vmatprep.mubr.f32.mxu0 0.0
          %6917 = vmatmul.mubr.f32.gmra.mrb[0].mxu0 %v5789
          %v6918 = vpop.f32.mrb[0].mxu0
          %v6919 = vadd.f32 %v6694, %v6918
          %v6920 = vpop.f32.mrb[0].mxu0
          %6921 = vmatprep.mubr.f32.mxu0 0.0
          %6922 = vmatmul.mubr.f32.gmra.mrb[0].mxu0 %v5792
          %v6923 = vpop.f32.mrb[0].mxu0
          %v6924 = vadd.f32 %v6699, %v6923
          %v6925 = vpop.f32.mrb[0].mxu0
          %6926 = vmatprep.mubr.f32.mxu0 0.0
          %6927 = vmatmul.mubr.f32.gmra.mrb[0].mxu0 %v5794
          %v6928 = vpop.f32.mrb[0].mxu0
          %v6929 = vadd.f32 %v6704, %v6928
          %v6930 = vpop.f32.mrb[0].mxu0
          %6931 = vmatprep.mubr.f32.mxu0 0.0
          %6932 = vmatmul.mubr.f32.gmra.mrb[0].mxu0 %v5797
          %v6933 = vpop.f32.mrb[0].mxu0
          %v6934 = vadd.f32 %v6709, %v6933
          %v6935 = vpop.f32.mrb[0].mxu0
          %6936 = vmatprep.mubr.f32.mxu0 0.0
          %6937 = vmatmul.mubr.f32.gmra.mrb[0].mxu0 %v5799
          %v6938 = vpop.f32.mrb[0].mxu0
          %v6939 = vadd.f32 %v6714, %v6938
          %v6940 = vpop.f32.mrb[0].mxu0
          %6941 = vmatprep.mubr.f32.mxu0 0.0
          %6942 = vmatmul.mubr.f32.gmra.mrb[0].mxu0 %v5802
          %v6943 = vpop.f32.mrb[0].mxu0
          %v6944 = vadd.f32 %v6719, %v6943
          %v6945 = vpop.f32.mrb[0].mxu0
          %6946 = vmatprep.mubr.f32.mxu0 0.0
          %6947 = vmatmul.mubr.f32.gmra.mrb[0].mxu0 %v5804
          %v6948 = vpop.f32.mrb[0].mxu0
          %v6949 = vadd.f32 %v6724, %v6948
          %v6950 = vpop.f32.mrb[0].mxu0
          %6951 = vmatprep.mubr.f32.mxu0 0.0
          %6952 = vmatmul.mubr.f32.gmra.mrb[0].mxu0 %v5807
          %v6953 = vpop.f32.mrb[0].mxu0
          %v6954 = vadd.f32 %v6729, %v6953
          %v6955 = vpop.f32.mrb[0].mxu0
          %6956 = vmatprep.mubr.f32.mxu0 0.0
          %6957 = vmatmul.mubr.f32.gmra.mrb[0].mxu0 %v5809
          %v6958 = vpop.f32.mrb[0].mxu0
          %v6959 = vadd.f32 %v6734, %v6958
          %v6960 = vpop.f32.mrb[0].mxu0
          %6961 = vmatprep.mubr.f32.mxu0 0.0
          %6962 = vmatmul.mubr.f32.gmra.mrb[0].mxu0 %v5812
          %v6963 = vpop.f32.mrb[0].mxu0
          %v6964 = vadd.f32 %v6739, %v6963
          %v6965 = vpop.f32.mrb[0].mxu0
          %6966 = vmatprep.mubr.f32.mxu0 0.0
          %6967 = vmatmul.mubr.f32.gmra.mrb[0].mxu0 %v5814
          %v6968 = vpop.f32.mrb[0].mxu0
          %v6969 = vadd.f32 %v6744, %v6968
          %v6970 = vpop.f32.mrb[0].mxu0
          %6971 = vmatprep.mubr.f32.mxu0 0.0
          %6972 = vmatmul.mubr.f32.gmra.mrb[0].mxu0 %v5817
          %v6973 = vpop.f32.mrb[0].mxu0
          %v6974 = vadd.f32 %v6749, %v6973
          %v6975 = vpop.f32.mrb[0].mxu0
          %6976 = vmatprep.mubr.f32.mxu0 0.0
          %6977 = vmatmul.mubr.f32.gmra.mrb[0].mxu0 %v5819
          %v6978 = vpop.f32.mrb[0].mxu0
          %v6979 = vadd.f32 %v6754, %v6978
          %v6980 = vpop.f32.mrb[0].mxu0
          %6981 = vmatprep.mubr.f32.mxu0 0.0
          %6982 = vmatmul.mubr.f32.gmra.mrb[0].mxu0 %v5822
          %v6983 = vpop.f32.mrb[0].mxu0
          %v6984 = vadd.f32 %v6759, %v6983
          %v6985 = vpop.f32.mrb[0].mxu0
          %6986 = vmatprep.mubr.f32.mxu0 0.0
          %6987 = vmatmul.mubr.f32.gmra.mrb[0].mxu0 %v5824
          %v6988 = vpop.f32.mrb[0].mxu0
          %v6989 = vadd.f32 %v6764, %v6988
          %v6990 = vpop.f32.mrb[0].mxu0
          %6991 = vmatprep.mubr.f32.mxu0 0.0
          %6992 = vmatmul.mubr.f32.gmra.mrb[0].mxu0 %v5827
          %v6993 = vpop.f32.mrb[0].mxu0
          %v6994 = vadd.f32 %v6769, %v6993
          %v6995 = vpop.f32.mrb[0].mxu0
          %6996 = vmatprep.mubr.f32.mxu0 0.0
          %6997 = vmatmul.mubr.f32.gmra.mrb[0].mxu0 %v5829
          %v6998 = vpop.f32.mrb[0].mxu0
          %v6999 = vadd.f32 %v6774, %v6998
          %v7000 = vpop.f32.mrb[0].mxu0
          %7001 = vmatprep.mubr.f32.mxu0 0.0
          %7002 = vmatmul.mubr.f32.gmra.mrb[0].mxu0 %v5832
          %v7003 = vpop.f32.mrb[0].mxu0
          %v7004 = vadd.f32 %v6779, %v7003
          %v7005 = vpop.f32.mrb[0].mxu0
          %7006 = vmatprep.mubr.f32.mxu0 0.0
          %7007 = vmatmul.mubr.f32.gmra.mrb[0].mxu0 %v5834
          %v7008 = vpop.f32.mrb[0].mxu0
          %v7009 = vadd.f32 %v6784, %v7008
          %v7010 = vpop.f32.mrb[0].mxu0
          %7011 = vmatprep.mubr.f32.mxu0 0.0
          %7012 = vmatmul.mubr.f32.gmra.mrb[0].mxu0 %v5879
          %v7013 = vpop.f32.mrb[0].mxu0
          %v7014 = vadd.f32 %v6789, %v7013
          %v7015 = vpop.f32.mrb[0].mxu0
          %7016 = vmatprep.mubr.f32.mxu0 0.0
          %7017 = vmatmul.mubr.f32.gmra.mrb[0].mxu0 %v5881
          %v7018 = vpop.f32.mrb[0].mxu0
          %v7019 = vadd.f32 %v6794, %v7018
          %v7020 = vpop.f32.mrb[0].mxu0
          %7021 = vmatprep.mubr.f32.mxu0 0.0
          %7022 = vmatmul.mubr.f32.gmra.mrb[0].mxu0 %v5896
          %v7023 = vpop.f32.mrb[0].mxu0
          %v7024 = vadd.f32 %v6799, %v7023
          %v7025 = vpop.f32.mrb[0].mxu0
          %7026 = vmatprep.mubr.f32.mxu0 0.0
          %7027 = vmatmul.mubr.f32.gmra.mrb[0].mxu0 %v5898
          %v7028 = vpop.f32.mrb[0].mxu0
          %v7029 = vadd.f32 %v6804, %v7028
          %v7030 = vpop.f32.mrb[0].mxu0
          %7031 = vdwg.mxu0
          %s7032 = smul.u32 %s5536, 16
          %s7033 = scalar_lea.vmem %s601, %s7032 [#allocation5]
          %v7034 = vld [vmem:[%s7033] sm:$0xff]
          %v7035 = vld [vmem:[%s7033 + $0x8] sm:$0xff]
          %v7036 = vld [vmem:[%s7033 + $0x10] sm:$0xff]
          %v7037 = vld [vmem:[%s7033 + $0x18] sm:$0xff]
          %v7038 = vld [vmem:[%s7033 + $0x20] sm:$0xff]
          %v7039 = vld [vmem:[%s7033 + $0x28] sm:$0xff]
          %v7040 = vld [vmem:[%s7033 + $0x30] sm:$0xff]
          %v7041 = vld [vmem:[%s7033 + $0x38] sm:$0xff]
          %v7042 = vld [vmem:[%s7033 + $0x40] sm:$0xff]
          %v7043 = vld [vmem:[%s7033 + $0x48] sm:$0xff]
          %v7044 = vld [vmem:[%s7033 + $0x50] sm:$0xff]
          %v7045 = vld [vmem:[%s7033 + $0x58] sm:$0xff]
          %v7046 = vld [vmem:[%s7033 + $0x60] sm:$0xff]
          %v7047 = vld [vmem:[%s7033 + $0x68] sm:$0xff]
          %v7048 = vld [vmem:[%s7033 + $0x70] sm:$0xff]
          %v7049 = vld [vmem:[%s7033 + $0x78] sm:$0xff]
          %v7050 = vld [vmem:[%s7033 + $0x80] sm:$0xff]
          %v7051 = vld [vmem:[%s7033 + $0x88] sm:$0xff]
          %v7052 = vld [vmem:[%s7033 + $0x90] sm:$0xff]
          %v7053 = vld [vmem:[%s7033 + $0x98] sm:$0xff]
          %v7054 = vld [vmem:[%s7033 + $0xa0] sm:$0xff]
          %v7055 = vld [vmem:[%s7033 + $0xa8] sm:$0xff]
          %v7056 = vld [vmem:[%s7033 + $0xb0] sm:$0xff]
          %v7057 = vld [vmem:[%s7033 + $0xb8] sm:$0xff]
          %v7058 = vld [vmem:[%s7033 + $0xc0] sm:$0xff]
          %v7059 = vld [vmem:[%s7033 + $0xc8] sm:$0xff]
          %v7060 = vld [vmem:[%s7033 + $0xd0] sm:$0xff]
          %v7061 = vld [vmem:[%s7033 + $0xd8] sm:$0xff]
          %v7062 = vld [vmem:[%s7033 + $0xe0] sm:$0xff]
          %v7063 = vld [vmem:[%s7033 + $0xe8] sm:$0xff]
          %v7064 = vld [vmem:[%s7033 + $0xf0] sm:$0xff]
          %v7065 = vld [vmem:[%s7033 + $0xf8] sm:$0xff]
          %v7066 = vadd.f32 %v6874, %v7034
          %v7067 = vadd.f32 %v6879, %v7035
          %v7068 = vadd.f32 %v6884, %v7036
          %v7069 = vadd.f32 %v6889, %v7037
          %v7070 = vadd.f32 %v6894, %v7038
          %v7071 = vadd.f32 %v6899, %v7039
          %v7072 = vadd.f32 %v6904, %v7040
          %v7073 = vadd.f32 %v6909, %v7041
          %v7074 = vadd.f32 %v6914, %v7042
          %v7075 = vadd.f32 %v6919, %v7043
          %v7076 = vadd.f32 %v6924, %v7044
          %v7077 = vadd.f32 %v6929, %v7045
          %v7078 = vadd.f32 %v6934, %v7046
          %v7079 = vadd.f32 %v6939, %v7047
          %v7080 = vadd.f32 %v6944, %v7048
          %v7081 = vadd.f32 %v6949, %v7049
          %v7082 = vadd.f32 %v6954, %v7050
          %v7083 = vadd.f32 %v6959, %v7051
          %v7084 = vadd.f32 %v6964, %v7052
          %v7085 = vadd.f32 %v6969, %v7053
          %v7086 = vadd.f32 %v6974, %v7054
          %v7087 = vadd.f32 %v6979, %v7055
          %v7088 = vadd.f32 %v6984, %v7056
          %v7089 = vadd.f32 %v6989, %v7057
          %v7090 = vadd.f32 %v6994, %v7058
          %v7091 = vadd.f32 %v6999, %v7059
          %v7092 = vadd.f32 %v7004, %v7060
          %v7093 = vadd.f32 %v7009, %v7061
          %v7094 = vadd.f32 %v7014, %v7062
          %v7095 = vadd.f32 %v7019, %v7063
          %v7096 = vadd.f32 %v7024, %v7064
          %v7097 = vadd.f32 %v7029, %v7065
          %s7098 = scalar_lea.vmem %s699, %s7032 [#allocation28]
          %7099 = vst [vmem:[%s7098] sm:$0xff] %v7066
          %7100 = vst [vmem:[%s7098 + $0x8] sm:$0xff] %v7067
          %7101 = vst [vmem:[%s7098 + $0x10] sm:$0xff] %v7068
          %7102 = vst [vmem:[%s7098 + $0x18] sm:$0xff] %v7069
          %7103 = vst [vmem:[%s7098 + $0x20] sm:$0xff] %v7070
          %7104 = vst [vmem:[%s7098 + $0x28] sm:$0xff] %v7071
          %7105 = vst [vmem:[%s7098 + $0x30] sm:$0xff] %v7072
          %7106 = vst [vmem:[%s7098 + $0x38] sm:$0xff] %v7073
          %7107 = vst [vmem:[%s7098 + $0x40] sm:$0xff] %v7074
          %7108 = vst [vmem:[%s7098 + $0x48] sm:$0xff] %v7075
          %7109 = vst [vmem:[%s7098 + $0x50] sm:$0xff] %v7076
          %7110 = vst [vmem:[%s7098 + $0x58] sm:$0xff] %v7077
          %7111 = vst [vmem:[%s7098 + $0x60] sm:$0xff] %v7078
          %7112 = vst [vmem:[%s7098 + $0x68] sm:$0xff] %v7079
          %7113 = vst [vmem:[%s7098 + $0x70] sm:$0xff] %v7080
          %7114 = vst [vmem:[%s7098 + $0x78] sm:$0xff] %v7081
          %7115 = vst [vmem:[%s7098 + $0x80] sm:$0xff] %v7082
          %7116 = vst [vmem:[%s7098 + $0x88] sm:$0xff] %v7083
          %7117 = vst [vmem:[%s7098 + $0x90] sm:$0xff] %v7084
          %7118 = vst [vmem:[%s7098 + $0x98] sm:$0xff] %v7085
          %7119 = vst [vmem:[%s7098 + $0xa0] sm:$0xff] %v7086
          %7120 = vst [vmem:[%s7098 + $0xa8] sm:$0xff] %v7087
          %7121 = vst [vmem:[%s7098 + $0xb0] sm:$0xff] %v7088
          %7122 = vst [vmem:[%s7098 + $0xb8] sm:$0xff] %v7089
          %7123 = vst [vmem:[%s7098 + $0xc0] sm:$0xff] %v7090
          %7124 = vst [vmem:[%s7098 + $0xc8] sm:$0xff] %v7091
          %7125 = vst [vmem:[%s7098 + $0xd0] sm:$0xff] %v7092
          %7126 = vst [vmem:[%s7098 + $0xd8] sm:$0xff] %v7093
          %7127 = vst [vmem:[%s7098 + $0xe0] sm:$0xff] %v7094
          %7128 = vst [vmem:[%s7098 + $0xe8] sm:$0xff] %v7095
          %7129 = vst [vmem:[%s7098 + $0xf0] sm:$0xff] %v7096
          %7130 = vst [vmem:[%s7098 + $0xf8] sm:$0xff] %v7097
        $region162: #{residual_group_forward.1} parent=79 // loop_footer
          %s5535 = sadd.s32 1, %s5531
        $region163: #{residual_group_forward.1} parent=79 // loop_footer_branch
          %5530 = sbr.rel target = $region159
        $region164: #{residual_group_forward.1} parent=79 // loop_exit
          _
        %s7131 = sand.u32 %s367, 1
        %s7132 = scalar_lea.sflag [#allocation7], %s7131
        %s7133 = sand.u32 %s367, 1
        %s7134 = smul.addr %s7133, 512
        %s7135 = scalar_lea.vmem [#allocation28], %s7134
        // Predicated region
        $region165: #{residual_group_forward.1} parent=79 // pred_check
          %p7136 = pneg %p377
        $region166: #{residual_group_forward.1} parent=79 // pred_check_branch
          %7138 = sbr.rel (%p7136) target = $region168
        $region167: #{residual_group_forward.1} parent=79 // pred_region
          %s7140 = ssub.s32 8192, 8192
          %7141 = vsyncadd %s7132, %s7140
          %s7142 = smul.addr %s39, 64
          %s7143 = smul.addr %s7142, 128
          %s7144 = scalar_lea.hbm %s15, %s7143
          %s7145 = sshll.u32 %s7135, 4
          %s7146 = int_to_ptr.vmem [resolvable:$true] %s7145
          %7151 = dma.vmem_to_hbm [thread:$0]  %s7146, 8192, %s7144, %s7132, 128, 128, 8
        $region168: #{residual_group_forward.1} parent=79 // pred_fallthru
          _
      $region80: #{residual_group_forward.1} parent=5 // pred_fallthru
        _
      %p7152 = scmp.le.s32.totalorder 2, %s34
      // Predicated region
      $region169: #{residual_group_forward.1} parent=5 // pred_check
        %p7153 = pneg %p7152
      $region170: #{residual_group_forward.1} parent=5 // pred_check_branch
        %7155 = sbr.rel (%p7153) target = $region172
      $region171: #{residual_group_forward.1} parent=5 // pred_region
        %s7156 = ssub.s32 %s34, 2
        // Predicated region
        $region173: #{residual_group_forward.1} parent=171 // pred_check
          %p7157 = pneg %p383
        $region174: #{residual_group_forward.1} parent=171 // pred_check_branch
          %7159 = sbr.rel (%p7157) target = $region176
        $region175: #{residual_group_forward.1} parent=171 // pred_region
          %s7160 = sand.u32 %s368, 1
          %s7161 = scalar_lea.sflag [#allocation7], %s7160
          %s7162 = sand.u32 %s368, 1
          %s7163 = smul.addr %s7162, 512
          %s7164 = scalar_lea.vmem [#allocation28], %s7163
          %7165 = dma.done %s7161, 8192
        $region176: #{residual_group_forward.1} parent=171 // pred_fallthru
          _
      $region172: #{residual_group_forward.1} parent=5 // pred_fallthru
        _
    $region6: #{residual_group_forward.1} parent=1 // loop_footer
      %s38 = sadd.s32 1, %s34
    $region7: #{residual_group_forward.1} parent=1 // loop_footer_branch
      %33 = sbr.rel target = $region3
    $region8: #{residual_group_forward.1} parent=1 // loop_exit
      _
    %7166 = vsyncpa [#allocation6], 1
    %s7167 = scalar_lea.sflag [#allocation6], 1
    %7168 = vsyncpa %s7167, 1
    %7169 = vsyncpa [#allocation9], 1
    %7170 = vsyncpa [#allocation12], 1
    %7171 = vsyncpa [#allocation15], 1
    %7172 = vsyncpa [#allocation18], 1
    %7173 = vsyncpa [#allocation21], 1
    %7174 = vsyncpa [#allocation24], 1
    %7175 = vsyncpa [#allocation27], 1
    %7176 = vsyncpa [#allocation7], 1
    %s7177 = scalar_lea.sflag [#allocation7], 1
    %7178 = vsyncpa %s7177, 1

</llo_original>
